<compile_context>
chip_gen: v5e
topology: v5e:2x2
jax: 0.10.0
libtpu: 0.0.40
codegen_flags: <defaults>
</compile_context>

<pallas_src>
import functools

import jax
import jax.numpy as jnp
from jax import lax
from jax.experimental import pallas as pl
from jax.experimental.pallas import tpu as pltpu

_BN_EPS = 1e-5

# Sub-pixel decomposition of ConvTranspose2d(k=4, s=2, p=1): output phase
# (ry, rx) is a stride-1 2x2 conv over the 1-padded input; conv tap (dy, dx)
# uses kernel element (kh, kw) = (_KH_SEL[ry][dy], _KH_SEL[rx][dx]).
_KH_SEL = ((3, 1), (2, 0))


def _round_up(x, m):
    return (x + m - 1) // m * m


def _largest_tile(dim, cap, step):
    """Largest multiple of `step` dividing `dim`, <= cap (dim itself if dim <= cap)."""
    if dim <= cap:
        return dim
    t = (cap // step) * step
    while dim % t:
        t -= step
    return t


# ----------------------------------------------------------------------------
# Pallas kernel: per-phase matmul with fused per-column affine (BN) + act.
# Full-K blocks (no K grid axis) -> single dot, single store, no scratch.
# ----------------------------------------------------------------------------
def _mm_bn_act_kernel(a_ref, b_ref, s_ref, c_ref, o_ref, *, act):
    y = jnp.dot(a_ref[...], b_ref[...], preferred_element_type=jnp.float32)
    y = y * s_ref[...] + c_ref[...]              # (tm,tn)*(1,tn)+(1,tn), f32
    if act == "relu":
        y = jnp.maximum(y, 0.0)
    elif act == "tanh":
        y = jnp.tanh(y)
    o_ref[...] = y.astype(o_ref.dtype)


def fused_matmul_bn_act(A, B, scale, bias, act, *, tm, tn, out_dtype):
    """out[p] = act((A[p] @ B[p]) * scale + bias) per phase p.

    A: (P, M, K) bf16, B: (P, K, N) bf16, scale/bias: (N,).
    tm | M, tn | N; K is consumed whole per block (no reduction grid axis).
    """
    P, M, K = A.shape
    _, _, N = B.shape
    assert M % tm == 0 and N % tn == 0
    s2 = scale.reshape(1, N).astype(jnp.float32)
    c2 = bias.reshape(1, N).astype(jnp.float32)

    return pl.pallas_call(
        functools.partial(_mm_bn_act_kernel, act=act),
        out_shape=jax.ShapeDtypeStruct((P, M, N), out_dtype),
        grid_spec=pltpu.PrefetchScalarGridSpec(
            num_scalar_prefetch=0,
            grid=(P, M // tm, N // tn),
            in_specs=[
                pl.BlockSpec((None, tm, K), lambda p, i, j: (p, i, 0)),
                pl.BlockSpec((None, K, tn), lambda p, i, j: (p, 0, j)),
                pl.BlockSpec((1, tn), lambda p, i, j: (0, j)),
                pl.BlockSpec((1, tn), lambda p, i, j: (0, j)),
            ],
            out_specs=pl.BlockSpec((None, tm, tn), lambda p, i, j: (p, i, j)),
        ),
        compiler_params=pltpu.CompilerParams(
            dimension_semantics=("parallel", "parallel", "parallel"),
        ),
    )(A, B, s2, c2)


# ----------------------------------------------------------------------------
# Parameter preparation (weights reshaped once; BN folded; bf16 cast).
# ----------------------------------------------------------------------------
def _prepare_first_layer(w, scale, bias, act):
    # ConvTranspose2d(latent, cout, 4, 1, 0) on a 1x1 input is a pure matmul:
    # out[n, oy, ox, co] = sum_ci x[n, ci] * w[ci, co, oy, ox]
    cin, cout, k, _ = w.shape
    B = jnp.transpose(w, (0, 2, 3, 1)).reshape(1, cin, k * k * cout)
    return dict(kind="dense", B=B.astype(jnp.bfloat16),
                scale=jnp.tile(scale, k * k), bias=jnp.tile(bias, k * k),
                act=act, cout=cout, k=k)


def _prepare_s2_layer(w, scale, bias, act):
    cin, cout, k, _ = w.shape
    assert k == 4
    blocks = []
    for ry in range(2):
        for rx in range(2):
            idx_h = jnp.array(_KH_SEL[ry])
            idx_w = jnp.array(_KH_SEL[rx])
            wsub = w[:, :, idx_h, :][:, :, :, idx_w]          # (cin, cout, dy, dx)
            blocks.append(jnp.transpose(wsub, (2, 3, 0, 1)).reshape(4 * cin, cout))
    B = jnp.stack(blocks, axis=0)                              # (4, 4*cin, cout)
    ncols = _round_up(cout, 128)                               # lane-dense stores
    if ncols != cout:
        B = jnp.pad(B, ((0, 0), (0, 0), (0, ncols - cout)))
        scale = jnp.pad(scale, (0, ncols - cout))
        bias = jnp.pad(bias, (0, ncols - cout))
    return dict(kind="s2", B=B.astype(jnp.bfloat16),
                scale=scale, bias=bias, act=act, cout=cout)


def init_generator_params(key, latent_dim):
    dims = [(latent_dim, 512), (512, 256), (256, 128), (128, 64), (64, 3)]
    layers = []
    for i, (cin, cout) in enumerate(dims):
        key, sub = jax.random.split(key)
        w = 0.02 * jax.random.normal(sub, (cin, cout, 4, 4), jnp.float32)
        # Round weights through bf16 once so the Pallas path and the f32
        # reference share numerically identical weights.
        w = w.astype(jnp.bfloat16).astype(jnp.float32)
        if i < 4:   # BatchNorm2d defaults (eval): gamma=1, beta=0, mean=0, var=1
            gamma = jnp.ones((cout,), jnp.float32)
            beta = jnp.zeros((cout,), jnp.float32)
            mean = jnp.zeros((cout,), jnp.float32)
            var = jnp.ones((cout,), jnp.float32)
            scale = gamma / jnp.sqrt(var + _BN_EPS)
            bias = beta - mean * scale
            act = "relu"
        else:       # final layer: no BN, Tanh
            scale = jnp.ones((cout,), jnp.float32)
            bias = jnp.zeros((cout,), jnp.float32)
            act = "tanh"
        layer = (_prepare_first_layer(w, scale, bias, act) if i == 0
                 else _prepare_s2_layer(w, scale, bias, act))
        # Keep raw params for the pure-JAX reference check.
        layer.update(w_ref=w, scale_ref=scale, bias_ref=bias,
                     stride=1 if i == 0 else 2, pad=0 if i == 0 else 1)
        layers.append(layer)
    return layers


# ----------------------------------------------------------------------------
# Forward pass (Pallas).
# ----------------------------------------------------------------------------
def _first_layer(x_nchw, layer):
    n = x_nchw.shape[0]
    k, cout = layer["k"], layer["cout"]
    x = x_nchw.reshape(n, -1).astype(jnp.bfloat16)             # (n, latent)
    mp = _round_up(n, 8)
    a = jnp.pad(x, ((0, mp - n), (0, 0)))[None]                # (1, mp, latent)
    ncols = layer["B"].shape[-1]
    y = fused_matmul_bn_act(a, layer["B"], layer["scale"], layer["bias"],
                            layer["act"], tm=mp,
                            tn=_largest_tile(ncols, 1024, 128),
                            out_dtype=jnp.bfloat16)
    return y[0, :n].reshape(n, k, k, cout)                      # NHWC (n,4,4,512)


def _s2_layer(x, layer):
    """ConvTranspose2d(cin, cout, 4, 2, 1) + (folded BN) + act, via 4 phase matmuls."""
    n, h, w, cin = x.shape
    cout, act = layer["cout"], layer["act"]
    bmat = layer["B"]                                           # (4, 4*cin, ncols)
    ncols = bmat.shape[-1]
    xp = jnp.pad(x, ((0, 0), (1, 1), (1, 1), (0, 0)))
    phases = []
    for ry in range(2):
        for rx in range(2):
            taps = [xp[:, ry + dy: ry + dy + h, rx + dx: rx + dx + w, :]
                    for dy in range(2) for dx in range(2)]
            phases.append(jnp.concatenate(taps, axis=-1).reshape(n * h * w, 4 * cin))
    a = jnp.stack(phases, axis=0)                               # (4, n*h*w, 4*cin)
    m = n * h * w
    out_dtype = jnp.float32 if act == "tanh" else jnp.bfloat16
    y = fused_matmul_bn_act(a, bmat, layer["scale"], layer["bias"], act,
                            tm=_largest_tile(m, 1024, 8),
                            tn=_largest_tile(ncols, 1024, 128),
                            out_dtype=out_dtype)
    y = y[..., :cout]                                           # drop lane padding
    # Interleave phases: out[n, 2qy+ry, 2qx+rx, c] = y[ry*2+rx, (n,qy,qx), c]
    y = y.reshape(2, 2, n, h, w, cout)
    y = jnp.transpose(y, (2, 3, 0, 4, 1, 5)).reshape(n, 2 * h, 2 * w, cout)
    return y


def generator_forward(layers, x_nchw):
    x = _first_layer(x_nchw, layers[0])
    for layer in layers[1:]:
        x = _s2_layer(x, layer)
    return jnp.transpose(x, (0, 3, 1, 2))                       # NHWC -> NCHW


# ----------------------------------------------------------------------------
# Pure-JAX (f32) reference: ConvTranspose2d == lhs-dilated conv w/ flipped w.
# ----------------------------------------------------------------------------
def reference_forward(layers, x_nchw):
    y = x_nchw
    for layer in layers:
        w = layer["w_ref"]                                      # (cin, cout, k, k)
        k = w.shape[2]
        s, p = layer["stride"], layer["pad"]
        rhs = jnp.transpose(jnp.flip(w, (2, 3)), (1, 0, 2, 3))  # OIHW, flipped
        y = lax.conv_general_dilated(
            y, rhs, window_strides=(1, 1),
            padding=[(k - 1 - p, k - 1 - p)] * 2,
            lhs_dilation=(s, s),
            dimension_numbers=("NCHW", "OIHW", "NCHW"))
        y = (y * layer["scale_ref"][None, :, None, None]
             + layer["bias_ref"][None, :, None, None])
        y = jnp.maximum(y, 0.0) if layer["act"] == "relu" else jnp.tanh(y)
    return y


if __name__ == "__main__":
    latent_dim = 16
    batch = 2

    key = jax.random.PRNGKey(0)
    kp, kx = jax.random.split(key)
    layers = init_generator_params(kp, latent_dim)
    x = jax.random.normal(kx, (batch, latent_dim, 1, 1), jnp.float32)
    # Pre-round input through bf16 so kernel and reference consume identical data.
    x = x.astype(jnp.bfloat16).astype(jnp.float32)

    y = jax.jit(lambda inp: generator_forward(layers, inp))(x)
    jax.block_until_ready(y)

    assert y.shape == (batch, 3, 64, 64), y.shape
    assert bool(jnp.all(jnp.isfinite(y)))
    assert bool(jnp.all(jnp.abs(y) <= 1.0 + 1e-6))  # tanh output range

    y_ref = jax.jit(lambda inp: reference_forward(layers, inp))(x)
    jax.block_until_ready(y_ref)
    err = float(jnp.max(jnp.abs(y.astype(jnp.float32) - y_ref)))
    ref_mag = float(jnp.max(jnp.abs(y_ref)))
    assert err <= 0.1 * ref_mag + 1e-3, (err, ref_mag)

    print("KERNEL_OK")
</pallas_src>

<mosaic_0001>
module attributes {stable_mosaic.version = 11 : i64} {
  func.func @_mm_bn_act_kernel(%arg0: i32, %arg1: i32, %arg2: i32, %arg3: memref<1x8x16xbf16, #tpu.memory_space<vmem>>, %arg4: memref<1x16x1024xbf16, #tpu.memory_space<vmem>>, %arg5: memref<1x1024xf32, #tpu.memory_space<vmem>>, %arg6: memref<1x1024xf32, #tpu.memory_space<vmem>>, %arg7: memref<1x8x1024xbf16, #tpu.memory_space<vmem>>) attributes {dimension_semantics = [#tpu.dimension_semantics<parallel>, #tpu.dimension_semantics<parallel>, #tpu.dimension_semantics<parallel>], iteration_bounds = array<i64: 1, 1, 8>, scalar_prefetch = 0 : i64, scratch_operands = 0 : i64, tpu.core_type = #tpu.core_type<tc>, window_params = [{transform_indices = @transform_0, window_bounds = array<i64: 1, 8, 16>}, {transform_indices = @transform_1, window_bounds = array<i64: 1, 16, 1024>}, {transform_indices = @transform_2, window_bounds = array<i64: 1, 1024>}, {transform_indices = @transform_3, window_bounds = array<i64: 1, 1024>}, {transform_indices = @transform_4, window_bounds = array<i64: 1, 8, 1024>}]} {
    %c0 = arith.constant 0 : index
    %c0_0 = arith.constant 0 : index
    %c0_1 = arith.constant 0 : index
    %0 = vector.load %arg3[%c0, %c0_0, %c0_1] : memref<1x8x16xbf16, #tpu.memory_space<vmem>>, vector<1x8x16xbf16>
    %1 = vector.shape_cast %0 : vector<1x8x16xbf16> to vector<8x16xbf16>
    %c0_2 = arith.constant 0 : index
    %c0_3 = arith.constant 0 : index
    %c0_4 = arith.constant 0 : index
    %2 = vector.load %arg4[%c0_2, %c0_3, %c0_4] : memref<1x16x1024xbf16, #tpu.memory_space<vmem>>, vector<1x16x1024xbf16>
    %3 = vector.shape_cast %2 : vector<1x16x1024xbf16> to vector<16x1024xbf16>
    %cst = arith.constant dense<0.000000e+00> : vector<8x1024xf32>
    %4 = tpu.matmul %1, %3, %cst {dimension_numbers = #tpu.dot_dimension_numbers<[1], [0], [0], [1], [0, 0, 1, 1], [], []>} : vector<8x16xbf16>, vector<16x1024xbf16>, vector<8x1024xf32> -> vector<8x1024xf32>
    %c0_5 = arith.constant 0 : index
    %c0_6 = arith.constant 0 : index
    %5 = vector.load %arg5[%c0_5, %c0_6] : memref<1x1024xf32, #tpu.memory_space<vmem>>, vector<1x1024xf32>
    %6 = vector.broadcast %5 : vector<1x1024xf32> to vector<8x1024xf32>
    %7 = arith.mulf %4, %6 : vector<8x1024xf32>
    %c0_7 = arith.constant 0 : index
    %c0_8 = arith.constant 0 : index
    %8 = vector.load %arg6[%c0_7, %c0_8] : memref<1x1024xf32, #tpu.memory_space<vmem>>, vector<1x1024xf32>
    %9 = vector.broadcast %8 : vector<1x1024xf32> to vector<8x1024xf32>
    %10 = arith.addf %7, %9 : vector<8x1024xf32>
    %cst_9 = arith.constant 0.000000e+00 : f32
    %11 = vector.broadcast %cst_9 : f32 to vector<8x1024xf32>
    %12 = arith.maximumf %10, %11 : vector<8x1024xf32>
    %13 = arith.truncf %12 : vector<8x1024xf32> to vector<8x1024xbf16>
    %c0_10 = arith.constant 0 : index
    %c0_11 = arith.constant 0 : index
    %c0_12 = arith.constant 0 : index
    %14 = vector.load %arg7[%c0_10, %c0_11, %c0_12] : memref<1x8x1024xbf16, #tpu.memory_space<vmem>>, vector<1x8x1024xbf16>
    %15 = vector.shape_cast %14 : vector<1x8x1024xbf16> to vector<8x1024xbf16>
    %16 = vector.shape_cast %13 : vector<8x1024xbf16> to vector<1x8x1024xbf16>
    tpu.vector_store %arg7[%c0_10, %c0_11, %c0_12], %16 {strides = array<i32>} : memref<1x8x1024xbf16, #tpu.memory_space<vmem>>, vector<1x8x1024xbf16>,
    return
  }
  func.func @transform_0(%arg0: i32, %arg1: i32, %arg2: i32) -> (i32, i32, i32) {
    %c0_i32 = arith.constant 0 : i32
    %c0_i32_0 = arith.constant 0 : i32
    return %arg0, %arg1, %c0_i32 : i32, i32, i32
  }
  func.func @transform_1(%arg0: i32, %arg1: i32, %arg2: i32) -> (i32, i32, i32) {
    %c0_i32 = arith.constant 0 : i32
    %c0_i32_0 = arith.constant 0 : i32
    return %arg0, %c0_i32, %arg2 : i32, i32, i32
  }
  func.func @transform_2(%arg0: i32, %arg1: i32, %arg2: i32) -> (i32, i32) {
    %c0_i32 = arith.constant 0 : i32
    %c0_i32_0 = arith.constant 0 : i32
    return %c0_i32, %arg2 : i32, i32
  }
  func.func @transform_3(%arg0: i32, %arg1: i32, %arg2: i32) -> (i32, i32) {
    %c0_i32 = arith.constant 0 : i32
    %c0_i32_0 = arith.constant 0 : i32
    return %c0_i32, %arg2 : i32, i32
  }
  func.func @transform_4(%arg0: i32, %arg1: i32, %arg2: i32) -> (i32, i32, i32) {
    %c0_i32 = arith.constant 0 : i32
    return %arg0, %arg1, %arg2 : i32, i32, i32
  }
}

module attributes {stable_mosaic.version = 11 : i64} {
  func.func @_mm_bn_act_kernel(%arg0: i32, %arg1: i32, %arg2: i32, %arg3: memref<1x32x2048xbf16, #tpu.memory_space<vmem>>, %arg4: memref<1x2048x256xbf16, #tpu.memory_space<vmem>>, %arg5: memref<1x256xf32, #tpu.memory_space<vmem>>, %arg6: memref<1x256xf32, #tpu.memory_space<vmem>>, %arg7: memref<1x32x256xbf16, #tpu.memory_space<vmem>>) attributes {dimension_semantics = [#tpu.dimension_semantics<parallel>, #tpu.dimension_semantics<parallel>, #tpu.dimension_semantics<parallel>], iteration_bounds = array<i64: 4, 1, 1>, scalar_prefetch = 0 : i64, scratch_operands = 0 : i64, tpu.core_type = #tpu.core_type<tc>, window_params = [{transform_indices = @transform_0, window_bounds = array<i64: 1, 32, 2048>}, {transform_indices = @transform_1, window_bounds = array<i64: 1, 2048, 256>}, {transform_indices = @transform_2, window_bounds = array<i64: 1, 256>}, {transform_indices = @transform_3, window_bounds = array<i64: 1, 256>}, {transform_indices = @transform_4, window_bounds = array<i64: 1, 32, 256>}]} {
    %c0 = arith.constant 0 : index
    %c0_0 = arith.constant 0 : index
    %c0_1 = arith.constant 0 : index
    %0 = vector.load %arg3[%c0, %c0_0, %c0_1] : memref<1x32x2048xbf16, #tpu.memory_space<vmem>>, vector<1x32x2048xbf16>
    %1 = vector.shape_cast %0 : vector<1x32x2048xbf16> to vector<32x2048xbf16>
    %c0_2 = arith.constant 0 : index
    %c0_3 = arith.constant 0 : index
    %c0_4 = arith.constant 0 : index
    %2 = vector.load %arg4[%c0_2, %c0_3, %c0_4] : memref<1x2048x256xbf16, #tpu.memory_space<vmem>>, vector<1x2048x256xbf16>
    %3 = vector.shape_cast %2 : vector<1x2048x256xbf16> to vector<2048x256xbf16>
    %cst = arith.constant dense<0.000000e+00> : vector<32x256xf32>
    %4 = tpu.matmul %1, %3, %cst {dimension_numbers = #tpu.dot_dimension_numbers<[1], [0], [0], [1], [0, 0, 1, 1], [], []>} : vector<32x2048xbf16>, vector<2048x256xbf16>, vector<32x256xf32> -> vector<32x256xf32>
    %c0_5 = arith.constant 0 : index
    %c0_6 = arith.constant 0 : index
    %5 = vector.load %arg5[%c0_5, %c0_6] : memref<1x256xf32, #tpu.memory_space<vmem>>, vector<1x256xf32>
    %6 = vector.broadcast %5 : vector<1x256xf32> to vector<32x256xf32>
    %7 = arith.mulf %4, %6 : vector<32x256xf32>
    %c0_7 = arith.constant 0 : index
    %c0_8 = arith.constant 0 : index
    %8 = vector.load %arg6[%c0_7, %c0_8] : memref<1x256xf32, #tpu.memory_space<vmem>>, vector<1x256xf32>
    %9 = vector.broadcast %8 : vector<1x256xf32> to vector<32x256xf32>
    %10 = arith.addf %7, %9 : vector<32x256xf32>
    %cst_9 = arith.constant 0.000000e+00 : f32
    %11 = vector.broadcast %cst_9 : f32 to vector<32x256xf32>
    %12 = arith.maximumf %10, %11 : vector<32x256xf32>
    %13 = arith.truncf %12 : vector<32x256xf32> to vector<32x256xbf16>
    %c0_10 = arith.constant 0 : index
    %c0_11 = arith.constant 0 : index
    %c0_12 = arith.constant 0 : index
    %14 = vector.load %arg7[%c0_10, %c0_11, %c0_12] : memref<1x32x256xbf16, #tpu.memory_space<vmem>>, vector<1x32x256xbf16>
    %15 = vector.shape_cast %14 : vector<1x32x256xbf16> to vector<32x256xbf16>
    %16 = vector.shape_cast %13 : vector<32x256xbf16> to vector<1x32x256xbf16>
    tpu.vector_store %arg7[%c0_10, %c0_11, %c0_12], %16 {strides = array<i32>} : memref<1x32x256xbf16, #tpu.memory_space<vmem>>, vector<1x32x256xbf16>,
    return
  }
  func.func @transform_0(%arg0: i32, %arg1: i32, %arg2: i32) -> (i32, i32, i32) {
    %c0_i32 = arith.constant 0 : i32
    %c0_i32_0 = arith.constant 0 : i32
    return %arg0, %arg1, %c0_i32 : i32, i32, i32
  }
  func.func @transform_1(%arg0: i32, %arg1: i32, %arg2: i32) -> (i32, i32, i32) {
    %c0_i32 = arith.constant 0 : i32
    %c0_i32_0 = arith.constant 0 : i32
    return %arg0, %c0_i32, %arg2 : i32, i32, i32
  }
  func.func @transform_2(%arg0: i32, %arg1: i32, %arg2: i32) -> (i32, i32) {
    %c0_i32 = arith.constant 0 : i32
    %c0_i32_0 = arith.constant 0 : i32
    return %c0_i32, %arg2 : i32, i32
  }
  func.func @transform_3(%arg0: i32, %arg1: i32, %arg2: i32) -> (i32, i32) {
    %c0_i32 = arith.constant 0 : i32
    %c0_i32_0 = arith.constant 0 : i32
    return %c0_i32, %arg2 : i32, i32
  }
  func.func @transform_4(%arg0: i32, %arg1: i32, %arg2: i32) -> (i32, i32, i32) {
    %c0_i32 = arith.constant 0 : i32
    return %arg0, %arg1, %arg2 : i32, i32, i32
  }
}

module attributes {stable_mosaic.version = 11 : i64} {
  func.func @_mm_bn_act_kernel(%arg0: i32, %arg1: i32, %arg2: i32, %arg3: memref<1x128x1024xbf16, #tpu.memory_space<vmem>>, %arg4: memref<1x1024x128xbf16, #tpu.memory_space<vmem>>, %arg5: memref<1x128xf32, #tpu.memory_space<vmem>>, %arg6: memref<1x128xf32, #tpu.memory_space<vmem>>, %arg7: memref<1x128x128xbf16, #tpu.memory_space<vmem>>) attributes {dimension_semantics = [#tpu.dimension_semantics<parallel>, #tpu.dimension_semantics<parallel>, #tpu.dimension_semantics<parallel>], iteration_bounds = array<i64: 4, 1, 1>, scalar_prefetch = 0 : i64, scratch_operands = 0 : i64, tpu.core_type = #tpu.core_type<tc>, window_params = [{transform_indices = @transform_0, window_bounds = array<i64: 1, 128, 1024>}, {transform_indices = @transform_1, window_bounds = array<i64: 1, 1024, 128>}, {transform_indices = @transform_2, window_bounds = array<i64: 1, 128>}, {transform_indices = @transform_3, window_bounds = array<i64: 1, 128>}, {transform_indices = @transform_4, window_bounds = array<i64: 1, 128, 128>}]} {
    %c0 = arith.constant 0 : index
    %c0_0 = arith.constant 0 : index
    %c0_1 = arith.constant 0 : index
    %0 = vector.load %arg3[%c0, %c0_0, %c0_1] : memref<1x128x1024xbf16, #tpu.memory_space<vmem>>, vector<1x128x1024xbf16>
    %1 = vector.shape_cast %0 : vector<1x128x1024xbf16> to vector<128x1024xbf16>
    %c0_2 = arith.constant 0 : index
    %c0_3 = arith.constant 0 : index
    %c0_4 = arith.constant 0 : index
    %2 = vector.load %arg4[%c0_2, %c0_3, %c0_4] : memref<1x1024x128xbf16, #tpu.memory_space<vmem>>, vector<1x1024x128xbf16>
    %3 = vector.shape_cast %2 : vector<1x1024x128xbf16> to vector<1024x128xbf16>
    %cst = arith.constant dense<0.000000e+00> : vector<128x128xf32>
    %4 = tpu.matmul %1, %3, %cst {dimension_numbers = #tpu.dot_dimension_numbers<[1], [0], [0], [1], [0, 0, 1, 1], [], []>} : vector<128x1024xbf16>, vector<1024x128xbf16>, vector<128x128xf32> -> vector<128x128xf32>
    %c0_5 = arith.constant 0 : index
    %c0_6 = arith.constant 0 : index
    %5 = vector.load %arg5[%c0_5, %c0_6] : memref<1x128xf32, #tpu.memory_space<vmem>>, vector<1x128xf32>
    %6 = vector.broadcast %5 : vector<1x128xf32> to vector<128x128xf32>
    %7 = arith.mulf %4, %6 : vector<128x128xf32>
    %c0_7 = arith.constant 0 : index
    %c0_8 = arith.constant 0 : index
    %8 = vector.load %arg6[%c0_7, %c0_8] : memref<1x128xf32, #tpu.memory_space<vmem>>, vector<1x128xf32>
    %9 = vector.broadcast %8 : vector<1x128xf32> to vector<128x128xf32>
    %10 = arith.addf %7, %9 : vector<128x128xf32>
    %cst_9 = arith.constant 0.000000e+00 : f32
    %11 = vector.broadcast %cst_9 : f32 to vector<128x128xf32>
    %12 = arith.maximumf %10, %11 : vector<128x128xf32>
    %13 = arith.truncf %12 : vector<128x128xf32> to vector<128x128xbf16>
    %c0_10 = arith.constant 0 : index
    %c0_11 = arith.constant 0 : index
    %c0_12 = arith.constant 0 : index
    %14 = vector.load %arg7[%c0_10, %c0_11, %c0_12] : memref<1x128x128xbf16, #tpu.memory_space<vmem>>, vector<1x128x128xbf16>
    %15 = vector.shape_cast %14 : vector<1x128x128xbf16> to vector<128x128xbf16>
    %16 = vector.shape_cast %13 : vector<128x128xbf16> to vector<1x128x128xbf16>
    tpu.vector_store %arg7[%c0_10, %c0_11, %c0_12], %16 {strides = array<i32>} : memref<1x128x128xbf16, #tpu.memory_space<vmem>>, vector<1x128x128xbf16>,
    return
  }
  func.func @transform_0(%arg0: i32, %arg1: i32, %arg2: i32) -> (i32, i32, i32) {
    %c0_i32 = arith.constant 0 : i32
    %c0_i32_0 = arith.constant 0 : i32
    return %arg0, %arg1, %c0_i32 : i32, i32, i32
  }
  func.func @transform_1(%arg0: i32, %arg1: i32, %arg2: i32) -> (i32, i32, i32) {
    %c0_i32 = arith.constant 0 : i32
    %c0_i32_0 = arith.constant 0 : i32
    return %arg0, %c0_i32, %arg2 : i32, i32, i32
  }
  func.func @transform_2(%arg0: i32, %arg1: i32, %arg2: i32) -> (i32, i32) {
    %c0_i32 = arith.constant 0 : i32
    %c0_i32_0 = arith.constant 0 : i32
    return %c0_i32, %arg2 : i32, i32
  }
  func.func @transform_3(%arg0: i32, %arg1: i32, %arg2: i32) -> (i32, i32) {
    %c0_i32 = arith.constant 0 : i32
    %c0_i32_0 = arith.constant 0 : i32
    return %c0_i32, %arg2 : i32, i32
  }
  func.func @transform_4(%arg0: i32, %arg1: i32, %arg2: i32) -> (i32, i32, i32) {
    %c0_i32 = arith.constant 0 : i32
    return %arg0, %arg1, %arg2 : i32, i32, i32
  }
}

module attributes {stable_mosaic.version = 11 : i64} {
  func.func @_mm_bn_act_kernel(%arg0: i32, %arg1: i32, %arg2: i32, %arg3: memref<1x512x512xbf16, #tpu.memory_space<vmem>>, %arg4: memref<1x512x128xbf16, #tpu.memory_space<vmem>>, %arg5: memref<1x128xf32, #tpu.memory_space<vmem>>, %arg6: memref<1x128xf32, #tpu.memory_space<vmem>>, %arg7: memref<1x512x128xbf16, #tpu.memory_space<vmem>>) attributes {dimension_semantics = [#tpu.dimension_semantics<parallel>, #tpu.dimension_semantics<parallel>, #tpu.dimension_semantics<parallel>], iteration_bounds = array<i64: 4, 1, 1>, scalar_prefetch = 0 : i64, scratch_operands = 0 : i64, tpu.core_type = #tpu.core_type<tc>, window_params = [{transform_indices = @transform_0, window_bounds = array<i64: 1, 512, 512>}, {transform_indices = @transform_1, window_bounds = array<i64: 1, 512, 128>}, {transform_indices = @transform_2, window_bounds = array<i64: 1, 128>}, {transform_indices = @transform_3, window_bounds = array<i64: 1, 128>}, {transform_indices = @transform_4, window_bounds = array<i64: 1, 512, 128>}]} {
    %c0 = arith.constant 0 : index
    %c0_0 = arith.constant 0 : index
    %c0_1 = arith.constant 0 : index
    %0 = vector.load %arg3[%c0, %c0_0, %c0_1] : memref<1x512x512xbf16, #tpu.memory_space<vmem>>, vector<1x512x512xbf16>
    %1 = vector.shape_cast %0 : vector<1x512x512xbf16> to vector<512x512xbf16>
    %c0_2 = arith.constant 0 : index
    %c0_3 = arith.constant 0 : index
    %c0_4 = arith.constant 0 : index
    %2 = vector.load %arg4[%c0_2, %c0_3, %c0_4] : memref<1x512x128xbf16, #tpu.memory_space<vmem>>, vector<1x512x128xbf16>
    %3 = vector.shape_cast %2 : vector<1x512x128xbf16> to vector<512x128xbf16>
    %cst = arith.constant dense<0.000000e+00> : vector<512x128xf32>
    %4 = tpu.matmul %1, %3, %cst {dimension_numbers = #tpu.dot_dimension_numbers<[1], [0], [0], [1], [0, 0, 1, 1], [], []>} : vector<512x512xbf16>, vector<512x128xbf16>, vector<512x128xf32> -> vector<512x128xf32>
    %c0_5 = arith.constant 0 : index
    %c0_6 = arith.constant 0 : index
    %5 = vector.load %arg5[%c0_5, %c0_6] : memref<1x128xf32, #tpu.memory_space<vmem>>, vector<1x128xf32>
    %6 = vector.broadcast %5 : vector<1x128xf32> to vector<512x128xf32>
    %7 = arith.mulf %4, %6 : vector<512x128xf32>
    %c0_7 = arith.constant 0 : index
    %c0_8 = arith.constant 0 : index
    %8 = vector.load %arg6[%c0_7, %c0_8] : memref<1x128xf32, #tpu.memory_space<vmem>>, vector<1x128xf32>
    %9 = vector.broadcast %8 : vector<1x128xf32> to vector<512x128xf32>
    %10 = arith.addf %7, %9 : vector<512x128xf32>
    %cst_9 = arith.constant 0.000000e+00 : f32
    %11 = vector.broadcast %cst_9 : f32 to vector<512x128xf32>
    %12 = arith.maximumf %10, %11 : vector<512x128xf32>
    %13 = arith.truncf %12 : vector<512x128xf32> to vector<512x128xbf16>
    %c0_10 = arith.constant 0 : index
    %c0_11 = arith.constant 0 : index
    %c0_12 = arith.constant 0 : index
    %14 = vector.load %arg7[%c0_10, %c0_11, %c0_12] : memref<1x512x128xbf16, #tpu.memory_space<vmem>>, vector<1x512x128xbf16>
    %15 = vector.shape_cast %14 : vector<1x512x128xbf16> to vector<512x128xbf16>
    %16 = vector.shape_cast %13 : vector<512x128xbf16> to vector<1x512x128xbf16>
    tpu.vector_store %arg7[%c0_10, %c0_11, %c0_12], %16 {strides = array<i32>} : memref<1x512x128xbf16, #tpu.memory_space<vmem>>, vector<1x512x128xbf16>,
    return
  }
  func.func @transform_0(%arg0: i32, %arg1: i32, %arg2: i32) -> (i32, i32, i32) {
    %c0_i32 = arith.constant 0 : i32
    %c0_i32_0 = arith.constant 0 : i32
    return %arg0, %arg1, %c0_i32 : i32, i32, i32
  }
  func.func @transform_1(%arg0: i32, %arg1: i32, %arg2: i32) -> (i32, i32, i32) {
    %c0_i32 = arith.constant 0 : i32
    %c0_i32_0 = arith.constant 0 : i32
    return %arg0, %c0_i32, %arg2 : i32, i32, i32
  }
  func.func @transform_2(%arg0: i32, %arg1: i32, %arg2: i32) -> (i32, i32) {
    %c0_i32 = arith.constant 0 : i32
    %c0_i32_0 = arith.constant 0 : i32
    return %c0_i32, %arg2 : i32, i32
  }
  func.func @transform_3(%arg0: i32, %arg1: i32, %arg2: i32) -> (i32, i32) {
    %c0_i32 = arith.constant 0 : i32
    %c0_i32_0 = arith.constant 0 : i32
    return %c0_i32, %arg2 : i32, i32
  }
  func.func @transform_4(%arg0: i32, %arg1: i32, %arg2: i32) -> (i32, i32, i32) {
    %c0_i32 = arith.constant 0 : i32
    return %arg0, %arg1, %arg2 : i32, i32, i32
  }
}

module attributes {stable_mosaic.version = 11 : i64} {
  func.func @_mm_bn_act_kernel(%arg0: i32, %arg1: i32, %arg2: i32, %arg3: memref<1x1024x256xbf16, #tpu.memory_space<vmem>>, %arg4: memref<1x256x128xbf16, #tpu.memory_space<vmem>>, %arg5: memref<1x128xf32, #tpu.memory_space<vmem>>, %arg6: memref<1x128xf32, #tpu.memory_space<vmem>>, %arg7: memref<1x1024x128xf32, #tpu.memory_space<vmem>>) attributes {dimension_semantics = [#tpu.dimension_semantics<parallel>, #tpu.dimension_semantics<parallel>, #tpu.dimension_semantics<parallel>], iteration_bounds = array<i64: 4, 2, 1>, scalar_prefetch = 0 : i64, scratch_operands = 0 : i64, tpu.core_type = #tpu.core_type<tc>, window_params = [{transform_indices = @transform_0, window_bounds = array<i64: 1, 1024, 256>}, {transform_indices = @transform_1, window_bounds = array<i64: 1, 256, 128>}, {transform_indices = @transform_2, window_bounds = array<i64: 1, 128>}, {transform_indices = @transform_3, window_bounds = array<i64: 1, 128>}, {transform_indices = @transform_4, window_bounds = array<i64: 1, 1024, 128>}]} {
    %c0 = arith.constant 0 : index
    %c0_0 = arith.constant 0 : index
    %c0_1 = arith.constant 0 : index
    %0 = vector.load %arg3[%c0, %c0_0, %c0_1] : memref<1x1024x256xbf16, #tpu.memory_space<vmem>>, vector<1x1024x256xbf16>
    %1 = vector.shape_cast %0 : vector<1x1024x256xbf16> to vector<1024x256xbf16>
    %c0_2 = arith.constant 0 : index
    %c0_3 = arith.constant 0 : index
    %c0_4 = arith.constant 0 : index
    %2 = vector.load %arg4[%c0_2, %c0_3, %c0_4] : memref<1x256x128xbf16, #tpu.memory_space<vmem>>, vector<1x256x128xbf16>
    %3 = vector.shape_cast %2 : vector<1x256x128xbf16> to vector<256x128xbf16>
    %cst = arith.constant dense<0.000000e+00> : vector<1024x128xf32>
    %4 = tpu.matmul %1, %3, %cst {dimension_numbers = #tpu.dot_dimension_numbers<[1], [0], [0], [1], [0, 0, 1, 1], [], []>} : vector<1024x256xbf16>, vector<256x128xbf16>, vector<1024x128xf32> -> vector<1024x128xf32>
    %c0_5 = arith.constant 0 : index
    %c0_6 = arith.constant 0 : index
    %5 = vector.load %arg5[%c0_5, %c0_6] : memref<1x128xf32, #tpu.memory_space<vmem>>, vector<1x128xf32>
    %6 = vector.broadcast %5 : vector<1x128xf32> to vector<1024x128xf32>
    %7 = arith.mulf %4, %6 : vector<1024x128xf32>
    %c0_7 = arith.constant 0 : index
    %c0_8 = arith.constant 0 : index
    %8 = vector.load %arg6[%c0_7, %c0_8] : memref<1x128xf32, #tpu.memory_space<vmem>>, vector<1x128xf32>
    %9 = vector.broadcast %8 : vector<1x128xf32> to vector<1024x128xf32>
    %10 = arith.addf %7, %9 : vector<1024x128xf32>
    %11 = math.tanh %10 : vector<1024x128xf32>
    %c0_9 = arith.constant 0 : index
    %c0_10 = arith.constant 0 : index
    %c0_11 = arith.constant 0 : index
    %12 = vector.load %arg7[%c0_9, %c0_10, %c0_11] : memref<1x1024x128xf32, #tpu.memory_space<vmem>>, vector<1x1024x128xf32>
    %13 = vector.shape_cast %12 : vector<1x1024x128xf32> to vector<1024x128xf32>
    %14 = vector.shape_cast %11 : vector<1024x128xf32> to vector<1x1024x128xf32>
    tpu.vector_store %arg7[%c0_9, %c0_10, %c0_11], %14 {strides = array<i32>} : memref<1x1024x128xf32, #tpu.memory_space<vmem>>, vector<1x1024x128xf32>,
    return
  }
  func.func @transform_0(%arg0: i32, %arg1: i32, %arg2: i32) -> (i32, i32, i32) {
    %c0_i32 = arith.constant 0 : i32
    %c0_i32_0 = arith.constant 0 : i32
    return %arg0, %arg1, %c0_i32 : i32, i32, i32
  }
  func.func @transform_1(%arg0: i32, %arg1: i32, %arg2: i32) -> (i32, i32, i32) {
    %c0_i32 = arith.constant 0 : i32
    %c0_i32_0 = arith.constant 0 : i32
    return %arg0, %c0_i32, %arg2 : i32, i32, i32
  }
  func.func @transform_2(%arg0: i32, %arg1: i32, %arg2: i32) -> (i32, i32) {
    %c0_i32 = arith.constant 0 : i32
    %c0_i32_0 = arith.constant 0 : i32
    return %c0_i32, %arg2 : i32, i32
  }
  func.func @transform_3(%arg0: i32, %arg1: i32, %arg2: i32) -> (i32, i32) {
    %c0_i32 = arith.constant 0 : i32
    %c0_i32_0 = arith.constant 0 : i32
    return %c0_i32, %arg2 : i32, i32
  }
  func.func @transform_4(%arg0: i32, %arg1: i32, %arg2: i32) -> (i32, i32, i32) {
    %c0_i32 = arith.constant 0 : i32
    return %arg0, %arg1, %arg2 : i32, i32, i32
  }
}

</mosaic_0001>

<llo_original>
// kernel: squeeze.1
$region0: #{squeeze.1}
  %s0 = inlined_call_operand.vmem [shape: bf16[1,2,8192], index: 0, kind: input, shape index: {}]
  %s1 = inlined_call_operand.vmem [shape: bf16[2,4,4,512], index: 1, kind: output, shape index: {}]
  $region1: #{squeeze.1} parent=0
    #allocation0 [shape = 'u8[131072]{0}', space=vmem, size = 0x20000, scoped, tag = 'scoped mem for output reshape']
    #allocation1 [shape = 'u8[262144]{0}', space=vmem, size = 0x40000, scoped, tag = 'scoped mem for input reshape']
    %s3 = ssub.s32 4, 1
    %s4 = scalar_lea.vmem %s0, 63
    %s5 = sshrl.u32 %s3, 1
    %s6 = sor.u32 %s3, %s5
    %s7 = sand.u32 %s6, 85
    %s8 = sshrl.u32 %s7, 1
    %s9 = sor.u32 %s7, %s8
    %s10 = sand.u32 51, %s9
    %s11 = sshrl.u32 %s10, 2
    %s12 = sor.u32 %s10, %s11
    %s13 = sand.u32 15, %s12
    %v14 = vld [vmem:[%s4] sm:%s13]
    %v15 = vunpack.c.l.bf16 %v14
    %v16 = vunpack.c.h.bf16 %v14
    %s17 = scalar_lea.vmem [#allocation1], 504
    %18 = vst [vmem:[%s17] sm:%s3] %v15
    %s19 = scalar_lea.vmem %s0, 62
    %s20 = sshrl.u32 %s3, 1
    %s21 = sor.u32 %s3, %s20
    %s22 = sand.u32 %s21, 85
    %s23 = sshrl.u32 %s22, 1
    %s24 = sor.u32 %s22, %s23
    %s25 = sand.u32 51, %s24
    %s26 = sshrl.u32 %s25, 2
    %s27 = sor.u32 %s25, %s26
    %s28 = sand.u32 15, %s27
    %v29 = vld [vmem:[%s19] sm:%s28]
    %v30 = vunpack.c.l.bf16 %v29
    %v31 = vunpack.c.h.bf16 %v29
    %s32 = scalar_lea.vmem [#allocation1], 496
    %33 = vst [vmem:[%s32] sm:%s3] %v30
    %s34 = scalar_lea.vmem %s0, 61
    %s35 = sshrl.u32 %s3, 1
    %s36 = sor.u32 %s3, %s35
    %s37 = sand.u32 %s36, 85
    %s38 = sshrl.u32 %s37, 1
    %s39 = sor.u32 %s37, %s38
    %s40 = sand.u32 51, %s39
    %s41 = sshrl.u32 %s40, 2
    %s42 = sor.u32 %s40, %s41
    %s43 = sand.u32 15, %s42
    %v44 = vld [vmem:[%s34] sm:%s43]
    %v45 = vunpack.c.l.bf16 %v44
    %v46 = vunpack.c.h.bf16 %v44
    %s47 = scalar_lea.vmem [#allocation1], 488
    %48 = vst [vmem:[%s47] sm:%s3] %v45
    %s49 = scalar_lea.vmem %s0, 60
    %s50 = sshrl.u32 %s3, 1
    %s51 = sor.u32 %s3, %s50
    %s52 = sand.u32 %s51, 85
    %s53 = sshrl.u32 %s52, 1
    %s54 = sor.u32 %s52, %s53
    %s55 = sand.u32 51, %s54
    %s56 = sshrl.u32 %s55, 2
    %s57 = sor.u32 %s55, %s56
    %s58 = sand.u32 15, %s57
    %v59 = vld [vmem:[%s49] sm:%s58]
    %v60 = vunpack.c.l.bf16 %v59
    %v61 = vunpack.c.h.bf16 %v59
    %s62 = scalar_lea.vmem [#allocation1], 480
    %63 = vst [vmem:[%s62] sm:%s3] %v60
    %s64 = scalar_lea.vmem %s0, 59
    %s65 = sshrl.u32 %s3, 1
    %s66 = sor.u32 %s3, %s65
    %s67 = sand.u32 %s66, 85
    %s68 = sshrl.u32 %s67, 1
    %s69 = sor.u32 %s67, %s68
    %s70 = sand.u32 51, %s69
    %s71 = sshrl.u32 %s70, 2
    %s72 = sor.u32 %s70, %s71
    %s73 = sand.u32 15, %s72
    %v74 = vld [vmem:[%s64] sm:%s73]
    %v75 = vunpack.c.l.bf16 %v74
    %v76 = vunpack.c.h.bf16 %v74
    %s77 = scalar_lea.vmem [#allocation1], 472
    %78 = vst [vmem:[%s77] sm:%s3] %v75
    %s79 = scalar_lea.vmem %s0, 58
    %s80 = sshrl.u32 %s3, 1
    %s81 = sor.u32 %s3, %s80
    %s82 = sand.u32 %s81, 85
    %s83 = sshrl.u32 %s82, 1
    %s84 = sor.u32 %s82, %s83
    %s85 = sand.u32 51, %s84
    %s86 = sshrl.u32 %s85, 2
    %s87 = sor.u32 %s85, %s86
    %s88 = sand.u32 15, %s87
    %v89 = vld [vmem:[%s79] sm:%s88]
    %v90 = vunpack.c.l.bf16 %v89
    %v91 = vunpack.c.h.bf16 %v89
    %s92 = scalar_lea.vmem [#allocation1], 464
    %93 = vst [vmem:[%s92] sm:%s3] %v90
    %s94 = scalar_lea.vmem %s0, 57
    %s95 = sshrl.u32 %s3, 1
    %s96 = sor.u32 %s3, %s95
    %s97 = sand.u32 %s96, 85
    %s98 = sshrl.u32 %s97, 1
    %s99 = sor.u32 %s97, %s98
    %s100 = sand.u32 51, %s99
    %s101 = sshrl.u32 %s100, 2
    %s102 = sor.u32 %s100, %s101
    %s103 = sand.u32 15, %s102
    %v104 = vld [vmem:[%s94] sm:%s103]
    %v105 = vunpack.c.l.bf16 %v104
    %v106 = vunpack.c.h.bf16 %v104
    %s107 = scalar_lea.vmem [#allocation1], 456
    %108 = vst [vmem:[%s107] sm:%s3] %v105
    %s109 = scalar_lea.vmem %s0, 56
    %s110 = sshrl.u32 %s3, 1
    %s111 = sor.u32 %s3, %s110
    %s112 = sand.u32 %s111, 85
    %s113 = sshrl.u32 %s112, 1
    %s114 = sor.u32 %s112, %s113
    %s115 = sand.u32 51, %s114
    %s116 = sshrl.u32 %s115, 2
    %s117 = sor.u32 %s115, %s116
    %s118 = sand.u32 15, %s117
    %v119 = vld [vmem:[%s109] sm:%s118]
    %v120 = vunpack.c.l.bf16 %v119
    %v121 = vunpack.c.h.bf16 %v119
    %s122 = scalar_lea.vmem [#allocation1], 448
    %123 = vst [vmem:[%s122] sm:%s3] %v120
    %s124 = scalar_lea.vmem %s0, 55
    %s125 = sshrl.u32 %s3, 1
    %s126 = sor.u32 %s3, %s125
    %s127 = sand.u32 %s126, 85
    %s128 = sshrl.u32 %s127, 1
    %s129 = sor.u32 %s127, %s128
    %s130 = sand.u32 51, %s129
    %s131 = sshrl.u32 %s130, 2
    %s132 = sor.u32 %s130, %s131
    %s133 = sand.u32 15, %s132
    %v134 = vld [vmem:[%s124] sm:%s133]
    %v135 = vunpack.c.l.bf16 %v134
    %v136 = vunpack.c.h.bf16 %v134
    %s137 = scalar_lea.vmem [#allocation1], 440
    %138 = vst [vmem:[%s137] sm:%s3] %v135
    %s139 = scalar_lea.vmem %s0, 54
    %s140 = sshrl.u32 %s3, 1
    %s141 = sor.u32 %s3, %s140
    %s142 = sand.u32 %s141, 85
    %s143 = sshrl.u32 %s142, 1
    %s144 = sor.u32 %s142, %s143
    %s145 = sand.u32 51, %s144
    %s146 = sshrl.u32 %s145, 2
    %s147 = sor.u32 %s145, %s146
    %s148 = sand.u32 15, %s147
    %v149 = vld [vmem:[%s139] sm:%s148]
    %v150 = vunpack.c.l.bf16 %v149
    %v151 = vunpack.c.h.bf16 %v149
    %s152 = scalar_lea.vmem [#allocation1], 432
    %153 = vst [vmem:[%s152] sm:%s3] %v150
    %s154 = scalar_lea.vmem %s0, 53
    %s155 = sshrl.u32 %s3, 1
    %s156 = sor.u32 %s3, %s155
    %s157 = sand.u32 %s156, 85
    %s158 = sshrl.u32 %s157, 1
    %s159 = sor.u32 %s157, %s158
    %s160 = sand.u32 51, %s159
    %s161 = sshrl.u32 %s160, 2
    %s162 = sor.u32 %s160, %s161
    %s163 = sand.u32 15, %s162
    %v164 = vld [vmem:[%s154] sm:%s163]
    %v165 = vunpack.c.l.bf16 %v164
    %v166 = vunpack.c.h.bf16 %v164
    %s167 = scalar_lea.vmem [#allocation1], 424
    %168 = vst [vmem:[%s167] sm:%s3] %v165
    %s169 = scalar_lea.vmem %s0, 52
    %s170 = sshrl.u32 %s3, 1
    %s171 = sor.u32 %s3, %s170
    %s172 = sand.u32 %s171, 85
    %s173 = sshrl.u32 %s172, 1
    %s174 = sor.u32 %s172, %s173
    %s175 = sand.u32 51, %s174
    %s176 = sshrl.u32 %s175, 2
    %s177 = sor.u32 %s175, %s176
    %s178 = sand.u32 15, %s177
    %v179 = vld [vmem:[%s169] sm:%s178]
    %v180 = vunpack.c.l.bf16 %v179
    %v181 = vunpack.c.h.bf16 %v179
    %s182 = scalar_lea.vmem [#allocation1], 416
    %183 = vst [vmem:[%s182] sm:%s3] %v180
    %s184 = scalar_lea.vmem %s0, 51
    %s185 = sshrl.u32 %s3, 1
    %s186 = sor.u32 %s3, %s185
    %s187 = sand.u32 %s186, 85
    %s188 = sshrl.u32 %s187, 1
    %s189 = sor.u32 %s187, %s188
    %s190 = sand.u32 51, %s189
    %s191 = sshrl.u32 %s190, 2
    %s192 = sor.u32 %s190, %s191
    %s193 = sand.u32 15, %s192
    %v194 = vld [vmem:[%s184] sm:%s193]
    %v195 = vunpack.c.l.bf16 %v194
    %v196 = vunpack.c.h.bf16 %v194
    %s197 = scalar_lea.vmem [#allocation1], 408
    %198 = vst [vmem:[%s197] sm:%s3] %v195
    %s199 = scalar_lea.vmem %s0, 50
    %s200 = sshrl.u32 %s3, 1
    %s201 = sor.u32 %s3, %s200
    %s202 = sand.u32 %s201, 85
    %s203 = sshrl.u32 %s202, 1
    %s204 = sor.u32 %s202, %s203
    %s205 = sand.u32 51, %s204
    %s206 = sshrl.u32 %s205, 2
    %s207 = sor.u32 %s205, %s206
    %s208 = sand.u32 15, %s207
    %v209 = vld [vmem:[%s199] sm:%s208]
    %v210 = vunpack.c.l.bf16 %v209
    %v211 = vunpack.c.h.bf16 %v209
    %s212 = scalar_lea.vmem [#allocation1], 400
    %213 = vst [vmem:[%s212] sm:%s3] %v210
    %s214 = scalar_lea.vmem %s0, 49
    %s215 = sshrl.u32 %s3, 1
    %s216 = sor.u32 %s3, %s215
    %s217 = sand.u32 %s216, 85
    %s218 = sshrl.u32 %s217, 1
    %s219 = sor.u32 %s217, %s218
    %s220 = sand.u32 51, %s219
    %s221 = sshrl.u32 %s220, 2
    %s222 = sor.u32 %s220, %s221
    %s223 = sand.u32 15, %s222
    %v224 = vld [vmem:[%s214] sm:%s223]
    %v225 = vunpack.c.l.bf16 %v224
    %v226 = vunpack.c.h.bf16 %v224
    %s227 = scalar_lea.vmem [#allocation1], 392
    %228 = vst [vmem:[%s227] sm:%s3] %v225
    %s229 = scalar_lea.vmem %s0, 48
    %s230 = sshrl.u32 %s3, 1
    %s231 = sor.u32 %s3, %s230
    %s232 = sand.u32 %s231, 85
    %s233 = sshrl.u32 %s232, 1
    %s234 = sor.u32 %s232, %s233
    %s235 = sand.u32 51, %s234
    %s236 = sshrl.u32 %s235, 2
    %s237 = sor.u32 %s235, %s236
    %s238 = sand.u32 15, %s237
    %v239 = vld [vmem:[%s229] sm:%s238]
    %v240 = vunpack.c.l.bf16 %v239
    %v241 = vunpack.c.h.bf16 %v239
    %s242 = scalar_lea.vmem [#allocation1], 384
    %243 = vst [vmem:[%s242] sm:%s3] %v240
    %s244 = scalar_lea.vmem %s0, 47
    %s245 = sshrl.u32 %s3, 1
    %s246 = sor.u32 %s3, %s245
    %s247 = sand.u32 %s246, 85
    %s248 = sshrl.u32 %s247, 1
    %s249 = sor.u32 %s247, %s248
    %s250 = sand.u32 51, %s249
    %s251 = sshrl.u32 %s250, 2
    %s252 = sor.u32 %s250, %s251
    %s253 = sand.u32 15, %s252
    %v254 = vld [vmem:[%s244] sm:%s253]
    %v255 = vunpack.c.l.bf16 %v254
    %v256 = vunpack.c.h.bf16 %v254
    %s257 = scalar_lea.vmem [#allocation1], 376
    %258 = vst [vmem:[%s257] sm:%s3] %v255
    %s259 = scalar_lea.vmem %s0, 46
    %s260 = sshrl.u32 %s3, 1
    %s261 = sor.u32 %s3, %s260
    %s262 = sand.u32 %s261, 85
    %s263 = sshrl.u32 %s262, 1
    %s264 = sor.u32 %s262, %s263
    %s265 = sand.u32 51, %s264
    %s266 = sshrl.u32 %s265, 2
    %s267 = sor.u32 %s265, %s266
    %s268 = sand.u32 15, %s267
    %v269 = vld [vmem:[%s259] sm:%s268]
    %v270 = vunpack.c.l.bf16 %v269
    %v271 = vunpack.c.h.bf16 %v269
    %s272 = scalar_lea.vmem [#allocation1], 368
    %273 = vst [vmem:[%s272] sm:%s3] %v270
    %s274 = scalar_lea.vmem %s0, 45
    %s275 = sshrl.u32 %s3, 1
    %s276 = sor.u32 %s3, %s275
    %s277 = sand.u32 %s276, 85
    %s278 = sshrl.u32 %s277, 1
    %s279 = sor.u32 %s277, %s278
    %s280 = sand.u32 51, %s279
    %s281 = sshrl.u32 %s280, 2
    %s282 = sor.u32 %s280, %s281
    %s283 = sand.u32 15, %s282
    %v284 = vld [vmem:[%s274] sm:%s283]
    %v285 = vunpack.c.l.bf16 %v284
    %v286 = vunpack.c.h.bf16 %v284
    %s287 = scalar_lea.vmem [#allocation1], 360
    %288 = vst [vmem:[%s287] sm:%s3] %v285
    %s289 = scalar_lea.vmem %s0, 44
    %s290 = sshrl.u32 %s3, 1
    %s291 = sor.u32 %s3, %s290
    %s292 = sand.u32 %s291, 85
    %s293 = sshrl.u32 %s292, 1
    %s294 = sor.u32 %s292, %s293
    %s295 = sand.u32 51, %s294
    %s296 = sshrl.u32 %s295, 2
    %s297 = sor.u32 %s295, %s296
    %s298 = sand.u32 15, %s297
    %v299 = vld [vmem:[%s289] sm:%s298]
    %v300 = vunpack.c.l.bf16 %v299
    %v301 = vunpack.c.h.bf16 %v299
    %s302 = scalar_lea.vmem [#allocation1], 352
    %303 = vst [vmem:[%s302] sm:%s3] %v300
    %s304 = scalar_lea.vmem %s0, 43
    %s305 = sshrl.u32 %s3, 1
    %s306 = sor.u32 %s3, %s305
    %s307 = sand.u32 %s306, 85
    %s308 = sshrl.u32 %s307, 1
    %s309 = sor.u32 %s307, %s308
    %s310 = sand.u32 51, %s309
    %s311 = sshrl.u32 %s310, 2
    %s312 = sor.u32 %s310, %s311
    %s313 = sand.u32 15, %s312
    %v314 = vld [vmem:[%s304] sm:%s313]
    %v315 = vunpack.c.l.bf16 %v314
    %v316 = vunpack.c.h.bf16 %v314
    %s317 = scalar_lea.vmem [#allocation1], 344
    %318 = vst [vmem:[%s317] sm:%s3] %v315
    %s319 = scalar_lea.vmem %s0, 42
    %s320 = sshrl.u32 %s3, 1
    %s321 = sor.u32 %s3, %s320
    %s322 = sand.u32 %s321, 85
    %s323 = sshrl.u32 %s322, 1
    %s324 = sor.u32 %s322, %s323
    %s325 = sand.u32 51, %s324
    %s326 = sshrl.u32 %s325, 2
    %s327 = sor.u32 %s325, %s326
    %s328 = sand.u32 15, %s327
    %v329 = vld [vmem:[%s319] sm:%s328]
    %v330 = vunpack.c.l.bf16 %v329
    %v331 = vunpack.c.h.bf16 %v329
    %s332 = scalar_lea.vmem [#allocation1], 336
    %333 = vst [vmem:[%s332] sm:%s3] %v330
    %s334 = scalar_lea.vmem %s0, 41
    %s335 = sshrl.u32 %s3, 1
    %s336 = sor.u32 %s3, %s335
    %s337 = sand.u32 %s336, 85
    %s338 = sshrl.u32 %s337, 1
    %s339 = sor.u32 %s337, %s338
    %s340 = sand.u32 51, %s339
    %s341 = sshrl.u32 %s340, 2
    %s342 = sor.u32 %s340, %s341
    %s343 = sand.u32 15, %s342
    %v344 = vld [vmem:[%s334] sm:%s343]
    %v345 = vunpack.c.l.bf16 %v344
    %v346 = vunpack.c.h.bf16 %v344
    %s347 = scalar_lea.vmem [#allocation1], 328
    %348 = vst [vmem:[%s347] sm:%s3] %v345
    %s349 = scalar_lea.vmem %s0, 40
    %s350 = sshrl.u32 %s3, 1
    %s351 = sor.u32 %s3, %s350
    %s352 = sand.u32 %s351, 85
    %s353 = sshrl.u32 %s352, 1
    %s354 = sor.u32 %s352, %s353
    %s355 = sand.u32 51, %s354
    %s356 = sshrl.u32 %s355, 2
    %s357 = sor.u32 %s355, %s356
    %s358 = sand.u32 15, %s357
    %v359 = vld [vmem:[%s349] sm:%s358]
    %v360 = vunpack.c.l.bf16 %v359
    %v361 = vunpack.c.h.bf16 %v359
    %s362 = scalar_lea.vmem [#allocation1], 320
    %363 = vst [vmem:[%s362] sm:%s3] %v360
    %s364 = scalar_lea.vmem %s0, 39
    %s365 = sshrl.u32 %s3, 1
    %s366 = sor.u32 %s3, %s365
    %s367 = sand.u32 %s366, 85
    %s368 = sshrl.u32 %s367, 1
    %s369 = sor.u32 %s367, %s368
    %s370 = sand.u32 51, %s369
    %s371 = sshrl.u32 %s370, 2
    %s372 = sor.u32 %s370, %s371
    %s373 = sand.u32 15, %s372
    %v374 = vld [vmem:[%s364] sm:%s373]
    %v375 = vunpack.c.l.bf16 %v374
    %v376 = vunpack.c.h.bf16 %v374
    %s377 = scalar_lea.vmem [#allocation1], 312
    %378 = vst [vmem:[%s377] sm:%s3] %v375
    %s379 = scalar_lea.vmem %s0, 38
    %s380 = sshrl.u32 %s3, 1
    %s381 = sor.u32 %s3, %s380
    %s382 = sand.u32 %s381, 85
    %s383 = sshrl.u32 %s382, 1
    %s384 = sor.u32 %s382, %s383
    %s385 = sand.u32 51, %s384
    %s386 = sshrl.u32 %s385, 2
    %s387 = sor.u32 %s385, %s386
    %s388 = sand.u32 15, %s387
    %v389 = vld [vmem:[%s379] sm:%s388]
    %v390 = vunpack.c.l.bf16 %v389
    %v391 = vunpack.c.h.bf16 %v389
    %s392 = scalar_lea.vmem [#allocation1], 304
    %393 = vst [vmem:[%s392] sm:%s3] %v390
    %s394 = scalar_lea.vmem %s0, 37
    %s395 = sshrl.u32 %s3, 1
    %s396 = sor.u32 %s3, %s395
    %s397 = sand.u32 %s396, 85
    %s398 = sshrl.u32 %s397, 1
    %s399 = sor.u32 %s397, %s398
    %s400 = sand.u32 51, %s399
    %s401 = sshrl.u32 %s400, 2
    %s402 = sor.u32 %s400, %s401
    %s403 = sand.u32 15, %s402
    %v404 = vld [vmem:[%s394] sm:%s403]
    %v405 = vunpack.c.l.bf16 %v404
    %v406 = vunpack.c.h.bf16 %v404
    %s407 = scalar_lea.vmem [#allocation1], 296
    %408 = vst [vmem:[%s407] sm:%s3] %v405
    %s409 = scalar_lea.vmem %s0, 36
    %s410 = sshrl.u32 %s3, 1
    %s411 = sor.u32 %s3, %s410
    %s412 = sand.u32 %s411, 85
    %s413 = sshrl.u32 %s412, 1
    %s414 = sor.u32 %s412, %s413
    %s415 = sand.u32 51, %s414
    %s416 = sshrl.u32 %s415, 2
    %s417 = sor.u32 %s415, %s416
    %s418 = sand.u32 15, %s417
    %v419 = vld [vmem:[%s409] sm:%s418]
    %v420 = vunpack.c.l.bf16 %v419
    %v421 = vunpack.c.h.bf16 %v419
    %s422 = scalar_lea.vmem [#allocation1], 288
    %423 = vst [vmem:[%s422] sm:%s3] %v420
    %s424 = scalar_lea.vmem %s0, 35
    %s425 = sshrl.u32 %s3, 1
    %s426 = sor.u32 %s3, %s425
    %s427 = sand.u32 %s426, 85
    %s428 = sshrl.u32 %s427, 1
    %s429 = sor.u32 %s427, %s428
    %s430 = sand.u32 51, %s429
    %s431 = sshrl.u32 %s430, 2
    %s432 = sor.u32 %s430, %s431
    %s433 = sand.u32 15, %s432
    %v434 = vld [vmem:[%s424] sm:%s433]
    %v435 = vunpack.c.l.bf16 %v434
    %v436 = vunpack.c.h.bf16 %v434
    %s437 = scalar_lea.vmem [#allocation1], 280
    %438 = vst [vmem:[%s437] sm:%s3] %v435
    %s439 = scalar_lea.vmem %s0, 34
    %s440 = sshrl.u32 %s3, 1
    %s441 = sor.u32 %s3, %s440
    %s442 = sand.u32 %s441, 85
    %s443 = sshrl.u32 %s442, 1
    %s444 = sor.u32 %s442, %s443
    %s445 = sand.u32 51, %s444
    %s446 = sshrl.u32 %s445, 2
    %s447 = sor.u32 %s445, %s446
    %s448 = sand.u32 15, %s447
    %v449 = vld [vmem:[%s439] sm:%s448]
    %v450 = vunpack.c.l.bf16 %v449
    %v451 = vunpack.c.h.bf16 %v449
    %s452 = scalar_lea.vmem [#allocation1], 272
    %453 = vst [vmem:[%s452] sm:%s3] %v450
    %s454 = scalar_lea.vmem %s0, 33
    %s455 = sshrl.u32 %s3, 1
    %s456 = sor.u32 %s3, %s455
    %s457 = sand.u32 %s456, 85
    %s458 = sshrl.u32 %s457, 1
    %s459 = sor.u32 %s457, %s458
    %s460 = sand.u32 51, %s459
    %s461 = sshrl.u32 %s460, 2
    %s462 = sor.u32 %s460, %s461
    %s463 = sand.u32 15, %s462
    %v464 = vld [vmem:[%s454] sm:%s463]
    %v465 = vunpack.c.l.bf16 %v464
    %v466 = vunpack.c.h.bf16 %v464
    %s467 = scalar_lea.vmem [#allocation1], 264
    %468 = vst [vmem:[%s467] sm:%s3] %v465
    %s469 = scalar_lea.vmem %s0, 32
    %s470 = sshrl.u32 %s3, 1
    %s471 = sor.u32 %s3, %s470
    %s472 = sand.u32 %s471, 85
    %s473 = sshrl.u32 %s472, 1
    %s474 = sor.u32 %s472, %s473
    %s475 = sand.u32 51, %s474
    %s476 = sshrl.u32 %s475, 2
    %s477 = sor.u32 %s475, %s476
    %s478 = sand.u32 15, %s477
    %v479 = vld [vmem:[%s469] sm:%s478]
    %v480 = vunpack.c.l.bf16 %v479
    %v481 = vunpack.c.h.bf16 %v479
    %s482 = scalar_lea.vmem [#allocation1], 256
    %483 = vst [vmem:[%s482] sm:%s3] %v480
    %s484 = scalar_lea.vmem %s0, 31
    %s485 = sshrl.u32 %s3, 1
    %s486 = sor.u32 %s3, %s485
    %s487 = sand.u32 %s486, 85
    %s488 = sshrl.u32 %s487, 1
    %s489 = sor.u32 %s487, %s488
    %s490 = sand.u32 51, %s489
    %s491 = sshrl.u32 %s490, 2
    %s492 = sor.u32 %s490, %s491
    %s493 = sand.u32 15, %s492
    %v494 = vld [vmem:[%s484] sm:%s493]
    %v495 = vunpack.c.l.bf16 %v494
    %v496 = vunpack.c.h.bf16 %v494
    %s497 = scalar_lea.vmem [#allocation1], 248
    %498 = vst [vmem:[%s497] sm:%s3] %v495
    %s499 = scalar_lea.vmem %s0, 30
    %s500 = sshrl.u32 %s3, 1
    %s501 = sor.u32 %s3, %s500
    %s502 = sand.u32 %s501, 85
    %s503 = sshrl.u32 %s502, 1
    %s504 = sor.u32 %s502, %s503
    %s505 = sand.u32 51, %s504
    %s506 = sshrl.u32 %s505, 2
    %s507 = sor.u32 %s505, %s506
    %s508 = sand.u32 15, %s507
    %v509 = vld [vmem:[%s499] sm:%s508]
    %v510 = vunpack.c.l.bf16 %v509
    %v511 = vunpack.c.h.bf16 %v509
    %s512 = scalar_lea.vmem [#allocation1], 240
    %513 = vst [vmem:[%s512] sm:%s3] %v510
    %s514 = scalar_lea.vmem %s0, 29
    %s515 = sshrl.u32 %s3, 1
    %s516 = sor.u32 %s3, %s515
    %s517 = sand.u32 %s516, 85
    %s518 = sshrl.u32 %s517, 1
    %s519 = sor.u32 %s517, %s518
    %s520 = sand.u32 51, %s519
    %s521 = sshrl.u32 %s520, 2
    %s522 = sor.u32 %s520, %s521
    %s523 = sand.u32 15, %s522
    %v524 = vld [vmem:[%s514] sm:%s523]
    %v525 = vunpack.c.l.bf16 %v524
    %v526 = vunpack.c.h.bf16 %v524
    %s527 = scalar_lea.vmem [#allocation1], 232
    %528 = vst [vmem:[%s527] sm:%s3] %v525
    %s529 = scalar_lea.vmem %s0, 28
    %s530 = sshrl.u32 %s3, 1
    %s531 = sor.u32 %s3, %s530
    %s532 = sand.u32 %s531, 85
    %s533 = sshrl.u32 %s532, 1
    %s534 = sor.u32 %s532, %s533
    %s535 = sand.u32 51, %s534
    %s536 = sshrl.u32 %s535, 2
    %s537 = sor.u32 %s535, %s536
    %s538 = sand.u32 15, %s537
    %v539 = vld [vmem:[%s529] sm:%s538]
    %v540 = vunpack.c.l.bf16 %v539
    %v541 = vunpack.c.h.bf16 %v539
    %s542 = scalar_lea.vmem [#allocation1], 224
    %543 = vst [vmem:[%s542] sm:%s3] %v540
    %s544 = scalar_lea.vmem %s0, 27
    %s545 = sshrl.u32 %s3, 1
    %s546 = sor.u32 %s3, %s545
    %s547 = sand.u32 %s546, 85
    %s548 = sshrl.u32 %s547, 1
    %s549 = sor.u32 %s547, %s548
    %s550 = sand.u32 51, %s549
    %s551 = sshrl.u32 %s550, 2
    %s552 = sor.u32 %s550, %s551
    %s553 = sand.u32 15, %s552
    %v554 = vld [vmem:[%s544] sm:%s553]
    %v555 = vunpack.c.l.bf16 %v554
    %v556 = vunpack.c.h.bf16 %v554
    %s557 = scalar_lea.vmem [#allocation1], 216
    %558 = vst [vmem:[%s557] sm:%s3] %v555
    %s559 = scalar_lea.vmem %s0, 26
    %s560 = sshrl.u32 %s3, 1
    %s561 = sor.u32 %s3, %s560
    %s562 = sand.u32 %s561, 85
    %s563 = sshrl.u32 %s562, 1
    %s564 = sor.u32 %s562, %s563
    %s565 = sand.u32 51, %s564
    %s566 = sshrl.u32 %s565, 2
    %s567 = sor.u32 %s565, %s566
    %s568 = sand.u32 15, %s567
    %v569 = vld [vmem:[%s559] sm:%s568]
    %v570 = vunpack.c.l.bf16 %v569
    %v571 = vunpack.c.h.bf16 %v569
    %s572 = scalar_lea.vmem [#allocation1], 208
    %573 = vst [vmem:[%s572] sm:%s3] %v570
    %s574 = scalar_lea.vmem %s0, 25
    %s575 = sshrl.u32 %s3, 1
    %s576 = sor.u32 %s3, %s575
    %s577 = sand.u32 %s576, 85
    %s578 = sshrl.u32 %s577, 1
    %s579 = sor.u32 %s577, %s578
    %s580 = sand.u32 51, %s579
    %s581 = sshrl.u32 %s580, 2
    %s582 = sor.u32 %s580, %s581
    %s583 = sand.u32 15, %s582
    %v584 = vld [vmem:[%s574] sm:%s583]
    %v585 = vunpack.c.l.bf16 %v584
    %v586 = vunpack.c.h.bf16 %v584
    %s587 = scalar_lea.vmem [#allocation1], 200
    %588 = vst [vmem:[%s587] sm:%s3] %v585
    %s589 = scalar_lea.vmem %s0, 24
    %s590 = sshrl.u32 %s3, 1
    %s591 = sor.u32 %s3, %s590
    %s592 = sand.u32 %s591, 85
    %s593 = sshrl.u32 %s592, 1
    %s594 = sor.u32 %s592, %s593
    %s595 = sand.u32 51, %s594
    %s596 = sshrl.u32 %s595, 2
    %s597 = sor.u32 %s595, %s596
    %s598 = sand.u32 15, %s597
    %v599 = vld [vmem:[%s589] sm:%s598]
    %v600 = vunpack.c.l.bf16 %v599
    %v601 = vunpack.c.h.bf16 %v599
    %s602 = scalar_lea.vmem [#allocation1], 192
    %603 = vst [vmem:[%s602] sm:%s3] %v600
    %s604 = scalar_lea.vmem %s0, 23
    %s605 = sshrl.u32 %s3, 1
    %s606 = sor.u32 %s3, %s605
    %s607 = sand.u32 %s606, 85
    %s608 = sshrl.u32 %s607, 1
    %s609 = sor.u32 %s607, %s608
    %s610 = sand.u32 51, %s609
    %s611 = sshrl.u32 %s610, 2
    %s612 = sor.u32 %s610, %s611
    %s613 = sand.u32 15, %s612
    %v614 = vld [vmem:[%s604] sm:%s613]
    %v615 = vunpack.c.l.bf16 %v614
    %v616 = vunpack.c.h.bf16 %v614
    %s617 = scalar_lea.vmem [#allocation1], 184
    %618 = vst [vmem:[%s617] sm:%s3] %v615
    %s619 = scalar_lea.vmem %s0, 22
    %s620 = sshrl.u32 %s3, 1
    %s621 = sor.u32 %s3, %s620
    %s622 = sand.u32 %s621, 85
    %s623 = sshrl.u32 %s622, 1
    %s624 = sor.u32 %s622, %s623
    %s625 = sand.u32 51, %s624
    %s626 = sshrl.u32 %s625, 2
    %s627 = sor.u32 %s625, %s626
    %s628 = sand.u32 15, %s627
    %v629 = vld [vmem:[%s619] sm:%s628]
    %v630 = vunpack.c.l.bf16 %v629
    %v631 = vunpack.c.h.bf16 %v629
    %s632 = scalar_lea.vmem [#allocation1], 176
    %633 = vst [vmem:[%s632] sm:%s3] %v630
    %s634 = scalar_lea.vmem %s0, 21
    %s635 = sshrl.u32 %s3, 1
    %s636 = sor.u32 %s3, %s635
    %s637 = sand.u32 %s636, 85
    %s638 = sshrl.u32 %s637, 1
    %s639 = sor.u32 %s637, %s638
    %s640 = sand.u32 51, %s639
    %s641 = sshrl.u32 %s640, 2
    %s642 = sor.u32 %s640, %s641
    %s643 = sand.u32 15, %s642
    %v644 = vld [vmem:[%s634] sm:%s643]
    %v645 = vunpack.c.l.bf16 %v644
    %v646 = vunpack.c.h.bf16 %v644
    %s647 = scalar_lea.vmem [#allocation1], 168
    %648 = vst [vmem:[%s647] sm:%s3] %v645
    %s649 = scalar_lea.vmem %s0, 20
    %s650 = sshrl.u32 %s3, 1
    %s651 = sor.u32 %s3, %s650
    %s652 = sand.u32 %s651, 85
    %s653 = sshrl.u32 %s652, 1
    %s654 = sor.u32 %s652, %s653
    %s655 = sand.u32 51, %s654
    %s656 = sshrl.u32 %s655, 2
    %s657 = sor.u32 %s655, %s656
    %s658 = sand.u32 15, %s657
    %v659 = vld [vmem:[%s649] sm:%s658]
    %v660 = vunpack.c.l.bf16 %v659
    %v661 = vunpack.c.h.bf16 %v659
    %s662 = scalar_lea.vmem [#allocation1], 160
    %663 = vst [vmem:[%s662] sm:%s3] %v660
    %s664 = scalar_lea.vmem %s0, 19
    %s665 = sshrl.u32 %s3, 1
    %s666 = sor.u32 %s3, %s665
    %s667 = sand.u32 %s666, 85
    %s668 = sshrl.u32 %s667, 1
    %s669 = sor.u32 %s667, %s668
    %s670 = sand.u32 51, %s669
    %s671 = sshrl.u32 %s670, 2
    %s672 = sor.u32 %s670, %s671
    %s673 = sand.u32 15, %s672
    %v674 = vld [vmem:[%s664] sm:%s673]
    %v675 = vunpack.c.l.bf16 %v674
    %v676 = vunpack.c.h.bf16 %v674
    %s677 = scalar_lea.vmem [#allocation1], 152
    %678 = vst [vmem:[%s677] sm:%s3] %v675
    %s679 = scalar_lea.vmem %s0, 18
    %s680 = sshrl.u32 %s3, 1
    %s681 = sor.u32 %s3, %s680
    %s682 = sand.u32 %s681, 85
    %s683 = sshrl.u32 %s682, 1
    %s684 = sor.u32 %s682, %s683
    %s685 = sand.u32 51, %s684
    %s686 = sshrl.u32 %s685, 2
    %s687 = sor.u32 %s685, %s686
    %s688 = sand.u32 15, %s687
    %v689 = vld [vmem:[%s679] sm:%s688]
    %v690 = vunpack.c.l.bf16 %v689
    %v691 = vunpack.c.h.bf16 %v689
    %s692 = scalar_lea.vmem [#allocation1], 144
    %693 = vst [vmem:[%s692] sm:%s3] %v690
    %s694 = scalar_lea.vmem %s0, 17
    %s695 = sshrl.u32 %s3, 1
    %s696 = sor.u32 %s3, %s695
    %s697 = sand.u32 %s696, 85
    %s698 = sshrl.u32 %s697, 1
    %s699 = sor.u32 %s697, %s698
    %s700 = sand.u32 51, %s699
    %s701 = sshrl.u32 %s700, 2
    %s702 = sor.u32 %s700, %s701
    %s703 = sand.u32 15, %s702
    %v704 = vld [vmem:[%s694] sm:%s703]
    %v705 = vunpack.c.l.bf16 %v704
    %v706 = vunpack.c.h.bf16 %v704
    %s707 = scalar_lea.vmem [#allocation1], 136
    %708 = vst [vmem:[%s707] sm:%s3] %v705
    %s709 = scalar_lea.vmem %s0, 16
    %s710 = sshrl.u32 %s3, 1
    %s711 = sor.u32 %s3, %s710
    %s712 = sand.u32 %s711, 85
    %s713 = sshrl.u32 %s712, 1
    %s714 = sor.u32 %s712, %s713
    %s715 = sand.u32 51, %s714
    %s716 = sshrl.u32 %s715, 2
    %s717 = sor.u32 %s715, %s716
    %s718 = sand.u32 15, %s717
    %v719 = vld [vmem:[%s709] sm:%s718]
    %v720 = vunpack.c.l.bf16 %v719
    %v721 = vunpack.c.h.bf16 %v719
    %s722 = scalar_lea.vmem [#allocation1], 128
    %723 = vst [vmem:[%s722] sm:%s3] %v720
    %s724 = scalar_lea.vmem %s0, 15
    %s725 = sshrl.u32 %s3, 1
    %s726 = sor.u32 %s3, %s725
    %s727 = sand.u32 %s726, 85
    %s728 = sshrl.u32 %s727, 1
    %s729 = sor.u32 %s727, %s728
    %s730 = sand.u32 51, %s729
    %s731 = sshrl.u32 %s730, 2
    %s732 = sor.u32 %s730, %s731
    %s733 = sand.u32 15, %s732
    %v734 = vld [vmem:[%s724] sm:%s733]
    %v735 = vunpack.c.l.bf16 %v734
    %v736 = vunpack.c.h.bf16 %v734
    %s737 = scalar_lea.vmem [#allocation1], 120
    %738 = vst [vmem:[%s737] sm:%s3] %v735
    %s739 = scalar_lea.vmem %s0, 14
    %s740 = sshrl.u32 %s3, 1
    %s741 = sor.u32 %s3, %s740
    %s742 = sand.u32 %s741, 85
    %s743 = sshrl.u32 %s742, 1
    %s744 = sor.u32 %s742, %s743
    %s745 = sand.u32 51, %s744
    %s746 = sshrl.u32 %s745, 2
    %s747 = sor.u32 %s745, %s746
    %s748 = sand.u32 15, %s747
    %v749 = vld [vmem:[%s739] sm:%s748]
    %v750 = vunpack.c.l.bf16 %v749
    %v751 = vunpack.c.h.bf16 %v749
    %s752 = scalar_lea.vmem [#allocation1], 112
    %753 = vst [vmem:[%s752] sm:%s3] %v750
    %s754 = scalar_lea.vmem %s0, 13
    %s755 = sshrl.u32 %s3, 1
    %s756 = sor.u32 %s3, %s755
    %s757 = sand.u32 %s756, 85
    %s758 = sshrl.u32 %s757, 1
    %s759 = sor.u32 %s757, %s758
    %s760 = sand.u32 51, %s759
    %s761 = sshrl.u32 %s760, 2
    %s762 = sor.u32 %s760, %s761
    %s763 = sand.u32 15, %s762
    %v764 = vld [vmem:[%s754] sm:%s763]
    %v765 = vunpack.c.l.bf16 %v764
    %v766 = vunpack.c.h.bf16 %v764
    %s767 = scalar_lea.vmem [#allocation1], 104
    %768 = vst [vmem:[%s767] sm:%s3] %v765
    %s769 = scalar_lea.vmem %s0, 12
    %s770 = sshrl.u32 %s3, 1
    %s771 = sor.u32 %s3, %s770
    %s772 = sand.u32 %s771, 85
    %s773 = sshrl.u32 %s772, 1
    %s774 = sor.u32 %s772, %s773
    %s775 = sand.u32 51, %s774
    %s776 = sshrl.u32 %s775, 2
    %s777 = sor.u32 %s775, %s776
    %s778 = sand.u32 15, %s777
    %v779 = vld [vmem:[%s769] sm:%s778]
    %v780 = vunpack.c.l.bf16 %v779
    %v781 = vunpack.c.h.bf16 %v779
    %s782 = scalar_lea.vmem [#allocation1], 96
    %783 = vst [vmem:[%s782] sm:%s3] %v780
    %s784 = scalar_lea.vmem %s0, 11
    %s785 = sshrl.u32 %s3, 1
    %s786 = sor.u32 %s3, %s785
    %s787 = sand.u32 %s786, 85
    %s788 = sshrl.u32 %s787, 1
    %s789 = sor.u32 %s787, %s788
    %s790 = sand.u32 51, %s789
    %s791 = sshrl.u32 %s790, 2
    %s792 = sor.u32 %s790, %s791
    %s793 = sand.u32 15, %s792
    %v794 = vld [vmem:[%s784] sm:%s793]
    %v795 = vunpack.c.l.bf16 %v794
    %v796 = vunpack.c.h.bf16 %v794
    %s797 = scalar_lea.vmem [#allocation1], 88
    %798 = vst [vmem:[%s797] sm:%s3] %v795
    %s799 = scalar_lea.vmem %s0, 10
    %s800 = sshrl.u32 %s3, 1
    %s801 = sor.u32 %s3, %s800
    %s802 = sand.u32 %s801, 85
    %s803 = sshrl.u32 %s802, 1
    %s804 = sor.u32 %s802, %s803
    %s805 = sand.u32 51, %s804
    %s806 = sshrl.u32 %s805, 2
    %s807 = sor.u32 %s805, %s806
    %s808 = sand.u32 15, %s807
    %v809 = vld [vmem:[%s799] sm:%s808]
    %v810 = vunpack.c.l.bf16 %v809
    %v811 = vunpack.c.h.bf16 %v809
    %s812 = scalar_lea.vmem [#allocation1], 80
    %813 = vst [vmem:[%s812] sm:%s3] %v810
    %s814 = scalar_lea.vmem %s0, 9
    %s815 = sshrl.u32 %s3, 1
    %s816 = sor.u32 %s3, %s815
    %s817 = sand.u32 %s816, 85
    %s818 = sshrl.u32 %s817, 1
    %s819 = sor.u32 %s817, %s818
    %s820 = sand.u32 51, %s819
    %s821 = sshrl.u32 %s820, 2
    %s822 = sor.u32 %s820, %s821
    %s823 = sand.u32 15, %s822
    %v824 = vld [vmem:[%s814] sm:%s823]
    %v825 = vunpack.c.l.bf16 %v824
    %v826 = vunpack.c.h.bf16 %v824
    %s827 = scalar_lea.vmem [#allocation1], 72
    %828 = vst [vmem:[%s827] sm:%s3] %v825
    %s829 = scalar_lea.vmem %s0, 8
    %s830 = sshrl.u32 %s3, 1
    %s831 = sor.u32 %s3, %s830
    %s832 = sand.u32 %s831, 85
    %s833 = sshrl.u32 %s832, 1
    %s834 = sor.u32 %s832, %s833
    %s835 = sand.u32 51, %s834
    %s836 = sshrl.u32 %s835, 2
    %s837 = sor.u32 %s835, %s836
    %s838 = sand.u32 15, %s837
    %v839 = vld [vmem:[%s829] sm:%s838]
    %v840 = vunpack.c.l.bf16 %v839
    %v841 = vunpack.c.h.bf16 %v839
    %s842 = scalar_lea.vmem [#allocation1], 64
    %843 = vst [vmem:[%s842] sm:%s3] %v840
    %s844 = scalar_lea.vmem %s0, 7
    %s845 = sshrl.u32 %s3, 1
    %s846 = sor.u32 %s3, %s845
    %s847 = sand.u32 %s846, 85
    %s848 = sshrl.u32 %s847, 1
    %s849 = sor.u32 %s847, %s848
    %s850 = sand.u32 51, %s849
    %s851 = sshrl.u32 %s850, 2
    %s852 = sor.u32 %s850, %s851
    %s853 = sand.u32 15, %s852
    %v854 = vld [vmem:[%s844] sm:%s853]
    %v855 = vunpack.c.l.bf16 %v854
    %v856 = vunpack.c.h.bf16 %v854
    %s857 = scalar_lea.vmem [#allocation1], 56
    %858 = vst [vmem:[%s857] sm:%s3] %v855
    %s859 = scalar_lea.vmem %s0, 6
    %s860 = sshrl.u32 %s3, 1
    %s861 = sor.u32 %s3, %s860
    %s862 = sand.u32 %s861, 85
    %s863 = sshrl.u32 %s862, 1
    %s864 = sor.u32 %s862, %s863
    %s865 = sand.u32 51, %s864
    %s866 = sshrl.u32 %s865, 2
    %s867 = sor.u32 %s865, %s866
    %s868 = sand.u32 15, %s867
    %v869 = vld [vmem:[%s859] sm:%s868]
    %v870 = vunpack.c.l.bf16 %v869
    %v871 = vunpack.c.h.bf16 %v869
    %s872 = scalar_lea.vmem [#allocation1], 48
    %873 = vst [vmem:[%s872] sm:%s3] %v870
    %s874 = scalar_lea.vmem %s0, 5
    %s875 = sshrl.u32 %s3, 1
    %s876 = sor.u32 %s3, %s875
    %s877 = sand.u32 %s876, 85
    %s878 = sshrl.u32 %s877, 1
    %s879 = sor.u32 %s877, %s878
    %s880 = sand.u32 51, %s879
    %s881 = sshrl.u32 %s880, 2
    %s882 = sor.u32 %s880, %s881
    %s883 = sand.u32 15, %s882
    %v884 = vld [vmem:[%s874] sm:%s883]
    %v885 = vunpack.c.l.bf16 %v884
    %v886 = vunpack.c.h.bf16 %v884
    %s887 = scalar_lea.vmem [#allocation1], 40
    %888 = vst [vmem:[%s887] sm:%s3] %v885
    %s889 = scalar_lea.vmem %s0, 4
    %s890 = sshrl.u32 %s3, 1
    %s891 = sor.u32 %s3, %s890
    %s892 = sand.u32 %s891, 85
    %s893 = sshrl.u32 %s892, 1
    %s894 = sor.u32 %s892, %s893
    %s895 = sand.u32 51, %s894
    %s896 = sshrl.u32 %s895, 2
    %s897 = sor.u32 %s895, %s896
    %s898 = sand.u32 15, %s897
    %v899 = vld [vmem:[%s889] sm:%s898]
    %v900 = vunpack.c.l.bf16 %v899
    %v901 = vunpack.c.h.bf16 %v899
    %s902 = scalar_lea.vmem [#allocation1], 32
    %903 = vst [vmem:[%s902] sm:%s3] %v900
    %s904 = scalar_lea.vmem %s0, 3
    %s905 = sshrl.u32 %s3, 1
    %s906 = sor.u32 %s3, %s905
    %s907 = sand.u32 %s906, 85
    %s908 = sshrl.u32 %s907, 1
    %s909 = sor.u32 %s907, %s908
    %s910 = sand.u32 51, %s909
    %s911 = sshrl.u32 %s910, 2
    %s912 = sor.u32 %s910, %s911
    %s913 = sand.u32 15, %s912
    %v914 = vld [vmem:[%s904] sm:%s913]
    %v915 = vunpack.c.l.bf16 %v914
    %v916 = vunpack.c.h.bf16 %v914
    %s917 = scalar_lea.vmem [#allocation1], 24
    %918 = vst [vmem:[%s917] sm:%s3] %v915
    %s919 = scalar_lea.vmem %s0, 2
    %s920 = sshrl.u32 %s3, 1
    %s921 = sor.u32 %s3, %s920
    %s922 = sand.u32 %s921, 85
    %s923 = sshrl.u32 %s922, 1
    %s924 = sor.u32 %s922, %s923
    %s925 = sand.u32 51, %s924
    %s926 = sshrl.u32 %s925, 2
    %s927 = sor.u32 %s925, %s926
    %s928 = sand.u32 15, %s927
    %v929 = vld [vmem:[%s919] sm:%s928]
    %v930 = vunpack.c.l.bf16 %v929
    %v931 = vunpack.c.h.bf16 %v929
    %s932 = scalar_lea.vmem [#allocation1], 16
    %933 = vst [vmem:[%s932] sm:%s3] %v930
    %s934 = scalar_lea.vmem %s0, 1
    %s935 = sshrl.u32 %s3, 1
    %s936 = sor.u32 %s3, %s935
    %s937 = sand.u32 %s936, 85
    %s938 = sshrl.u32 %s937, 1
    %s939 = sor.u32 %s937, %s938
    %s940 = sand.u32 51, %s939
    %s941 = sshrl.u32 %s940, 2
    %s942 = sor.u32 %s940, %s941
    %s943 = sand.u32 15, %s942
    %v944 = vld [vmem:[%s934] sm:%s943]
    %v945 = vunpack.c.l.bf16 %v944
    %v946 = vunpack.c.h.bf16 %v944
    %s947 = scalar_lea.vmem [#allocation1], 8
    %948 = vst [vmem:[%s947] sm:%s3] %v945
    %s949 = sshrl.u32 %s3, 1
    %s950 = sor.u32 %s3, %s949
    %s951 = sand.u32 %s950, 85
    %s952 = sshrl.u32 %s951, 1
    %s953 = sor.u32 %s951, %s952
    %s954 = sand.u32 51, %s953
    %s955 = sshrl.u32 %s954, 2
    %s956 = sor.u32 %s954, %s955
    %s957 = sand.u32 15, %s956
    %v958 = vld [vmem:[%s0] sm:%s957]
    %v959 = vunpack.c.l.bf16 %v958
    %v960 = vunpack.c.h.bf16 %v958
    %961 = vst [vmem:[#allocation1] sm:%s3] %v959
    %v962 = vld [vmem:[#allocation1] sm:$0x3]
    %963 = vst [vmem:[#allocation0] sm:$0x1] %v962
    %s964 = scalar_lea.vmem [#allocation0], 127
    %965 = vst [vmem:[%s964] sm:$0x2] %v962
    %s966 = scalar_lea.vmem [#allocation1], 8
    %v967 = vld [vmem:[%s966] sm:$0x3]
    %s968 = scalar_lea.vmem [#allocation0], 8
    %969 = vst [vmem:[%s968] sm:$0x1] %v967
    %s970 = scalar_lea.vmem [#allocation0], 135
    %971 = vst [vmem:[%s970] sm:$0x2] %v967
    %s972 = scalar_lea.vmem [#allocation1], 16
    %v973 = vld [vmem:[%s972] sm:$0x3]
    %s974 = scalar_lea.vmem [#allocation0], 16
    %975 = vst [vmem:[%s974] sm:$0x1] %v973
    %s976 = scalar_lea.vmem [#allocation0], 143
    %977 = vst [vmem:[%s976] sm:$0x2] %v973
    %s978 = scalar_lea.vmem [#allocation1], 24
    %v979 = vld [vmem:[%s978] sm:$0x3]
    %s980 = scalar_lea.vmem [#allocation0], 24
    %981 = vst [vmem:[%s980] sm:$0x1] %v979
    %s982 = scalar_lea.vmem [#allocation0], 151
    %983 = vst [vmem:[%s982] sm:$0x2] %v979
    %s984 = scalar_lea.vmem [#allocation1], 32
    %v985 = vld [vmem:[%s984] sm:$0x3]
    %s986 = scalar_lea.vmem [#allocation0], 1
    %987 = vst [vmem:[%s986] sm:$0x1] %v985
    %s988 = scalar_lea.vmem [#allocation0], 128
    %989 = vst [vmem:[%s988] sm:$0x2] %v985
    %s990 = scalar_lea.vmem [#allocation1], 40
    %v991 = vld [vmem:[%s990] sm:$0x3]
    %s992 = scalar_lea.vmem [#allocation0], 9
    %993 = vst [vmem:[%s992] sm:$0x1] %v991
    %s994 = scalar_lea.vmem [#allocation0], 136
    %995 = vst [vmem:[%s994] sm:$0x2] %v991
    %s996 = scalar_lea.vmem [#allocation1], 48
    %v997 = vld [vmem:[%s996] sm:$0x3]
    %s998 = scalar_lea.vmem [#allocation0], 17
    %999 = vst [vmem:[%s998] sm:$0x1] %v997
    %s1000 = scalar_lea.vmem [#allocation0], 144
    %1001 = vst [vmem:[%s1000] sm:$0x2] %v997
    %s1002 = scalar_lea.vmem [#allocation1], 56
    %v1003 = vld [vmem:[%s1002] sm:$0x3]
    %s1004 = scalar_lea.vmem [#allocation0], 25
    %1005 = vst [vmem:[%s1004] sm:$0x1] %v1003
    %s1006 = scalar_lea.vmem [#allocation0], 152
    %1007 = vst [vmem:[%s1006] sm:$0x2] %v1003
    %s1008 = scalar_lea.vmem [#allocation1], 64
    %v1009 = vld [vmem:[%s1008] sm:$0x3]
    %s1010 = scalar_lea.vmem [#allocation0], 2
    %1011 = vst [vmem:[%s1010] sm:$0x1] %v1009
    %s1012 = scalar_lea.vmem [#allocation0], 129
    %1013 = vst [vmem:[%s1012] sm:$0x2] %v1009
    %s1014 = scalar_lea.vmem [#allocation1], 72
    %v1015 = vld [vmem:[%s1014] sm:$0x3]
    %s1016 = scalar_lea.vmem [#allocation0], 10
    %1017 = vst [vmem:[%s1016] sm:$0x1] %v1015
    %s1018 = scalar_lea.vmem [#allocation0], 137
    %1019 = vst [vmem:[%s1018] sm:$0x2] %v1015
    %s1020 = scalar_lea.vmem [#allocation1], 80
    %v1021 = vld [vmem:[%s1020] sm:$0x3]
    %s1022 = scalar_lea.vmem [#allocation0], 18
    %1023 = vst [vmem:[%s1022] sm:$0x1] %v1021
    %s1024 = scalar_lea.vmem [#allocation0], 145
    %1025 = vst [vmem:[%s1024] sm:$0x2] %v1021
    %s1026 = scalar_lea.vmem [#allocation1], 88
    %v1027 = vld [vmem:[%s1026] sm:$0x3]
    %s1028 = scalar_lea.vmem [#allocation0], 26
    %1029 = vst [vmem:[%s1028] sm:$0x1] %v1027
    %s1030 = scalar_lea.vmem [#allocation0], 153
    %1031 = vst [vmem:[%s1030] sm:$0x2] %v1027
    %s1032 = scalar_lea.vmem [#allocation1], 96
    %v1033 = vld [vmem:[%s1032] sm:$0x3]
    %s1034 = scalar_lea.vmem [#allocation0], 3
    %1035 = vst [vmem:[%s1034] sm:$0x1] %v1033
    %s1036 = scalar_lea.vmem [#allocation0], 130
    %1037 = vst [vmem:[%s1036] sm:$0x2] %v1033
    %s1038 = scalar_lea.vmem [#allocation1], 104
    %v1039 = vld [vmem:[%s1038] sm:$0x3]
    %s1040 = scalar_lea.vmem [#allocation0], 11
    %1041 = vst [vmem:[%s1040] sm:$0x1] %v1039
    %s1042 = scalar_lea.vmem [#allocation0], 138
    %1043 = vst [vmem:[%s1042] sm:$0x2] %v1039
    %s1044 = scalar_lea.vmem [#allocation1], 112
    %v1045 = vld [vmem:[%s1044] sm:$0x3]
    %s1046 = scalar_lea.vmem [#allocation0], 19
    %1047 = vst [vmem:[%s1046] sm:$0x1] %v1045
    %s1048 = scalar_lea.vmem [#allocation0], 146
    %1049 = vst [vmem:[%s1048] sm:$0x2] %v1045
    %s1050 = scalar_lea.vmem [#allocation1], 120
    %v1051 = vld [vmem:[%s1050] sm:$0x3]
    %s1052 = scalar_lea.vmem [#allocation0], 27
    %1053 = vst [vmem:[%s1052] sm:$0x1] %v1051
    %s1054 = scalar_lea.vmem [#allocation0], 154
    %1055 = vst [vmem:[%s1054] sm:$0x2] %v1051
    %s1056 = scalar_lea.vmem [#allocation1], 128
    %v1057 = vld [vmem:[%s1056] sm:$0x3]
    %s1058 = scalar_lea.vmem [#allocation0], 32
    %1059 = vst [vmem:[%s1058] sm:$0x1] %v1057
    %s1060 = scalar_lea.vmem [#allocation0], 159
    %1061 = vst [vmem:[%s1060] sm:$0x2] %v1057
    %s1062 = scalar_lea.vmem [#allocation1], 136
    %v1063 = vld [vmem:[%s1062] sm:$0x3]
    %s1064 = scalar_lea.vmem [#allocation0], 40
    %1065 = vst [vmem:[%s1064] sm:$0x1] %v1063
    %s1066 = scalar_lea.vmem [#allocation0], 167
    %1067 = vst [vmem:[%s1066] sm:$0x2] %v1063
    %s1068 = scalar_lea.vmem [#allocation1], 144
    %v1069 = vld [vmem:[%s1068] sm:$0x3]
    %s1070 = scalar_lea.vmem [#allocation0], 48
    %1071 = vst [vmem:[%s1070] sm:$0x1] %v1069
    %s1072 = scalar_lea.vmem [#allocation0], 175
    %1073 = vst [vmem:[%s1072] sm:$0x2] %v1069
    %s1074 = scalar_lea.vmem [#allocation1], 152
    %v1075 = vld [vmem:[%s1074] sm:$0x3]
    %s1076 = scalar_lea.vmem [#allocation0], 56
    %1077 = vst [vmem:[%s1076] sm:$0x1] %v1075
    %s1078 = scalar_lea.vmem [#allocation0], 183
    %1079 = vst [vmem:[%s1078] sm:$0x2] %v1075
    %s1080 = scalar_lea.vmem [#allocation1], 160
    %v1081 = vld [vmem:[%s1080] sm:$0x3]
    %s1082 = scalar_lea.vmem [#allocation0], 33
    %1083 = vst [vmem:[%s1082] sm:$0x1] %v1081
    %s1084 = scalar_lea.vmem [#allocation0], 160
    %1085 = vst [vmem:[%s1084] sm:$0x2] %v1081
    %s1086 = scalar_lea.vmem [#allocation1], 168
    %v1087 = vld [vmem:[%s1086] sm:$0x3]
    %s1088 = scalar_lea.vmem [#allocation0], 41
    %1089 = vst [vmem:[%s1088] sm:$0x1] %v1087
    %s1090 = scalar_lea.vmem [#allocation0], 168
    %1091 = vst [vmem:[%s1090] sm:$0x2] %v1087
    %s1092 = scalar_lea.vmem [#allocation1], 176
    %v1093 = vld [vmem:[%s1092] sm:$0x3]
    %s1094 = scalar_lea.vmem [#allocation0], 49
    %1095 = vst [vmem:[%s1094] sm:$0x1] %v1093
    %s1096 = scalar_lea.vmem [#allocation0], 176
    %1097 = vst [vmem:[%s1096] sm:$0x2] %v1093
    %s1098 = scalar_lea.vmem [#allocation1], 184
    %v1099 = vld [vmem:[%s1098] sm:$0x3]
    %s1100 = scalar_lea.vmem [#allocation0], 57
    %1101 = vst [vmem:[%s1100] sm:$0x1] %v1099
    %s1102 = scalar_lea.vmem [#allocation0], 184
    %1103 = vst [vmem:[%s1102] sm:$0x2] %v1099
    %s1104 = scalar_lea.vmem [#allocation1], 192
    %v1105 = vld [vmem:[%s1104] sm:$0x3]
    %s1106 = scalar_lea.vmem [#allocation0], 34
    %1107 = vst [vmem:[%s1106] sm:$0x1] %v1105
    %s1108 = scalar_lea.vmem [#allocation0], 161
    %1109 = vst [vmem:[%s1108] sm:$0x2] %v1105
    %s1110 = scalar_lea.vmem [#allocation1], 200
    %v1111 = vld [vmem:[%s1110] sm:$0x3]
    %s1112 = scalar_lea.vmem [#allocation0], 42
    %1113 = vst [vmem:[%s1112] sm:$0x1] %v1111
    %s1114 = scalar_lea.vmem [#allocation0], 169
    %1115 = vst [vmem:[%s1114] sm:$0x2] %v1111
    %s1116 = scalar_lea.vmem [#allocation1], 208
    %v1117 = vld [vmem:[%s1116] sm:$0x3]
    %s1118 = scalar_lea.vmem [#allocation0], 50
    %1119 = vst [vmem:[%s1118] sm:$0x1] %v1117
    %s1120 = scalar_lea.vmem [#allocation0], 177
    %1121 = vst [vmem:[%s1120] sm:$0x2] %v1117
    %s1122 = scalar_lea.vmem [#allocation1], 216
    %v1123 = vld [vmem:[%s1122] sm:$0x3]
    %s1124 = scalar_lea.vmem [#allocation0], 58
    %1125 = vst [vmem:[%s1124] sm:$0x1] %v1123
    %s1126 = scalar_lea.vmem [#allocation0], 185
    %1127 = vst [vmem:[%s1126] sm:$0x2] %v1123
    %s1128 = scalar_lea.vmem [#allocation1], 224
    %v1129 = vld [vmem:[%s1128] sm:$0x3]
    %s1130 = scalar_lea.vmem [#allocation0], 35
    %1131 = vst [vmem:[%s1130] sm:$0x1] %v1129
    %s1132 = scalar_lea.vmem [#allocation0], 162
    %1133 = vst [vmem:[%s1132] sm:$0x2] %v1129
    %s1134 = scalar_lea.vmem [#allocation1], 232
    %v1135 = vld [vmem:[%s1134] sm:$0x3]
    %s1136 = scalar_lea.vmem [#allocation0], 43
    %1137 = vst [vmem:[%s1136] sm:$0x1] %v1135
    %s1138 = scalar_lea.vmem [#allocation0], 170
    %1139 = vst [vmem:[%s1138] sm:$0x2] %v1135
    %s1140 = scalar_lea.vmem [#allocation1], 240
    %v1141 = vld [vmem:[%s1140] sm:$0x3]
    %s1142 = scalar_lea.vmem [#allocation0], 51
    %1143 = vst [vmem:[%s1142] sm:$0x1] %v1141
    %s1144 = scalar_lea.vmem [#allocation0], 178
    %1145 = vst [vmem:[%s1144] sm:$0x2] %v1141
    %s1146 = scalar_lea.vmem [#allocation1], 248
    %v1147 = vld [vmem:[%s1146] sm:$0x3]
    %s1148 = scalar_lea.vmem [#allocation0], 59
    %1149 = vst [vmem:[%s1148] sm:$0x1] %v1147
    %s1150 = scalar_lea.vmem [#allocation0], 186
    %1151 = vst [vmem:[%s1150] sm:$0x2] %v1147
    %s1152 = scalar_lea.vmem [#allocation1], 256
    %v1153 = vld [vmem:[%s1152] sm:$0x3]
    %s1154 = scalar_lea.vmem [#allocation0], 64
    %1155 = vst [vmem:[%s1154] sm:$0x1] %v1153
    %s1156 = scalar_lea.vmem [#allocation0], 191
    %1157 = vst [vmem:[%s1156] sm:$0x2] %v1153
    %s1158 = scalar_lea.vmem [#allocation1], 264
    %v1159 = vld [vmem:[%s1158] sm:$0x3]
    %s1160 = scalar_lea.vmem [#allocation0], 72
    %1161 = vst [vmem:[%s1160] sm:$0x1] %v1159
    %s1162 = scalar_lea.vmem [#allocation0], 199
    %1163 = vst [vmem:[%s1162] sm:$0x2] %v1159
    %s1164 = scalar_lea.vmem [#allocation1], 272
    %v1165 = vld [vmem:[%s1164] sm:$0x3]
    %s1166 = scalar_lea.vmem [#allocation0], 80
    %1167 = vst [vmem:[%s1166] sm:$0x1] %v1165
    %s1168 = scalar_lea.vmem [#allocation0], 207
    %1169 = vst [vmem:[%s1168] sm:$0x2] %v1165
    %s1170 = scalar_lea.vmem [#allocation1], 280
    %v1171 = vld [vmem:[%s1170] sm:$0x3]
    %s1172 = scalar_lea.vmem [#allocation0], 88
    %1173 = vst [vmem:[%s1172] sm:$0x1] %v1171
    %s1174 = scalar_lea.vmem [#allocation0], 215
    %1175 = vst [vmem:[%s1174] sm:$0x2] %v1171
    %s1176 = scalar_lea.vmem [#allocation1], 288
    %v1177 = vld [vmem:[%s1176] sm:$0x3]
    %s1178 = scalar_lea.vmem [#allocation0], 65
    %1179 = vst [vmem:[%s1178] sm:$0x1] %v1177
    %s1180 = scalar_lea.vmem [#allocation0], 192
    %1181 = vst [vmem:[%s1180] sm:$0x2] %v1177
    %s1182 = scalar_lea.vmem [#allocation1], 296
    %v1183 = vld [vmem:[%s1182] sm:$0x3]
    %s1184 = scalar_lea.vmem [#allocation0], 73
    %1185 = vst [vmem:[%s1184] sm:$0x1] %v1183
    %s1186 = scalar_lea.vmem [#allocation0], 200
    %1187 = vst [vmem:[%s1186] sm:$0x2] %v1183
    %s1188 = scalar_lea.vmem [#allocation1], 304
    %v1189 = vld [vmem:[%s1188] sm:$0x3]
    %s1190 = scalar_lea.vmem [#allocation0], 81
    %1191 = vst [vmem:[%s1190] sm:$0x1] %v1189
    %s1192 = scalar_lea.vmem [#allocation0], 208
    %1193 = vst [vmem:[%s1192] sm:$0x2] %v1189
    %s1194 = scalar_lea.vmem [#allocation1], 312
    %v1195 = vld [vmem:[%s1194] sm:$0x3]
    %s1196 = scalar_lea.vmem [#allocation0], 89
    %1197 = vst [vmem:[%s1196] sm:$0x1] %v1195
    %s1198 = scalar_lea.vmem [#allocation0], 216
    %1199 = vst [vmem:[%s1198] sm:$0x2] %v1195
    %s1200 = scalar_lea.vmem [#allocation1], 320
    %v1201 = vld [vmem:[%s1200] sm:$0x3]
    %s1202 = scalar_lea.vmem [#allocation0], 66
    %1203 = vst [vmem:[%s1202] sm:$0x1] %v1201
    %s1204 = scalar_lea.vmem [#allocation0], 193
    %1205 = vst [vmem:[%s1204] sm:$0x2] %v1201
    %s1206 = scalar_lea.vmem [#allocation1], 328
    %v1207 = vld [vmem:[%s1206] sm:$0x3]
    %s1208 = scalar_lea.vmem [#allocation0], 74
    %1209 = vst [vmem:[%s1208] sm:$0x1] %v1207
    %s1210 = scalar_lea.vmem [#allocation0], 201
    %1211 = vst [vmem:[%s1210] sm:$0x2] %v1207
    %s1212 = scalar_lea.vmem [#allocation1], 336
    %v1213 = vld [vmem:[%s1212] sm:$0x3]
    %s1214 = scalar_lea.vmem [#allocation0], 82
    %1215 = vst [vmem:[%s1214] sm:$0x1] %v1213
    %s1216 = scalar_lea.vmem [#allocation0], 209
    %1217 = vst [vmem:[%s1216] sm:$0x2] %v1213
    %s1218 = scalar_lea.vmem [#allocation1], 344
    %v1219 = vld [vmem:[%s1218] sm:$0x3]
    %s1220 = scalar_lea.vmem [#allocation0], 90
    %1221 = vst [vmem:[%s1220] sm:$0x1] %v1219
    %s1222 = scalar_lea.vmem [#allocation0], 217
    %1223 = vst [vmem:[%s1222] sm:$0x2] %v1219
    %s1224 = scalar_lea.vmem [#allocation1], 352
    %v1225 = vld [vmem:[%s1224] sm:$0x3]
    %s1226 = scalar_lea.vmem [#allocation0], 67
    %1227 = vst [vmem:[%s1226] sm:$0x1] %v1225
    %s1228 = scalar_lea.vmem [#allocation0], 194
    %1229 = vst [vmem:[%s1228] sm:$0x2] %v1225
    %s1230 = scalar_lea.vmem [#allocation1], 360
    %v1231 = vld [vmem:[%s1230] sm:$0x3]
    %s1232 = scalar_lea.vmem [#allocation0], 75
    %1233 = vst [vmem:[%s1232] sm:$0x1] %v1231
    %s1234 = scalar_lea.vmem [#allocation0], 202
    %1235 = vst [vmem:[%s1234] sm:$0x2] %v1231
    %s1236 = scalar_lea.vmem [#allocation1], 368
    %v1237 = vld [vmem:[%s1236] sm:$0x3]
    %s1238 = scalar_lea.vmem [#allocation0], 83
    %1239 = vst [vmem:[%s1238] sm:$0x1] %v1237
    %s1240 = scalar_lea.vmem [#allocation0], 210
    %1241 = vst [vmem:[%s1240] sm:$0x2] %v1237
    %s1242 = scalar_lea.vmem [#allocation1], 376
    %v1243 = vld [vmem:[%s1242] sm:$0x3]
    %s1244 = scalar_lea.vmem [#allocation0], 91
    %1245 = vst [vmem:[%s1244] sm:$0x1] %v1243
    %s1246 = scalar_lea.vmem [#allocation0], 218
    %1247 = vst [vmem:[%s1246] sm:$0x2] %v1243
    %s1248 = scalar_lea.vmem [#allocation1], 384
    %v1249 = vld [vmem:[%s1248] sm:$0x3]
    %s1250 = scalar_lea.vmem [#allocation0], 96
    %1251 = vst [vmem:[%s1250] sm:$0x1] %v1249
    %s1252 = scalar_lea.vmem [#allocation0], 223
    %1253 = vst [vmem:[%s1252] sm:$0x2] %v1249
    %s1254 = scalar_lea.vmem [#allocation1], 392
    %v1255 = vld [vmem:[%s1254] sm:$0x3]
    %s1256 = scalar_lea.vmem [#allocation0], 104
    %1257 = vst [vmem:[%s1256] sm:$0x1] %v1255
    %s1258 = scalar_lea.vmem [#allocation0], 231
    %1259 = vst [vmem:[%s1258] sm:$0x2] %v1255
    %s1260 = scalar_lea.vmem [#allocation1], 400
    %v1261 = vld [vmem:[%s1260] sm:$0x3]
    %s1262 = scalar_lea.vmem [#allocation0], 112
    %1263 = vst [vmem:[%s1262] sm:$0x1] %v1261
    %s1264 = scalar_lea.vmem [#allocation0], 239
    %1265 = vst [vmem:[%s1264] sm:$0x2] %v1261
    %s1266 = scalar_lea.vmem [#allocation1], 408
    %v1267 = vld [vmem:[%s1266] sm:$0x3]
    %s1268 = scalar_lea.vmem [#allocation0], 120
    %1269 = vst [vmem:[%s1268] sm:$0x1] %v1267
    %s1270 = scalar_lea.vmem [#allocation0], 247
    %1271 = vst [vmem:[%s1270] sm:$0x2] %v1267
    %s1272 = scalar_lea.vmem [#allocation1], 416
    %v1273 = vld [vmem:[%s1272] sm:$0x3]
    %s1274 = scalar_lea.vmem [#allocation0], 97
    %1275 = vst [vmem:[%s1274] sm:$0x1] %v1273
    %s1276 = scalar_lea.vmem [#allocation0], 224
    %1277 = vst [vmem:[%s1276] sm:$0x2] %v1273
    %s1278 = scalar_lea.vmem [#allocation1], 424
    %v1279 = vld [vmem:[%s1278] sm:$0x3]
    %s1280 = scalar_lea.vmem [#allocation0], 105
    %1281 = vst [vmem:[%s1280] sm:$0x1] %v1279
    %s1282 = scalar_lea.vmem [#allocation0], 232
    %1283 = vst [vmem:[%s1282] sm:$0x2] %v1279
    %s1284 = scalar_lea.vmem [#allocation1], 432
    %v1285 = vld [vmem:[%s1284] sm:$0x3]
    %s1286 = scalar_lea.vmem [#allocation0], 113
    %1287 = vst [vmem:[%s1286] sm:$0x1] %v1285
    %s1288 = scalar_lea.vmem [#allocation0], 240
    %1289 = vst [vmem:[%s1288] sm:$0x2] %v1285
    %s1290 = scalar_lea.vmem [#allocation1], 440
    %v1291 = vld [vmem:[%s1290] sm:$0x3]
    %s1292 = scalar_lea.vmem [#allocation0], 121
    %1293 = vst [vmem:[%s1292] sm:$0x1] %v1291
    %s1294 = scalar_lea.vmem [#allocation0], 248
    %1295 = vst [vmem:[%s1294] sm:$0x2] %v1291
    %s1296 = scalar_lea.vmem [#allocation1], 448
    %v1297 = vld [vmem:[%s1296] sm:$0x3]
    %s1298 = scalar_lea.vmem [#allocation0], 98
    %1299 = vst [vmem:[%s1298] sm:$0x1] %v1297
    %s1300 = scalar_lea.vmem [#allocation0], 225
    %1301 = vst [vmem:[%s1300] sm:$0x2] %v1297
    %s1302 = scalar_lea.vmem [#allocation1], 456
    %v1303 = vld [vmem:[%s1302] sm:$0x3]
    %s1304 = scalar_lea.vmem [#allocation0], 106
    %1305 = vst [vmem:[%s1304] sm:$0x1] %v1303
    %s1306 = scalar_lea.vmem [#allocation0], 233
    %1307 = vst [vmem:[%s1306] sm:$0x2] %v1303
    %s1308 = scalar_lea.vmem [#allocation1], 464
    %v1309 = vld [vmem:[%s1308] sm:$0x3]
    %s1310 = scalar_lea.vmem [#allocation0], 114
    %1311 = vst [vmem:[%s1310] sm:$0x1] %v1309
    %s1312 = scalar_lea.vmem [#allocation0], 241
    %1313 = vst [vmem:[%s1312] sm:$0x2] %v1309
    %s1314 = scalar_lea.vmem [#allocation1], 472
    %v1315 = vld [vmem:[%s1314] sm:$0x3]
    %s1316 = scalar_lea.vmem [#allocation0], 122
    %1317 = vst [vmem:[%s1316] sm:$0x1] %v1315
    %s1318 = scalar_lea.vmem [#allocation0], 249
    %1319 = vst [vmem:[%s1318] sm:$0x2] %v1315
    %s1320 = scalar_lea.vmem [#allocation1], 480
    %v1321 = vld [vmem:[%s1320] sm:$0x3]
    %s1322 = scalar_lea.vmem [#allocation0], 99
    %1323 = vst [vmem:[%s1322] sm:$0x1] %v1321
    %s1324 = scalar_lea.vmem [#allocation0], 226
    %1325 = vst [vmem:[%s1324] sm:$0x2] %v1321
    %s1326 = scalar_lea.vmem [#allocation1], 488
    %v1327 = vld [vmem:[%s1326] sm:$0x3]
    %s1328 = scalar_lea.vmem [#allocation0], 107
    %1329 = vst [vmem:[%s1328] sm:$0x1] %v1327
    %s1330 = scalar_lea.vmem [#allocation0], 234
    %1331 = vst [vmem:[%s1330] sm:$0x2] %v1327
    %s1332 = scalar_lea.vmem [#allocation1], 496
    %v1333 = vld [vmem:[%s1332] sm:$0x3]
    %s1334 = scalar_lea.vmem [#allocation0], 115
    %1335 = vst [vmem:[%s1334] sm:$0x1] %v1333
    %s1336 = scalar_lea.vmem [#allocation0], 242
    %1337 = vst [vmem:[%s1336] sm:$0x2] %v1333
    %s1338 = scalar_lea.vmem [#allocation1], 504
    %v1339 = vld [vmem:[%s1338] sm:$0x3]
    %s1340 = scalar_lea.vmem [#allocation0], 123
    %1341 = vst [vmem:[%s1340] sm:$0x1] %v1339
    %s1342 = scalar_lea.vmem [#allocation0], 250
    %1343 = vst [vmem:[%s1342] sm:$0x2] %v1339
    %s1345 = ssub.s32 16, 1
    %v1346 = vld [vmem:[#allocation0] sm:%s1345]
    %v1347 = vpack.c.bf16 0.0, %v1346
    %s1349 = ssub.s32 4, 1
    %1350 = vst [vmem:[%s1] sm:%s1349] %v1347
    %s1351 = scalar_lea.vmem [#allocation0], 8
    %v1352 = vld [vmem:[%s1351] sm:%s1345]
    %v1353 = vpack.c.bf16 0.0, %v1352
    %s1355 = ssub.s32 4, 1
    %s1356 = scalar_lea.vmem %s1, 2
    %1357 = vst [vmem:[%s1356] sm:%s1355] %v1353
    %s1358 = scalar_lea.vmem [#allocation0], 16
    %v1359 = vld [vmem:[%s1358] sm:%s1345]
    %v1360 = vpack.c.bf16 0.0, %v1359
    %s1362 = ssub.s32 4, 1
    %s1363 = scalar_lea.vmem %s1, 4
    %1364 = vst [vmem:[%s1363] sm:%s1362] %v1360
    %s1365 = scalar_lea.vmem [#allocation0], 24
    %v1366 = vld [vmem:[%s1365] sm:%s1345]
    %v1367 = vpack.c.bf16 0.0, %v1366
    %s1369 = ssub.s32 4, 1
    %s1370 = scalar_lea.vmem %s1, 6
    %1371 = vst [vmem:[%s1370] sm:%s1369] %v1367
    %s1372 = scalar_lea.vmem [#allocation0], 32
    %v1373 = vld [vmem:[%s1372] sm:%s1345]
    %v1374 = vpack.c.bf16 0.0, %v1373
    %s1376 = ssub.s32 4, 1
    %s1377 = scalar_lea.vmem %s1, 8
    %1378 = vst [vmem:[%s1377] sm:%s1376] %v1374
    %s1379 = scalar_lea.vmem [#allocation0], 40
    %v1380 = vld [vmem:[%s1379] sm:%s1345]
    %v1381 = vpack.c.bf16 0.0, %v1380
    %s1383 = ssub.s32 4, 1
    %s1384 = scalar_lea.vmem %s1, 10
    %1385 = vst [vmem:[%s1384] sm:%s1383] %v1381
    %s1386 = scalar_lea.vmem [#allocation0], 48
    %v1387 = vld [vmem:[%s1386] sm:%s1345]
    %v1388 = vpack.c.bf16 0.0, %v1387
    %s1390 = ssub.s32 4, 1
    %s1391 = scalar_lea.vmem %s1, 12
    %1392 = vst [vmem:[%s1391] sm:%s1390] %v1388
    %s1393 = scalar_lea.vmem [#allocation0], 56
    %v1394 = vld [vmem:[%s1393] sm:%s1345]
    %v1395 = vpack.c.bf16 0.0, %v1394
    %s1397 = ssub.s32 4, 1
    %s1398 = scalar_lea.vmem %s1, 14
    %1399 = vst [vmem:[%s1398] sm:%s1397] %v1395
    %s1400 = scalar_lea.vmem [#allocation0], 64
    %v1401 = vld [vmem:[%s1400] sm:%s1345]
    %v1402 = vpack.c.bf16 0.0, %v1401
    %s1404 = ssub.s32 4, 1
    %s1405 = scalar_lea.vmem %s1, 16
    %1406 = vst [vmem:[%s1405] sm:%s1404] %v1402
    %s1407 = scalar_lea.vmem [#allocation0], 72
    %v1408 = vld [vmem:[%s1407] sm:%s1345]
    %v1409 = vpack.c.bf16 0.0, %v1408
    %s1411 = ssub.s32 4, 1
    %s1412 = scalar_lea.vmem %s1, 18
    %1413 = vst [vmem:[%s1412] sm:%s1411] %v1409
    %s1414 = scalar_lea.vmem [#allocation0], 80
    %v1415 = vld [vmem:[%s1414] sm:%s1345]
    %v1416 = vpack.c.bf16 0.0, %v1415
    %s1418 = ssub.s32 4, 1
    %s1419 = scalar_lea.vmem %s1, 20
    %1420 = vst [vmem:[%s1419] sm:%s1418] %v1416
    %s1421 = scalar_lea.vmem [#allocation0], 88
    %v1422 = vld [vmem:[%s1421] sm:%s1345]
    %v1423 = vpack.c.bf16 0.0, %v1422
    %s1425 = ssub.s32 4, 1
    %s1426 = scalar_lea.vmem %s1, 22
    %1427 = vst [vmem:[%s1426] sm:%s1425] %v1423
    %s1428 = scalar_lea.vmem [#allocation0], 96
    %v1429 = vld [vmem:[%s1428] sm:%s1345]
    %v1430 = vpack.c.bf16 0.0, %v1429
    %s1432 = ssub.s32 4, 1
    %s1433 = scalar_lea.vmem %s1, 24
    %1434 = vst [vmem:[%s1433] sm:%s1432] %v1430
    %s1435 = scalar_lea.vmem [#allocation0], 104
    %v1436 = vld [vmem:[%s1435] sm:%s1345]
    %v1437 = vpack.c.bf16 0.0, %v1436
    %s1439 = ssub.s32 4, 1
    %s1440 = scalar_lea.vmem %s1, 26
    %1441 = vst [vmem:[%s1440] sm:%s1439] %v1437
    %s1442 = scalar_lea.vmem [#allocation0], 112
    %v1443 = vld [vmem:[%s1442] sm:%s1345]
    %v1444 = vpack.c.bf16 0.0, %v1443
    %s1446 = ssub.s32 4, 1
    %s1447 = scalar_lea.vmem %s1, 28
    %1448 = vst [vmem:[%s1447] sm:%s1446] %v1444
    %s1449 = scalar_lea.vmem [#allocation0], 120
    %v1450 = vld [vmem:[%s1449] sm:%s1345]
    %v1451 = vpack.c.bf16 0.0, %v1450
    %s1453 = ssub.s32 4, 1
    %s1454 = scalar_lea.vmem %s1, 30
    %1455 = vst [vmem:[%s1454] sm:%s1453] %v1451
    %s1456 = scalar_lea.vmem [#allocation0], 128
    %v1457 = vld [vmem:[%s1456] sm:%s1345]
    %v1458 = vpack.c.bf16 0.0, %v1457
    %s1460 = ssub.s32 4, 1
    %s1461 = scalar_lea.vmem %s1, 32
    %1462 = vst [vmem:[%s1461] sm:%s1460] %v1458
    %s1463 = scalar_lea.vmem [#allocation0], 136
    %v1464 = vld [vmem:[%s1463] sm:%s1345]
    %v1465 = vpack.c.bf16 0.0, %v1464
    %s1467 = ssub.s32 4, 1
    %s1468 = scalar_lea.vmem %s1, 34
    %1469 = vst [vmem:[%s1468] sm:%s1467] %v1465
    %s1470 = scalar_lea.vmem [#allocation0], 144
    %v1471 = vld [vmem:[%s1470] sm:%s1345]
    %v1472 = vpack.c.bf16 0.0, %v1471
    %s1474 = ssub.s32 4, 1
    %s1475 = scalar_lea.vmem %s1, 36
    %1476 = vst [vmem:[%s1475] sm:%s1474] %v1472
    %s1477 = scalar_lea.vmem [#allocation0], 152
    %v1478 = vld [vmem:[%s1477] sm:%s1345]
    %v1479 = vpack.c.bf16 0.0, %v1478
    %s1481 = ssub.s32 4, 1
    %s1482 = scalar_lea.vmem %s1, 38
    %1483 = vst [vmem:[%s1482] sm:%s1481] %v1479
    %s1484 = scalar_lea.vmem [#allocation0], 160
    %v1485 = vld [vmem:[%s1484] sm:%s1345]
    %v1486 = vpack.c.bf16 0.0, %v1485
    %s1488 = ssub.s32 4, 1
    %s1489 = scalar_lea.vmem %s1, 40
    %1490 = vst [vmem:[%s1489] sm:%s1488] %v1486
    %s1491 = scalar_lea.vmem [#allocation0], 168
    %v1492 = vld [vmem:[%s1491] sm:%s1345]
    %v1493 = vpack.c.bf16 0.0, %v1492
    %s1495 = ssub.s32 4, 1
    %s1496 = scalar_lea.vmem %s1, 42
    %1497 = vst [vmem:[%s1496] sm:%s1495] %v1493
    %s1498 = scalar_lea.vmem [#allocation0], 176
    %v1499 = vld [vmem:[%s1498] sm:%s1345]
    %v1500 = vpack.c.bf16 0.0, %v1499
    %s1502 = ssub.s32 4, 1
    %s1503 = scalar_lea.vmem %s1, 44
    %1504 = vst [vmem:[%s1503] sm:%s1502] %v1500
    %s1505 = scalar_lea.vmem [#allocation0], 184
    %v1506 = vld [vmem:[%s1505] sm:%s1345]
    %v1507 = vpack.c.bf16 0.0, %v1506
    %s1509 = ssub.s32 4, 1
    %s1510 = scalar_lea.vmem %s1, 46
    %1511 = vst [vmem:[%s1510] sm:%s1509] %v1507
    %s1512 = scalar_lea.vmem [#allocation0], 192
    %v1513 = vld [vmem:[%s1512] sm:%s1345]
    %v1514 = vpack.c.bf16 0.0, %v1513
    %s1516 = ssub.s32 4, 1
    %s1517 = scalar_lea.vmem %s1, 48
    %1518 = vst [vmem:[%s1517] sm:%s1516] %v1514
    %s1519 = scalar_lea.vmem [#allocation0], 200
    %v1520 = vld [vmem:[%s1519] sm:%s1345]
    %v1521 = vpack.c.bf16 0.0, %v1520
    %s1523 = ssub.s32 4, 1
    %s1524 = scalar_lea.vmem %s1, 50
    %1525 = vst [vmem:[%s1524] sm:%s1523] %v1521
    %s1526 = scalar_lea.vmem [#allocation0], 208
    %v1527 = vld [vmem:[%s1526] sm:%s1345]
    %v1528 = vpack.c.bf16 0.0, %v1527
    %s1530 = ssub.s32 4, 1
    %s1531 = scalar_lea.vmem %s1, 52
    %1532 = vst [vmem:[%s1531] sm:%s1530] %v1528
    %s1533 = scalar_lea.vmem [#allocation0], 216
    %v1534 = vld [vmem:[%s1533] sm:%s1345]
    %v1535 = vpack.c.bf16 0.0, %v1534
    %s1537 = ssub.s32 4, 1
    %s1538 = scalar_lea.vmem %s1, 54
    %1539 = vst [vmem:[%s1538] sm:%s1537] %v1535
    %s1540 = scalar_lea.vmem [#allocation0], 224
    %v1541 = vld [vmem:[%s1540] sm:%s1345]
    %v1542 = vpack.c.bf16 0.0, %v1541
    %s1544 = ssub.s32 4, 1
    %s1545 = scalar_lea.vmem %s1, 56
    %1546 = vst [vmem:[%s1545] sm:%s1544] %v1542
    %s1547 = scalar_lea.vmem [#allocation0], 232
    %v1548 = vld [vmem:[%s1547] sm:%s1345]
    %v1549 = vpack.c.bf16 0.0, %v1548
    %s1551 = ssub.s32 4, 1
    %s1552 = scalar_lea.vmem %s1, 58
    %1553 = vst [vmem:[%s1552] sm:%s1551] %v1549
    %s1554 = scalar_lea.vmem [#allocation0], 240
    %v1555 = vld [vmem:[%s1554] sm:%s1345]
    %v1556 = vpack.c.bf16 0.0, %v1555
    %s1558 = ssub.s32 4, 1
    %s1559 = scalar_lea.vmem %s1, 60
    %1560 = vst [vmem:[%s1559] sm:%s1558] %v1556
    %s1561 = scalar_lea.vmem [#allocation0], 248
    %v1562 = vld [vmem:[%s1561] sm:%s1345]
    %v1563 = vpack.c.bf16 0.0, %v1562
    %s1565 = ssub.s32 4, 1
    %s1566 = scalar_lea.vmem %s1, 62
    %1567 = vst [vmem:[%s1566] sm:%s1565] %v1563

// kernel: _lambda_.5
$region0: #{_lambda_.5}
  #allocation0 [shape = 'u32[]', space=smem, size = 0x4, offset = 0x4, fixed_abs, tag = 'smem constant byte address 0x4 - core index']
  #allocation1 [shape = 'u32[72,128]{1,0:T(1,128)}', space=vmem, size = 0x9000, scoped, tag = 'internal scratch']
  %s0 = inlined_call_operand.vmem [shape: bf16[1,8,16], index: 0, kind: input, shape index: {}]
  %s1 = inlined_call_operand.hbm [shape: bf16[1,16,8192], index: 1, kind: input, shape index: {}]
  %s2 = inlined_call_operand.vmem [shape: f32[1,8192], index: 2, kind: input, shape index: {}]
  %s3 = inlined_call_operand.vmem [shape: f32[1,8192], index: 3, kind: input, shape index: {}]
  %s4 = inlined_call_operand.vmem [shape: bf16[1,8,8192], index: 4, kind: output, shape index: {}]
  %s5 = sld [smem:[#allocation0]]
  $region53: #{_lambda_.5} parent=0
    _
  %s7 = ssub.s32 1, %s5
  %s8 = scalar_select 0, %s7, %s5
  $region1: #{_lambda_.5} parent=0
    #allocation2 [shape = 'u8[65536]{0}', space=vmem, size = 0x10000, scoped, tag = 'input window, operand 1']
    #allocation3 [shape = 's32[2]{0}', space=sflag, size = 0x8, scoped, tag = 'scoped memory for _lambda_.5']
    %9 = vsyncpa [#allocation3], 0
    %s10 = scalar_lea.sflag [#allocation3], 1
    %11 = vsyncpa %s10, 0
    loop: start=0, step=1, limit=10
    $region2: #{_lambda_.5} parent=1 // loop_pre_header
      _
    $region3: #{_lambda_.5} parent=1 // loop_header
      %s13 = sphi 0, %s17
      %p14 = scmp.ge.s32.totalorder %s13, 10
      %s20 = sphi 0, %s39
      %s21 = sphi 0, %s35
      %s22 = sphi 0, %s31
      %s23 = sphi 0, %s20
      %s24 = sphi 0, %s21
      %s25 = sphi 0, %s22
      %s26 = sphi 0, %s23
      %s27 = sphi 0, %s24
      %s28 = sphi 0, %s25
      %s44 = sphi 0, %s46
      %s47 = sphi 0, %s44
      %s48 = sphi 0, %s47
      %s64 = sphi 0, %s48
      %s72 = sphi 0, %s74
      %s75 = sphi 0, %s72
      %s76 = sphi 0, %s75
      %s92 = sphi 0, %s76
      %s98 = sphi 0, %s100
      %s101 = sphi 0, %s98
      %s102 = sphi 0, %s101
      %s118 = sphi 0, %s102
      %s124 = sphi 0, %s126
      %s127 = sphi 0, %s124
      %s128 = sphi 0, %s127
      %s144 = sphi 0, %s128
      %s154 = sphi 0, %s156
      %s157 = sphi 0, %s154
      %s158 = sphi 0, %s157
      %s174 = sphi 0, %s158
    $region4: #{_lambda_.5} parent=1 // loop_header_branch
      %16 = sbr.rel (%p14) target = $region8
    $region5: #{_lambda_.5} parent=1 // loop_body
      %s18 = ssub.s32 %s13, 1
      %s19 = ssub.s32 %s13, 2
      %s29 = sadd.s32 1, %s22
      %p30 = scmp.ge.s32.totalorder %s29, 8
      %s31 = scalar_select %p30, 0, %s29
      %s32 = sadd.s32 1, %s21
      %s33 = scalar_select %p30, %s32, %s21
      %p34 = scmp.ge.s32.totalorder %s33, 1
      %s35 = scalar_select %p34, 0, %s33
      %s36 = sadd.s32 1, %s20
      %s37 = scalar_select %p34, %s36, %s20
      %p38 = scmp.ge.s32.totalorder %s37, 1
      %s39 = scalar_select %p38, 0, %s37
      %s40 = ssub.s32 %s20, %s39
      %s41 = ssub.s32 %s21, %s35
      %s42 = sor.u32 %s40, %s41
      %p43 = scmp.eq.s32.totalorder %s42, 0
      %s45 = sadd.s32 %s44, 1
      %s46 = scalar_select %p43, %s44, %s45
      %p49 = pneg %p43
      %p50 = scmp.eq.s32.totalorder %s13, 7
      %p51 = por %p49, %p50
      %p52 = scmp.ne.s32.totalorder %s44, %s47
      %p53 = scmp.eq.s32.totalorder %s13, 0
      %p54 = por %p52, %p53
      %p55 = scmp.ne.s32.totalorder %s44, %s47
      %p56 = scmp.eq.s32.totalorder %s18, 7
      %p57 = por %p55, %p56
      %p58 = scmp.ne.s32.totalorder %s47, %s48
      %p59 = scmp.eq.s32.totalorder %s18, 0
      %p60 = por %p58, %p59
      %p61 = scmp.ne.s32.totalorder %s47, %s48
      %p62 = scmp.eq.s32.totalorder %s19, 7
      %p63 = por %p61, %p62
      %p65 = scmp.ne.s32.totalorder %s48, %s64
      %p66 = scmp.eq.s32.totalorder %s19, 0
      %p67 = por %p65, %p66
      %s68 = ssub.s32 %s20, %s39
      %s69 = ssub.s32 %s22, %s31
      %s70 = sor.u32 %s68, %s69
      %p71 = scmp.eq.s32.totalorder %s70, 0
      %s73 = sadd.s32 %s72, 1
      %s74 = scalar_select %p71, %s72, %s73
      %p77 = pneg %p71
      %p78 = scmp.eq.s32.totalorder %s13, 7
      %p79 = por %p77, %p78
      %p80 = scmp.ne.s32.totalorder %s72, %s75
      %p81 = scmp.eq.s32.totalorder %s13, 0
      %p82 = por %p80, %p81
      %p83 = scmp.ne.s32.totalorder %s72, %s75
      %p84 = scmp.eq.s32.totalorder %s18, 7
      %p85 = por %p83, %p84
      %p86 = scmp.ne.s32.totalorder %s75, %s76
      %p87 = scmp.eq.s32.totalorder %s18, 0
      %p88 = por %p86, %p87
      %p89 = scmp.ne.s32.totalorder %s75, %s76
      %p90 = scmp.eq.s32.totalorder %s19, 7
      %p91 = por %p89, %p90
      %p93 = scmp.ne.s32.totalorder %s76, %s92
      %p94 = scmp.eq.s32.totalorder %s19, 0
      %p95 = por %p93, %p94
      %s96 = ssub.s32 %s22, %s31
      %p97 = scmp.eq.s32.totalorder %s96, 0
      %s99 = sadd.s32 %s98, 1
      %s100 = scalar_select %p97, %s98, %s99
      %p103 = pneg %p97
      %p104 = scmp.eq.s32.totalorder %s13, 7
      %p105 = por %p103, %p104
      %p106 = scmp.ne.s32.totalorder %s98, %s101
      %p107 = scmp.eq.s32.totalorder %s13, 0
      %p108 = por %p106, %p107
      %p109 = scmp.ne.s32.totalorder %s98, %s101
      %p110 = scmp.eq.s32.totalorder %s18, 7
      %p111 = por %p109, %p110
      %p112 = scmp.ne.s32.totalorder %s101, %s102
      %p113 = scmp.eq.s32.totalorder %s18, 0
      %p114 = por %p112, %p113
      %p115 = scmp.ne.s32.totalorder %s101, %s102
      %p116 = scmp.eq.s32.totalorder %s19, 7
      %p117 = por %p115, %p116
      %p119 = scmp.ne.s32.totalorder %s102, %s118
      %p120 = scmp.eq.s32.totalorder %s19, 0
      %p121 = por %p119, %p120
      %s122 = ssub.s32 %s22, %s31
      %p123 = scmp.eq.s32.totalorder %s122, 0
      %s125 = sadd.s32 %s124, 1
      %s126 = scalar_select %p123, %s124, %s125
      %p129 = pneg %p123
      %p130 = scmp.eq.s32.totalorder %s13, 7
      %p131 = por %p129, %p130
      %p132 = scmp.ne.s32.totalorder %s124, %s127
      %p133 = scmp.eq.s32.totalorder %s13, 0
      %p134 = por %p132, %p133
      %p135 = scmp.ne.s32.totalorder %s124, %s127
      %p136 = scmp.eq.s32.totalorder %s18, 7
      %p137 = por %p135, %p136
      %p138 = scmp.ne.s32.totalorder %s127, %s128
      %p139 = scmp.eq.s32.totalorder %s18, 0
      %p140 = por %p138, %p139
      %p141 = scmp.ne.s32.totalorder %s127, %s128
      %p142 = scmp.eq.s32.totalorder %s19, 7
      %p143 = por %p141, %p142
      %p145 = scmp.ne.s32.totalorder %s128, %s144
      %p146 = scmp.eq.s32.totalorder %s19, 0
      %p147 = por %p145, %p146
      %s148 = ssub.s32 %s20, %s39
      %s149 = ssub.s32 %s21, %s35
      %s150 = sor.u32 %s148, %s149
      %s151 = ssub.s32 %s22, %s31
      %s152 = sor.u32 %s150, %s151
      %p153 = scmp.eq.s32.totalorder %s152, 0
      %s155 = sadd.s32 %s154, 1
      %s156 = scalar_select %p153, %s154, %s155
      %p159 = pneg %p153
      %p160 = scmp.eq.s32.totalorder %s13, 7
      %p161 = por %p159, %p160
      %p162 = scmp.ne.s32.totalorder %s154, %s157
      %p163 = scmp.eq.s32.totalorder %s13, 0
      %p164 = por %p162, %p163
      %p165 = scmp.ne.s32.totalorder %s154, %s157
      %p166 = scmp.eq.s32.totalorder %s18, 7
      %p167 = por %p165, %p166
      %p168 = scmp.ne.s32.totalorder %s157, %s158
      %p169 = scmp.eq.s32.totalorder %s18, 0
      %p170 = por %p168, %p169
      %p171 = scmp.ne.s32.totalorder %s157, %s158
      %p172 = scmp.eq.s32.totalorder %s19, 7
      %p173 = por %p171, %p172
      %p175 = scmp.ne.s32.totalorder %s158, %s174
      %p176 = scmp.eq.s32.totalorder %s19, 0
      %p177 = por %p175, %p176
      %p178 = scmp.le.s32.totalorder 1, %s13
      %p179 = scmp.lt.s32.totalorder %s13, 9
      %p180 = pnand %p178, %p179
      %p181 = pneg %p180
      // Predicated region
      $region9: #{_lambda_.5} parent=5 // pred_check
        _
      $region10: #{_lambda_.5} parent=5 // pred_check_branch
        %183 = sbr.rel (%p180) target = $region12
      $region11: #{_lambda_.5} parent=5 // pred_region
        %s184 = ssub.s32 %s13, 1
        // Predicated region
        $region13: #{_lambda_.5} parent=11 // pred_check
          %p185 = pneg %p60
        $region14: #{_lambda_.5} parent=11 // pred_check_branch
          %187 = sbr.rel (%p185) target = $region16
        $region15: #{_lambda_.5} parent=11 // pred_region
          %p188 = scmp.lt.s32.totalorder %s23, 0
          %s189 = scalar_select %p188, %s23, 0
          %p190 = scmp.lt.s32.totalorder %s24, 0
          %s191 = scalar_select %p190, %s24, 0
          %s192 = sadd.s32 %s191, %s189
          %s193 = smul.addr %s192, 4
          %s194 = scalar_lea.vmem %s0, %s193
        $region16: #{_lambda_.5} parent=11 // pred_fallthru
          _
      $region12: #{_lambda_.5} parent=5 // pred_fallthru
        _
      %p195 = scmp.lt.s32.totalorder %s13, 8
      // Predicated region
      $region17: #{_lambda_.5} parent=5 // pred_check
        %p196 = pneg %p195
      $region18: #{_lambda_.5} parent=5 // pred_check_branch
        %198 = sbr.rel (%p196) target = $region20
      $region19: #{_lambda_.5} parent=5 // pred_region
        // Predicated region
        $region21: #{_lambda_.5} parent=19 // pred_check
          %p199 = pneg %p82
        $region22: #{_lambda_.5} parent=19 // pred_check_branch
          %201 = sbr.rel (%p199) target = $region24
        $region23: #{_lambda_.5} parent=19 // pred_region
          %s202 = sand.u32 %s72, 1
          %s203 = scalar_lea.sflag [#allocation3], %s202
          %s204 = sand.u32 %s72, 1
          %s205 = smul.addr %s204, 64
          %s206 = scalar_lea.vmem [#allocation2], %s205
          %s207 = smul.u32 8, %s22
          %209 = vsyncadd %s203, 0
          %s210 = smul.addr %s20, 128
          %s211 = sadd.s32 %s207, %s210
          %s212 = smul.addr %s211, 4
          %s213 = scalar_lea.hbm %s1, %s212
          %s214 = sshll.u32 %s213, 4
          %s215 = int_to_ptr.hbm [resolvable:$true] %s214
          %s216 = sshll.u32 %s206, 4
          %s217 = int_to_ptr.vmem [resolvable:$true] %s216
          %222 = dma.hbm_to_vmem [thread:$0]  %s215, 1024, %s217, %s203, 4096, 512, 32
        $region24: #{_lambda_.5} parent=19 // pred_fallthru
          _
        // Predicated region
        $region25: #{_lambda_.5} parent=19 // pred_check
          %p223 = pneg %p108
        $region26: #{_lambda_.5} parent=19 // pred_check_branch
          %225 = sbr.rel (%p223) target = $region28
        $region27: #{_lambda_.5} parent=19 // pred_region
          %s226 = smul.u32 8, %s22
          %p227 = scmp.lt.s32.totalorder %s226, 63
          %s228 = scalar_select %p227, %s226, 63
          %s229 = scalar_lea.vmem %s2, %s228
          %s230 = smul.u32 8, %s22
        $region28: #{_lambda_.5} parent=19 // pred_fallthru
          _
        // Predicated region
        $region29: #{_lambda_.5} parent=19 // pred_check
          %p231 = pneg %p134
        $region30: #{_lambda_.5} parent=19 // pred_check_branch
          %233 = sbr.rel (%p231) target = $region32
        $region31: #{_lambda_.5} parent=19 // pred_region
          %s234 = smul.u32 8, %s22
          %p235 = scmp.lt.s32.totalorder %s234, 63
          %s236 = scalar_select %p235, %s234, 63
          %s237 = scalar_lea.vmem %s3, %s236
          %s238 = smul.u32 8, %s22
        $region32: #{_lambda_.5} parent=19 // pred_fallthru
          _
      $region20: #{_lambda_.5} parent=5 // pred_fallthru
        _
      %p239 = scmp.le.s32.totalorder 1, %s13
      %p240 = scmp.lt.s32.totalorder %s13, 9
      %p241 = pnand %p239, %p240
      %p242 = pneg %p241
      // Predicated region
      $region33: #{_lambda_.5} parent=5 // pred_check
        _
      $region34: #{_lambda_.5} parent=5 // pred_check_branch
        %244 = sbr.rel (%p241) target = $region36
      $region35: #{_lambda_.5} parent=5 // pred_region
        %s245 = ssub.s32 %s13, 1
        %s246 = sand.u32 %s75, 1
        %s247 = scalar_lea.sflag [#allocation3], %s246
        %s248 = sand.u32 %s75, 1
        %s249 = smul.addr %s248, 64
        %s250 = scalar_lea.vmem [#allocation2], %s249
        // Predicated region
        $region37: #{_lambda_.5} parent=35 // pred_check
          %p251 = pneg %p88
        $region38: #{_lambda_.5} parent=35 // pred_check_branch
          %253 = sbr.rel (%p251) target = $region40
        $region39: #{_lambda_.5} parent=35 // pred_region
          %255 = dma.done %s247, 1024
        $region40: #{_lambda_.5} parent=35 // pred_fallthru
          _
        %p256 = scmp.lt.s32.totalorder %s23, 0
        %s257 = scalar_select %p256, %s23, 0
        %p258 = scmp.lt.s32.totalorder %s24, 0
        %s259 = scalar_select %p258, %s24, 0
        %s260 = sadd.s32 %s259, %s257
        %s261 = smul.addr %s260, 4
        %s262 = scalar_lea.vmem %s0, %s261
        %p263 = pneg %p60
        %p264 = pneg %p57
        %s265 = sand.u32 %s75, 1
        %s266 = scalar_lea.sflag [#allocation3], %s265
        %s267 = sand.u32 %s75, 1
        %s268 = smul.addr %s267, 64
        %s269 = scalar_lea.vmem [#allocation2], %s268
        %p270 = pneg %p88
        %p271 = pneg %p85
        %s272 = smul.u32 8, %s25
        %p273 = scmp.lt.s32.totalorder %s272, 63
        %s274 = scalar_select %p273, %s272, 63
        %s275 = scalar_lea.vmem %s2, %s274
        %p276 = pneg %p114
        %p277 = pneg %p111
        %s278 = smul.u32 8, %s25
        %p279 = scmp.lt.s32.totalorder %s278, 63
        %s280 = scalar_select %p279, %s278, 63
        %s281 = scalar_lea.vmem %s3, %s280
        %p282 = pneg %p140
        %p283 = pneg %p137
        %p284 = pneg %p170
        %p285 = pneg %p167
        %s286 = smul.u32 8, %s25
        %p287 = scmp.lt.s32.totalorder %s23, 0
        %s288 = scalar_select %p287, %s23, 0
        %p289 = scmp.lt.s32.totalorder %s24, 0
        %s290 = scalar_select %p289, %s24, 0
        %p291 = scmp.lt.s32.totalorder %s286, 63
        %s292 = scalar_select %p291, %s286, 63
        %s293 = smul.addr %s290, 64
        %s294 = sadd.s32 %s292, %s293
        %s295 = smul.addr %s288, 64
        %s296 = sadd.s32 %s294, %s295
        %s297 = smul.addr %s296, 4
        %s298 = scalar_lea.vmem %s4, %s297
        %p299 = scmp.lt.s32.totalorder %s23, 0
        %s300 = scalar_select %p299, %s23, 0
        %p301 = scmp.lt.s32.totalorder %s24, 0
        %s302 = scalar_select %p301, %s24, 0
        %s303 = sadd.s32 %s302, %s300
        %s304 = smul.addr %s303, 4
        %s305 = scalar_lea.vmem %s0, %s304
        %s306 = smul.u32 8, %s25
        %s307 = smul.u32 8, %s25
        %p308 = scmp.lt.s32.totalorder %s307, 63
        %s309 = scalar_select %p308, %s307, 63
        %s310 = scalar_lea.vmem %s2, %s309
        %s311 = smul.u32 8, %s25
        %s312 = smul.u32 8, %s25
        %p313 = scmp.lt.s32.totalorder %s312, 63
        %s314 = scalar_select %p313, %s312, 63
        %s315 = scalar_lea.vmem %s3, %s314
        %s316 = smul.u32 8, %s25
        %s317 = smul.u32 8, %s25
        %p318 = scmp.lt.s32.totalorder %s23, 0
        %s319 = scalar_select %p318, %s23, 0
        %p320 = scmp.lt.s32.totalorder %s24, 0
        %s321 = scalar_select %p320, %s24, 0
        %p322 = scmp.lt.s32.totalorder %s317, 63
        %s323 = scalar_select %p322, %s317, 63
        %s324 = smul.addr %s321, 64
        %s325 = sadd.s32 %s323, %s324
        %s326 = smul.addr %s319, 64
        %s327 = sadd.s32 %s325, %s326
        %s328 = smul.addr %s327, 4
        %s329 = scalar_lea.vmem %s4, %s328
        %s330 = smul.u32 8, %s25
        %v332 = vld [vmem:[%s305] sm:$0xf]
        %v333 = vld [vmem:[%s250] sm:$0xff]
        %v334 = vld [vmem:[%s250 + $0x8] sm:$0xff]
        %v335 = vld [vmem:[%s250 + $0x10] sm:$0xff]
        %v336 = vld [vmem:[%s250 + $0x18] sm:$0xff]
        %v337 = vld [vmem:[%s250 + $0x20] sm:$0xff]
        %v338 = vld [vmem:[%s250 + $0x28] sm:$0xff]
        %v339 = vld [vmem:[%s250 + $0x30] sm:$0xff]
        %v340 = vld [vmem:[%s250 + $0x38] sm:$0xff]
        %v349 = vunpack.c.l.b16 %v333
        %v350 = vunpack.c.h.b16 %v333
        %v351 = vunpack.c.l.b16 %v334
        %v352 = vunpack.c.h.b16 %v334
        %v353 = vunpack.c.l.b16 %v335
        %v354 = vunpack.c.h.b16 %v335
        %v355 = vunpack.c.l.b16 %v336
        %v356 = vunpack.c.h.b16 %v336
        %v357 = vunpack.c.l.b16 %v337
        %v358 = vunpack.c.h.b16 %v337
        %v359 = vunpack.c.l.b16 %v338
        %v360 = vunpack.c.h.b16 %v338
        %v361 = vunpack.c.l.b16 %v339
        %v362 = vunpack.c.h.b16 %v339
        %v363 = vunpack.c.l.b16 %v340
        %v364 = vunpack.c.h.b16 %v340
        %v365 = vpack.c.b16 %v357, %v349
        %v366 = vpack.c.b16 %v358, %v350
        %v367 = vpack.c.b16 %v359, %v351
        %v368 = vpack.c.b16 %v360, %v352
        %v369 = vpack.c.b16 %v361, %v353
        %v370 = vpack.c.b16 %v362, %v354
        %v371 = vpack.c.b16 %v363, %v355
        %v372 = vpack.c.b16 %v364, %v356
        %vm381 = vcmask 130048
        %v383 = vsel %vm381, %v332, 0
        %385 = vmatpush.bf16.msra.mxu0 0
        %386 = vmatpush.bf16.msra.mxu0 0
        %387 = vmatpush.bf16.msra.mxu0 0
        %388 = vmatpush.bf16.msra.mxu0 0
        %389 = vmatpush.bf16.msra.mxu0 0
        %390 = vmatpush.bf16.msra.mxu0 0
        %391 = vmatpush.bf16.msra.mxu0 0
        %392 = vmatpush.bf16.msra.mxu0 %v365
        %393 = vmatmul.bf16.gmra.mxu0 %v383
        %v394 = vpop.f32.mrf.mxu0
        %v395 = vadd.f32 0.0, %v394
        %v396 = vpop.f32.mrf.mxu0
        %397 = vdwg.mxu0
        %398 = vmatpush.bf16.msra.mxu0 0
        %399 = vmatpush.bf16.msra.mxu0 0
        %400 = vmatpush.bf16.msra.mxu0 0
        %401 = vmatpush.bf16.msra.mxu0 0
        %402 = vmatpush.bf16.msra.mxu0 0
        %403 = vmatpush.bf16.msra.mxu0 0
        %404 = vmatpush.bf16.msra.mxu0 0
        %405 = vmatpush.bf16.msra.mxu0 %v366
        %406 = vmatmul.bf16.gmra.mxu0 %v383
        %v407 = vpop.f32.mrf.mxu0
        %v408 = vadd.f32 0.0, %v407
        %v409 = vpop.f32.mrf.mxu0
        %410 = vdwg.mxu0
        %411 = vmatpush.bf16.msra.mxu0 0
        %412 = vmatpush.bf16.msra.mxu0 0
        %413 = vmatpush.bf16.msra.mxu0 0
        %414 = vmatpush.bf16.msra.mxu0 0
        %415 = vmatpush.bf16.msra.mxu0 0
        %416 = vmatpush.bf16.msra.mxu0 0
        %417 = vmatpush.bf16.msra.mxu0 0
        %418 = vmatpush.bf16.msra.mxu0 %v367
        %419 = vmatmul.bf16.gmra.mxu0 %v383
        %v420 = vpop.f32.mrf.mxu0
        %v421 = vadd.f32 0.0, %v420
        %v422 = vpop.f32.mrf.mxu0
        %423 = vdwg.mxu0
        %424 = vmatpush.bf16.msra.mxu0 0
        %425 = vmatpush.bf16.msra.mxu0 0
        %426 = vmatpush.bf16.msra.mxu0 0
        %427 = vmatpush.bf16.msra.mxu0 0
        %428 = vmatpush.bf16.msra.mxu0 0
        %429 = vmatpush.bf16.msra.mxu0 0
        %430 = vmatpush.bf16.msra.mxu0 0
        %431 = vmatpush.bf16.msra.mxu0 %v368
        %432 = vmatmul.bf16.gmra.mxu0 %v383
        %v433 = vpop.f32.mrf.mxu0
        %v434 = vadd.f32 0.0, %v433
        %v435 = vpop.f32.mrf.mxu0
        %436 = vdwg.mxu0
        %437 = vmatpush.bf16.msra.mxu0 0
        %438 = vmatpush.bf16.msra.mxu0 0
        %439 = vmatpush.bf16.msra.mxu0 0
        %440 = vmatpush.bf16.msra.mxu0 0
        %441 = vmatpush.bf16.msra.mxu0 0
        %442 = vmatpush.bf16.msra.mxu0 0
        %443 = vmatpush.bf16.msra.mxu0 0
        %444 = vmatpush.bf16.msra.mxu0 %v369
        %445 = vmatmul.bf16.gmra.mxu0 %v383
        %v446 = vpop.f32.mrf.mxu0
        %v447 = vadd.f32 0.0, %v446
        %v448 = vpop.f32.mrf.mxu0
        %449 = vdwg.mxu0
        %450 = vmatpush.bf16.msra.mxu0 0
        %451 = vmatpush.bf16.msra.mxu0 0
        %452 = vmatpush.bf16.msra.mxu0 0
        %453 = vmatpush.bf16.msra.mxu0 0
        %454 = vmatpush.bf16.msra.mxu0 0
        %455 = vmatpush.bf16.msra.mxu0 0
        %456 = vmatpush.bf16.msra.mxu0 0
        %457 = vmatpush.bf16.msra.mxu0 %v370
        %458 = vmatmul.bf16.gmra.mxu0 %v383
        %v459 = vpop.f32.mrf.mxu0
        %v460 = vadd.f32 0.0, %v459
        %v461 = vpop.f32.mrf.mxu0
        %462 = vdwg.mxu0
        %463 = vmatpush.bf16.msra.mxu0 0
        %464 = vmatpush.bf16.msra.mxu0 0
        %465 = vmatpush.bf16.msra.mxu0 0
        %466 = vmatpush.bf16.msra.mxu0 0
        %467 = vmatpush.bf16.msra.mxu0 0
        %468 = vmatpush.bf16.msra.mxu0 0
        %469 = vmatpush.bf16.msra.mxu0 0
        %470 = vmatpush.bf16.msra.mxu0 %v371
        %471 = vmatmul.bf16.gmra.mxu0 %v383
        %v472 = vpop.f32.mrf.mxu0
        %v473 = vadd.f32 0.0, %v472
        %v474 = vpop.f32.mrf.mxu0
        %475 = vdwg.mxu0
        %476 = vmatpush.bf16.msra.mxu0 0
        %477 = vmatpush.bf16.msra.mxu0 0
        %478 = vmatpush.bf16.msra.mxu0 0
        %479 = vmatpush.bf16.msra.mxu0 0
        %480 = vmatpush.bf16.msra.mxu0 0
        %481 = vmatpush.bf16.msra.mxu0 0
        %482 = vmatpush.bf16.msra.mxu0 0
        %483 = vmatpush.bf16.msra.mxu0 %v372
        %484 = vmatmul.bf16.gmra.mxu0 %v383
        %v485 = vpop.f32.mrf.mxu0
        %v486 = vadd.f32 0.0, %v485
        %v487 = vpop.f32.mrf.mxu0
        %488 = vdwg.mxu0
        %v489 = vld [vmem:[%s310] sm:$0xff]
        %v491 = vperm.slane %v489, 0
        %v492 = vperm.slane %v489, 1
        %v493 = vperm.slane %v489, 2
        %v494 = vperm.slane %v489, 3
        %v495 = vperm.slane %v489, 4
        %v496 = vperm.slane %v489, 5
        %v497 = vperm.slane %v489, 6
        %v498 = vperm.slane %v489, 7
        %v507 = vmul.f32 %v395, %v491
        %v508 = vmul.f32 %v408, %v492
        %v509 = vmul.f32 %v421, %v493
        %v510 = vmul.f32 %v434, %v494
        %v511 = vmul.f32 %v447, %v495
        %v512 = vmul.f32 %v460, %v496
        %v513 = vmul.f32 %v473, %v497
        %v514 = vmul.f32 %v486, %v498
        %v515 = vld [vmem:[%s315] sm:$0xff]
        %v517 = vperm.slane %v515, 0
        %v518 = vperm.slane %v515, 1
        %v519 = vperm.slane %v515, 2
        %v520 = vperm.slane %v515, 3
        %v521 = vperm.slane %v515, 4
        %v522 = vperm.slane %v515, 5
        %v523 = vperm.slane %v515, 6
        %v524 = vperm.slane %v515, 7
        %v533 = vadd.f32 %v507, %v517
        %v534 = vadd.f32 %v508, %v518
        %v535 = vadd.f32 %v509, %v519
        %v536 = vadd.f32 %v510, %v520
        %v537 = vadd.f32 %v511, %v521
        %v538 = vadd.f32 %v512, %v522
        %v539 = vadd.f32 %v513, %v523
        %v540 = vadd.f32 %v514, %v524
        %v541 = vmax.f32 %v533, 0.0
        %v542 = vmax.f32 %v534, 0.0
        %v543 = vmax.f32 %v535, 0.0
        %v544 = vmax.f32 %v536, 0.0
        %v545 = vmax.f32 %v537, 0.0
        %v546 = vmax.f32 %v538, 0.0
        %v547 = vmax.f32 %v539, 0.0
        %v548 = vmax.f32 %v540, 0.0
        %v549 = vpack.c.bf16 %v542, %v541
        %v550 = vpack.c.bf16 %v544, %v543
        %v551 = vpack.c.bf16 %v546, %v545
        %v552 = vpack.c.bf16 %v548, %v547
        %553 = vst [vmem:[%s329] sm:$0xff] %v549
        %554 = vst [vmem:[%s329 + $0x8] sm:$0xff] %v550
        %555 = vst [vmem:[%s329 + $0x10] sm:$0xff] %v551
        %556 = vst [vmem:[%s329 + $0x18] sm:$0xff] %v552
        %s557 = smul.u32 8, %s25
        %p558 = scmp.lt.s32.totalorder %s23, 0
        %s559 = scalar_select %p558, %s23, 0
        %p560 = scmp.lt.s32.totalorder %s24, 0
        %s561 = scalar_select %p560, %s24, 0
        %p562 = scmp.lt.s32.totalorder %s557, 63
        %s563 = scalar_select %p562, %s557, 63
        %s564 = smul.addr %s561, 64
        %s565 = sadd.s32 %s563, %s564
        %s566 = smul.addr %s559, 64
        %s567 = sadd.s32 %s565, %s566
        %s568 = smul.addr %s567, 4
        %s569 = scalar_lea.vmem %s4, %s568
        // Predicated region
        $region41: #{_lambda_.5} parent=35 // pred_check
          %p570 = pneg %p167
        $region42: #{_lambda_.5} parent=35 // pred_check_branch
          %572 = sbr.rel (%p570) target = $region44
        $region43: #{_lambda_.5} parent=35 // pred_region
          %s573 = smul.u32 8, %s25
        $region44: #{_lambda_.5} parent=35 // pred_fallthru
          _
      $region36: #{_lambda_.5} parent=5 // pred_fallthru
        _
      %p574 = scmp.le.s32.totalorder 2, %s13
      // Predicated region
      $region45: #{_lambda_.5} parent=5 // pred_check
        %p575 = pneg %p574
      $region46: #{_lambda_.5} parent=5 // pred_check_branch
        %577 = sbr.rel (%p575) target = $region48
      $region47: #{_lambda_.5} parent=5 // pred_region
        %s578 = ssub.s32 %s13, 2
        // Predicated region
        $region49: #{_lambda_.5} parent=47 // pred_check
          %p579 = pneg %p173
        $region50: #{_lambda_.5} parent=47 // pred_check_branch
          %581 = sbr.rel (%p579) target = $region52
        $region51: #{_lambda_.5} parent=47 // pred_region
          %s582 = smul.u32 8, %s28
          %p583 = scmp.lt.s32.totalorder %s26, 0
          %s584 = scalar_select %p583, %s26, 0
          %p585 = scmp.lt.s32.totalorder %s27, 0
          %s586 = scalar_select %p585, %s27, 0
          %p587 = scmp.lt.s32.totalorder %s582, 63
          %s588 = scalar_select %p587, %s582, 63
          %s589 = smul.addr %s586, 64
          %s590 = sadd.s32 %s588, %s589
          %s591 = smul.addr %s584, 64
          %s592 = sadd.s32 %s590, %s591
          %s593 = smul.addr %s592, 4
          %s594 = scalar_lea.vmem %s4, %s593
        $region52: #{_lambda_.5} parent=47 // pred_fallthru
          _
      $region48: #{_lambda_.5} parent=5 // pred_fallthru
        _
    $region6: #{_lambda_.5} parent=1 // loop_footer
      %s17 = sadd.s32 1, %s13
    $region7: #{_lambda_.5} parent=1 // loop_footer_branch
      %12 = sbr.rel target = $region3
    $region8: #{_lambda_.5} parent=1 // loop_exit
      _
    %595 = vsyncpa [#allocation3], 1
    %s596 = scalar_lea.sflag [#allocation3], 1
    %597 = vsyncpa %s596, 1

// kernel: _lambda_.6
$region0: #{_lambda_.6}
  #allocation0 [shape = 'u32[]', space=smem, size = 0x4, offset = 0x4, fixed_abs, tag = 'smem constant byte address 0x4 - core index']
  #allocation1 [shape = 'u32[72,128]{1,0:T(1,128)}', space=vmem, size = 0x9000, scoped, tag = 'internal scratch']
  %s0 = inlined_call_operand.vmem [shape: bf16[4,32,2048], index: 0, kind: input, shape index: {}]
  %s1 = inlined_call_operand.hbm [shape: bf16[4,2048,256], index: 1, kind: input, shape index: {}]
  %s2 = inlined_call_operand.vmem [shape: f32[1,256], index: 2, kind: input, shape index: {}]
  %s3 = inlined_call_operand.vmem [shape: f32[1,256], index: 3, kind: input, shape index: {}]
  %s4 = inlined_call_operand.vmem [shape: bf16[4,32,256], index: 4, kind: output, shape index: {}]
  %s5 = sld [smem:[#allocation0]]
  $region53: #{_lambda_.6} parent=0
    _
  %s7 = ssub.s32 1, %s5
  %s8 = scalar_select 0, %s7, %s5
  $region1: #{_lambda_.6} parent=0
    #allocation2 [shape = 'u8[2097152]{0}', space=vmem, size = 0x200000, scoped, tag = 'input window, operand 1']
    #allocation3 [shape = 's32[2]{0}', space=sflag, size = 0x8, scoped, tag = 'scoped memory for _lambda_.6']
    %9 = vsyncpa [#allocation3], 0
    %s10 = scalar_lea.sflag [#allocation3], 1
    %11 = vsyncpa %s10, 0
    loop: start=0, step=1, limit=6
    $region2: #{_lambda_.6} parent=1 // loop_pre_header
      _
    $region3: #{_lambda_.6} parent=1 // loop_header
      %s13 = sphi 0, %s17
      %p14 = scmp.ge.s32.totalorder %s13, 6
      %s20 = sphi 0, %s39
      %s21 = sphi 0, %s35
      %s22 = sphi 0, %s31
      %s23 = sphi 0, %s20
      %s24 = sphi 0, %s21
      %s25 = sphi 0, %s22
      %s26 = sphi 0, %s23
      %s27 = sphi 0, %s24
      %s28 = sphi 0, %s25
      %s44 = sphi 0, %s46
      %s47 = sphi 0, %s44
      %s48 = sphi 0, %s47
      %s64 = sphi 0, %s48
      %s72 = sphi 0, %s74
      %s75 = sphi 0, %s72
      %s76 = sphi 0, %s75
      %s92 = sphi 0, %s76
      %s98 = sphi 0, %s100
      %s101 = sphi 0, %s98
      %s102 = sphi 0, %s101
      %s118 = sphi 0, %s102
      %s124 = sphi 0, %s126
      %s127 = sphi 0, %s124
      %s128 = sphi 0, %s127
      %s144 = sphi 0, %s128
      %s154 = sphi 0, %s156
      %s157 = sphi 0, %s154
      %s158 = sphi 0, %s157
      %s174 = sphi 0, %s158
    $region4: #{_lambda_.6} parent=1 // loop_header_branch
      %16 = sbr.rel (%p14) target = $region8
    $region5: #{_lambda_.6} parent=1 // loop_body
      %s18 = ssub.s32 %s13, 1
      %s19 = ssub.s32 %s13, 2
      %s29 = sadd.s32 1, %s22
      %p30 = scmp.ge.s32.totalorder %s29, 1
      %s31 = scalar_select %p30, 0, %s29
      %s32 = sadd.s32 1, %s21
      %s33 = scalar_select %p30, %s32, %s21
      %p34 = scmp.ge.s32.totalorder %s33, 1
      %s35 = scalar_select %p34, 0, %s33
      %s36 = sadd.s32 1, %s20
      %s37 = scalar_select %p34, %s36, %s20
      %p38 = scmp.ge.s32.totalorder %s37, 4
      %s39 = scalar_select %p38, 0, %s37
      %s40 = ssub.s32 %s20, %s39
      %s41 = ssub.s32 %s21, %s35
      %s42 = sor.u32 %s40, %s41
      %p43 = scmp.eq.s32.totalorder %s42, 0
      %s45 = sadd.s32 %s44, 1
      %s46 = scalar_select %p43, %s44, %s45
      %p49 = pneg %p43
      %p50 = scmp.eq.s32.totalorder %s13, 3
      %p51 = por %p49, %p50
      %p52 = scmp.ne.s32.totalorder %s44, %s47
      %p53 = scmp.eq.s32.totalorder %s13, 0
      %p54 = por %p52, %p53
      %p55 = scmp.ne.s32.totalorder %s44, %s47
      %p56 = scmp.eq.s32.totalorder %s18, 3
      %p57 = por %p55, %p56
      %p58 = scmp.ne.s32.totalorder %s47, %s48
      %p59 = scmp.eq.s32.totalorder %s18, 0
      %p60 = por %p58, %p59
      %p61 = scmp.ne.s32.totalorder %s47, %s48
      %p62 = scmp.eq.s32.totalorder %s19, 3
      %p63 = por %p61, %p62
      %p65 = scmp.ne.s32.totalorder %s48, %s64
      %p66 = scmp.eq.s32.totalorder %s19, 0
      %p67 = por %p65, %p66
      %s68 = ssub.s32 %s20, %s39
      %s69 = ssub.s32 %s22, %s31
      %s70 = sor.u32 %s68, %s69
      %p71 = scmp.eq.s32.totalorder %s70, 0
      %s73 = sadd.s32 %s72, 1
      %s74 = scalar_select %p71, %s72, %s73
      %p77 = pneg %p71
      %p78 = scmp.eq.s32.totalorder %s13, 3
      %p79 = por %p77, %p78
      %p80 = scmp.ne.s32.totalorder %s72, %s75
      %p81 = scmp.eq.s32.totalorder %s13, 0
      %p82 = por %p80, %p81
      %p83 = scmp.ne.s32.totalorder %s72, %s75
      %p84 = scmp.eq.s32.totalorder %s18, 3
      %p85 = por %p83, %p84
      %p86 = scmp.ne.s32.totalorder %s75, %s76
      %p87 = scmp.eq.s32.totalorder %s18, 0
      %p88 = por %p86, %p87
      %p89 = scmp.ne.s32.totalorder %s75, %s76
      %p90 = scmp.eq.s32.totalorder %s19, 3
      %p91 = por %p89, %p90
      %p93 = scmp.ne.s32.totalorder %s76, %s92
      %p94 = scmp.eq.s32.totalorder %s19, 0
      %p95 = por %p93, %p94
      %s96 = ssub.s32 %s22, %s31
      %p97 = scmp.eq.s32.totalorder %s96, 0
      %s99 = sadd.s32 %s98, 1
      %s100 = scalar_select %p97, %s98, %s99
      %p103 = pneg %p97
      %p104 = scmp.eq.s32.totalorder %s13, 3
      %p105 = por %p103, %p104
      %p106 = scmp.ne.s32.totalorder %s98, %s101
      %p107 = scmp.eq.s32.totalorder %s13, 0
      %p108 = por %p106, %p107
      %p109 = scmp.ne.s32.totalorder %s98, %s101
      %p110 = scmp.eq.s32.totalorder %s18, 3
      %p111 = por %p109, %p110
      %p112 = scmp.ne.s32.totalorder %s101, %s102
      %p113 = scmp.eq.s32.totalorder %s18, 0
      %p114 = por %p112, %p113
      %p115 = scmp.ne.s32.totalorder %s101, %s102
      %p116 = scmp.eq.s32.totalorder %s19, 3
      %p117 = por %p115, %p116
      %p119 = scmp.ne.s32.totalorder %s102, %s118
      %p120 = scmp.eq.s32.totalorder %s19, 0
      %p121 = por %p119, %p120
      %s122 = ssub.s32 %s22, %s31
      %p123 = scmp.eq.s32.totalorder %s122, 0
      %s125 = sadd.s32 %s124, 1
      %s126 = scalar_select %p123, %s124, %s125
      %p129 = pneg %p123
      %p130 = scmp.eq.s32.totalorder %s13, 3
      %p131 = por %p129, %p130
      %p132 = scmp.ne.s32.totalorder %s124, %s127
      %p133 = scmp.eq.s32.totalorder %s13, 0
      %p134 = por %p132, %p133
      %p135 = scmp.ne.s32.totalorder %s124, %s127
      %p136 = scmp.eq.s32.totalorder %s18, 3
      %p137 = por %p135, %p136
      %p138 = scmp.ne.s32.totalorder %s127, %s128
      %p139 = scmp.eq.s32.totalorder %s18, 0
      %p140 = por %p138, %p139
      %p141 = scmp.ne.s32.totalorder %s127, %s128
      %p142 = scmp.eq.s32.totalorder %s19, 3
      %p143 = por %p141, %p142
      %p145 = scmp.ne.s32.totalorder %s128, %s144
      %p146 = scmp.eq.s32.totalorder %s19, 0
      %p147 = por %p145, %p146
      %s148 = ssub.s32 %s20, %s39
      %s149 = ssub.s32 %s21, %s35
      %s150 = sor.u32 %s148, %s149
      %s151 = ssub.s32 %s22, %s31
      %s152 = sor.u32 %s150, %s151
      %p153 = scmp.eq.s32.totalorder %s152, 0
      %s155 = sadd.s32 %s154, 1
      %s156 = scalar_select %p153, %s154, %s155
      %p159 = pneg %p153
      %p160 = scmp.eq.s32.totalorder %s13, 3
      %p161 = por %p159, %p160
      %p162 = scmp.ne.s32.totalorder %s154, %s157
      %p163 = scmp.eq.s32.totalorder %s13, 0
      %p164 = por %p162, %p163
      %p165 = scmp.ne.s32.totalorder %s154, %s157
      %p166 = scmp.eq.s32.totalorder %s18, 3
      %p167 = por %p165, %p166
      %p168 = scmp.ne.s32.totalorder %s157, %s158
      %p169 = scmp.eq.s32.totalorder %s18, 0
      %p170 = por %p168, %p169
      %p171 = scmp.ne.s32.totalorder %s157, %s158
      %p172 = scmp.eq.s32.totalorder %s19, 3
      %p173 = por %p171, %p172
      %p175 = scmp.ne.s32.totalorder %s158, %s174
      %p176 = scmp.eq.s32.totalorder %s19, 0
      %p177 = por %p175, %p176
      %p178 = scmp.le.s32.totalorder 1, %s13
      %p179 = scmp.lt.s32.totalorder %s13, 5
      %p180 = pnand %p178, %p179
      %p181 = pneg %p180
      // Predicated region
      $region9: #{_lambda_.6} parent=5 // pred_check
        _
      $region10: #{_lambda_.6} parent=5 // pred_check_branch
        %183 = sbr.rel (%p180) target = $region12
      $region11: #{_lambda_.6} parent=5 // pred_region
        %s184 = ssub.s32 %s13, 1
        // Predicated region
        $region13: #{_lambda_.6} parent=11 // pred_check
          %p185 = pneg %p114
        $region14: #{_lambda_.6} parent=11 // pred_check_branch
          %187 = sbr.rel (%p185) target = $region16
        $region15: #{_lambda_.6} parent=11 // pred_region
          %s188 = smul.u32 2, %s25
          %p189 = scmp.lt.s32.totalorder %s188, 1
          %s190 = scalar_select %p189, %s188, 1
          %s191 = scalar_lea.vmem %s2, %s190
          %s192 = smul.u32 2, %s25
        $region16: #{_lambda_.6} parent=11 // pred_fallthru
          _
        // Predicated region
        $region17: #{_lambda_.6} parent=11 // pred_check
          %p193 = pneg %p140
        $region18: #{_lambda_.6} parent=11 // pred_check_branch
          %195 = sbr.rel (%p193) target = $region20
        $region19: #{_lambda_.6} parent=11 // pred_region
          %s196 = smul.u32 2, %s25
          %p197 = scmp.lt.s32.totalorder %s196, 1
          %s198 = scalar_select %p197, %s196, 1
          %s199 = scalar_lea.vmem %s3, %s198
          %s200 = smul.u32 2, %s25
        $region20: #{_lambda_.6} parent=11 // pred_fallthru
          _
      $region12: #{_lambda_.6} parent=5 // pred_fallthru
        _
      %p201 = scmp.lt.s32.totalorder %s13, 4
      // Predicated region
      $region21: #{_lambda_.6} parent=5 // pred_check
        %p202 = pneg %p201
      $region22: #{_lambda_.6} parent=5 // pred_check_branch
        %204 = sbr.rel (%p202) target = $region24
      $region23: #{_lambda_.6} parent=5 // pred_region
        // Predicated region
        $region25: #{_lambda_.6} parent=23 // pred_check
          %p205 = pneg %p54
        $region26: #{_lambda_.6} parent=23 // pred_check_branch
          %207 = sbr.rel (%p205) target = $region28
        $region27: #{_lambda_.6} parent=23 // pred_region
          %s208 = smul.u32 4, %s21
          %p209 = scmp.lt.s32.totalorder %s20, 3
          %s210 = scalar_select %p209, %s20, 3
          %p211 = scmp.lt.s32.totalorder %s208, 3
          %s212 = scalar_select %p211, %s208, 3
          %s213 = smul.addr %s212, 16
          %s214 = smul.addr %s210, 64
          %s215 = sadd.s32 %s213, %s214
          %s216 = smul.addr %s215, 4
          %s217 = scalar_lea.vmem %s0, %s216
          %s218 = smul.u32 4, %s21
        $region28: #{_lambda_.6} parent=23 // pred_fallthru
          _
        // Predicated region
        $region29: #{_lambda_.6} parent=23 // pred_check
          %p219 = pneg %p82
        $region30: #{_lambda_.6} parent=23 // pred_check_branch
          %221 = sbr.rel (%p219) target = $region32
        $region31: #{_lambda_.6} parent=23 // pred_region
          %s222 = sand.u32 %s72, 1
          %s223 = scalar_lea.sflag [#allocation3], %s222
          %s224 = sand.u32 %s72, 1
          %s225 = smul.addr %s224, 2048
          %s226 = scalar_lea.vmem [#allocation2], %s225
          %s227 = smul.u32 2, %s22
          %229 = vsyncadd %s223, 0
          %s230 = smul.addr %s20, 512
          %s231 = sadd.s32 %s227, %s230
          %s232 = smul.addr %s231, 4
          %s233 = scalar_lea.hbm %s1, %s232
          %s234 = sshll.u32 %s233, 4
          %s235 = int_to_ptr.hbm [resolvable:$true] %s234
          %s236 = sshll.u32 %s226, 4
          %s237 = int_to_ptr.vmem [resolvable:$true] %s236
          %242 = dma.hbm_to_vmem [thread:$0]  %s235, 32768, %s237, %s223, 128, 128, 8
        $region32: #{_lambda_.6} parent=23 // pred_fallthru
          _
      $region24: #{_lambda_.6} parent=5 // pred_fallthru
        _
      %p243 = scmp.le.s32.totalorder 1, %s13
      %p244 = scmp.lt.s32.totalorder %s13, 5
      %p245 = pnand %p243, %p244
      %p246 = pneg %p245
      // Predicated region
      $region33: #{_lambda_.6} parent=5 // pred_check
        _
      $region34: #{_lambda_.6} parent=5 // pred_check_branch
        %248 = sbr.rel (%p245) target = $region36
      $region35: #{_lambda_.6} parent=5 // pred_region
        %s249 = ssub.s32 %s13, 1
        %s250 = sand.u32 %s75, 1
        %s251 = scalar_lea.sflag [#allocation3], %s250
        %s252 = sand.u32 %s75, 1
        %s253 = smul.addr %s252, 2048
        %s254 = scalar_lea.vmem [#allocation2], %s253
        // Predicated region
        $region37: #{_lambda_.6} parent=35 // pred_check
          %p255 = pneg %p88
        $region38: #{_lambda_.6} parent=35 // pred_check_branch
          %257 = sbr.rel (%p255) target = $region40
        $region39: #{_lambda_.6} parent=35 // pred_region
          %259 = dma.done %s251, 32768
        $region40: #{_lambda_.6} parent=35 // pred_fallthru
          _
        %s260 = smul.u32 4, %s24
        %p261 = scmp.lt.s32.totalorder %s23, 3
        %s262 = scalar_select %p261, %s23, 3
        %p263 = scmp.lt.s32.totalorder %s260, 3
        %s264 = scalar_select %p263, %s260, 3
        %s265 = smul.addr %s264, 16
        %s266 = smul.addr %s262, 64
        %s267 = sadd.s32 %s265, %s266
        %s268 = smul.addr %s267, 4
        %s269 = scalar_lea.vmem %s0, %s268
        %p270 = pneg %p60
        %p271 = pneg %p57
        %s272 = sand.u32 %s75, 1
        %s273 = scalar_lea.sflag [#allocation3], %s272
        %s274 = sand.u32 %s75, 1
        %s275 = smul.addr %s274, 2048
        %s276 = scalar_lea.vmem [#allocation2], %s275
        %p277 = pneg %p88
        %p278 = pneg %p85
        %s279 = smul.u32 2, %s25
        %p280 = scmp.lt.s32.totalorder %s279, 1
        %s281 = scalar_select %p280, %s279, 1
        %s282 = scalar_lea.vmem %s2, %s281
        %p283 = pneg %p114
        %p284 = pneg %p111
        %s285 = smul.u32 2, %s25
        %p286 = scmp.lt.s32.totalorder %s285, 1
        %s287 = scalar_select %p286, %s285, 1
        %s288 = scalar_lea.vmem %s3, %s287
        %p289 = pneg %p140
        %p290 = pneg %p137
        %p291 = pneg %p170
        %p292 = pneg %p167
        %s293 = smul.u32 4, %s24
        %s294 = smul.u32 2, %s25
        %p295 = scmp.lt.s32.totalorder %s23, 3
        %s296 = scalar_select %p295, %s23, 3
        %p297 = scmp.lt.s32.totalorder %s293, 3
        %s298 = scalar_select %p297, %s293, 3
        %p299 = scmp.lt.s32.totalorder %s294, 1
        %s300 = scalar_select %p299, %s294, 1
        %s301 = smul.addr %s298, 2
        %s302 = sadd.s32 %s300, %s301
        %s303 = smul.addr %s296, 8
        %s304 = sadd.s32 %s302, %s303
        %s305 = smul.addr %s304, 4
        %s306 = scalar_lea.vmem %s4, %s305
        %s307 = smul.u32 4, %s24
        %p308 = scmp.lt.s32.totalorder %s23, 3
        %s309 = scalar_select %p308, %s23, 3
        %p310 = scmp.lt.s32.totalorder %s307, 3
        %s311 = scalar_select %p310, %s307, 3
        %s312 = smul.addr %s311, 16
        %s313 = smul.addr %s309, 64
        %s314 = sadd.s32 %s312, %s313
        %s315 = smul.addr %s314, 4
        %s316 = scalar_lea.vmem %s0, %s315
        %s317 = smul.u32 4, %s24
        %s318 = smul.u32 2, %s25
        %s319 = smul.u32 2, %s25
        %p320 = scmp.lt.s32.totalorder %s319, 1
        %s321 = scalar_select %p320, %s319, 1
        %s322 = scalar_lea.vmem %s2, %s321
        %s323 = smul.u32 2, %s25
        %s324 = smul.u32 2, %s25
        %p325 = scmp.lt.s32.totalorder %s324, 1
        %s326 = scalar_select %p325, %s324, 1
        %s327 = scalar_lea.vmem %s3, %s326
        %s328 = smul.u32 2, %s25
        %s329 = smul.u32 4, %s24
        %s330 = smul.u32 2, %s25
        %p331 = scmp.lt.s32.totalorder %s23, 3
        %s332 = scalar_select %p331, %s23, 3
        %p333 = scmp.lt.s32.totalorder %s329, 3
        %s334 = scalar_select %p333, %s329, 3
        %p335 = scmp.lt.s32.totalorder %s330, 1
        %s336 = scalar_select %p335, %s330, 1
        %s337 = smul.addr %s334, 2
        %s338 = sadd.s32 %s336, %s337
        %s339 = smul.addr %s332, 8
        %s340 = sadd.s32 %s338, %s339
        %s341 = smul.addr %s340, 4
        %s342 = scalar_lea.vmem %s4, %s341
        %s343 = smul.u32 4, %s24
        %s344 = smul.u32 2, %s25
        %v345 = vld [vmem:[%s316] sm:$0xff]
        %v346 = vld [vmem:[%s316 + $0x8] sm:$0xff]
        %v347 = vld [vmem:[%s316 + $0x10] sm:$0xff]
        %v348 = vld [vmem:[%s316 + $0x18] sm:$0xff]
        %v349 = vld [vmem:[%s316 + $0x20] sm:$0xff]
        %v350 = vld [vmem:[%s316 + $0x28] sm:$0xff]
        %v351 = vld [vmem:[%s316 + $0x30] sm:$0xff]
        %v352 = vld [vmem:[%s316 + $0x38] sm:$0xff]
        %v353 = vld [vmem:[%s316 + $0x40] sm:$0xff]
        %v354 = vld [vmem:[%s316 + $0x48] sm:$0xff]
        %v355 = vld [vmem:[%s316 + $0x50] sm:$0xff]
        %v356 = vld [vmem:[%s316 + $0x58] sm:$0xff]
        %v357 = vld [vmem:[%s316 + $0x60] sm:$0xff]
        %v358 = vld [vmem:[%s316 + $0x68] sm:$0xff]
        %v359 = vld [vmem:[%s316 + $0x70] sm:$0xff]
        %v360 = vld [vmem:[%s316 + $0x78] sm:$0xff]
        %v361 = vld [vmem:[%s316 + $0x80] sm:$0xff]
        %v362 = vld [vmem:[%s316 + $0x88] sm:$0xff]
        %v363 = vld [vmem:[%s316 + $0x90] sm:$0xff]
        %v364 = vld [vmem:[%s316 + $0x98] sm:$0xff]
        %v365 = vld [vmem:[%s316 + $0xa0] sm:$0xff]
        %v366 = vld [vmem:[%s316 + $0xa8] sm:$0xff]
        %v367 = vld [vmem:[%s316 + $0xb0] sm:$0xff]
        %v368 = vld [vmem:[%s316 + $0xb8] sm:$0xff]
        %v369 = vld [vmem:[%s316 + $0xc0] sm:$0xff]
        %v370 = vld [vmem:[%s316 + $0xc8] sm:$0xff]
        %v371 = vld [vmem:[%s316 + $0xd0] sm:$0xff]
        %v372 = vld [vmem:[%s316 + $0xd8] sm:$0xff]
        %v373 = vld [vmem:[%s316 + $0xe0] sm:$0xff]
        %v374 = vld [vmem:[%s316 + $0xe8] sm:$0xff]
        %v375 = vld [vmem:[%s316 + $0xf0] sm:$0xff]
        %v376 = vld [vmem:[%s316 + $0xf8] sm:$0xff]
        %v377 = vld [vmem:[%s254] sm:$0xff]
        %v378 = vld [vmem:[%s254 + $0x8] sm:$0xff]
        %v379 = vld [vmem:[%s254 + $0x10] sm:$0xff]
        %v380 = vld [vmem:[%s254 + $0x18] sm:$0xff]
        %v381 = vld [vmem:[%s254 + $0x20] sm:$0xff]
        %v382 = vld [vmem:[%s254 + $0x28] sm:$0xff]
        %v383 = vld [vmem:[%s254 + $0x30] sm:$0xff]
        %v384 = vld [vmem:[%s254 + $0x38] sm:$0xff]
        %v385 = vld [vmem:[%s254 + $0x40] sm:$0xff]
        %v386 = vld [vmem:[%s254 + $0x48] sm:$0xff]
        %v387 = vld [vmem:[%s254 + $0x50] sm:$0xff]
        %v388 = vld [vmem:[%s254 + $0x58] sm:$0xff]
        %v389 = vld [vmem:[%s254 + $0x60] sm:$0xff]
        %v390 = vld [vmem:[%s254 + $0x68] sm:$0xff]
        %v391 = vld [vmem:[%s254 + $0x70] sm:$0xff]
        %v392 = vld [vmem:[%s254 + $0x78] sm:$0xff]
        %v393 = vld [vmem:[%s254 + $0x80] sm:$0xff]
        %v394 = vld [vmem:[%s254 + $0x88] sm:$0xff]
        %v395 = vld [vmem:[%s254 + $0x90] sm:$0xff]
        %v396 = vld [vmem:[%s254 + $0x98] sm:$0xff]
        %v397 = vld [vmem:[%s254 + $0xa0] sm:$0xff]
        %v398 = vld [vmem:[%s254 + $0xa8] sm:$0xff]
        %v399 = vld [vmem:[%s254 + $0xb0] sm:$0xff]
        %v400 = vld [vmem:[%s254 + $0xb8] sm:$0xff]
        %v401 = vld [vmem:[%s254 + $0xc0] sm:$0xff]
        %v402 = vld [vmem:[%s254 + $0xc8] sm:$0xff]
        %v403 = vld [vmem:[%s254 + $0xd0] sm:$0xff]
        %v404 = vld [vmem:[%s254 + $0xd8] sm:$0xff]
        %v405 = vld [vmem:[%s254 + $0xe0] sm:$0xff]
        %v406 = vld [vmem:[%s254 + $0xe8] sm:$0xff]
        %v407 = vld [vmem:[%s254 + $0xf0] sm:$0xff]
        %v408 = vld [vmem:[%s254 + $0xf8] sm:$0xff]
        %v409 = vld [vmem:[%s254 + $0x100] sm:$0xff]
        %v410 = vld [vmem:[%s254 + $0x108] sm:$0xff]
        %v411 = vld [vmem:[%s254 + $0x110] sm:$0xff]
        %v412 = vld [vmem:[%s254 + $0x118] sm:$0xff]
        %v413 = vld [vmem:[%s254 + $0x120] sm:$0xff]
        %v414 = vld [vmem:[%s254 + $0x128] sm:$0xff]
        %v415 = vld [vmem:[%s254 + $0x130] sm:$0xff]
        %v416 = vld [vmem:[%s254 + $0x138] sm:$0xff]
        %v417 = vld [vmem:[%s254 + $0x140] sm:$0xff]
        %v418 = vld [vmem:[%s254 + $0x148] sm:$0xff]
        %v419 = vld [vmem:[%s254 + $0x150] sm:$0xff]
        %v420 = vld [vmem:[%s254 + $0x158] sm:$0xff]
        %v421 = vld [vmem:[%s254 + $0x160] sm:$0xff]
        %v422 = vld [vmem:[%s254 + $0x168] sm:$0xff]
        %v423 = vld [vmem:[%s254 + $0x170] sm:$0xff]
        %v424 = vld [vmem:[%s254 + $0x178] sm:$0xff]
        %v425 = vld [vmem:[%s254 + $0x180] sm:$0xff]
        %v426 = vld [vmem:[%s254 + $0x188] sm:$0xff]
        %v427 = vld [vmem:[%s254 + $0x190] sm:$0xff]
        %v428 = vld [vmem:[%s254 + $0x198] sm:$0xff]
        %v429 = vld [vmem:[%s254 + $0x1a0] sm:$0xff]
        %v430 = vld [vmem:[%s254 + $0x1a8] sm:$0xff]
        %v431 = vld [vmem:[%s254 + $0x1b0] sm:$0xff]
        %v432 = vld [vmem:[%s254 + $0x1b8] sm:$0xff]
        %v433 = vld [vmem:[%s254 + $0x1c0] sm:$0xff]
        %v434 = vld [vmem:[%s254 + $0x1c8] sm:$0xff]
        %v435 = vld [vmem:[%s254 + $0x1d0] sm:$0xff]
        %v436 = vld [vmem:[%s254 + $0x1d8] sm:$0xff]
        %v437 = vld [vmem:[%s254 + $0x1e0] sm:$0xff]
        %v438 = vld [vmem:[%s254 + $0x1e8] sm:$0xff]
        %v439 = vld [vmem:[%s254 + $0x1f0] sm:$0xff]
        %v440 = vld [vmem:[%s254 + $0x1f8] sm:$0xff]
        %v441 = vld [vmem:[%s254 + $0x200] sm:$0xff]
        %v442 = vld [vmem:[%s254 + $0x208] sm:$0xff]
        %v443 = vld [vmem:[%s254 + $0x210] sm:$0xff]
        %v444 = vld [vmem:[%s254 + $0x218] sm:$0xff]
        %v445 = vld [vmem:[%s254 + $0x220] sm:$0xff]
        %v446 = vld [vmem:[%s254 + $0x228] sm:$0xff]
        %v447 = vld [vmem:[%s254 + $0x230] sm:$0xff]
        %v448 = vld [vmem:[%s254 + $0x238] sm:$0xff]
        %v449 = vld [vmem:[%s254 + $0x240] sm:$0xff]
        %v450 = vld [vmem:[%s254 + $0x248] sm:$0xff]
        %v451 = vld [vmem:[%s254 + $0x250] sm:$0xff]
        %v452 = vld [vmem:[%s254 + $0x258] sm:$0xff]
        %v453 = vld [vmem:[%s254 + $0x260] sm:$0xff]
        %v454 = vld [vmem:[%s254 + $0x268] sm:$0xff]
        %v455 = vld [vmem:[%s254 + $0x270] sm:$0xff]
        %v456 = vld [vmem:[%s254 + $0x278] sm:$0xff]
        %v457 = vld [vmem:[%s254 + $0x280] sm:$0xff]
        %v458 = vld [vmem:[%s254 + $0x288] sm:$0xff]
        %v459 = vld [vmem:[%s254 + $0x290] sm:$0xff]
        %v460 = vld [vmem:[%s254 + $0x298] sm:$0xff]
        %v461 = vld [vmem:[%s254 + $0x2a0] sm:$0xff]
        %v462 = vld [vmem:[%s254 + $0x2a8] sm:$0xff]
        %v463 = vld [vmem:[%s254 + $0x2b0] sm:$0xff]
        %v464 = vld [vmem:[%s254 + $0x2b8] sm:$0xff]
        %v465 = vld [vmem:[%s254 + $0x2c0] sm:$0xff]
        %v466 = vld [vmem:[%s254 + $0x2c8] sm:$0xff]
        %v467 = vld [vmem:[%s254 + $0x2d0] sm:$0xff]
        %v468 = vld [vmem:[%s254 + $0x2d8] sm:$0xff]
        %v469 = vld [vmem:[%s254 + $0x2e0] sm:$0xff]
        %v470 = vld [vmem:[%s254 + $0x2e8] sm:$0xff]
        %v471 = vld [vmem:[%s254 + $0x2f0] sm:$0xff]
        %v472 = vld [vmem:[%s254 + $0x2f8] sm:$0xff]
        %v473 = vld [vmem:[%s254 + $0x300] sm:$0xff]
        %v474 = vld [vmem:[%s254 + $0x308] sm:$0xff]
        %v475 = vld [vmem:[%s254 + $0x310] sm:$0xff]
        %v476 = vld [vmem:[%s254 + $0x318] sm:$0xff]
        %v477 = vld [vmem:[%s254 + $0x320] sm:$0xff]
        %v478 = vld [vmem:[%s254 + $0x328] sm:$0xff]
        %v479 = vld [vmem:[%s254 + $0x330] sm:$0xff]
        %v480 = vld [vmem:[%s254 + $0x338] sm:$0xff]
        %v481 = vld [vmem:[%s254 + $0x340] sm:$0xff]
        %v482 = vld [vmem:[%s254 + $0x348] sm:$0xff]
        %v483 = vld [vmem:[%s254 + $0x350] sm:$0xff]
        %v484 = vld [vmem:[%s254 + $0x358] sm:$0xff]
        %v485 = vld [vmem:[%s254 + $0x360] sm:$0xff]
        %v486 = vld [vmem:[%s254 + $0x368] sm:$0xff]
        %v487 = vld [vmem:[%s254 + $0x370] sm:$0xff]
        %v488 = vld [vmem:[%s254 + $0x378] sm:$0xff]
        %v489 = vld [vmem:[%s254 + $0x380] sm:$0xff]
        %v490 = vld [vmem:[%s254 + $0x388] sm:$0xff]
        %v491 = vld [vmem:[%s254 + $0x390] sm:$0xff]
        %v492 = vld [vmem:[%s254 + $0x398] sm:$0xff]
        %v493 = vld [vmem:[%s254 + $0x3a0] sm:$0xff]
        %v494 = vld [vmem:[%s254 + $0x3a8] sm:$0xff]
        %v495 = vld [vmem:[%s254 + $0x3b0] sm:$0xff]
        %v496 = vld [vmem:[%s254 + $0x3b8] sm:$0xff]
        %v497 = vld [vmem:[%s254 + $0x3c0] sm:$0xff]
        %v498 = vld [vmem:[%s254 + $0x3c8] sm:$0xff]
        %v499 = vld [vmem:[%s254 + $0x3d0] sm:$0xff]
        %v500 = vld [vmem:[%s254 + $0x3d8] sm:$0xff]
        %v501 = vld [vmem:[%s254 + $0x3e0] sm:$0xff]
        %v502 = vld [vmem:[%s254 + $0x3e8] sm:$0xff]
        %v503 = vld [vmem:[%s254 + $0x3f0] sm:$0xff]
        %v504 = vld [vmem:[%s254 + $0x3f8] sm:$0xff]
        %v505 = vld [vmem:[%s254 + $0x400] sm:$0xff]
        %v506 = vld [vmem:[%s254 + $0x408] sm:$0xff]
        %v507 = vld [vmem:[%s254 + $0x410] sm:$0xff]
        %v508 = vld [vmem:[%s254 + $0x418] sm:$0xff]
        %v509 = vld [vmem:[%s254 + $0x420] sm:$0xff]
        %v510 = vld [vmem:[%s254 + $0x428] sm:$0xff]
        %v511 = vld [vmem:[%s254 + $0x430] sm:$0xff]
        %v512 = vld [vmem:[%s254 + $0x438] sm:$0xff]
        %v513 = vld [vmem:[%s254 + $0x440] sm:$0xff]
        %v514 = vld [vmem:[%s254 + $0x448] sm:$0xff]
        %v515 = vld [vmem:[%s254 + $0x450] sm:$0xff]
        %v516 = vld [vmem:[%s254 + $0x458] sm:$0xff]
        %v517 = vld [vmem:[%s254 + $0x460] sm:$0xff]
        %v518 = vld [vmem:[%s254 + $0x468] sm:$0xff]
        %v519 = vld [vmem:[%s254 + $0x470] sm:$0xff]
        %v520 = vld [vmem:[%s254 + $0x478] sm:$0xff]
        %v521 = vld [vmem:[%s254 + $0x480] sm:$0xff]
        %v522 = vld [vmem:[%s254 + $0x488] sm:$0xff]
        %v523 = vld [vmem:[%s254 + $0x490] sm:$0xff]
        %v524 = vld [vmem:[%s254 + $0x498] sm:$0xff]
        %v525 = vld [vmem:[%s254 + $0x4a0] sm:$0xff]
        %v526 = vld [vmem:[%s254 + $0x4a8] sm:$0xff]
        %v527 = vld [vmem:[%s254 + $0x4b0] sm:$0xff]
        %v528 = vld [vmem:[%s254 + $0x4b8] sm:$0xff]
        %v529 = vld [vmem:[%s254 + $0x4c0] sm:$0xff]
        %v530 = vld [vmem:[%s254 + $0x4c8] sm:$0xff]
        %v531 = vld [vmem:[%s254 + $0x4d0] sm:$0xff]
        %v532 = vld [vmem:[%s254 + $0x4d8] sm:$0xff]
        %v533 = vld [vmem:[%s254 + $0x4e0] sm:$0xff]
        %v534 = vld [vmem:[%s254 + $0x4e8] sm:$0xff]
        %v535 = vld [vmem:[%s254 + $0x4f0] sm:$0xff]
        %v536 = vld [vmem:[%s254 + $0x4f8] sm:$0xff]
        %v537 = vld [vmem:[%s254 + $0x500] sm:$0xff]
        %v538 = vld [vmem:[%s254 + $0x508] sm:$0xff]
        %v539 = vld [vmem:[%s254 + $0x510] sm:$0xff]
        %v540 = vld [vmem:[%s254 + $0x518] sm:$0xff]
        %v541 = vld [vmem:[%s254 + $0x520] sm:$0xff]
        %v542 = vld [vmem:[%s254 + $0x528] sm:$0xff]
        %v543 = vld [vmem:[%s254 + $0x530] sm:$0xff]
        %v544 = vld [vmem:[%s254 + $0x538] sm:$0xff]
        %v545 = vld [vmem:[%s254 + $0x540] sm:$0xff]
        %v546 = vld [vmem:[%s254 + $0x548] sm:$0xff]
        %v547 = vld [vmem:[%s254 + $0x550] sm:$0xff]
        %v548 = vld [vmem:[%s254 + $0x558] sm:$0xff]
        %v549 = vld [vmem:[%s254 + $0x560] sm:$0xff]
        %v550 = vld [vmem:[%s254 + $0x568] sm:$0xff]
        %v551 = vld [vmem:[%s254 + $0x570] sm:$0xff]
        %v552 = vld [vmem:[%s254 + $0x578] sm:$0xff]
        %v553 = vld [vmem:[%s254 + $0x580] sm:$0xff]
        %v554 = vld [vmem:[%s254 + $0x588] sm:$0xff]
        %v555 = vld [vmem:[%s254 + $0x590] sm:$0xff]
        %v556 = vld [vmem:[%s254 + $0x598] sm:$0xff]
        %v557 = vld [vmem:[%s254 + $0x5a0] sm:$0xff]
        %v558 = vld [vmem:[%s254 + $0x5a8] sm:$0xff]
        %v559 = vld [vmem:[%s254 + $0x5b0] sm:$0xff]
        %v560 = vld [vmem:[%s254 + $0x5b8] sm:$0xff]
        %v561 = vld [vmem:[%s254 + $0x5c0] sm:$0xff]
        %v562 = vld [vmem:[%s254 + $0x5c8] sm:$0xff]
        %v563 = vld [vmem:[%s254 + $0x5d0] sm:$0xff]
        %v564 = vld [vmem:[%s254 + $0x5d8] sm:$0xff]
        %v565 = vld [vmem:[%s254 + $0x5e0] sm:$0xff]
        %v566 = vld [vmem:[%s254 + $0x5e8] sm:$0xff]
        %v567 = vld [vmem:[%s254 + $0x5f0] sm:$0xff]
        %v568 = vld [vmem:[%s254 + $0x5f8] sm:$0xff]
        %v569 = vld [vmem:[%s254 + $0x600] sm:$0xff]
        %v570 = vld [vmem:[%s254 + $0x608] sm:$0xff]
        %v571 = vld [vmem:[%s254 + $0x610] sm:$0xff]
        %v572 = vld [vmem:[%s254 + $0x618] sm:$0xff]
        %v573 = vld [vmem:[%s254 + $0x620] sm:$0xff]
        %v574 = vld [vmem:[%s254 + $0x628] sm:$0xff]
        %v575 = vld [vmem:[%s254 + $0x630] sm:$0xff]
        %v576 = vld [vmem:[%s254 + $0x638] sm:$0xff]
        %v577 = vld [vmem:[%s254 + $0x640] sm:$0xff]
        %v578 = vld [vmem:[%s254 + $0x648] sm:$0xff]
        %v579 = vld [vmem:[%s254 + $0x650] sm:$0xff]
        %v580 = vld [vmem:[%s254 + $0x658] sm:$0xff]
        %v581 = vld [vmem:[%s254 + $0x660] sm:$0xff]
        %v582 = vld [vmem:[%s254 + $0x668] sm:$0xff]
        %v583 = vld [vmem:[%s254 + $0x670] sm:$0xff]
        %v584 = vld [vmem:[%s254 + $0x678] sm:$0xff]
        %v585 = vld [vmem:[%s254 + $0x680] sm:$0xff]
        %v586 = vld [vmem:[%s254 + $0x688] sm:$0xff]
        %v587 = vld [vmem:[%s254 + $0x690] sm:$0xff]
        %v588 = vld [vmem:[%s254 + $0x698] sm:$0xff]
        %v589 = vld [vmem:[%s254 + $0x6a0] sm:$0xff]
        %v590 = vld [vmem:[%s254 + $0x6a8] sm:$0xff]
        %v591 = vld [vmem:[%s254 + $0x6b0] sm:$0xff]
        %v592 = vld [vmem:[%s254 + $0x6b8] sm:$0xff]
        %v593 = vld [vmem:[%s254 + $0x6c0] sm:$0xff]
        %v594 = vld [vmem:[%s254 + $0x6c8] sm:$0xff]
        %v595 = vld [vmem:[%s254 + $0x6d0] sm:$0xff]
        %v596 = vld [vmem:[%s254 + $0x6d8] sm:$0xff]
        %v597 = vld [vmem:[%s254 + $0x6e0] sm:$0xff]
        %v598 = vld [vmem:[%s254 + $0x6e8] sm:$0xff]
        %v599 = vld [vmem:[%s254 + $0x6f0] sm:$0xff]
        %v600 = vld [vmem:[%s254 + $0x6f8] sm:$0xff]
        %v601 = vld [vmem:[%s254 + $0x700] sm:$0xff]
        %v602 = vld [vmem:[%s254 + $0x708] sm:$0xff]
        %v603 = vld [vmem:[%s254 + $0x710] sm:$0xff]
        %v604 = vld [vmem:[%s254 + $0x718] sm:$0xff]
        %v605 = vld [vmem:[%s254 + $0x720] sm:$0xff]
        %v606 = vld [vmem:[%s254 + $0x728] sm:$0xff]
        %v607 = vld [vmem:[%s254 + $0x730] sm:$0xff]
        %v608 = vld [vmem:[%s254 + $0x738] sm:$0xff]
        %v609 = vld [vmem:[%s254 + $0x740] sm:$0xff]
        %v610 = vld [vmem:[%s254 + $0x748] sm:$0xff]
        %v611 = vld [vmem:[%s254 + $0x750] sm:$0xff]
        %v612 = vld [vmem:[%s254 + $0x758] sm:$0xff]
        %v613 = vld [vmem:[%s254 + $0x760] sm:$0xff]
        %v614 = vld [vmem:[%s254 + $0x768] sm:$0xff]
        %v615 = vld [vmem:[%s254 + $0x770] sm:$0xff]
        %v616 = vld [vmem:[%s254 + $0x778] sm:$0xff]
        %v617 = vld [vmem:[%s254 + $0x780] sm:$0xff]
        %v618 = vld [vmem:[%s254 + $0x788] sm:$0xff]
        %v619 = vld [vmem:[%s254 + $0x790] sm:$0xff]
        %v620 = vld [vmem:[%s254 + $0x798] sm:$0xff]
        %v621 = vld [vmem:[%s254 + $0x7a0] sm:$0xff]
        %v622 = vld [vmem:[%s254 + $0x7a8] sm:$0xff]
        %v623 = vld [vmem:[%s254 + $0x7b0] sm:$0xff]
        %v624 = vld [vmem:[%s254 + $0x7b8] sm:$0xff]
        %v625 = vld [vmem:[%s254 + $0x7c0] sm:$0xff]
        %v626 = vld [vmem:[%s254 + $0x7c8] sm:$0xff]
        %v627 = vld [vmem:[%s254 + $0x7d0] sm:$0xff]
        %v628 = vld [vmem:[%s254 + $0x7d8] sm:$0xff]
        %v629 = vld [vmem:[%s254 + $0x7e0] sm:$0xff]
        %v630 = vld [vmem:[%s254 + $0x7e8] sm:$0xff]
        %v631 = vld [vmem:[%s254 + $0x7f0] sm:$0xff]
        %v632 = vld [vmem:[%s254 + $0x7f8] sm:$0xff]
        %v665 = vunpack.c.l.b16 %v345
        %v666 = vunpack.c.h.b16 %v345
        %v667 = vunpack.c.l.b16 %v346
        %v668 = vunpack.c.h.b16 %v346
        %v669 = vunpack.c.l.b16 %v347
        %v670 = vunpack.c.h.b16 %v347
        %v671 = vunpack.c.l.b16 %v348
        %v672 = vunpack.c.h.b16 %v348
        %v673 = vunpack.c.l.b16 %v349
        %v674 = vunpack.c.h.b16 %v349
        %v675 = vunpack.c.l.b16 %v350
        %v676 = vunpack.c.h.b16 %v350
        %v677 = vunpack.c.l.b16 %v351
        %v678 = vunpack.c.h.b16 %v351
        %v679 = vunpack.c.l.b16 %v352
        %v680 = vunpack.c.h.b16 %v352
        %v681 = vunpack.c.l.b16 %v353
        %v682 = vunpack.c.h.b16 %v353
        %v683 = vunpack.c.l.b16 %v354
        %v684 = vunpack.c.h.b16 %v354
        %v685 = vunpack.c.l.b16 %v355
        %v686 = vunpack.c.h.b16 %v355
        %v687 = vunpack.c.l.b16 %v356
        %v688 = vunpack.c.h.b16 %v356
        %v689 = vunpack.c.l.b16 %v357
        %v690 = vunpack.c.h.b16 %v357
        %v691 = vunpack.c.l.b16 %v358
        %v692 = vunpack.c.h.b16 %v358
        %v693 = vunpack.c.l.b16 %v359
        %v694 = vunpack.c.h.b16 %v359
        %v695 = vunpack.c.l.b16 %v360
        %v696 = vunpack.c.h.b16 %v360
        %v697 = vunpack.c.l.b16 %v361
        %v698 = vunpack.c.h.b16 %v361
        %v699 = vunpack.c.l.b16 %v362
        %v700 = vunpack.c.h.b16 %v362
        %v701 = vunpack.c.l.b16 %v363
        %v702 = vunpack.c.h.b16 %v363
        %v703 = vunpack.c.l.b16 %v364
        %v704 = vunpack.c.h.b16 %v364
        %v705 = vunpack.c.l.b16 %v365
        %v706 = vunpack.c.h.b16 %v365
        %v707 = vunpack.c.l.b16 %v366
        %v708 = vunpack.c.h.b16 %v366
        %v709 = vunpack.c.l.b16 %v367
        %v710 = vunpack.c.h.b16 %v367
        %v711 = vunpack.c.l.b16 %v368
        %v712 = vunpack.c.h.b16 %v368
        %v713 = vunpack.c.l.b16 %v369
        %v714 = vunpack.c.h.b16 %v369
        %v715 = vunpack.c.l.b16 %v370
        %v716 = vunpack.c.h.b16 %v370
        %v717 = vunpack.c.l.b16 %v371
        %v718 = vunpack.c.h.b16 %v371
        %v719 = vunpack.c.l.b16 %v372
        %v720 = vunpack.c.h.b16 %v372
        %v721 = vunpack.c.l.b16 %v373
        %v722 = vunpack.c.h.b16 %v373
        %v723 = vunpack.c.l.b16 %v374
        %v724 = vunpack.c.h.b16 %v374
        %v725 = vunpack.c.l.b16 %v375
        %v726 = vunpack.c.h.b16 %v375
        %v727 = vunpack.c.l.b16 %v376
        %v728 = vunpack.c.h.b16 %v376
        %v729 = vpack.c.b16 %v681, %v665
        %v730 = vpack.c.b16 %v682, %v666
        %v731 = vpack.c.b16 %v683, %v667
        %v732 = vpack.c.b16 %v684, %v668
        %v733 = vpack.c.b16 %v685, %v669
        %v734 = vpack.c.b16 %v686, %v670
        %v735 = vpack.c.b16 %v687, %v671
        %v736 = vpack.c.b16 %v688, %v672
        %v737 = vpack.c.b16 %v689, %v673
        %v738 = vpack.c.b16 %v690, %v674
        %v739 = vpack.c.b16 %v691, %v675
        %v740 = vpack.c.b16 %v692, %v676
        %v741 = vpack.c.b16 %v693, %v677
        %v742 = vpack.c.b16 %v694, %v678
        %v743 = vpack.c.b16 %v695, %v679
        %v744 = vpack.c.b16 %v696, %v680
        %v745 = vpack.c.b16 %v713, %v697
        %v746 = vpack.c.b16 %v714, %v698
        %v747 = vpack.c.b16 %v715, %v699
        %v748 = vpack.c.b16 %v716, %v700
        %v749 = vpack.c.b16 %v717, %v701
        %v750 = vpack.c.b16 %v718, %v702
        %v751 = vpack.c.b16 %v719, %v703
        %v752 = vpack.c.b16 %v720, %v704
        %v753 = vpack.c.b16 %v721, %v705
        %v754 = vpack.c.b16 %v722, %v706
        %v755 = vpack.c.b16 %v723, %v707
        %v756 = vpack.c.b16 %v724, %v708
        %v757 = vpack.c.b16 %v725, %v709
        %v758 = vpack.c.b16 %v726, %v710
        %v759 = vpack.c.b16 %v727, %v711
        %v760 = vpack.c.b16 %v728, %v712
        %v1049 = vunpack.c.l.b16 %v377
        %v1050 = vunpack.c.h.b16 %v377
        %v1051 = vunpack.c.l.b16 %v378
        %v1052 = vunpack.c.h.b16 %v378
        %v1053 = vunpack.c.l.b16 %v379
        %v1054 = vunpack.c.h.b16 %v379
        %v1055 = vunpack.c.l.b16 %v380
        %v1056 = vunpack.c.h.b16 %v380
        %v1057 = vunpack.c.l.b16 %v381
        %v1058 = vunpack.c.h.b16 %v381
        %v1059 = vunpack.c.l.b16 %v382
        %v1060 = vunpack.c.h.b16 %v382
        %v1061 = vunpack.c.l.b16 %v383
        %v1062 = vunpack.c.h.b16 %v383
        %v1063 = vunpack.c.l.b16 %v384
        %v1064 = vunpack.c.h.b16 %v384
        %v1065 = vunpack.c.l.b16 %v385
        %v1066 = vunpack.c.h.b16 %v385
        %v1067 = vunpack.c.l.b16 %v386
        %v1068 = vunpack.c.h.b16 %v386
        %v1069 = vunpack.c.l.b16 %v387
        %v1070 = vunpack.c.h.b16 %v387
        %v1071 = vunpack.c.l.b16 %v388
        %v1072 = vunpack.c.h.b16 %v388
        %v1073 = vunpack.c.l.b16 %v389
        %v1074 = vunpack.c.h.b16 %v389
        %v1075 = vunpack.c.l.b16 %v390
        %v1076 = vunpack.c.h.b16 %v390
        %v1077 = vunpack.c.l.b16 %v391
        %v1078 = vunpack.c.h.b16 %v391
        %v1079 = vunpack.c.l.b16 %v392
        %v1080 = vunpack.c.h.b16 %v392
        %v1081 = vunpack.c.l.b16 %v393
        %v1082 = vunpack.c.h.b16 %v393
        %v1083 = vunpack.c.l.b16 %v394
        %v1084 = vunpack.c.h.b16 %v394
        %v1085 = vunpack.c.l.b16 %v395
        %v1086 = vunpack.c.h.b16 %v395
        %v1087 = vunpack.c.l.b16 %v396
        %v1088 = vunpack.c.h.b16 %v396
        %v1089 = vunpack.c.l.b16 %v397
        %v1090 = vunpack.c.h.b16 %v397
        %v1091 = vunpack.c.l.b16 %v398
        %v1092 = vunpack.c.h.b16 %v398
        %v1093 = vunpack.c.l.b16 %v399
        %v1094 = vunpack.c.h.b16 %v399
        %v1095 = vunpack.c.l.b16 %v400
        %v1096 = vunpack.c.h.b16 %v400
        %v1097 = vunpack.c.l.b16 %v401
        %v1098 = vunpack.c.h.b16 %v401
        %v1099 = vunpack.c.l.b16 %v402
        %v1100 = vunpack.c.h.b16 %v402
        %v1101 = vunpack.c.l.b16 %v403
        %v1102 = vunpack.c.h.b16 %v403
        %v1103 = vunpack.c.l.b16 %v404
        %v1104 = vunpack.c.h.b16 %v404
        %v1105 = vunpack.c.l.b16 %v405
        %v1106 = vunpack.c.h.b16 %v405
        %v1107 = vunpack.c.l.b16 %v406
        %v1108 = vunpack.c.h.b16 %v406
        %v1109 = vunpack.c.l.b16 %v407
        %v1110 = vunpack.c.h.b16 %v407
        %v1111 = vunpack.c.l.b16 %v408
        %v1112 = vunpack.c.h.b16 %v408
        %v1113 = vunpack.c.l.b16 %v409
        %v1114 = vunpack.c.h.b16 %v409
        %v1115 = vunpack.c.l.b16 %v410
        %v1116 = vunpack.c.h.b16 %v410
        %v1117 = vunpack.c.l.b16 %v411
        %v1118 = vunpack.c.h.b16 %v411
        %v1119 = vunpack.c.l.b16 %v412
        %v1120 = vunpack.c.h.b16 %v412
        %v1121 = vunpack.c.l.b16 %v413
        %v1122 = vunpack.c.h.b16 %v413
        %v1123 = vunpack.c.l.b16 %v414
        %v1124 = vunpack.c.h.b16 %v414
        %v1125 = vunpack.c.l.b16 %v415
        %v1126 = vunpack.c.h.b16 %v415
        %v1127 = vunpack.c.l.b16 %v416
        %v1128 = vunpack.c.h.b16 %v416
        %v1129 = vunpack.c.l.b16 %v417
        %v1130 = vunpack.c.h.b16 %v417
        %v1131 = vunpack.c.l.b16 %v418
        %v1132 = vunpack.c.h.b16 %v418
        %v1133 = vunpack.c.l.b16 %v419
        %v1134 = vunpack.c.h.b16 %v419
        %v1135 = vunpack.c.l.b16 %v420
        %v1136 = vunpack.c.h.b16 %v420
        %v1137 = vunpack.c.l.b16 %v421
        %v1138 = vunpack.c.h.b16 %v421
        %v1139 = vunpack.c.l.b16 %v422
        %v1140 = vunpack.c.h.b16 %v422
        %v1141 = vunpack.c.l.b16 %v423
        %v1142 = vunpack.c.h.b16 %v423
        %v1143 = vunpack.c.l.b16 %v424
        %v1144 = vunpack.c.h.b16 %v424
        %v1145 = vunpack.c.l.b16 %v425
        %v1146 = vunpack.c.h.b16 %v425
        %v1147 = vunpack.c.l.b16 %v426
        %v1148 = vunpack.c.h.b16 %v426
        %v1149 = vunpack.c.l.b16 %v427
        %v1150 = vunpack.c.h.b16 %v427
        %v1151 = vunpack.c.l.b16 %v428
        %v1152 = vunpack.c.h.b16 %v428
        %v1153 = vunpack.c.l.b16 %v429
        %v1154 = vunpack.c.h.b16 %v429
        %v1155 = vunpack.c.l.b16 %v430
        %v1156 = vunpack.c.h.b16 %v430
        %v1157 = vunpack.c.l.b16 %v431
        %v1158 = vunpack.c.h.b16 %v431
        %v1159 = vunpack.c.l.b16 %v432
        %v1160 = vunpack.c.h.b16 %v432
        %v1161 = vunpack.c.l.b16 %v433
        %v1162 = vunpack.c.h.b16 %v433
        %v1163 = vunpack.c.l.b16 %v434
        %v1164 = vunpack.c.h.b16 %v434
        %v1165 = vunpack.c.l.b16 %v435
        %v1166 = vunpack.c.h.b16 %v435
        %v1167 = vunpack.c.l.b16 %v436
        %v1168 = vunpack.c.h.b16 %v436
        %v1169 = vunpack.c.l.b16 %v437
        %v1170 = vunpack.c.h.b16 %v437
        %v1171 = vunpack.c.l.b16 %v438
        %v1172 = vunpack.c.h.b16 %v438
        %v1173 = vunpack.c.l.b16 %v439
        %v1174 = vunpack.c.h.b16 %v439
        %v1175 = vunpack.c.l.b16 %v440
        %v1176 = vunpack.c.h.b16 %v440
        %v1177 = vunpack.c.l.b16 %v441
        %v1178 = vunpack.c.h.b16 %v441
        %v1179 = vunpack.c.l.b16 %v442
        %v1180 = vunpack.c.h.b16 %v442
        %v1181 = vunpack.c.l.b16 %v443
        %v1182 = vunpack.c.h.b16 %v443
        %v1183 = vunpack.c.l.b16 %v444
        %v1184 = vunpack.c.h.b16 %v444
        %v1185 = vunpack.c.l.b16 %v445
        %v1186 = vunpack.c.h.b16 %v445
        %v1187 = vunpack.c.l.b16 %v446
        %v1188 = vunpack.c.h.b16 %v446
        %v1189 = vunpack.c.l.b16 %v447
        %v1190 = vunpack.c.h.b16 %v447
        %v1191 = vunpack.c.l.b16 %v448
        %v1192 = vunpack.c.h.b16 %v448
        %v1193 = vunpack.c.l.b16 %v449
        %v1194 = vunpack.c.h.b16 %v449
        %v1195 = vunpack.c.l.b16 %v450
        %v1196 = vunpack.c.h.b16 %v450
        %v1197 = vunpack.c.l.b16 %v451
        %v1198 = vunpack.c.h.b16 %v451
        %v1199 = vunpack.c.l.b16 %v452
        %v1200 = vunpack.c.h.b16 %v452
        %v1201 = vunpack.c.l.b16 %v453
        %v1202 = vunpack.c.h.b16 %v453
        %v1203 = vunpack.c.l.b16 %v454
        %v1204 = vunpack.c.h.b16 %v454
        %v1205 = vunpack.c.l.b16 %v455
        %v1206 = vunpack.c.h.b16 %v455
        %v1207 = vunpack.c.l.b16 %v456
        %v1208 = vunpack.c.h.b16 %v456
        %v1209 = vunpack.c.l.b16 %v457
        %v1210 = vunpack.c.h.b16 %v457
        %v1211 = vunpack.c.l.b16 %v458
        %v1212 = vunpack.c.h.b16 %v458
        %v1213 = vunpack.c.l.b16 %v459
        %v1214 = vunpack.c.h.b16 %v459
        %v1215 = vunpack.c.l.b16 %v460
        %v1216 = vunpack.c.h.b16 %v460
        %v1217 = vunpack.c.l.b16 %v461
        %v1218 = vunpack.c.h.b16 %v461
        %v1219 = vunpack.c.l.b16 %v462
        %v1220 = vunpack.c.h.b16 %v462
        %v1221 = vunpack.c.l.b16 %v463
        %v1222 = vunpack.c.h.b16 %v463
        %v1223 = vunpack.c.l.b16 %v464
        %v1224 = vunpack.c.h.b16 %v464
        %v1225 = vunpack.c.l.b16 %v465
        %v1226 = vunpack.c.h.b16 %v465
        %v1227 = vunpack.c.l.b16 %v466
        %v1228 = vunpack.c.h.b16 %v466
        %v1229 = vunpack.c.l.b16 %v467
        %v1230 = vunpack.c.h.b16 %v467
        %v1231 = vunpack.c.l.b16 %v468
        %v1232 = vunpack.c.h.b16 %v468
        %v1233 = vunpack.c.l.b16 %v469
        %v1234 = vunpack.c.h.b16 %v469
        %v1235 = vunpack.c.l.b16 %v470
        %v1236 = vunpack.c.h.b16 %v470
        %v1237 = vunpack.c.l.b16 %v471
        %v1238 = vunpack.c.h.b16 %v471
        %v1239 = vunpack.c.l.b16 %v472
        %v1240 = vunpack.c.h.b16 %v472
        %v1241 = vunpack.c.l.b16 %v473
        %v1242 = vunpack.c.h.b16 %v473
        %v1243 = vunpack.c.l.b16 %v474
        %v1244 = vunpack.c.h.b16 %v474
        %v1245 = vunpack.c.l.b16 %v475
        %v1246 = vunpack.c.h.b16 %v475
        %v1247 = vunpack.c.l.b16 %v476
        %v1248 = vunpack.c.h.b16 %v476
        %v1249 = vunpack.c.l.b16 %v477
        %v1250 = vunpack.c.h.b16 %v477
        %v1251 = vunpack.c.l.b16 %v478
        %v1252 = vunpack.c.h.b16 %v478
        %v1253 = vunpack.c.l.b16 %v479
        %v1254 = vunpack.c.h.b16 %v479
        %v1255 = vunpack.c.l.b16 %v480
        %v1256 = vunpack.c.h.b16 %v480
        %v1257 = vunpack.c.l.b16 %v481
        %v1258 = vunpack.c.h.b16 %v481
        %v1259 = vunpack.c.l.b16 %v482
        %v1260 = vunpack.c.h.b16 %v482
        %v1261 = vunpack.c.l.b16 %v483
        %v1262 = vunpack.c.h.b16 %v483
        %v1263 = vunpack.c.l.b16 %v484
        %v1264 = vunpack.c.h.b16 %v484
        %v1265 = vunpack.c.l.b16 %v485
        %v1266 = vunpack.c.h.b16 %v485
        %v1267 = vunpack.c.l.b16 %v486
        %v1268 = vunpack.c.h.b16 %v486
        %v1269 = vunpack.c.l.b16 %v487
        %v1270 = vunpack.c.h.b16 %v487
        %v1271 = vunpack.c.l.b16 %v488
        %v1272 = vunpack.c.h.b16 %v488
        %v1273 = vunpack.c.l.b16 %v489
        %v1274 = vunpack.c.h.b16 %v489
        %v1275 = vunpack.c.l.b16 %v490
        %v1276 = vunpack.c.h.b16 %v490
        %v1277 = vunpack.c.l.b16 %v491
        %v1278 = vunpack.c.h.b16 %v491
        %v1279 = vunpack.c.l.b16 %v492
        %v1280 = vunpack.c.h.b16 %v492
        %v1281 = vunpack.c.l.b16 %v493
        %v1282 = vunpack.c.h.b16 %v493
        %v1283 = vunpack.c.l.b16 %v494
        %v1284 = vunpack.c.h.b16 %v494
        %v1285 = vunpack.c.l.b16 %v495
        %v1286 = vunpack.c.h.b16 %v495
        %v1287 = vunpack.c.l.b16 %v496
        %v1288 = vunpack.c.h.b16 %v496
        %v1289 = vunpack.c.l.b16 %v497
        %v1290 = vunpack.c.h.b16 %v497
        %v1291 = vunpack.c.l.b16 %v498
        %v1292 = vunpack.c.h.b16 %v498
        %v1293 = vunpack.c.l.b16 %v499
        %v1294 = vunpack.c.h.b16 %v499
        %v1295 = vunpack.c.l.b16 %v500
        %v1296 = vunpack.c.h.b16 %v500
        %v1297 = vunpack.c.l.b16 %v501
        %v1298 = vunpack.c.h.b16 %v501
        %v1299 = vunpack.c.l.b16 %v502
        %v1300 = vunpack.c.h.b16 %v502
        %v1301 = vunpack.c.l.b16 %v503
        %v1302 = vunpack.c.h.b16 %v503
        %v1303 = vunpack.c.l.b16 %v504
        %v1304 = vunpack.c.h.b16 %v504
        %v1305 = vunpack.c.l.b16 %v505
        %v1306 = vunpack.c.h.b16 %v505
        %v1307 = vunpack.c.l.b16 %v506
        %v1308 = vunpack.c.h.b16 %v506
        %v1309 = vunpack.c.l.b16 %v507
        %v1310 = vunpack.c.h.b16 %v507
        %v1311 = vunpack.c.l.b16 %v508
        %v1312 = vunpack.c.h.b16 %v508
        %v1313 = vunpack.c.l.b16 %v509
        %v1314 = vunpack.c.h.b16 %v509
        %v1315 = vunpack.c.l.b16 %v510
        %v1316 = vunpack.c.h.b16 %v510
        %v1317 = vunpack.c.l.b16 %v511
        %v1318 = vunpack.c.h.b16 %v511
        %v1319 = vunpack.c.l.b16 %v512
        %v1320 = vunpack.c.h.b16 %v512
        %v1321 = vunpack.c.l.b16 %v513
        %v1322 = vunpack.c.h.b16 %v513
        %v1323 = vunpack.c.l.b16 %v514
        %v1324 = vunpack.c.h.b16 %v514
        %v1325 = vunpack.c.l.b16 %v515
        %v1326 = vunpack.c.h.b16 %v515
        %v1327 = vunpack.c.l.b16 %v516
        %v1328 = vunpack.c.h.b16 %v516
        %v1329 = vunpack.c.l.b16 %v517
        %v1330 = vunpack.c.h.b16 %v517
        %v1331 = vunpack.c.l.b16 %v518
        %v1332 = vunpack.c.h.b16 %v518
        %v1333 = vunpack.c.l.b16 %v519
        %v1334 = vunpack.c.h.b16 %v519
        %v1335 = vunpack.c.l.b16 %v520
        %v1336 = vunpack.c.h.b16 %v520
        %v1337 = vunpack.c.l.b16 %v521
        %v1338 = vunpack.c.h.b16 %v521
        %v1339 = vunpack.c.l.b16 %v522
        %v1340 = vunpack.c.h.b16 %v522
        %v1341 = vunpack.c.l.b16 %v523
        %v1342 = vunpack.c.h.b16 %v523
        %v1343 = vunpack.c.l.b16 %v524
        %v1344 = vunpack.c.h.b16 %v524
        %v1345 = vunpack.c.l.b16 %v525
        %v1346 = vunpack.c.h.b16 %v525
        %v1347 = vunpack.c.l.b16 %v526
        %v1348 = vunpack.c.h.b16 %v526
        %v1349 = vunpack.c.l.b16 %v527
        %v1350 = vunpack.c.h.b16 %v527
        %v1351 = vunpack.c.l.b16 %v528
        %v1352 = vunpack.c.h.b16 %v528
        %v1353 = vunpack.c.l.b16 %v529
        %v1354 = vunpack.c.h.b16 %v529
        %v1355 = vunpack.c.l.b16 %v530
        %v1356 = vunpack.c.h.b16 %v530
        %v1357 = vunpack.c.l.b16 %v531
        %v1358 = vunpack.c.h.b16 %v531
        %v1359 = vunpack.c.l.b16 %v532
        %v1360 = vunpack.c.h.b16 %v532
        %v1361 = vunpack.c.l.b16 %v533
        %v1362 = vunpack.c.h.b16 %v533
        %v1363 = vunpack.c.l.b16 %v534
        %v1364 = vunpack.c.h.b16 %v534
        %v1365 = vunpack.c.l.b16 %v535
        %v1366 = vunpack.c.h.b16 %v535
        %v1367 = vunpack.c.l.b16 %v536
        %v1368 = vunpack.c.h.b16 %v536
        %v1369 = vunpack.c.l.b16 %v537
        %v1370 = vunpack.c.h.b16 %v537
        %v1371 = vunpack.c.l.b16 %v538
        %v1372 = vunpack.c.h.b16 %v538
        %v1373 = vunpack.c.l.b16 %v539
        %v1374 = vunpack.c.h.b16 %v539
        %v1375 = vunpack.c.l.b16 %v540
        %v1376 = vunpack.c.h.b16 %v540
        %v1377 = vunpack.c.l.b16 %v541
        %v1378 = vunpack.c.h.b16 %v541
        %v1379 = vunpack.c.l.b16 %v542
        %v1380 = vunpack.c.h.b16 %v542
        %v1381 = vunpack.c.l.b16 %v543
        %v1382 = vunpack.c.h.b16 %v543
        %v1383 = vunpack.c.l.b16 %v544
        %v1384 = vunpack.c.h.b16 %v544
        %v1385 = vunpack.c.l.b16 %v545
        %v1386 = vunpack.c.h.b16 %v545
        %v1387 = vunpack.c.l.b16 %v546
        %v1388 = vunpack.c.h.b16 %v546
        %v1389 = vunpack.c.l.b16 %v547
        %v1390 = vunpack.c.h.b16 %v547
        %v1391 = vunpack.c.l.b16 %v548
        %v1392 = vunpack.c.h.b16 %v548
        %v1393 = vunpack.c.l.b16 %v549
        %v1394 = vunpack.c.h.b16 %v549
        %v1395 = vunpack.c.l.b16 %v550
        %v1396 = vunpack.c.h.b16 %v550
        %v1397 = vunpack.c.l.b16 %v551
        %v1398 = vunpack.c.h.b16 %v551
        %v1399 = vunpack.c.l.b16 %v552
        %v1400 = vunpack.c.h.b16 %v552
        %v1401 = vunpack.c.l.b16 %v553
        %v1402 = vunpack.c.h.b16 %v553
        %v1403 = vunpack.c.l.b16 %v554
        %v1404 = vunpack.c.h.b16 %v554
        %v1405 = vunpack.c.l.b16 %v555
        %v1406 = vunpack.c.h.b16 %v555
        %v1407 = vunpack.c.l.b16 %v556
        %v1408 = vunpack.c.h.b16 %v556
        %v1409 = vunpack.c.l.b16 %v557
        %v1410 = vunpack.c.h.b16 %v557
        %v1411 = vunpack.c.l.b16 %v558
        %v1412 = vunpack.c.h.b16 %v558
        %v1413 = vunpack.c.l.b16 %v559
        %v1414 = vunpack.c.h.b16 %v559
        %v1415 = vunpack.c.l.b16 %v560
        %v1416 = vunpack.c.h.b16 %v560
        %v1417 = vunpack.c.l.b16 %v561
        %v1418 = vunpack.c.h.b16 %v561
        %v1419 = vunpack.c.l.b16 %v562
        %v1420 = vunpack.c.h.b16 %v562
        %v1421 = vunpack.c.l.b16 %v563
        %v1422 = vunpack.c.h.b16 %v563
        %v1423 = vunpack.c.l.b16 %v564
        %v1424 = vunpack.c.h.b16 %v564
        %v1425 = vunpack.c.l.b16 %v565
        %v1426 = vunpack.c.h.b16 %v565
        %v1427 = vunpack.c.l.b16 %v566
        %v1428 = vunpack.c.h.b16 %v566
        %v1429 = vunpack.c.l.b16 %v567
        %v1430 = vunpack.c.h.b16 %v567
        %v1431 = vunpack.c.l.b16 %v568
        %v1432 = vunpack.c.h.b16 %v568
        %v1433 = vunpack.c.l.b16 %v569
        %v1434 = vunpack.c.h.b16 %v569
        %v1435 = vunpack.c.l.b16 %v570
        %v1436 = vunpack.c.h.b16 %v570
        %v1437 = vunpack.c.l.b16 %v571
        %v1438 = vunpack.c.h.b16 %v571
        %v1439 = vunpack.c.l.b16 %v572
        %v1440 = vunpack.c.h.b16 %v572
        %v1441 = vunpack.c.l.b16 %v573
        %v1442 = vunpack.c.h.b16 %v573
        %v1443 = vunpack.c.l.b16 %v574
        %v1444 = vunpack.c.h.b16 %v574
        %v1445 = vunpack.c.l.b16 %v575
        %v1446 = vunpack.c.h.b16 %v575
        %v1447 = vunpack.c.l.b16 %v576
        %v1448 = vunpack.c.h.b16 %v576
        %v1449 = vunpack.c.l.b16 %v577
        %v1450 = vunpack.c.h.b16 %v577
        %v1451 = vunpack.c.l.b16 %v578
        %v1452 = vunpack.c.h.b16 %v578
        %v1453 = vunpack.c.l.b16 %v579
        %v1454 = vunpack.c.h.b16 %v579
        %v1455 = vunpack.c.l.b16 %v580
        %v1456 = vunpack.c.h.b16 %v580
        %v1457 = vunpack.c.l.b16 %v581
        %v1458 = vunpack.c.h.b16 %v581
        %v1459 = vunpack.c.l.b16 %v582
        %v1460 = vunpack.c.h.b16 %v582
        %v1461 = vunpack.c.l.b16 %v583
        %v1462 = vunpack.c.h.b16 %v583
        %v1463 = vunpack.c.l.b16 %v584
        %v1464 = vunpack.c.h.b16 %v584
        %v1465 = vunpack.c.l.b16 %v585
        %v1466 = vunpack.c.h.b16 %v585
        %v1467 = vunpack.c.l.b16 %v586
        %v1468 = vunpack.c.h.b16 %v586
        %v1469 = vunpack.c.l.b16 %v587
        %v1470 = vunpack.c.h.b16 %v587
        %v1471 = vunpack.c.l.b16 %v588
        %v1472 = vunpack.c.h.b16 %v588
        %v1473 = vunpack.c.l.b16 %v589
        %v1474 = vunpack.c.h.b16 %v589
        %v1475 = vunpack.c.l.b16 %v590
        %v1476 = vunpack.c.h.b16 %v590
        %v1477 = vunpack.c.l.b16 %v591
        %v1478 = vunpack.c.h.b16 %v591
        %v1479 = vunpack.c.l.b16 %v592
        %v1480 = vunpack.c.h.b16 %v592
        %v1481 = vunpack.c.l.b16 %v593
        %v1482 = vunpack.c.h.b16 %v593
        %v1483 = vunpack.c.l.b16 %v594
        %v1484 = vunpack.c.h.b16 %v594
        %v1485 = vunpack.c.l.b16 %v595
        %v1486 = vunpack.c.h.b16 %v595
        %v1487 = vunpack.c.l.b16 %v596
        %v1488 = vunpack.c.h.b16 %v596
        %v1489 = vunpack.c.l.b16 %v597
        %v1490 = vunpack.c.h.b16 %v597
        %v1491 = vunpack.c.l.b16 %v598
        %v1492 = vunpack.c.h.b16 %v598
        %v1493 = vunpack.c.l.b16 %v599
        %v1494 = vunpack.c.h.b16 %v599
        %v1495 = vunpack.c.l.b16 %v600
        %v1496 = vunpack.c.h.b16 %v600
        %v1497 = vunpack.c.l.b16 %v601
        %v1498 = vunpack.c.h.b16 %v601
        %v1499 = vunpack.c.l.b16 %v602
        %v1500 = vunpack.c.h.b16 %v602
        %v1501 = vunpack.c.l.b16 %v603
        %v1502 = vunpack.c.h.b16 %v603
        %v1503 = vunpack.c.l.b16 %v604
        %v1504 = vunpack.c.h.b16 %v604
        %v1505 = vunpack.c.l.b16 %v605
        %v1506 = vunpack.c.h.b16 %v605
        %v1507 = vunpack.c.l.b16 %v606
        %v1508 = vunpack.c.h.b16 %v606
        %v1509 = vunpack.c.l.b16 %v607
        %v1510 = vunpack.c.h.b16 %v607
        %v1511 = vunpack.c.l.b16 %v608
        %v1512 = vunpack.c.h.b16 %v608
        %v1513 = vunpack.c.l.b16 %v609
        %v1514 = vunpack.c.h.b16 %v609
        %v1515 = vunpack.c.l.b16 %v610
        %v1516 = vunpack.c.h.b16 %v610
        %v1517 = vunpack.c.l.b16 %v611
        %v1518 = vunpack.c.h.b16 %v611
        %v1519 = vunpack.c.l.b16 %v612
        %v1520 = vunpack.c.h.b16 %v612
        %v1521 = vunpack.c.l.b16 %v613
        %v1522 = vunpack.c.h.b16 %v613
        %v1523 = vunpack.c.l.b16 %v614
        %v1524 = vunpack.c.h.b16 %v614
        %v1525 = vunpack.c.l.b16 %v615
        %v1526 = vunpack.c.h.b16 %v615
        %v1527 = vunpack.c.l.b16 %v616
        %v1528 = vunpack.c.h.b16 %v616
        %v1529 = vunpack.c.l.b16 %v617
        %v1530 = vunpack.c.h.b16 %v617
        %v1531 = vunpack.c.l.b16 %v618
        %v1532 = vunpack.c.h.b16 %v618
        %v1533 = vunpack.c.l.b16 %v619
        %v1534 = vunpack.c.h.b16 %v619
        %v1535 = vunpack.c.l.b16 %v620
        %v1536 = vunpack.c.h.b16 %v620
        %v1537 = vunpack.c.l.b16 %v621
        %v1538 = vunpack.c.h.b16 %v621
        %v1539 = vunpack.c.l.b16 %v622
        %v1540 = vunpack.c.h.b16 %v622
        %v1541 = vunpack.c.l.b16 %v623
        %v1542 = vunpack.c.h.b16 %v623
        %v1543 = vunpack.c.l.b16 %v624
        %v1544 = vunpack.c.h.b16 %v624
        %v1545 = vunpack.c.l.b16 %v625
        %v1546 = vunpack.c.h.b16 %v625
        %v1547 = vunpack.c.l.b16 %v626
        %v1548 = vunpack.c.h.b16 %v626
        %v1549 = vunpack.c.l.b16 %v627
        %v1550 = vunpack.c.h.b16 %v627
        %v1551 = vunpack.c.l.b16 %v628
        %v1552 = vunpack.c.h.b16 %v628
        %v1553 = vunpack.c.l.b16 %v629
        %v1554 = vunpack.c.h.b16 %v629
        %v1555 = vunpack.c.l.b16 %v630
        %v1556 = vunpack.c.h.b16 %v630
        %v1557 = vunpack.c.l.b16 %v631
        %v1558 = vunpack.c.h.b16 %v631
        %v1559 = vunpack.c.l.b16 %v632
        %v1560 = vunpack.c.h.b16 %v632
        %v1561 = vpack.c.b16 %v1051, %v1049
        %v1562 = vpack.c.b16 %v1052, %v1050
        %v1563 = vpack.c.b16 %v1055, %v1053
        %v1564 = vpack.c.b16 %v1056, %v1054
        %v1565 = vpack.c.b16 %v1059, %v1057
        %v1566 = vpack.c.b16 %v1060, %v1058
        %v1567 = vpack.c.b16 %v1063, %v1061
        %v1568 = vpack.c.b16 %v1064, %v1062
        %v1569 = vpack.c.b16 %v1067, %v1065
        %v1570 = vpack.c.b16 %v1068, %v1066
        %v1571 = vpack.c.b16 %v1071, %v1069
        %v1572 = vpack.c.b16 %v1072, %v1070
        %v1573 = vpack.c.b16 %v1075, %v1073
        %v1574 = vpack.c.b16 %v1076, %v1074
        %v1575 = vpack.c.b16 %v1079, %v1077
        %v1576 = vpack.c.b16 %v1080, %v1078
        %v1577 = vpack.c.b16 %v1083, %v1081
        %v1578 = vpack.c.b16 %v1084, %v1082
        %v1579 = vpack.c.b16 %v1087, %v1085
        %v1580 = vpack.c.b16 %v1088, %v1086
        %v1581 = vpack.c.b16 %v1091, %v1089
        %v1582 = vpack.c.b16 %v1092, %v1090
        %v1583 = vpack.c.b16 %v1095, %v1093
        %v1584 = vpack.c.b16 %v1096, %v1094
        %v1585 = vpack.c.b16 %v1099, %v1097
        %v1586 = vpack.c.b16 %v1100, %v1098
        %v1587 = vpack.c.b16 %v1103, %v1101
        %v1588 = vpack.c.b16 %v1104, %v1102
        %v1589 = vpack.c.b16 %v1107, %v1105
        %v1590 = vpack.c.b16 %v1108, %v1106
        %v1591 = vpack.c.b16 %v1111, %v1109
        %v1592 = vpack.c.b16 %v1112, %v1110
        %v1593 = vpack.c.b16 %v1115, %v1113
        %v1594 = vpack.c.b16 %v1116, %v1114
        %v1595 = vpack.c.b16 %v1119, %v1117
        %v1596 = vpack.c.b16 %v1120, %v1118
        %v1597 = vpack.c.b16 %v1123, %v1121
        %v1598 = vpack.c.b16 %v1124, %v1122
        %v1599 = vpack.c.b16 %v1127, %v1125
        %v1600 = vpack.c.b16 %v1128, %v1126
        %v1601 = vpack.c.b16 %v1131, %v1129
        %v1602 = vpack.c.b16 %v1132, %v1130
        %v1603 = vpack.c.b16 %v1135, %v1133
        %v1604 = vpack.c.b16 %v1136, %v1134
        %v1605 = vpack.c.b16 %v1139, %v1137
        %v1606 = vpack.c.b16 %v1140, %v1138
        %v1607 = vpack.c.b16 %v1143, %v1141
        %v1608 = vpack.c.b16 %v1144, %v1142
        %v1609 = vpack.c.b16 %v1147, %v1145
        %v1610 = vpack.c.b16 %v1148, %v1146
        %v1611 = vpack.c.b16 %v1151, %v1149
        %v1612 = vpack.c.b16 %v1152, %v1150
        %v1613 = vpack.c.b16 %v1155, %v1153
        %v1614 = vpack.c.b16 %v1156, %v1154
        %v1615 = vpack.c.b16 %v1159, %v1157
        %v1616 = vpack.c.b16 %v1160, %v1158
        %v1617 = vpack.c.b16 %v1163, %v1161
        %v1618 = vpack.c.b16 %v1164, %v1162
        %v1619 = vpack.c.b16 %v1167, %v1165
        %v1620 = vpack.c.b16 %v1168, %v1166
        %v1621 = vpack.c.b16 %v1171, %v1169
        %v1622 = vpack.c.b16 %v1172, %v1170
        %v1623 = vpack.c.b16 %v1175, %v1173
        %v1624 = vpack.c.b16 %v1176, %v1174
        %v1625 = vpack.c.b16 %v1179, %v1177
        %v1626 = vpack.c.b16 %v1180, %v1178
        %v1627 = vpack.c.b16 %v1183, %v1181
        %v1628 = vpack.c.b16 %v1184, %v1182
        %v1629 = vpack.c.b16 %v1187, %v1185
        %v1630 = vpack.c.b16 %v1188, %v1186
        %v1631 = vpack.c.b16 %v1191, %v1189
        %v1632 = vpack.c.b16 %v1192, %v1190
        %v1633 = vpack.c.b16 %v1195, %v1193
        %v1634 = vpack.c.b16 %v1196, %v1194
        %v1635 = vpack.c.b16 %v1199, %v1197
        %v1636 = vpack.c.b16 %v1200, %v1198
        %v1637 = vpack.c.b16 %v1203, %v1201
        %v1638 = vpack.c.b16 %v1204, %v1202
        %v1639 = vpack.c.b16 %v1207, %v1205
        %v1640 = vpack.c.b16 %v1208, %v1206
        %v1641 = vpack.c.b16 %v1211, %v1209
        %v1642 = vpack.c.b16 %v1212, %v1210
        %v1643 = vpack.c.b16 %v1215, %v1213
        %v1644 = vpack.c.b16 %v1216, %v1214
        %v1645 = vpack.c.b16 %v1219, %v1217
        %v1646 = vpack.c.b16 %v1220, %v1218
        %v1647 = vpack.c.b16 %v1223, %v1221
        %v1648 = vpack.c.b16 %v1224, %v1222
        %v1649 = vpack.c.b16 %v1227, %v1225
        %v1650 = vpack.c.b16 %v1228, %v1226
        %v1651 = vpack.c.b16 %v1231, %v1229
        %v1652 = vpack.c.b16 %v1232, %v1230
        %v1653 = vpack.c.b16 %v1235, %v1233
        %v1654 = vpack.c.b16 %v1236, %v1234
        %v1655 = vpack.c.b16 %v1239, %v1237
        %v1656 = vpack.c.b16 %v1240, %v1238
        %v1657 = vpack.c.b16 %v1243, %v1241
        %v1658 = vpack.c.b16 %v1244, %v1242
        %v1659 = vpack.c.b16 %v1247, %v1245
        %v1660 = vpack.c.b16 %v1248, %v1246
        %v1661 = vpack.c.b16 %v1251, %v1249
        %v1662 = vpack.c.b16 %v1252, %v1250
        %v1663 = vpack.c.b16 %v1255, %v1253
        %v1664 = vpack.c.b16 %v1256, %v1254
        %v1665 = vpack.c.b16 %v1259, %v1257
        %v1666 = vpack.c.b16 %v1260, %v1258
        %v1667 = vpack.c.b16 %v1263, %v1261
        %v1668 = vpack.c.b16 %v1264, %v1262
        %v1669 = vpack.c.b16 %v1267, %v1265
        %v1670 = vpack.c.b16 %v1268, %v1266
        %v1671 = vpack.c.b16 %v1271, %v1269
        %v1672 = vpack.c.b16 %v1272, %v1270
        %v1673 = vpack.c.b16 %v1275, %v1273
        %v1674 = vpack.c.b16 %v1276, %v1274
        %v1675 = vpack.c.b16 %v1279, %v1277
        %v1676 = vpack.c.b16 %v1280, %v1278
        %v1677 = vpack.c.b16 %v1283, %v1281
        %v1678 = vpack.c.b16 %v1284, %v1282
        %v1679 = vpack.c.b16 %v1287, %v1285
        %v1680 = vpack.c.b16 %v1288, %v1286
        %v1681 = vpack.c.b16 %v1291, %v1289
        %v1682 = vpack.c.b16 %v1292, %v1290
        %v1683 = vpack.c.b16 %v1295, %v1293
        %v1684 = vpack.c.b16 %v1296, %v1294
        %v1685 = vpack.c.b16 %v1299, %v1297
        %v1686 = vpack.c.b16 %v1300, %v1298
        %v1687 = vpack.c.b16 %v1303, %v1301
        %v1688 = vpack.c.b16 %v1304, %v1302
        %v1689 = vpack.c.b16 %v1307, %v1305
        %v1690 = vpack.c.b16 %v1308, %v1306
        %v1691 = vpack.c.b16 %v1311, %v1309
        %v1692 = vpack.c.b16 %v1312, %v1310
        %v1693 = vpack.c.b16 %v1315, %v1313
        %v1694 = vpack.c.b16 %v1316, %v1314
        %v1695 = vpack.c.b16 %v1319, %v1317
        %v1696 = vpack.c.b16 %v1320, %v1318
        %v1697 = vpack.c.b16 %v1323, %v1321
        %v1698 = vpack.c.b16 %v1324, %v1322
        %v1699 = vpack.c.b16 %v1327, %v1325
        %v1700 = vpack.c.b16 %v1328, %v1326
        %v1701 = vpack.c.b16 %v1331, %v1329
        %v1702 = vpack.c.b16 %v1332, %v1330
        %v1703 = vpack.c.b16 %v1335, %v1333
        %v1704 = vpack.c.b16 %v1336, %v1334
        %v1705 = vpack.c.b16 %v1339, %v1337
        %v1706 = vpack.c.b16 %v1340, %v1338
        %v1707 = vpack.c.b16 %v1343, %v1341
        %v1708 = vpack.c.b16 %v1344, %v1342
        %v1709 = vpack.c.b16 %v1347, %v1345
        %v1710 = vpack.c.b16 %v1348, %v1346
        %v1711 = vpack.c.b16 %v1351, %v1349
        %v1712 = vpack.c.b16 %v1352, %v1350
        %v1713 = vpack.c.b16 %v1355, %v1353
        %v1714 = vpack.c.b16 %v1356, %v1354
        %v1715 = vpack.c.b16 %v1359, %v1357
        %v1716 = vpack.c.b16 %v1360, %v1358
        %v1717 = vpack.c.b16 %v1363, %v1361
        %v1718 = vpack.c.b16 %v1364, %v1362
        %v1719 = vpack.c.b16 %v1367, %v1365
        %v1720 = vpack.c.b16 %v1368, %v1366
        %v1721 = vpack.c.b16 %v1371, %v1369
        %v1722 = vpack.c.b16 %v1372, %v1370
        %v1723 = vpack.c.b16 %v1375, %v1373
        %v1724 = vpack.c.b16 %v1376, %v1374
        %v1725 = vpack.c.b16 %v1379, %v1377
        %v1726 = vpack.c.b16 %v1380, %v1378
        %v1727 = vpack.c.b16 %v1383, %v1381
        %v1728 = vpack.c.b16 %v1384, %v1382
        %v1729 = vpack.c.b16 %v1387, %v1385
        %v1730 = vpack.c.b16 %v1388, %v1386
        %v1731 = vpack.c.b16 %v1391, %v1389
        %v1732 = vpack.c.b16 %v1392, %v1390
        %v1733 = vpack.c.b16 %v1395, %v1393
        %v1734 = vpack.c.b16 %v1396, %v1394
        %v1735 = vpack.c.b16 %v1399, %v1397
        %v1736 = vpack.c.b16 %v1400, %v1398
        %v1737 = vpack.c.b16 %v1403, %v1401
        %v1738 = vpack.c.b16 %v1404, %v1402
        %v1739 = vpack.c.b16 %v1407, %v1405
        %v1740 = vpack.c.b16 %v1408, %v1406
        %v1741 = vpack.c.b16 %v1411, %v1409
        %v1742 = vpack.c.b16 %v1412, %v1410
        %v1743 = vpack.c.b16 %v1415, %v1413
        %v1744 = vpack.c.b16 %v1416, %v1414
        %v1745 = vpack.c.b16 %v1419, %v1417
        %v1746 = vpack.c.b16 %v1420, %v1418
        %v1747 = vpack.c.b16 %v1423, %v1421
        %v1748 = vpack.c.b16 %v1424, %v1422
        %v1749 = vpack.c.b16 %v1427, %v1425
        %v1750 = vpack.c.b16 %v1428, %v1426
        %v1751 = vpack.c.b16 %v1431, %v1429
        %v1752 = vpack.c.b16 %v1432, %v1430
        %v1753 = vpack.c.b16 %v1435, %v1433
        %v1754 = vpack.c.b16 %v1436, %v1434
        %v1755 = vpack.c.b16 %v1439, %v1437
        %v1756 = vpack.c.b16 %v1440, %v1438
        %v1757 = vpack.c.b16 %v1443, %v1441
        %v1758 = vpack.c.b16 %v1444, %v1442
        %v1759 = vpack.c.b16 %v1447, %v1445
        %v1760 = vpack.c.b16 %v1448, %v1446
        %v1761 = vpack.c.b16 %v1451, %v1449
        %v1762 = vpack.c.b16 %v1452, %v1450
        %v1763 = vpack.c.b16 %v1455, %v1453
        %v1764 = vpack.c.b16 %v1456, %v1454
        %v1765 = vpack.c.b16 %v1459, %v1457
        %v1766 = vpack.c.b16 %v1460, %v1458
        %v1767 = vpack.c.b16 %v1463, %v1461
        %v1768 = vpack.c.b16 %v1464, %v1462
        %v1769 = vpack.c.b16 %v1467, %v1465
        %v1770 = vpack.c.b16 %v1468, %v1466
        %v1771 = vpack.c.b16 %v1471, %v1469
        %v1772 = vpack.c.b16 %v1472, %v1470
        %v1773 = vpack.c.b16 %v1475, %v1473
        %v1774 = vpack.c.b16 %v1476, %v1474
        %v1775 = vpack.c.b16 %v1479, %v1477
        %v1776 = vpack.c.b16 %v1480, %v1478
        %v1777 = vpack.c.b16 %v1483, %v1481
        %v1778 = vpack.c.b16 %v1484, %v1482
        %v1779 = vpack.c.b16 %v1487, %v1485
        %v1780 = vpack.c.b16 %v1488, %v1486
        %v1781 = vpack.c.b16 %v1491, %v1489
        %v1782 = vpack.c.b16 %v1492, %v1490
        %v1783 = vpack.c.b16 %v1495, %v1493
        %v1784 = vpack.c.b16 %v1496, %v1494
        %v1785 = vpack.c.b16 %v1499, %v1497
        %v1786 = vpack.c.b16 %v1500, %v1498
        %v1787 = vpack.c.b16 %v1503, %v1501
        %v1788 = vpack.c.b16 %v1504, %v1502
        %v1789 = vpack.c.b16 %v1507, %v1505
        %v1790 = vpack.c.b16 %v1508, %v1506
        %v1791 = vpack.c.b16 %v1511, %v1509
        %v1792 = vpack.c.b16 %v1512, %v1510
        %v1793 = vpack.c.b16 %v1515, %v1513
        %v1794 = vpack.c.b16 %v1516, %v1514
        %v1795 = vpack.c.b16 %v1519, %v1517
        %v1796 = vpack.c.b16 %v1520, %v1518
        %v1797 = vpack.c.b16 %v1523, %v1521
        %v1798 = vpack.c.b16 %v1524, %v1522
        %v1799 = vpack.c.b16 %v1527, %v1525
        %v1800 = vpack.c.b16 %v1528, %v1526
        %v1801 = vpack.c.b16 %v1531, %v1529
        %v1802 = vpack.c.b16 %v1532, %v1530
        %v1803 = vpack.c.b16 %v1535, %v1533
        %v1804 = vpack.c.b16 %v1536, %v1534
        %v1805 = vpack.c.b16 %v1539, %v1537
        %v1806 = vpack.c.b16 %v1540, %v1538
        %v1807 = vpack.c.b16 %v1543, %v1541
        %v1808 = vpack.c.b16 %v1544, %v1542
        %v1809 = vpack.c.b16 %v1547, %v1545
        %v1810 = vpack.c.b16 %v1548, %v1546
        %v1811 = vpack.c.b16 %v1551, %v1549
        %v1812 = vpack.c.b16 %v1552, %v1550
        %v1813 = vpack.c.b16 %v1555, %v1553
        %v1814 = vpack.c.b16 %v1556, %v1554
        %v1815 = vpack.c.b16 %v1559, %v1557
        %v1816 = vpack.c.b16 %v1560, %v1558
        %2073 = vmatpush.bf16.msra.mxu0 %v1575
        %2074 = vmatpush.bf16.msra.mxu0 %v1573
        %2075 = vmatpush.bf16.msra.mxu0 %v1571
        %2076 = vmatpush.bf16.msra.mxu0 %v1569
        %2077 = vmatpush.bf16.msra.mxu0 %v1567
        %2078 = vmatpush.bf16.msra.mxu0 %v1565
        %2079 = vmatpush.bf16.msra.mxu0 %v1563
        %2080 = vmatpush.bf16.msra.mxu0 %v1561
        %2081 = vmatmul.bf16.gmra.mxu0 %v729
        %v2082 = vpop.f32.mrf.mxu0
        %v2083 = vadd.f32 0.0, %v2082
        %v2084 = vpop.f32.mrf.mxu0
        %v2085 = vadd.f32 0.0, %v2084
        %2086 = vmatmul.bf16.gmra.mxu0 %v745
        %v2087 = vpop.f32.mrf.mxu0
        %v2088 = vadd.f32 0.0, %v2087
        %v2089 = vpop.f32.mrf.mxu0
        %v2090 = vadd.f32 0.0, %v2089
        %2091 = vdwg.mxu0
        %2092 = vmatpush.bf16.msra.mxu0 %v1591
        %2093 = vmatpush.bf16.msra.mxu0 %v1589
        %2094 = vmatpush.bf16.msra.mxu0 %v1587
        %2095 = vmatpush.bf16.msra.mxu0 %v1585
        %2096 = vmatpush.bf16.msra.mxu0 %v1583
        %2097 = vmatpush.bf16.msra.mxu0 %v1581
        %2098 = vmatpush.bf16.msra.mxu0 %v1579
        %2099 = vmatpush.bf16.msra.mxu0 %v1577
        %2100 = vmatmul.bf16.gmra.mxu0 %v730
        %v2101 = vpop.f32.mrf.mxu0
        %v2102 = vadd.f32 %v2083, %v2101
        %v2103 = vpop.f32.mrf.mxu0
        %v2104 = vadd.f32 %v2085, %v2103
        %2105 = vmatmul.bf16.gmra.mxu0 %v746
        %v2106 = vpop.f32.mrf.mxu0
        %v2107 = vadd.f32 %v2088, %v2106
        %v2108 = vpop.f32.mrf.mxu0
        %v2109 = vadd.f32 %v2090, %v2108
        %2110 = vdwg.mxu0
        %2111 = vmatpush.bf16.msra.mxu0 %v1607
        %2112 = vmatpush.bf16.msra.mxu0 %v1605
        %2113 = vmatpush.bf16.msra.mxu0 %v1603
        %2114 = vmatpush.bf16.msra.mxu0 %v1601
        %2115 = vmatpush.bf16.msra.mxu0 %v1599
        %2116 = vmatpush.bf16.msra.mxu0 %v1597
        %2117 = vmatpush.bf16.msra.mxu0 %v1595
        %2118 = vmatpush.bf16.msra.mxu0 %v1593
        %2119 = vmatmul.bf16.gmra.mxu0 %v731
        %v2120 = vpop.f32.mrf.mxu0
        %v2121 = vadd.f32 %v2102, %v2120
        %v2122 = vpop.f32.mrf.mxu0
        %v2123 = vadd.f32 %v2104, %v2122
        %2124 = vmatmul.bf16.gmra.mxu0 %v747
        %v2125 = vpop.f32.mrf.mxu0
        %v2126 = vadd.f32 %v2107, %v2125
        %v2127 = vpop.f32.mrf.mxu0
        %v2128 = vadd.f32 %v2109, %v2127
        %2129 = vdwg.mxu0
        %2130 = vmatpush.bf16.msra.mxu0 %v1623
        %2131 = vmatpush.bf16.msra.mxu0 %v1621
        %2132 = vmatpush.bf16.msra.mxu0 %v1619
        %2133 = vmatpush.bf16.msra.mxu0 %v1617
        %2134 = vmatpush.bf16.msra.mxu0 %v1615
        %2135 = vmatpush.bf16.msra.mxu0 %v1613
        %2136 = vmatpush.bf16.msra.mxu0 %v1611
        %2137 = vmatpush.bf16.msra.mxu0 %v1609
        %2138 = vmatmul.bf16.gmra.mxu0 %v732
        %v2139 = vpop.f32.mrf.mxu0
        %v2140 = vadd.f32 %v2121, %v2139
        %v2141 = vpop.f32.mrf.mxu0
        %v2142 = vadd.f32 %v2123, %v2141
        %2143 = vmatmul.bf16.gmra.mxu0 %v748
        %v2144 = vpop.f32.mrf.mxu0
        %v2145 = vadd.f32 %v2126, %v2144
        %v2146 = vpop.f32.mrf.mxu0
        %v2147 = vadd.f32 %v2128, %v2146
        %2148 = vdwg.mxu0
        %2149 = vmatpush.bf16.msra.mxu0 %v1639
        %2150 = vmatpush.bf16.msra.mxu0 %v1637
        %2151 = vmatpush.bf16.msra.mxu0 %v1635
        %2152 = vmatpush.bf16.msra.mxu0 %v1633
        %2153 = vmatpush.bf16.msra.mxu0 %v1631
        %2154 = vmatpush.bf16.msra.mxu0 %v1629
        %2155 = vmatpush.bf16.msra.mxu0 %v1627
        %2156 = vmatpush.bf16.msra.mxu0 %v1625
        %2157 = vmatmul.bf16.gmra.mxu0 %v733
        %v2158 = vpop.f32.mrf.mxu0
        %v2159 = vadd.f32 %v2140, %v2158
        %v2160 = vpop.f32.mrf.mxu0
        %v2161 = vadd.f32 %v2142, %v2160
        %2162 = vmatmul.bf16.gmra.mxu0 %v749
        %v2163 = vpop.f32.mrf.mxu0
        %v2164 = vadd.f32 %v2145, %v2163
        %v2165 = vpop.f32.mrf.mxu0
        %v2166 = vadd.f32 %v2147, %v2165
        %2167 = vdwg.mxu0
        %2168 = vmatpush.bf16.msra.mxu0 %v1655
        %2169 = vmatpush.bf16.msra.mxu0 %v1653
        %2170 = vmatpush.bf16.msra.mxu0 %v1651
        %2171 = vmatpush.bf16.msra.mxu0 %v1649
        %2172 = vmatpush.bf16.msra.mxu0 %v1647
        %2173 = vmatpush.bf16.msra.mxu0 %v1645
        %2174 = vmatpush.bf16.msra.mxu0 %v1643
        %2175 = vmatpush.bf16.msra.mxu0 %v1641
        %2176 = vmatmul.bf16.gmra.mxu0 %v734
        %v2177 = vpop.f32.mrf.mxu0
        %v2178 = vadd.f32 %v2159, %v2177
        %v2179 = vpop.f32.mrf.mxu0
        %v2180 = vadd.f32 %v2161, %v2179
        %2181 = vmatmul.bf16.gmra.mxu0 %v750
        %v2182 = vpop.f32.mrf.mxu0
        %v2183 = vadd.f32 %v2164, %v2182
        %v2184 = vpop.f32.mrf.mxu0
        %v2185 = vadd.f32 %v2166, %v2184
        %2186 = vdwg.mxu0
        %2187 = vmatpush.bf16.msra.mxu0 %v1671
        %2188 = vmatpush.bf16.msra.mxu0 %v1669
        %2189 = vmatpush.bf16.msra.mxu0 %v1667
        %2190 = vmatpush.bf16.msra.mxu0 %v1665
        %2191 = vmatpush.bf16.msra.mxu0 %v1663
        %2192 = vmatpush.bf16.msra.mxu0 %v1661
        %2193 = vmatpush.bf16.msra.mxu0 %v1659
        %2194 = vmatpush.bf16.msra.mxu0 %v1657
        %2195 = vmatmul.bf16.gmra.mxu0 %v735
        %v2196 = vpop.f32.mrf.mxu0
        %v2197 = vadd.f32 %v2178, %v2196
        %v2198 = vpop.f32.mrf.mxu0
        %v2199 = vadd.f32 %v2180, %v2198
        %2200 = vmatmul.bf16.gmra.mxu0 %v751
        %v2201 = vpop.f32.mrf.mxu0
        %v2202 = vadd.f32 %v2183, %v2201
        %v2203 = vpop.f32.mrf.mxu0
        %v2204 = vadd.f32 %v2185, %v2203
        %2205 = vdwg.mxu0
        %2206 = vmatpush.bf16.msra.mxu0 %v1687
        %2207 = vmatpush.bf16.msra.mxu0 %v1685
        %2208 = vmatpush.bf16.msra.mxu0 %v1683
        %2209 = vmatpush.bf16.msra.mxu0 %v1681
        %2210 = vmatpush.bf16.msra.mxu0 %v1679
        %2211 = vmatpush.bf16.msra.mxu0 %v1677
        %2212 = vmatpush.bf16.msra.mxu0 %v1675
        %2213 = vmatpush.bf16.msra.mxu0 %v1673
        %2214 = vmatmul.bf16.gmra.mxu0 %v736
        %v2215 = vpop.f32.mrf.mxu0
        %v2216 = vadd.f32 %v2197, %v2215
        %v2217 = vpop.f32.mrf.mxu0
        %v2218 = vadd.f32 %v2199, %v2217
        %2219 = vmatmul.bf16.gmra.mxu0 %v752
        %v2220 = vpop.f32.mrf.mxu0
        %v2221 = vadd.f32 %v2202, %v2220
        %v2222 = vpop.f32.mrf.mxu0
        %v2223 = vadd.f32 %v2204, %v2222
        %2224 = vdwg.mxu0
        %2225 = vmatpush.bf16.msra.mxu0 %v1703
        %2226 = vmatpush.bf16.msra.mxu0 %v1701
        %2227 = vmatpush.bf16.msra.mxu0 %v1699
        %2228 = vmatpush.bf16.msra.mxu0 %v1697
        %2229 = vmatpush.bf16.msra.mxu0 %v1695
        %2230 = vmatpush.bf16.msra.mxu0 %v1693
        %2231 = vmatpush.bf16.msra.mxu0 %v1691
        %2232 = vmatpush.bf16.msra.mxu0 %v1689
        %2233 = vmatmul.bf16.gmra.mxu0 %v737
        %v2234 = vpop.f32.mrf.mxu0
        %v2235 = vadd.f32 %v2216, %v2234
        %v2236 = vpop.f32.mrf.mxu0
        %v2237 = vadd.f32 %v2218, %v2236
        %2238 = vmatmul.bf16.gmra.mxu0 %v753
        %v2239 = vpop.f32.mrf.mxu0
        %v2240 = vadd.f32 %v2221, %v2239
        %v2241 = vpop.f32.mrf.mxu0
        %v2242 = vadd.f32 %v2223, %v2241
        %2243 = vdwg.mxu0
        %2244 = vmatpush.bf16.msra.mxu0 %v1719
        %2245 = vmatpush.bf16.msra.mxu0 %v1717
        %2246 = vmatpush.bf16.msra.mxu0 %v1715
        %2247 = vmatpush.bf16.msra.mxu0 %v1713
        %2248 = vmatpush.bf16.msra.mxu0 %v1711
        %2249 = vmatpush.bf16.msra.mxu0 %v1709
        %2250 = vmatpush.bf16.msra.mxu0 %v1707
        %2251 = vmatpush.bf16.msra.mxu0 %v1705
        %2252 = vmatmul.bf16.gmra.mxu0 %v738
        %v2253 = vpop.f32.mrf.mxu0
        %v2254 = vadd.f32 %v2235, %v2253
        %v2255 = vpop.f32.mrf.mxu0
        %v2256 = vadd.f32 %v2237, %v2255
        %2257 = vmatmul.bf16.gmra.mxu0 %v754
        %v2258 = vpop.f32.mrf.mxu0
        %v2259 = vadd.f32 %v2240, %v2258
        %v2260 = vpop.f32.mrf.mxu0
        %v2261 = vadd.f32 %v2242, %v2260
        %2262 = vdwg.mxu0
        %2263 = vmatpush.bf16.msra.mxu0 %v1735
        %2264 = vmatpush.bf16.msra.mxu0 %v1733
        %2265 = vmatpush.bf16.msra.mxu0 %v1731
        %2266 = vmatpush.bf16.msra.mxu0 %v1729
        %2267 = vmatpush.bf16.msra.mxu0 %v1727
        %2268 = vmatpush.bf16.msra.mxu0 %v1725
        %2269 = vmatpush.bf16.msra.mxu0 %v1723
        %2270 = vmatpush.bf16.msra.mxu0 %v1721
        %2271 = vmatmul.bf16.gmra.mxu0 %v739
        %v2272 = vpop.f32.mrf.mxu0
        %v2273 = vadd.f32 %v2254, %v2272
        %v2274 = vpop.f32.mrf.mxu0
        %v2275 = vadd.f32 %v2256, %v2274
        %2276 = vmatmul.bf16.gmra.mxu0 %v755
        %v2277 = vpop.f32.mrf.mxu0
        %v2278 = vadd.f32 %v2259, %v2277
        %v2279 = vpop.f32.mrf.mxu0
        %v2280 = vadd.f32 %v2261, %v2279
        %2281 = vdwg.mxu0
        %2282 = vmatpush.bf16.msra.mxu0 %v1751
        %2283 = vmatpush.bf16.msra.mxu0 %v1749
        %2284 = vmatpush.bf16.msra.mxu0 %v1747
        %2285 = vmatpush.bf16.msra.mxu0 %v1745
        %2286 = vmatpush.bf16.msra.mxu0 %v1743
        %2287 = vmatpush.bf16.msra.mxu0 %v1741
        %2288 = vmatpush.bf16.msra.mxu0 %v1739
        %2289 = vmatpush.bf16.msra.mxu0 %v1737
        %2290 = vmatmul.bf16.gmra.mxu0 %v740
        %v2291 = vpop.f32.mrf.mxu0
        %v2292 = vadd.f32 %v2273, %v2291
        %v2293 = vpop.f32.mrf.mxu0
        %v2294 = vadd.f32 %v2275, %v2293
        %2295 = vmatmul.bf16.gmra.mxu0 %v756
        %v2296 = vpop.f32.mrf.mxu0
        %v2297 = vadd.f32 %v2278, %v2296
        %v2298 = vpop.f32.mrf.mxu0
        %v2299 = vadd.f32 %v2280, %v2298
        %2300 = vdwg.mxu0
        %2301 = vmatpush.bf16.msra.mxu0 %v1767
        %2302 = vmatpush.bf16.msra.mxu0 %v1765
        %2303 = vmatpush.bf16.msra.mxu0 %v1763
        %2304 = vmatpush.bf16.msra.mxu0 %v1761
        %2305 = vmatpush.bf16.msra.mxu0 %v1759
        %2306 = vmatpush.bf16.msra.mxu0 %v1757
        %2307 = vmatpush.bf16.msra.mxu0 %v1755
        %2308 = vmatpush.bf16.msra.mxu0 %v1753
        %2309 = vmatmul.bf16.gmra.mxu0 %v741
        %v2310 = vpop.f32.mrf.mxu0
        %v2311 = vadd.f32 %v2292, %v2310
        %v2312 = vpop.f32.mrf.mxu0
        %v2313 = vadd.f32 %v2294, %v2312
        %2314 = vmatmul.bf16.gmra.mxu0 %v757
        %v2315 = vpop.f32.mrf.mxu0
        %v2316 = vadd.f32 %v2297, %v2315
        %v2317 = vpop.f32.mrf.mxu0
        %v2318 = vadd.f32 %v2299, %v2317
        %2319 = vdwg.mxu0
        %2320 = vmatpush.bf16.msra.mxu0 %v1783
        %2321 = vmatpush.bf16.msra.mxu0 %v1781
        %2322 = vmatpush.bf16.msra.mxu0 %v1779
        %2323 = vmatpush.bf16.msra.mxu0 %v1777
        %2324 = vmatpush.bf16.msra.mxu0 %v1775
        %2325 = vmatpush.bf16.msra.mxu0 %v1773
        %2326 = vmatpush.bf16.msra.mxu0 %v1771
        %2327 = vmatpush.bf16.msra.mxu0 %v1769
        %2328 = vmatmul.bf16.gmra.mxu0 %v742
        %v2329 = vpop.f32.mrf.mxu0
        %v2330 = vadd.f32 %v2311, %v2329
        %v2331 = vpop.f32.mrf.mxu0
        %v2332 = vadd.f32 %v2313, %v2331
        %2333 = vmatmul.bf16.gmra.mxu0 %v758
        %v2334 = vpop.f32.mrf.mxu0
        %v2335 = vadd.f32 %v2316, %v2334
        %v2336 = vpop.f32.mrf.mxu0
        %v2337 = vadd.f32 %v2318, %v2336
        %2338 = vdwg.mxu0
        %2339 = vmatpush.bf16.msra.mxu0 %v1799
        %2340 = vmatpush.bf16.msra.mxu0 %v1797
        %2341 = vmatpush.bf16.msra.mxu0 %v1795
        %2342 = vmatpush.bf16.msra.mxu0 %v1793
        %2343 = vmatpush.bf16.msra.mxu0 %v1791
        %2344 = vmatpush.bf16.msra.mxu0 %v1789
        %2345 = vmatpush.bf16.msra.mxu0 %v1787
        %2346 = vmatpush.bf16.msra.mxu0 %v1785
        %2347 = vmatmul.bf16.gmra.mxu0 %v743
        %v2348 = vpop.f32.mrf.mxu0
        %v2349 = vadd.f32 %v2330, %v2348
        %v2350 = vpop.f32.mrf.mxu0
        %v2351 = vadd.f32 %v2332, %v2350
        %2352 = vmatmul.bf16.gmra.mxu0 %v759
        %v2353 = vpop.f32.mrf.mxu0
        %v2354 = vadd.f32 %v2335, %v2353
        %v2355 = vpop.f32.mrf.mxu0
        %v2356 = vadd.f32 %v2337, %v2355
        %2357 = vdwg.mxu0
        %2358 = vmatpush.bf16.msra.mxu0 %v1815
        %2359 = vmatpush.bf16.msra.mxu0 %v1813
        %2360 = vmatpush.bf16.msra.mxu0 %v1811
        %2361 = vmatpush.bf16.msra.mxu0 %v1809
        %2362 = vmatpush.bf16.msra.mxu0 %v1807
        %2363 = vmatpush.bf16.msra.mxu0 %v1805
        %2364 = vmatpush.bf16.msra.mxu0 %v1803
        %2365 = vmatpush.bf16.msra.mxu0 %v1801
        %2366 = vmatmul.bf16.gmra.mxu0 %v744
        %v2367 = vpop.f32.mrf.mxu0
        %v2368 = vadd.f32 %v2349, %v2367
        %v2369 = vpop.f32.mrf.mxu0
        %v2370 = vadd.f32 %v2351, %v2369
        %2371 = vmatmul.bf16.gmra.mxu0 %v760
        %v2372 = vpop.f32.mrf.mxu0
        %v2373 = vadd.f32 %v2354, %v2372
        %v2374 = vpop.f32.mrf.mxu0
        %v2375 = vadd.f32 %v2356, %v2374
        %2376 = vdwg.mxu0
        %2377 = vmatpush.bf16.msra.mxu0 %v1576
        %2378 = vmatpush.bf16.msra.mxu0 %v1574
        %2379 = vmatpush.bf16.msra.mxu0 %v1572
        %2380 = vmatpush.bf16.msra.mxu0 %v1570
        %2381 = vmatpush.bf16.msra.mxu0 %v1568
        %2382 = vmatpush.bf16.msra.mxu0 %v1566
        %2383 = vmatpush.bf16.msra.mxu0 %v1564
        %2384 = vmatpush.bf16.msra.mxu0 %v1562
        %2385 = vmatmul.bf16.gmra.mxu0 %v729
        %v2386 = vpop.f32.mrf.mxu0
        %v2387 = vadd.f32 0.0, %v2386
        %v2388 = vpop.f32.mrf.mxu0
        %v2389 = vadd.f32 0.0, %v2388
        %2390 = vmatmul.bf16.gmra.mxu0 %v745
        %v2391 = vpop.f32.mrf.mxu0
        %v2392 = vadd.f32 0.0, %v2391
        %v2393 = vpop.f32.mrf.mxu0
        %v2394 = vadd.f32 0.0, %v2393
        %2395 = vdwg.mxu0
        %2396 = vmatpush.bf16.msra.mxu0 %v1592
        %2397 = vmatpush.bf16.msra.mxu0 %v1590
        %2398 = vmatpush.bf16.msra.mxu0 %v1588
        %2399 = vmatpush.bf16.msra.mxu0 %v1586
        %2400 = vmatpush.bf16.msra.mxu0 %v1584
        %2401 = vmatpush.bf16.msra.mxu0 %v1582
        %2402 = vmatpush.bf16.msra.mxu0 %v1580
        %2403 = vmatpush.bf16.msra.mxu0 %v1578
        %2404 = vmatmul.bf16.gmra.mxu0 %v730
        %v2405 = vpop.f32.mrf.mxu0
        %v2406 = vadd.f32 %v2387, %v2405
        %v2407 = vpop.f32.mrf.mxu0
        %v2408 = vadd.f32 %v2389, %v2407
        %2409 = vmatmul.bf16.gmra.mxu0 %v746
        %v2410 = vpop.f32.mrf.mxu0
        %v2411 = vadd.f32 %v2392, %v2410
        %v2412 = vpop.f32.mrf.mxu0
        %v2413 = vadd.f32 %v2394, %v2412
        %2414 = vdwg.mxu0
        %2415 = vmatpush.bf16.msra.mxu0 %v1608
        %2416 = vmatpush.bf16.msra.mxu0 %v1606
        %2417 = vmatpush.bf16.msra.mxu0 %v1604
        %2418 = vmatpush.bf16.msra.mxu0 %v1602
        %2419 = vmatpush.bf16.msra.mxu0 %v1600
        %2420 = vmatpush.bf16.msra.mxu0 %v1598
        %2421 = vmatpush.bf16.msra.mxu0 %v1596
        %2422 = vmatpush.bf16.msra.mxu0 %v1594
        %2423 = vmatmul.bf16.gmra.mxu0 %v731
        %v2424 = vpop.f32.mrf.mxu0
        %v2425 = vadd.f32 %v2406, %v2424
        %v2426 = vpop.f32.mrf.mxu0
        %v2427 = vadd.f32 %v2408, %v2426
        %2428 = vmatmul.bf16.gmra.mxu0 %v747
        %v2429 = vpop.f32.mrf.mxu0
        %v2430 = vadd.f32 %v2411, %v2429
        %v2431 = vpop.f32.mrf.mxu0
        %v2432 = vadd.f32 %v2413, %v2431
        %2433 = vdwg.mxu0
        %2434 = vmatpush.bf16.msra.mxu0 %v1624
        %2435 = vmatpush.bf16.msra.mxu0 %v1622
        %2436 = vmatpush.bf16.msra.mxu0 %v1620
        %2437 = vmatpush.bf16.msra.mxu0 %v1618
        %2438 = vmatpush.bf16.msra.mxu0 %v1616
        %2439 = vmatpush.bf16.msra.mxu0 %v1614
        %2440 = vmatpush.bf16.msra.mxu0 %v1612
        %2441 = vmatpush.bf16.msra.mxu0 %v1610
        %2442 = vmatmul.bf16.gmra.mxu0 %v732
        %v2443 = vpop.f32.mrf.mxu0
        %v2444 = vadd.f32 %v2425, %v2443
        %v2445 = vpop.f32.mrf.mxu0
        %v2446 = vadd.f32 %v2427, %v2445
        %2447 = vmatmul.bf16.gmra.mxu0 %v748
        %v2448 = vpop.f32.mrf.mxu0
        %v2449 = vadd.f32 %v2430, %v2448
        %v2450 = vpop.f32.mrf.mxu0
        %v2451 = vadd.f32 %v2432, %v2450
        %2452 = vdwg.mxu0
        %2453 = vmatpush.bf16.msra.mxu0 %v1640
        %2454 = vmatpush.bf16.msra.mxu0 %v1638
        %2455 = vmatpush.bf16.msra.mxu0 %v1636
        %2456 = vmatpush.bf16.msra.mxu0 %v1634
        %2457 = vmatpush.bf16.msra.mxu0 %v1632
        %2458 = vmatpush.bf16.msra.mxu0 %v1630
        %2459 = vmatpush.bf16.msra.mxu0 %v1628
        %2460 = vmatpush.bf16.msra.mxu0 %v1626
        %2461 = vmatmul.bf16.gmra.mxu0 %v733
        %v2462 = vpop.f32.mrf.mxu0
        %v2463 = vadd.f32 %v2444, %v2462
        %v2464 = vpop.f32.mrf.mxu0
        %v2465 = vadd.f32 %v2446, %v2464
        %2466 = vmatmul.bf16.gmra.mxu0 %v749
        %v2467 = vpop.f32.mrf.mxu0
        %v2468 = vadd.f32 %v2449, %v2467
        %v2469 = vpop.f32.mrf.mxu0
        %v2470 = vadd.f32 %v2451, %v2469
        %2471 = vdwg.mxu0
        %2472 = vmatpush.bf16.msra.mxu0 %v1656
        %2473 = vmatpush.bf16.msra.mxu0 %v1654
        %2474 = vmatpush.bf16.msra.mxu0 %v1652
        %2475 = vmatpush.bf16.msra.mxu0 %v1650
        %2476 = vmatpush.bf16.msra.mxu0 %v1648
        %2477 = vmatpush.bf16.msra.mxu0 %v1646
        %2478 = vmatpush.bf16.msra.mxu0 %v1644
        %2479 = vmatpush.bf16.msra.mxu0 %v1642
        %2480 = vmatmul.bf16.gmra.mxu0 %v734
        %v2481 = vpop.f32.mrf.mxu0
        %v2482 = vadd.f32 %v2463, %v2481
        %v2483 = vpop.f32.mrf.mxu0
        %v2484 = vadd.f32 %v2465, %v2483
        %2485 = vmatmul.bf16.gmra.mxu0 %v750
        %v2486 = vpop.f32.mrf.mxu0
        %v2487 = vadd.f32 %v2468, %v2486
        %v2488 = vpop.f32.mrf.mxu0
        %v2489 = vadd.f32 %v2470, %v2488
        %2490 = vdwg.mxu0
        %2491 = vmatpush.bf16.msra.mxu0 %v1672
        %2492 = vmatpush.bf16.msra.mxu0 %v1670
        %2493 = vmatpush.bf16.msra.mxu0 %v1668
        %2494 = vmatpush.bf16.msra.mxu0 %v1666
        %2495 = vmatpush.bf16.msra.mxu0 %v1664
        %2496 = vmatpush.bf16.msra.mxu0 %v1662
        %2497 = vmatpush.bf16.msra.mxu0 %v1660
        %2498 = vmatpush.bf16.msra.mxu0 %v1658
        %2499 = vmatmul.bf16.gmra.mxu0 %v735
        %v2500 = vpop.f32.mrf.mxu0
        %v2501 = vadd.f32 %v2482, %v2500
        %v2502 = vpop.f32.mrf.mxu0
        %v2503 = vadd.f32 %v2484, %v2502
        %2504 = vmatmul.bf16.gmra.mxu0 %v751
        %v2505 = vpop.f32.mrf.mxu0
        %v2506 = vadd.f32 %v2487, %v2505
        %v2507 = vpop.f32.mrf.mxu0
        %v2508 = vadd.f32 %v2489, %v2507
        %2509 = vdwg.mxu0
        %2510 = vmatpush.bf16.msra.mxu0 %v1688
        %2511 = vmatpush.bf16.msra.mxu0 %v1686
        %2512 = vmatpush.bf16.msra.mxu0 %v1684
        %2513 = vmatpush.bf16.msra.mxu0 %v1682
        %2514 = vmatpush.bf16.msra.mxu0 %v1680
        %2515 = vmatpush.bf16.msra.mxu0 %v1678
        %2516 = vmatpush.bf16.msra.mxu0 %v1676
        %2517 = vmatpush.bf16.msra.mxu0 %v1674
        %2518 = vmatmul.bf16.gmra.mxu0 %v736
        %v2519 = vpop.f32.mrf.mxu0
        %v2520 = vadd.f32 %v2501, %v2519
        %v2521 = vpop.f32.mrf.mxu0
        %v2522 = vadd.f32 %v2503, %v2521
        %2523 = vmatmul.bf16.gmra.mxu0 %v752
        %v2524 = vpop.f32.mrf.mxu0
        %v2525 = vadd.f32 %v2506, %v2524
        %v2526 = vpop.f32.mrf.mxu0
        %v2527 = vadd.f32 %v2508, %v2526
        %2528 = vdwg.mxu0
        %2529 = vmatpush.bf16.msra.mxu0 %v1704
        %2530 = vmatpush.bf16.msra.mxu0 %v1702
        %2531 = vmatpush.bf16.msra.mxu0 %v1700
        %2532 = vmatpush.bf16.msra.mxu0 %v1698
        %2533 = vmatpush.bf16.msra.mxu0 %v1696
        %2534 = vmatpush.bf16.msra.mxu0 %v1694
        %2535 = vmatpush.bf16.msra.mxu0 %v1692
        %2536 = vmatpush.bf16.msra.mxu0 %v1690
        %2537 = vmatmul.bf16.gmra.mxu0 %v737
        %v2538 = vpop.f32.mrf.mxu0
        %v2539 = vadd.f32 %v2520, %v2538
        %v2540 = vpop.f32.mrf.mxu0
        %v2541 = vadd.f32 %v2522, %v2540
        %2542 = vmatmul.bf16.gmra.mxu0 %v753
        %v2543 = vpop.f32.mrf.mxu0
        %v2544 = vadd.f32 %v2525, %v2543
        %v2545 = vpop.f32.mrf.mxu0
        %v2546 = vadd.f32 %v2527, %v2545
        %2547 = vdwg.mxu0
        %2548 = vmatpush.bf16.msra.mxu0 %v1720
        %2549 = vmatpush.bf16.msra.mxu0 %v1718
        %2550 = vmatpush.bf16.msra.mxu0 %v1716
        %2551 = vmatpush.bf16.msra.mxu0 %v1714
        %2552 = vmatpush.bf16.msra.mxu0 %v1712
        %2553 = vmatpush.bf16.msra.mxu0 %v1710
        %2554 = vmatpush.bf16.msra.mxu0 %v1708
        %2555 = vmatpush.bf16.msra.mxu0 %v1706
        %2556 = vmatmul.bf16.gmra.mxu0 %v738
        %v2557 = vpop.f32.mrf.mxu0
        %v2558 = vadd.f32 %v2539, %v2557
        %v2559 = vpop.f32.mrf.mxu0
        %v2560 = vadd.f32 %v2541, %v2559
        %2561 = vmatmul.bf16.gmra.mxu0 %v754
        %v2562 = vpop.f32.mrf.mxu0
        %v2563 = vadd.f32 %v2544, %v2562
        %v2564 = vpop.f32.mrf.mxu0
        %v2565 = vadd.f32 %v2546, %v2564
        %2566 = vdwg.mxu0
        %2567 = vmatpush.bf16.msra.mxu0 %v1736
        %2568 = vmatpush.bf16.msra.mxu0 %v1734
        %2569 = vmatpush.bf16.msra.mxu0 %v1732
        %2570 = vmatpush.bf16.msra.mxu0 %v1730
        %2571 = vmatpush.bf16.msra.mxu0 %v1728
        %2572 = vmatpush.bf16.msra.mxu0 %v1726
        %2573 = vmatpush.bf16.msra.mxu0 %v1724
        %2574 = vmatpush.bf16.msra.mxu0 %v1722
        %2575 = vmatmul.bf16.gmra.mxu0 %v739
        %v2576 = vpop.f32.mrf.mxu0
        %v2577 = vadd.f32 %v2558, %v2576
        %v2578 = vpop.f32.mrf.mxu0
        %v2579 = vadd.f32 %v2560, %v2578
        %2580 = vmatmul.bf16.gmra.mxu0 %v755
        %v2581 = vpop.f32.mrf.mxu0
        %v2582 = vadd.f32 %v2563, %v2581
        %v2583 = vpop.f32.mrf.mxu0
        %v2584 = vadd.f32 %v2565, %v2583
        %2585 = vdwg.mxu0
        %2586 = vmatpush.bf16.msra.mxu0 %v1752
        %2587 = vmatpush.bf16.msra.mxu0 %v1750
        %2588 = vmatpush.bf16.msra.mxu0 %v1748
        %2589 = vmatpush.bf16.msra.mxu0 %v1746
        %2590 = vmatpush.bf16.msra.mxu0 %v1744
        %2591 = vmatpush.bf16.msra.mxu0 %v1742
        %2592 = vmatpush.bf16.msra.mxu0 %v1740
        %2593 = vmatpush.bf16.msra.mxu0 %v1738
        %2594 = vmatmul.bf16.gmra.mxu0 %v740
        %v2595 = vpop.f32.mrf.mxu0
        %v2596 = vadd.f32 %v2577, %v2595
        %v2597 = vpop.f32.mrf.mxu0
        %v2598 = vadd.f32 %v2579, %v2597
        %2599 = vmatmul.bf16.gmra.mxu0 %v756
        %v2600 = vpop.f32.mrf.mxu0
        %v2601 = vadd.f32 %v2582, %v2600
        %v2602 = vpop.f32.mrf.mxu0
        %v2603 = vadd.f32 %v2584, %v2602
        %2604 = vdwg.mxu0
        %2605 = vmatpush.bf16.msra.mxu0 %v1768
        %2606 = vmatpush.bf16.msra.mxu0 %v1766
        %2607 = vmatpush.bf16.msra.mxu0 %v1764
        %2608 = vmatpush.bf16.msra.mxu0 %v1762
        %2609 = vmatpush.bf16.msra.mxu0 %v1760
        %2610 = vmatpush.bf16.msra.mxu0 %v1758
        %2611 = vmatpush.bf16.msra.mxu0 %v1756
        %2612 = vmatpush.bf16.msra.mxu0 %v1754
        %2613 = vmatmul.bf16.gmra.mxu0 %v741
        %v2614 = vpop.f32.mrf.mxu0
        %v2615 = vadd.f32 %v2596, %v2614
        %v2616 = vpop.f32.mrf.mxu0
        %v2617 = vadd.f32 %v2598, %v2616
        %2618 = vmatmul.bf16.gmra.mxu0 %v757
        %v2619 = vpop.f32.mrf.mxu0
        %v2620 = vadd.f32 %v2601, %v2619
        %v2621 = vpop.f32.mrf.mxu0
        %v2622 = vadd.f32 %v2603, %v2621
        %2623 = vdwg.mxu0
        %2624 = vmatpush.bf16.msra.mxu0 %v1784
        %2625 = vmatpush.bf16.msra.mxu0 %v1782
        %2626 = vmatpush.bf16.msra.mxu0 %v1780
        %2627 = vmatpush.bf16.msra.mxu0 %v1778
        %2628 = vmatpush.bf16.msra.mxu0 %v1776
        %2629 = vmatpush.bf16.msra.mxu0 %v1774
        %2630 = vmatpush.bf16.msra.mxu0 %v1772
        %2631 = vmatpush.bf16.msra.mxu0 %v1770
        %2632 = vmatmul.bf16.gmra.mxu0 %v742
        %v2633 = vpop.f32.mrf.mxu0
        %v2634 = vadd.f32 %v2615, %v2633
        %v2635 = vpop.f32.mrf.mxu0
        %v2636 = vadd.f32 %v2617, %v2635
        %2637 = vmatmul.bf16.gmra.mxu0 %v758
        %v2638 = vpop.f32.mrf.mxu0
        %v2639 = vadd.f32 %v2620, %v2638
        %v2640 = vpop.f32.mrf.mxu0
        %v2641 = vadd.f32 %v2622, %v2640
        %2642 = vdwg.mxu0
        %2643 = vmatpush.bf16.msra.mxu0 %v1800
        %2644 = vmatpush.bf16.msra.mxu0 %v1798
        %2645 = vmatpush.bf16.msra.mxu0 %v1796
        %2646 = vmatpush.bf16.msra.mxu0 %v1794
        %2647 = vmatpush.bf16.msra.mxu0 %v1792
        %2648 = vmatpush.bf16.msra.mxu0 %v1790
        %2649 = vmatpush.bf16.msra.mxu0 %v1788
        %2650 = vmatpush.bf16.msra.mxu0 %v1786
        %2651 = vmatmul.bf16.gmra.mxu0 %v743
        %v2652 = vpop.f32.mrf.mxu0
        %v2653 = vadd.f32 %v2634, %v2652
        %v2654 = vpop.f32.mrf.mxu0
        %v2655 = vadd.f32 %v2636, %v2654
        %2656 = vmatmul.bf16.gmra.mxu0 %v759
        %v2657 = vpop.f32.mrf.mxu0
        %v2658 = vadd.f32 %v2639, %v2657
        %v2659 = vpop.f32.mrf.mxu0
        %v2660 = vadd.f32 %v2641, %v2659
        %2661 = vdwg.mxu0
        %2662 = vmatpush.bf16.msra.mxu0 %v1816
        %2663 = vmatpush.bf16.msra.mxu0 %v1814
        %2664 = vmatpush.bf16.msra.mxu0 %v1812
        %2665 = vmatpush.bf16.msra.mxu0 %v1810
        %2666 = vmatpush.bf16.msra.mxu0 %v1808
        %2667 = vmatpush.bf16.msra.mxu0 %v1806
        %2668 = vmatpush.bf16.msra.mxu0 %v1804
        %2669 = vmatpush.bf16.msra.mxu0 %v1802
        %2670 = vmatmul.bf16.gmra.mxu0 %v744
        %v2671 = vpop.f32.mrf.mxu0
        %v2672 = vadd.f32 %v2653, %v2671
        %v2673 = vpop.f32.mrf.mxu0
        %v2674 = vadd.f32 %v2655, %v2673
        %2675 = vmatmul.bf16.gmra.mxu0 %v760
        %v2676 = vpop.f32.mrf.mxu0
        %v2677 = vadd.f32 %v2658, %v2676
        %v2678 = vpop.f32.mrf.mxu0
        %v2679 = vadd.f32 %v2660, %v2678
        %2680 = vdwg.mxu0
        %v2681 = vld [vmem:[%s322] sm:$0x3]
        %v2683 = vperm.slane %v2681, 0
        %v2684 = vperm.slane %v2681, 1
        %v2687 = vmul.f32 %v2368, %v2683
        %v2688 = vmul.f32 %v2672, %v2684
        %v2689 = vmul.f32 %v2370, %v2683
        %v2690 = vmul.f32 %v2674, %v2684
        %v2691 = vmul.f32 %v2373, %v2683
        %v2692 = vmul.f32 %v2677, %v2684
        %v2693 = vmul.f32 %v2375, %v2683
        %v2694 = vmul.f32 %v2679, %v2684
        %v2695 = vld [vmem:[%s327] sm:$0x3]
        %v2697 = vperm.slane %v2695, 0
        %v2698 = vperm.slane %v2695, 1
        %v2701 = vadd.f32 %v2687, %v2697
        %v2702 = vadd.f32 %v2688, %v2698
        %v2703 = vadd.f32 %v2689, %v2697
        %v2704 = vadd.f32 %v2690, %v2698
        %v2705 = vadd.f32 %v2691, %v2697
        %v2706 = vadd.f32 %v2692, %v2698
        %v2707 = vadd.f32 %v2693, %v2697
        %v2708 = vadd.f32 %v2694, %v2698
        %v2709 = vmax.f32 %v2701, 0.0
        %v2710 = vmax.f32 %v2702, 0.0
        %v2711 = vmax.f32 %v2703, 0.0
        %v2712 = vmax.f32 %v2704, 0.0
        %v2713 = vmax.f32 %v2705, 0.0
        %v2714 = vmax.f32 %v2706, 0.0
        %v2715 = vmax.f32 %v2707, 0.0
        %v2716 = vmax.f32 %v2708, 0.0
        %v2717 = vpack.c.bf16 %v2710, %v2709
        %v2718 = vpack.c.bf16 %v2712, %v2711
        %v2719 = vpack.c.bf16 %v2714, %v2713
        %v2720 = vpack.c.bf16 %v2716, %v2715
        %2721 = vst [vmem:[%s342] sm:$0xff] %v2717
        %2722 = vst [vmem:[%s342 + $0x8] sm:$0xff] %v2718
        %2723 = vst [vmem:[%s342 + $0x10] sm:$0xff] %v2719
        %2724 = vst [vmem:[%s342 + $0x18] sm:$0xff] %v2720
        %s2725 = smul.u32 4, %s24
        %s2726 = smul.u32 2, %s25
        %p2727 = scmp.lt.s32.totalorder %s23, 3
        %s2728 = scalar_select %p2727, %s23, 3
        %p2729 = scmp.lt.s32.totalorder %s2725, 3
        %s2730 = scalar_select %p2729, %s2725, 3
        %p2731 = scmp.lt.s32.totalorder %s2726, 1
        %s2732 = scalar_select %p2731, %s2726, 1
        %s2733 = smul.addr %s2730, 2
        %s2734 = sadd.s32 %s2732, %s2733
        %s2735 = smul.addr %s2728, 8
        %s2736 = sadd.s32 %s2734, %s2735
        %s2737 = smul.addr %s2736, 4
        %s2738 = scalar_lea.vmem %s4, %s2737
        // Predicated region
        $region41: #{_lambda_.6} parent=35 // pred_check
          %p2739 = pneg %p167
        $region42: #{_lambda_.6} parent=35 // pred_check_branch
          %2741 = sbr.rel (%p2739) target = $region44
        $region43: #{_lambda_.6} parent=35 // pred_region
          %s2742 = smul.u32 4, %s24
          %s2743 = smul.u32 2, %s25
        $region44: #{_lambda_.6} parent=35 // pred_fallthru
          _
      $region36: #{_lambda_.6} parent=5 // pred_fallthru
        _
      %p2744 = scmp.le.s32.totalorder 2, %s13
      // Predicated region
      $region45: #{_lambda_.6} parent=5 // pred_check
        %p2745 = pneg %p2744
      $region46: #{_lambda_.6} parent=5 // pred_check_branch
        %2747 = sbr.rel (%p2745) target = $region48
      $region47: #{_lambda_.6} parent=5 // pred_region
        %s2748 = ssub.s32 %s13, 2
        // Predicated region
        $region49: #{_lambda_.6} parent=47 // pred_check
          %p2749 = pneg %p173
        $region50: #{_lambda_.6} parent=47 // pred_check_branch
          %2751 = sbr.rel (%p2749) target = $region52
        $region51: #{_lambda_.6} parent=47 // pred_region
          %s2752 = smul.u32 4, %s27
          %s2753 = smul.u32 2, %s28
          %p2754 = scmp.lt.s32.totalorder %s26, 3
          %s2755 = scalar_select %p2754, %s26, 3
          %p2756 = scmp.lt.s32.totalorder %s2752, 3
          %s2757 = scalar_select %p2756, %s2752, 3
          %p2758 = scmp.lt.s32.totalorder %s2753, 1
          %s2759 = scalar_select %p2758, %s2753, 1
          %s2760 = smul.addr %s2757, 2
          %s2761 = sadd.s32 %s2759, %s2760
          %s2762 = smul.addr %s2755, 8
          %s2763 = sadd.s32 %s2761, %s2762
          %s2764 = smul.addr %s2763, 4
          %s2765 = scalar_lea.vmem %s4, %s2764
        $region52: #{_lambda_.6} parent=47 // pred_fallthru
          _
      $region48: #{_lambda_.6} parent=5 // pred_fallthru
        _
    $region6: #{_lambda_.6} parent=1 // loop_footer
      %s17 = sadd.s32 1, %s13
    $region7: #{_lambda_.6} parent=1 // loop_footer_branch
      %12 = sbr.rel target = $region3
    $region8: #{_lambda_.6} parent=1 // loop_exit
      _
    %2766 = vsyncpa [#allocation3], 1
    %s2767 = scalar_lea.sflag [#allocation3], 1
    %2768 = vsyncpa %s2767, 1

// kernel: _lambda_.7
$region0: #{_lambda_.7}
  #allocation0 [shape = 'u32[]', space=smem, size = 0x4, offset = 0x4, fixed_abs, tag = 'smem constant byte address 0x4 - core index']
  #allocation1 [shape = 'u32[72,128]{1,0:T(1,128)}', space=vmem, size = 0x9000, scoped, tag = 'internal scratch']
  %s0 = inlined_call_operand.vmem [shape: bf16[4,128,1024], index: 0, kind: input, shape index: {}]
  %s1 = inlined_call_operand.vmem [shape: bf16[4,1024,128], index: 1, kind: input, shape index: {}]
  %s2 = inlined_call_operand.vmem [shape: f32[1,128], index: 2, kind: input, shape index: {}]
  %s3 = inlined_call_operand.vmem [shape: f32[1,128], index: 3, kind: input, shape index: {}]
  %s4 = inlined_call_operand.vmem [shape: bf16[4,128,128], index: 4, kind: output, shape index: {}]
  %s5 = sld [smem:[#allocation0]]
  $region49: #{_lambda_.7} parent=0
    _
  %s7 = ssub.s32 1, %s5
  %s8 = scalar_select 0, %s7, %s5
  loop: start=0, step=1, limit=6
  $region2: #{_lambda_.7} parent=0 // loop_pre_header
    _
  $region3: #{_lambda_.7} parent=0 // loop_header
    %s10 = sphi 0, %s14
    %p11 = scmp.ge.s32.totalorder %s10, 6
    %s17 = sphi 0, %s36
    %s18 = sphi 0, %s32
    %s19 = sphi 0, %s28
    %s20 = sphi 0, %s17
    %s21 = sphi 0, %s18
    %s22 = sphi 0, %s19
    %s23 = sphi 0, %s20
    %s24 = sphi 0, %s21
    %s25 = sphi 0, %s22
    %s41 = sphi 0, %s43
    %s44 = sphi 0, %s41
    %s45 = sphi 0, %s44
    %s61 = sphi 0, %s45
    %s69 = sphi 0, %s71
    %s72 = sphi 0, %s69
    %s73 = sphi 0, %s72
    %s89 = sphi 0, %s73
    %s95 = sphi 0, %s97
    %s98 = sphi 0, %s95
    %s99 = sphi 0, %s98
    %s115 = sphi 0, %s99
    %s121 = sphi 0, %s123
    %s124 = sphi 0, %s121
    %s125 = sphi 0, %s124
    %s141 = sphi 0, %s125
    %s151 = sphi 0, %s153
    %s154 = sphi 0, %s151
    %s155 = sphi 0, %s154
    %s171 = sphi 0, %s155
  $region4: #{_lambda_.7} parent=0 // loop_header_branch
    %13 = sbr.rel (%p11) target = $region8
  $region5: #{_lambda_.7} parent=0 // loop_body
    %s15 = ssub.s32 %s10, 1
    %s16 = ssub.s32 %s10, 2
    %s26 = sadd.s32 1, %s19
    %p27 = scmp.ge.s32.totalorder %s26, 1
    %s28 = scalar_select %p27, 0, %s26
    %s29 = sadd.s32 1, %s18
    %s30 = scalar_select %p27, %s29, %s18
    %p31 = scmp.ge.s32.totalorder %s30, 1
    %s32 = scalar_select %p31, 0, %s30
    %s33 = sadd.s32 1, %s17
    %s34 = scalar_select %p31, %s33, %s17
    %p35 = scmp.ge.s32.totalorder %s34, 4
    %s36 = scalar_select %p35, 0, %s34
    %s37 = ssub.s32 %s17, %s36
    %s38 = ssub.s32 %s18, %s32
    %s39 = sor.u32 %s37, %s38
    %p40 = scmp.eq.s32.totalorder %s39, 0
    %s42 = sadd.s32 %s41, 1
    %s43 = scalar_select %p40, %s41, %s42
    %p46 = pneg %p40
    %p47 = scmp.eq.s32.totalorder %s10, 3
    %p48 = por %p46, %p47
    %p49 = scmp.ne.s32.totalorder %s41, %s44
    %p50 = scmp.eq.s32.totalorder %s10, 0
    %p51 = por %p49, %p50
    %p52 = scmp.ne.s32.totalorder %s41, %s44
    %p53 = scmp.eq.s32.totalorder %s15, 3
    %p54 = por %p52, %p53
    %p55 = scmp.ne.s32.totalorder %s44, %s45
    %p56 = scmp.eq.s32.totalorder %s15, 0
    %p57 = por %p55, %p56
    %p58 = scmp.ne.s32.totalorder %s44, %s45
    %p59 = scmp.eq.s32.totalorder %s16, 3
    %p60 = por %p58, %p59
    %p62 = scmp.ne.s32.totalorder %s45, %s61
    %p63 = scmp.eq.s32.totalorder %s16, 0
    %p64 = por %p62, %p63
    %s65 = ssub.s32 %s17, %s36
    %s66 = ssub.s32 %s19, %s28
    %s67 = sor.u32 %s65, %s66
    %p68 = scmp.eq.s32.totalorder %s67, 0
    %s70 = sadd.s32 %s69, 1
    %s71 = scalar_select %p68, %s69, %s70
    %p74 = pneg %p68
    %p75 = scmp.eq.s32.totalorder %s10, 3
    %p76 = por %p74, %p75
    %p77 = scmp.ne.s32.totalorder %s69, %s72
    %p78 = scmp.eq.s32.totalorder %s10, 0
    %p79 = por %p77, %p78
    %p80 = scmp.ne.s32.totalorder %s69, %s72
    %p81 = scmp.eq.s32.totalorder %s15, 3
    %p82 = por %p80, %p81
    %p83 = scmp.ne.s32.totalorder %s72, %s73
    %p84 = scmp.eq.s32.totalorder %s15, 0
    %p85 = por %p83, %p84
    %p86 = scmp.ne.s32.totalorder %s72, %s73
    %p87 = scmp.eq.s32.totalorder %s16, 3
    %p88 = por %p86, %p87
    %p90 = scmp.ne.s32.totalorder %s73, %s89
    %p91 = scmp.eq.s32.totalorder %s16, 0
    %p92 = por %p90, %p91
    %s93 = ssub.s32 %s19, %s28
    %p94 = scmp.eq.s32.totalorder %s93, 0
    %s96 = sadd.s32 %s95, 1
    %s97 = scalar_select %p94, %s95, %s96
    %p100 = pneg %p94
    %p101 = scmp.eq.s32.totalorder %s10, 3
    %p102 = por %p100, %p101
    %p103 = scmp.ne.s32.totalorder %s95, %s98
    %p104 = scmp.eq.s32.totalorder %s10, 0
    %p105 = por %p103, %p104
    %p106 = scmp.ne.s32.totalorder %s95, %s98
    %p107 = scmp.eq.s32.totalorder %s15, 3
    %p108 = por %p106, %p107
    %p109 = scmp.ne.s32.totalorder %s98, %s99
    %p110 = scmp.eq.s32.totalorder %s15, 0
    %p111 = por %p109, %p110
    %p112 = scmp.ne.s32.totalorder %s98, %s99
    %p113 = scmp.eq.s32.totalorder %s16, 3
    %p114 = por %p112, %p113
    %p116 = scmp.ne.s32.totalorder %s99, %s115
    %p117 = scmp.eq.s32.totalorder %s16, 0
    %p118 = por %p116, %p117
    %s119 = ssub.s32 %s19, %s28
    %p120 = scmp.eq.s32.totalorder %s119, 0
    %s122 = sadd.s32 %s121, 1
    %s123 = scalar_select %p120, %s121, %s122
    %p126 = pneg %p120
    %p127 = scmp.eq.s32.totalorder %s10, 3
    %p128 = por %p126, %p127
    %p129 = scmp.ne.s32.totalorder %s121, %s124
    %p130 = scmp.eq.s32.totalorder %s10, 0
    %p131 = por %p129, %p130
    %p132 = scmp.ne.s32.totalorder %s121, %s124
    %p133 = scmp.eq.s32.totalorder %s15, 3
    %p134 = por %p132, %p133
    %p135 = scmp.ne.s32.totalorder %s124, %s125
    %p136 = scmp.eq.s32.totalorder %s15, 0
    %p137 = por %p135, %p136
    %p138 = scmp.ne.s32.totalorder %s124, %s125
    %p139 = scmp.eq.s32.totalorder %s16, 3
    %p140 = por %p138, %p139
    %p142 = scmp.ne.s32.totalorder %s125, %s141
    %p143 = scmp.eq.s32.totalorder %s16, 0
    %p144 = por %p142, %p143
    %s145 = ssub.s32 %s17, %s36
    %s146 = ssub.s32 %s18, %s32
    %s147 = sor.u32 %s145, %s146
    %s148 = ssub.s32 %s19, %s28
    %s149 = sor.u32 %s147, %s148
    %p150 = scmp.eq.s32.totalorder %s149, 0
    %s152 = sadd.s32 %s151, 1
    %s153 = scalar_select %p150, %s151, %s152
    %p156 = pneg %p150
    %p157 = scmp.eq.s32.totalorder %s10, 3
    %p158 = por %p156, %p157
    %p159 = scmp.ne.s32.totalorder %s151, %s154
    %p160 = scmp.eq.s32.totalorder %s10, 0
    %p161 = por %p159, %p160
    %p162 = scmp.ne.s32.totalorder %s151, %s154
    %p163 = scmp.eq.s32.totalorder %s15, 3
    %p164 = por %p162, %p163
    %p165 = scmp.ne.s32.totalorder %s154, %s155
    %p166 = scmp.eq.s32.totalorder %s15, 0
    %p167 = por %p165, %p166
    %p168 = scmp.ne.s32.totalorder %s154, %s155
    %p169 = scmp.eq.s32.totalorder %s16, 3
    %p170 = por %p168, %p169
    %p172 = scmp.ne.s32.totalorder %s155, %s171
    %p173 = scmp.eq.s32.totalorder %s16, 0
    %p174 = por %p172, %p173
    %p175 = scmp.le.s32.totalorder 1, %s10
    %p176 = scmp.lt.s32.totalorder %s10, 5
    %p177 = pnand %p175, %p176
    %p178 = pneg %p177
    // Predicated region
    $region9: #{_lambda_.7} parent=5 // pred_check
      _
    $region10: #{_lambda_.7} parent=5 // pred_check_branch
      %180 = sbr.rel (%p177) target = $region12
    $region11: #{_lambda_.7} parent=5 // pred_region
      %s181 = ssub.s32 %s10, 1
      // Predicated region
      $region13: #{_lambda_.7} parent=11 // pred_check
        %p182 = pneg %p111
      $region14: #{_lambda_.7} parent=11 // pred_check_branch
        %184 = sbr.rel (%p182) target = $region16
      $region15: #{_lambda_.7} parent=11 // pred_region
        %p185 = scmp.lt.s32.totalorder %s22, 0
        %s186 = scalar_select %p185, %s22, 0
        %s187 = scalar_lea.vmem %s2, %s186
      $region16: #{_lambda_.7} parent=11 // pred_fallthru
        _
      // Predicated region
      $region17: #{_lambda_.7} parent=11 // pred_check
        %p188 = pneg %p137
      $region18: #{_lambda_.7} parent=11 // pred_check_branch
        %190 = sbr.rel (%p188) target = $region20
      $region19: #{_lambda_.7} parent=11 // pred_region
        %p191 = scmp.lt.s32.totalorder %s22, 0
        %s192 = scalar_select %p191, %s22, 0
        %s193 = scalar_lea.vmem %s3, %s192
      $region20: #{_lambda_.7} parent=11 // pred_fallthru
        _
    $region12: #{_lambda_.7} parent=5 // pred_fallthru
      _
    %p194 = scmp.lt.s32.totalorder %s10, 4
    // Predicated region
    $region21: #{_lambda_.7} parent=5 // pred_check
      %p195 = pneg %p194
    $region22: #{_lambda_.7} parent=5 // pred_check_branch
      %197 = sbr.rel (%p195) target = $region24
    $region23: #{_lambda_.7} parent=5 // pred_region
      // Predicated region
      $region25: #{_lambda_.7} parent=23 // pred_check
        %p198 = pneg %p51
      $region26: #{_lambda_.7} parent=23 // pred_check_branch
        %200 = sbr.rel (%p198) target = $region28
      $region27: #{_lambda_.7} parent=23 // pred_region
        %s201 = smul.u32 16, %s18
        %p202 = scmp.lt.s32.totalorder %s17, 3
        %s203 = scalar_select %p202, %s17, 3
        %p204 = scmp.lt.s32.totalorder %s201, 15
        %s205 = scalar_select %p204, %s201, 15
        %s206 = smul.addr %s205, 8
        %s207 = smul.addr %s203, 128
        %s208 = sadd.s32 %s206, %s207
        %s209 = smul.addr %s208, 4
        %s210 = scalar_lea.vmem %s0, %s209
        %s211 = smul.u32 16, %s18
      $region28: #{_lambda_.7} parent=23 // pred_fallthru
        _
      // Predicated region
      $region29: #{_lambda_.7} parent=23 // pred_check
        %p212 = pneg %p79
      $region30: #{_lambda_.7} parent=23 // pred_check_branch
        %214 = sbr.rel (%p212) target = $region32
      $region31: #{_lambda_.7} parent=23 // pred_region
        %p215 = scmp.lt.s32.totalorder %s17, 3
        %s216 = scalar_select %p215, %s17, 3
        %p217 = scmp.lt.s32.totalorder %s19, 0
        %s218 = scalar_select %p217, %s19, 0
        %s219 = smul.addr %s216, 128
        %s220 = sadd.s32 %s218, %s219
        %s221 = smul.addr %s220, 4
        %s222 = scalar_lea.vmem %s1, %s221
      $region32: #{_lambda_.7} parent=23 // pred_fallthru
        _
    $region24: #{_lambda_.7} parent=5 // pred_fallthru
      _
    %p223 = scmp.le.s32.totalorder 1, %s10
    %p224 = scmp.lt.s32.totalorder %s10, 5
    %p225 = pnand %p223, %p224
    %p226 = pneg %p225
    // Predicated region
    $region33: #{_lambda_.7} parent=5 // pred_check
      _
    $region34: #{_lambda_.7} parent=5 // pred_check_branch
      %228 = sbr.rel (%p225) target = $region36
    $region35: #{_lambda_.7} parent=5 // pred_region
      %s229 = ssub.s32 %s10, 1
      %s230 = smul.u32 16, %s21
      %p231 = scmp.lt.s32.totalorder %s20, 3
      %s232 = scalar_select %p231, %s20, 3
      %p233 = scmp.lt.s32.totalorder %s230, 15
      %s234 = scalar_select %p233, %s230, 15
      %s235 = smul.addr %s234, 8
      %s236 = smul.addr %s232, 128
      %s237 = sadd.s32 %s235, %s236
      %s238 = smul.addr %s237, 4
      %s239 = scalar_lea.vmem %s0, %s238
      %p240 = pneg %p57
      %p241 = pneg %p54
      %p242 = scmp.lt.s32.totalorder %s20, 3
      %s243 = scalar_select %p242, %s20, 3
      %p244 = scmp.lt.s32.totalorder %s22, 0
      %s245 = scalar_select %p244, %s22, 0
      %s246 = smul.addr %s243, 128
      %s247 = sadd.s32 %s245, %s246
      %s248 = smul.addr %s247, 4
      %s249 = scalar_lea.vmem %s1, %s248
      %p250 = pneg %p85
      %p251 = pneg %p82
      %p252 = scmp.lt.s32.totalorder %s22, 0
      %s253 = scalar_select %p252, %s22, 0
      %s254 = scalar_lea.vmem %s2, %s253
      %p255 = pneg %p111
      %p256 = pneg %p108
      %p257 = scmp.lt.s32.totalorder %s22, 0
      %s258 = scalar_select %p257, %s22, 0
      %s259 = scalar_lea.vmem %s3, %s258
      %p260 = pneg %p137
      %p261 = pneg %p134
      %p262 = pneg %p167
      %p263 = pneg %p164
      %s264 = smul.u32 16, %s21
      %p265 = scmp.lt.s32.totalorder %s20, 3
      %s266 = scalar_select %p265, %s20, 3
      %p267 = scmp.lt.s32.totalorder %s264, 15
      %s268 = scalar_select %p267, %s264, 15
      %p269 = scmp.lt.s32.totalorder %s22, 0
      %s270 = scalar_select %p269, %s22, 0
      %s271 = sadd.s32 %s270, %s268
      %s272 = smul.addr %s266, 16
      %s273 = sadd.s32 %s271, %s272
      %s274 = smul.addr %s273, 4
      %s275 = scalar_lea.vmem %s4, %s274
      %s276 = smul.u32 16, %s21
      %p277 = scmp.lt.s32.totalorder %s20, 3
      %s278 = scalar_select %p277, %s20, 3
      %p279 = scmp.lt.s32.totalorder %s276, 15
      %s280 = scalar_select %p279, %s276, 15
      %s281 = smul.addr %s280, 8
      %s282 = smul.addr %s278, 128
      %s283 = sadd.s32 %s281, %s282
      %s284 = smul.addr %s283, 4
      %s285 = scalar_lea.vmem %s0, %s284
      %s286 = smul.u32 16, %s21
      %p287 = scmp.lt.s32.totalorder %s20, 3
      %s288 = scalar_select %p287, %s20, 3
      %p289 = scmp.lt.s32.totalorder %s22, 0
      %s290 = scalar_select %p289, %s22, 0
      %s291 = smul.addr %s288, 128
      %s292 = sadd.s32 %s290, %s291
      %s293 = smul.addr %s292, 4
      %s294 = scalar_lea.vmem %s1, %s293
      %p295 = scmp.lt.s32.totalorder %s22, 0
      %s296 = scalar_select %p295, %s22, 0
      %s297 = scalar_lea.vmem %s2, %s296
      %p298 = scmp.lt.s32.totalorder %s22, 0
      %s299 = scalar_select %p298, %s22, 0
      %s300 = scalar_lea.vmem %s3, %s299
      %s301 = smul.u32 16, %s21
      %p302 = scmp.lt.s32.totalorder %s20, 3
      %s303 = scalar_select %p302, %s20, 3
      %p304 = scmp.lt.s32.totalorder %s301, 15
      %s305 = scalar_select %p304, %s301, 15
      %p306 = scmp.lt.s32.totalorder %s22, 0
      %s307 = scalar_select %p306, %s22, 0
      %s308 = sadd.s32 %s307, %s305
      %s309 = smul.addr %s303, 16
      %s310 = sadd.s32 %s308, %s309
      %s311 = smul.addr %s310, 4
      %s312 = scalar_lea.vmem %s4, %s311
      %s313 = smul.u32 16, %s21
      %v314 = vld [vmem:[%s285] sm:$0xff]
      %v315 = vld [vmem:[%s285 + $0x8] sm:$0xff]
      %v316 = vld [vmem:[%s285 + $0x10] sm:$0xff]
      %v317 = vld [vmem:[%s285 + $0x18] sm:$0xff]
      %v318 = vld [vmem:[%s285 + $0x20] sm:$0xff]
      %v319 = vld [vmem:[%s285 + $0x28] sm:$0xff]
      %v320 = vld [vmem:[%s285 + $0x30] sm:$0xff]
      %v321 = vld [vmem:[%s285 + $0x38] sm:$0xff]
      %v322 = vld [vmem:[%s285 + $0x40] sm:$0xff]
      %v323 = vld [vmem:[%s285 + $0x48] sm:$0xff]
      %v324 = vld [vmem:[%s285 + $0x50] sm:$0xff]
      %v325 = vld [vmem:[%s285 + $0x58] sm:$0xff]
      %v326 = vld [vmem:[%s285 + $0x60] sm:$0xff]
      %v327 = vld [vmem:[%s285 + $0x68] sm:$0xff]
      %v328 = vld [vmem:[%s285 + $0x70] sm:$0xff]
      %v329 = vld [vmem:[%s285 + $0x78] sm:$0xff]
      %v330 = vld [vmem:[%s285 + $0x80] sm:$0xff]
      %v331 = vld [vmem:[%s285 + $0x88] sm:$0xff]
      %v332 = vld [vmem:[%s285 + $0x90] sm:$0xff]
      %v333 = vld [vmem:[%s285 + $0x98] sm:$0xff]
      %v334 = vld [vmem:[%s285 + $0xa0] sm:$0xff]
      %v335 = vld [vmem:[%s285 + $0xa8] sm:$0xff]
      %v336 = vld [vmem:[%s285 + $0xb0] sm:$0xff]
      %v337 = vld [vmem:[%s285 + $0xb8] sm:$0xff]
      %v338 = vld [vmem:[%s285 + $0xc0] sm:$0xff]
      %v339 = vld [vmem:[%s285 + $0xc8] sm:$0xff]
      %v340 = vld [vmem:[%s285 + $0xd0] sm:$0xff]
      %v341 = vld [vmem:[%s285 + $0xd8] sm:$0xff]
      %v342 = vld [vmem:[%s285 + $0xe0] sm:$0xff]
      %v343 = vld [vmem:[%s285 + $0xe8] sm:$0xff]
      %v344 = vld [vmem:[%s285 + $0xf0] sm:$0xff]
      %v345 = vld [vmem:[%s285 + $0xf8] sm:$0xff]
      %v346 = vld [vmem:[%s285 + $0x100] sm:$0xff]
      %v347 = vld [vmem:[%s285 + $0x108] sm:$0xff]
      %v348 = vld [vmem:[%s285 + $0x110] sm:$0xff]
      %v349 = vld [vmem:[%s285 + $0x118] sm:$0xff]
      %v350 = vld [vmem:[%s285 + $0x120] sm:$0xff]
      %v351 = vld [vmem:[%s285 + $0x128] sm:$0xff]
      %v352 = vld [vmem:[%s285 + $0x130] sm:$0xff]
      %v353 = vld [vmem:[%s285 + $0x138] sm:$0xff]
      %v354 = vld [vmem:[%s285 + $0x140] sm:$0xff]
      %v355 = vld [vmem:[%s285 + $0x148] sm:$0xff]
      %v356 = vld [vmem:[%s285 + $0x150] sm:$0xff]
      %v357 = vld [vmem:[%s285 + $0x158] sm:$0xff]
      %v358 = vld [vmem:[%s285 + $0x160] sm:$0xff]
      %v359 = vld [vmem:[%s285 + $0x168] sm:$0xff]
      %v360 = vld [vmem:[%s285 + $0x170] sm:$0xff]
      %v361 = vld [vmem:[%s285 + $0x178] sm:$0xff]
      %v362 = vld [vmem:[%s285 + $0x180] sm:$0xff]
      %v363 = vld [vmem:[%s285 + $0x188] sm:$0xff]
      %v364 = vld [vmem:[%s285 + $0x190] sm:$0xff]
      %v365 = vld [vmem:[%s285 + $0x198] sm:$0xff]
      %v366 = vld [vmem:[%s285 + $0x1a0] sm:$0xff]
      %v367 = vld [vmem:[%s285 + $0x1a8] sm:$0xff]
      %v368 = vld [vmem:[%s285 + $0x1b0] sm:$0xff]
      %v369 = vld [vmem:[%s285 + $0x1b8] sm:$0xff]
      %v370 = vld [vmem:[%s285 + $0x1c0] sm:$0xff]
      %v371 = vld [vmem:[%s285 + $0x1c8] sm:$0xff]
      %v372 = vld [vmem:[%s285 + $0x1d0] sm:$0xff]
      %v373 = vld [vmem:[%s285 + $0x1d8] sm:$0xff]
      %v374 = vld [vmem:[%s285 + $0x1e0] sm:$0xff]
      %v375 = vld [vmem:[%s285 + $0x1e8] sm:$0xff]
      %v376 = vld [vmem:[%s285 + $0x1f0] sm:$0xff]
      %v377 = vld [vmem:[%s285 + $0x1f8] sm:$0xff]
      %v378 = vld [vmem:[%s294] sm:$0xf]
      %v379 = vld [vmem:[%s294 + $0x4] sm:$0xf]
      %v380 = vld [vmem:[%s294 + $0x8] sm:$0xf]
      %v381 = vld [vmem:[%s294 + $0xc] sm:$0xf]
      %v382 = vld [vmem:[%s294 + $0x10] sm:$0xf]
      %v383 = vld [vmem:[%s294 + $0x14] sm:$0xf]
      %v384 = vld [vmem:[%s294 + $0x18] sm:$0xf]
      %v385 = vld [vmem:[%s294 + $0x1c] sm:$0xf]
      %v386 = vld [vmem:[%s294 + $0x20] sm:$0xf]
      %v387 = vld [vmem:[%s294 + $0x24] sm:$0xf]
      %v388 = vld [vmem:[%s294 + $0x28] sm:$0xf]
      %v389 = vld [vmem:[%s294 + $0x2c] sm:$0xf]
      %v390 = vld [vmem:[%s294 + $0x30] sm:$0xf]
      %v391 = vld [vmem:[%s294 + $0x34] sm:$0xf]
      %v392 = vld [vmem:[%s294 + $0x38] sm:$0xf]
      %v393 = vld [vmem:[%s294 + $0x3c] sm:$0xf]
      %v394 = vld [vmem:[%s294 + $0x40] sm:$0xf]
      %v395 = vld [vmem:[%s294 + $0x44] sm:$0xf]
      %v396 = vld [vmem:[%s294 + $0x48] sm:$0xf]
      %v397 = vld [vmem:[%s294 + $0x4c] sm:$0xf]
      %v398 = vld [vmem:[%s294 + $0x50] sm:$0xf]
      %v399 = vld [vmem:[%s294 + $0x54] sm:$0xf]
      %v400 = vld [vmem:[%s294 + $0x58] sm:$0xf]
      %v401 = vld [vmem:[%s294 + $0x5c] sm:$0xf]
      %v402 = vld [vmem:[%s294 + $0x60] sm:$0xf]
      %v403 = vld [vmem:[%s294 + $0x64] sm:$0xf]
      %v404 = vld [vmem:[%s294 + $0x68] sm:$0xf]
      %v405 = vld [vmem:[%s294 + $0x6c] sm:$0xf]
      %v406 = vld [vmem:[%s294 + $0x70] sm:$0xf]
      %v407 = vld [vmem:[%s294 + $0x74] sm:$0xf]
      %v408 = vld [vmem:[%s294 + $0x78] sm:$0xf]
      %v409 = vld [vmem:[%s294 + $0x7c] sm:$0xf]
      %v410 = vld [vmem:[%s294 + $0x80] sm:$0xf]
      %v411 = vld [vmem:[%s294 + $0x84] sm:$0xf]
      %v412 = vld [vmem:[%s294 + $0x88] sm:$0xf]
      %v413 = vld [vmem:[%s294 + $0x8c] sm:$0xf]
      %v414 = vld [vmem:[%s294 + $0x90] sm:$0xf]
      %v415 = vld [vmem:[%s294 + $0x94] sm:$0xf]
      %v416 = vld [vmem:[%s294 + $0x98] sm:$0xf]
      %v417 = vld [vmem:[%s294 + $0x9c] sm:$0xf]
      %v418 = vld [vmem:[%s294 + $0xa0] sm:$0xf]
      %v419 = vld [vmem:[%s294 + $0xa4] sm:$0xf]
      %v420 = vld [vmem:[%s294 + $0xa8] sm:$0xf]
      %v421 = vld [vmem:[%s294 + $0xac] sm:$0xf]
      %v422 = vld [vmem:[%s294 + $0xb0] sm:$0xf]
      %v423 = vld [vmem:[%s294 + $0xb4] sm:$0xf]
      %v424 = vld [vmem:[%s294 + $0xb8] sm:$0xf]
      %v425 = vld [vmem:[%s294 + $0xbc] sm:$0xf]
      %v426 = vld [vmem:[%s294 + $0xc0] sm:$0xf]
      %v427 = vld [vmem:[%s294 + $0xc4] sm:$0xf]
      %v428 = vld [vmem:[%s294 + $0xc8] sm:$0xf]
      %v429 = vld [vmem:[%s294 + $0xcc] sm:$0xf]
      %v430 = vld [vmem:[%s294 + $0xd0] sm:$0xf]
      %v431 = vld [vmem:[%s294 + $0xd4] sm:$0xf]
      %v432 = vld [vmem:[%s294 + $0xd8] sm:$0xf]
      %v433 = vld [vmem:[%s294 + $0xdc] sm:$0xf]
      %v434 = vld [vmem:[%s294 + $0xe0] sm:$0xf]
      %v435 = vld [vmem:[%s294 + $0xe4] sm:$0xf]
      %v436 = vld [vmem:[%s294 + $0xe8] sm:$0xf]
      %v437 = vld [vmem:[%s294 + $0xec] sm:$0xf]
      %v438 = vld [vmem:[%s294 + $0xf0] sm:$0xf]
      %v439 = vld [vmem:[%s294 + $0xf4] sm:$0xf]
      %v440 = vld [vmem:[%s294 + $0xf8] sm:$0xf]
      %v441 = vld [vmem:[%s294 + $0xfc] sm:$0xf]
      %v442 = vld [vmem:[%s294 + $0x100] sm:$0xf]
      %v443 = vld [vmem:[%s294 + $0x104] sm:$0xf]
      %v444 = vld [vmem:[%s294 + $0x108] sm:$0xf]
      %v445 = vld [vmem:[%s294 + $0x10c] sm:$0xf]
      %v446 = vld [vmem:[%s294 + $0x110] sm:$0xf]
      %v447 = vld [vmem:[%s294 + $0x114] sm:$0xf]
      %v448 = vld [vmem:[%s294 + $0x118] sm:$0xf]
      %v449 = vld [vmem:[%s294 + $0x11c] sm:$0xf]
      %v450 = vld [vmem:[%s294 + $0x120] sm:$0xf]
      %v451 = vld [vmem:[%s294 + $0x124] sm:$0xf]
      %v452 = vld [vmem:[%s294 + $0x128] sm:$0xf]
      %v453 = vld [vmem:[%s294 + $0x12c] sm:$0xf]
      %v454 = vld [vmem:[%s294 + $0x130] sm:$0xf]
      %v455 = vld [vmem:[%s294 + $0x134] sm:$0xf]
      %v456 = vld [vmem:[%s294 + $0x138] sm:$0xf]
      %v457 = vld [vmem:[%s294 + $0x13c] sm:$0xf]
      %v458 = vld [vmem:[%s294 + $0x140] sm:$0xf]
      %v459 = vld [vmem:[%s294 + $0x144] sm:$0xf]
      %v460 = vld [vmem:[%s294 + $0x148] sm:$0xf]
      %v461 = vld [vmem:[%s294 + $0x14c] sm:$0xf]
      %v462 = vld [vmem:[%s294 + $0x150] sm:$0xf]
      %v463 = vld [vmem:[%s294 + $0x154] sm:$0xf]
      %v464 = vld [vmem:[%s294 + $0x158] sm:$0xf]
      %v465 = vld [vmem:[%s294 + $0x15c] sm:$0xf]
      %v466 = vld [vmem:[%s294 + $0x160] sm:$0xf]
      %v467 = vld [vmem:[%s294 + $0x164] sm:$0xf]
      %v468 = vld [vmem:[%s294 + $0x168] sm:$0xf]
      %v469 = vld [vmem:[%s294 + $0x16c] sm:$0xf]
      %v470 = vld [vmem:[%s294 + $0x170] sm:$0xf]
      %v471 = vld [vmem:[%s294 + $0x174] sm:$0xf]
      %v472 = vld [vmem:[%s294 + $0x178] sm:$0xf]
      %v473 = vld [vmem:[%s294 + $0x17c] sm:$0xf]
      %v474 = vld [vmem:[%s294 + $0x180] sm:$0xf]
      %v475 = vld [vmem:[%s294 + $0x184] sm:$0xf]
      %v476 = vld [vmem:[%s294 + $0x188] sm:$0xf]
      %v477 = vld [vmem:[%s294 + $0x18c] sm:$0xf]
      %v478 = vld [vmem:[%s294 + $0x190] sm:$0xf]
      %v479 = vld [vmem:[%s294 + $0x194] sm:$0xf]
      %v480 = vld [vmem:[%s294 + $0x198] sm:$0xf]
      %v481 = vld [vmem:[%s294 + $0x19c] sm:$0xf]
      %v482 = vld [vmem:[%s294 + $0x1a0] sm:$0xf]
      %v483 = vld [vmem:[%s294 + $0x1a4] sm:$0xf]
      %v484 = vld [vmem:[%s294 + $0x1a8] sm:$0xf]
      %v485 = vld [vmem:[%s294 + $0x1ac] sm:$0xf]
      %v486 = vld [vmem:[%s294 + $0x1b0] sm:$0xf]
      %v487 = vld [vmem:[%s294 + $0x1b4] sm:$0xf]
      %v488 = vld [vmem:[%s294 + $0x1b8] sm:$0xf]
      %v489 = vld [vmem:[%s294 + $0x1bc] sm:$0xf]
      %v490 = vld [vmem:[%s294 + $0x1c0] sm:$0xf]
      %v491 = vld [vmem:[%s294 + $0x1c4] sm:$0xf]
      %v492 = vld [vmem:[%s294 + $0x1c8] sm:$0xf]
      %v493 = vld [vmem:[%s294 + $0x1cc] sm:$0xf]
      %v494 = vld [vmem:[%s294 + $0x1d0] sm:$0xf]
      %v495 = vld [vmem:[%s294 + $0x1d4] sm:$0xf]
      %v496 = vld [vmem:[%s294 + $0x1d8] sm:$0xf]
      %v497 = vld [vmem:[%s294 + $0x1dc] sm:$0xf]
      %v498 = vld [vmem:[%s294 + $0x1e0] sm:$0xf]
      %v499 = vld [vmem:[%s294 + $0x1e4] sm:$0xf]
      %v500 = vld [vmem:[%s294 + $0x1e8] sm:$0xf]
      %v501 = vld [vmem:[%s294 + $0x1ec] sm:$0xf]
      %v502 = vld [vmem:[%s294 + $0x1f0] sm:$0xf]
      %v503 = vld [vmem:[%s294 + $0x1f4] sm:$0xf]
      %v504 = vld [vmem:[%s294 + $0x1f8] sm:$0xf]
      %v505 = vld [vmem:[%s294 + $0x1fc] sm:$0xf]
      %v570 = vunpack.c.l.b16 %v314
      %v571 = vunpack.c.h.b16 %v314
      %v572 = vunpack.c.l.b16 %v315
      %v573 = vunpack.c.h.b16 %v315
      %v574 = vunpack.c.l.b16 %v316
      %v575 = vunpack.c.h.b16 %v316
      %v576 = vunpack.c.l.b16 %v317
      %v577 = vunpack.c.h.b16 %v317
      %v578 = vunpack.c.l.b16 %v318
      %v579 = vunpack.c.h.b16 %v318
      %v580 = vunpack.c.l.b16 %v319
      %v581 = vunpack.c.h.b16 %v319
      %v582 = vunpack.c.l.b16 %v320
      %v583 = vunpack.c.h.b16 %v320
      %v584 = vunpack.c.l.b16 %v321
      %v585 = vunpack.c.h.b16 %v321
      %v586 = vunpack.c.l.b16 %v322
      %v587 = vunpack.c.h.b16 %v322
      %v588 = vunpack.c.l.b16 %v323
      %v589 = vunpack.c.h.b16 %v323
      %v590 = vunpack.c.l.b16 %v324
      %v591 = vunpack.c.h.b16 %v324
      %v592 = vunpack.c.l.b16 %v325
      %v593 = vunpack.c.h.b16 %v325
      %v594 = vunpack.c.l.b16 %v326
      %v595 = vunpack.c.h.b16 %v326
      %v596 = vunpack.c.l.b16 %v327
      %v597 = vunpack.c.h.b16 %v327
      %v598 = vunpack.c.l.b16 %v328
      %v599 = vunpack.c.h.b16 %v328
      %v600 = vunpack.c.l.b16 %v329
      %v601 = vunpack.c.h.b16 %v329
      %v602 = vunpack.c.l.b16 %v330
      %v603 = vunpack.c.h.b16 %v330
      %v604 = vunpack.c.l.b16 %v331
      %v605 = vunpack.c.h.b16 %v331
      %v606 = vunpack.c.l.b16 %v332
      %v607 = vunpack.c.h.b16 %v332
      %v608 = vunpack.c.l.b16 %v333
      %v609 = vunpack.c.h.b16 %v333
      %v610 = vunpack.c.l.b16 %v334
      %v611 = vunpack.c.h.b16 %v334
      %v612 = vunpack.c.l.b16 %v335
      %v613 = vunpack.c.h.b16 %v335
      %v614 = vunpack.c.l.b16 %v336
      %v615 = vunpack.c.h.b16 %v336
      %v616 = vunpack.c.l.b16 %v337
      %v617 = vunpack.c.h.b16 %v337
      %v618 = vunpack.c.l.b16 %v338
      %v619 = vunpack.c.h.b16 %v338
      %v620 = vunpack.c.l.b16 %v339
      %v621 = vunpack.c.h.b16 %v339
      %v622 = vunpack.c.l.b16 %v340
      %v623 = vunpack.c.h.b16 %v340
      %v624 = vunpack.c.l.b16 %v341
      %v625 = vunpack.c.h.b16 %v341
      %v626 = vunpack.c.l.b16 %v342
      %v627 = vunpack.c.h.b16 %v342
      %v628 = vunpack.c.l.b16 %v343
      %v629 = vunpack.c.h.b16 %v343
      %v630 = vunpack.c.l.b16 %v344
      %v631 = vunpack.c.h.b16 %v344
      %v632 = vunpack.c.l.b16 %v345
      %v633 = vunpack.c.h.b16 %v345
      %v634 = vunpack.c.l.b16 %v346
      %v635 = vunpack.c.h.b16 %v346
      %v636 = vunpack.c.l.b16 %v347
      %v637 = vunpack.c.h.b16 %v347
      %v638 = vunpack.c.l.b16 %v348
      %v639 = vunpack.c.h.b16 %v348
      %v640 = vunpack.c.l.b16 %v349
      %v641 = vunpack.c.h.b16 %v349
      %v642 = vunpack.c.l.b16 %v350
      %v643 = vunpack.c.h.b16 %v350
      %v644 = vunpack.c.l.b16 %v351
      %v645 = vunpack.c.h.b16 %v351
      %v646 = vunpack.c.l.b16 %v352
      %v647 = vunpack.c.h.b16 %v352
      %v648 = vunpack.c.l.b16 %v353
      %v649 = vunpack.c.h.b16 %v353
      %v650 = vunpack.c.l.b16 %v354
      %v651 = vunpack.c.h.b16 %v354
      %v652 = vunpack.c.l.b16 %v355
      %v653 = vunpack.c.h.b16 %v355
      %v654 = vunpack.c.l.b16 %v356
      %v655 = vunpack.c.h.b16 %v356
      %v656 = vunpack.c.l.b16 %v357
      %v657 = vunpack.c.h.b16 %v357
      %v658 = vunpack.c.l.b16 %v358
      %v659 = vunpack.c.h.b16 %v358
      %v660 = vunpack.c.l.b16 %v359
      %v661 = vunpack.c.h.b16 %v359
      %v662 = vunpack.c.l.b16 %v360
      %v663 = vunpack.c.h.b16 %v360
      %v664 = vunpack.c.l.b16 %v361
      %v665 = vunpack.c.h.b16 %v361
      %v666 = vunpack.c.l.b16 %v362
      %v667 = vunpack.c.h.b16 %v362
      %v668 = vunpack.c.l.b16 %v363
      %v669 = vunpack.c.h.b16 %v363
      %v670 = vunpack.c.l.b16 %v364
      %v671 = vunpack.c.h.b16 %v364
      %v672 = vunpack.c.l.b16 %v365
      %v673 = vunpack.c.h.b16 %v365
      %v674 = vunpack.c.l.b16 %v366
      %v675 = vunpack.c.h.b16 %v366
      %v676 = vunpack.c.l.b16 %v367
      %v677 = vunpack.c.h.b16 %v367
      %v678 = vunpack.c.l.b16 %v368
      %v679 = vunpack.c.h.b16 %v368
      %v680 = vunpack.c.l.b16 %v369
      %v681 = vunpack.c.h.b16 %v369
      %v682 = vunpack.c.l.b16 %v370
      %v683 = vunpack.c.h.b16 %v370
      %v684 = vunpack.c.l.b16 %v371
      %v685 = vunpack.c.h.b16 %v371
      %v686 = vunpack.c.l.b16 %v372
      %v687 = vunpack.c.h.b16 %v372
      %v688 = vunpack.c.l.b16 %v373
      %v689 = vunpack.c.h.b16 %v373
      %v690 = vunpack.c.l.b16 %v374
      %v691 = vunpack.c.h.b16 %v374
      %v692 = vunpack.c.l.b16 %v375
      %v693 = vunpack.c.h.b16 %v375
      %v694 = vunpack.c.l.b16 %v376
      %v695 = vunpack.c.h.b16 %v376
      %v696 = vunpack.c.l.b16 %v377
      %v697 = vunpack.c.h.b16 %v377
      %v698 = vpack.c.b16 %v578, %v570
      %v699 = vpack.c.b16 %v579, %v571
      %v700 = vpack.c.b16 %v580, %v572
      %v701 = vpack.c.b16 %v581, %v573
      %v702 = vpack.c.b16 %v582, %v574
      %v703 = vpack.c.b16 %v583, %v575
      %v704 = vpack.c.b16 %v584, %v576
      %v705 = vpack.c.b16 %v585, %v577
      %v706 = vpack.c.b16 %v594, %v586
      %v707 = vpack.c.b16 %v595, %v587
      %v708 = vpack.c.b16 %v596, %v588
      %v709 = vpack.c.b16 %v597, %v589
      %v710 = vpack.c.b16 %v598, %v590
      %v711 = vpack.c.b16 %v599, %v591
      %v712 = vpack.c.b16 %v600, %v592
      %v713 = vpack.c.b16 %v601, %v593
      %v714 = vpack.c.b16 %v610, %v602
      %v715 = vpack.c.b16 %v611, %v603
      %v716 = vpack.c.b16 %v612, %v604
      %v717 = vpack.c.b16 %v613, %v605
      %v718 = vpack.c.b16 %v614, %v606
      %v719 = vpack.c.b16 %v615, %v607
      %v720 = vpack.c.b16 %v616, %v608
      %v721 = vpack.c.b16 %v617, %v609
      %v722 = vpack.c.b16 %v626, %v618
      %v723 = vpack.c.b16 %v627, %v619
      %v724 = vpack.c.b16 %v628, %v620
      %v725 = vpack.c.b16 %v629, %v621
      %v726 = vpack.c.b16 %v630, %v622
      %v727 = vpack.c.b16 %v631, %v623
      %v728 = vpack.c.b16 %v632, %v624
      %v729 = vpack.c.b16 %v633, %v625
      %v730 = vpack.c.b16 %v642, %v634
      %v731 = vpack.c.b16 %v643, %v635
      %v732 = vpack.c.b16 %v644, %v636
      %v733 = vpack.c.b16 %v645, %v637
      %v734 = vpack.c.b16 %v646, %v638
      %v735 = vpack.c.b16 %v647, %v639
      %v736 = vpack.c.b16 %v648, %v640
      %v737 = vpack.c.b16 %v649, %v641
      %v738 = vpack.c.b16 %v658, %v650
      %v739 = vpack.c.b16 %v659, %v651
      %v740 = vpack.c.b16 %v660, %v652
      %v741 = vpack.c.b16 %v661, %v653
      %v742 = vpack.c.b16 %v662, %v654
      %v743 = vpack.c.b16 %v663, %v655
      %v744 = vpack.c.b16 %v664, %v656
      %v745 = vpack.c.b16 %v665, %v657
      %v746 = vpack.c.b16 %v674, %v666
      %v747 = vpack.c.b16 %v675, %v667
      %v748 = vpack.c.b16 %v676, %v668
      %v749 = vpack.c.b16 %v677, %v669
      %v750 = vpack.c.b16 %v678, %v670
      %v751 = vpack.c.b16 %v679, %v671
      %v752 = vpack.c.b16 %v680, %v672
      %v753 = vpack.c.b16 %v681, %v673
      %v754 = vpack.c.b16 %v690, %v682
      %v755 = vpack.c.b16 %v691, %v683
      %v756 = vpack.c.b16 %v692, %v684
      %v757 = vpack.c.b16 %v693, %v685
      %v758 = vpack.c.b16 %v694, %v686
      %v759 = vpack.c.b16 %v695, %v687
      %v760 = vpack.c.b16 %v696, %v688
      %v761 = vpack.c.b16 %v697, %v689
      %v954 = vunpack.c.l.b16 %v378
      %v955 = vunpack.c.l.b16 %v379
      %v956 = vunpack.c.l.b16 %v380
      %v957 = vunpack.c.l.b16 %v381
      %v958 = vunpack.c.l.b16 %v382
      %v959 = vunpack.c.l.b16 %v383
      %v960 = vunpack.c.l.b16 %v384
      %v961 = vunpack.c.l.b16 %v385
      %v962 = vunpack.c.l.b16 %v386
      %v963 = vunpack.c.l.b16 %v387
      %v964 = vunpack.c.l.b16 %v388
      %v965 = vunpack.c.l.b16 %v389
      %v966 = vunpack.c.l.b16 %v390
      %v967 = vunpack.c.l.b16 %v391
      %v968 = vunpack.c.l.b16 %v392
      %v969 = vunpack.c.l.b16 %v393
      %v970 = vunpack.c.l.b16 %v394
      %v971 = vunpack.c.l.b16 %v395
      %v972 = vunpack.c.l.b16 %v396
      %v973 = vunpack.c.l.b16 %v397
      %v974 = vunpack.c.l.b16 %v398
      %v975 = vunpack.c.l.b16 %v399
      %v976 = vunpack.c.l.b16 %v400
      %v977 = vunpack.c.l.b16 %v401
      %v978 = vunpack.c.l.b16 %v402
      %v979 = vunpack.c.l.b16 %v403
      %v980 = vunpack.c.l.b16 %v404
      %v981 = vunpack.c.l.b16 %v405
      %v982 = vunpack.c.l.b16 %v406
      %v983 = vunpack.c.l.b16 %v407
      %v984 = vunpack.c.l.b16 %v408
      %v985 = vunpack.c.l.b16 %v409
      %v986 = vunpack.c.l.b16 %v410
      %v987 = vunpack.c.l.b16 %v411
      %v988 = vunpack.c.l.b16 %v412
      %v989 = vunpack.c.l.b16 %v413
      %v990 = vunpack.c.l.b16 %v414
      %v991 = vunpack.c.l.b16 %v415
      %v992 = vunpack.c.l.b16 %v416
      %v993 = vunpack.c.l.b16 %v417
      %v994 = vunpack.c.l.b16 %v418
      %v995 = vunpack.c.l.b16 %v419
      %v996 = vunpack.c.l.b16 %v420
      %v997 = vunpack.c.l.b16 %v421
      %v998 = vunpack.c.l.b16 %v422
      %v999 = vunpack.c.l.b16 %v423
      %v1000 = vunpack.c.l.b16 %v424
      %v1001 = vunpack.c.l.b16 %v425
      %v1002 = vunpack.c.l.b16 %v426
      %v1003 = vunpack.c.l.b16 %v427
      %v1004 = vunpack.c.l.b16 %v428
      %v1005 = vunpack.c.l.b16 %v429
      %v1006 = vunpack.c.l.b16 %v430
      %v1007 = vunpack.c.l.b16 %v431
      %v1008 = vunpack.c.l.b16 %v432
      %v1009 = vunpack.c.l.b16 %v433
      %v1010 = vunpack.c.l.b16 %v434
      %v1011 = vunpack.c.l.b16 %v435
      %v1012 = vunpack.c.l.b16 %v436
      %v1013 = vunpack.c.l.b16 %v437
      %v1014 = vunpack.c.l.b16 %v438
      %v1015 = vunpack.c.l.b16 %v439
      %v1016 = vunpack.c.l.b16 %v440
      %v1017 = vunpack.c.l.b16 %v441
      %v1018 = vunpack.c.l.b16 %v442
      %v1019 = vunpack.c.l.b16 %v443
      %v1020 = vunpack.c.l.b16 %v444
      %v1021 = vunpack.c.l.b16 %v445
      %v1022 = vunpack.c.l.b16 %v446
      %v1023 = vunpack.c.l.b16 %v447
      %v1024 = vunpack.c.l.b16 %v448
      %v1025 = vunpack.c.l.b16 %v449
      %v1026 = vunpack.c.l.b16 %v450
      %v1027 = vunpack.c.l.b16 %v451
      %v1028 = vunpack.c.l.b16 %v452
      %v1029 = vunpack.c.l.b16 %v453
      %v1030 = vunpack.c.l.b16 %v454
      %v1031 = vunpack.c.l.b16 %v455
      %v1032 = vunpack.c.l.b16 %v456
      %v1033 = vunpack.c.l.b16 %v457
      %v1034 = vunpack.c.l.b16 %v458
      %v1035 = vunpack.c.l.b16 %v459
      %v1036 = vunpack.c.l.b16 %v460
      %v1037 = vunpack.c.l.b16 %v461
      %v1038 = vunpack.c.l.b16 %v462
      %v1039 = vunpack.c.l.b16 %v463
      %v1040 = vunpack.c.l.b16 %v464
      %v1041 = vunpack.c.l.b16 %v465
      %v1042 = vunpack.c.l.b16 %v466
      %v1043 = vunpack.c.l.b16 %v467
      %v1044 = vunpack.c.l.b16 %v468
      %v1045 = vunpack.c.l.b16 %v469
      %v1046 = vunpack.c.l.b16 %v470
      %v1047 = vunpack.c.l.b16 %v471
      %v1048 = vunpack.c.l.b16 %v472
      %v1049 = vunpack.c.l.b16 %v473
      %v1050 = vunpack.c.l.b16 %v474
      %v1051 = vunpack.c.l.b16 %v475
      %v1052 = vunpack.c.l.b16 %v476
      %v1053 = vunpack.c.l.b16 %v477
      %v1054 = vunpack.c.l.b16 %v478
      %v1055 = vunpack.c.l.b16 %v479
      %v1056 = vunpack.c.l.b16 %v480
      %v1057 = vunpack.c.l.b16 %v481
      %v1058 = vunpack.c.l.b16 %v482
      %v1059 = vunpack.c.l.b16 %v483
      %v1060 = vunpack.c.l.b16 %v484
      %v1061 = vunpack.c.l.b16 %v485
      %v1062 = vunpack.c.l.b16 %v486
      %v1063 = vunpack.c.l.b16 %v487
      %v1064 = vunpack.c.l.b16 %v488
      %v1065 = vunpack.c.l.b16 %v489
      %v1066 = vunpack.c.l.b16 %v490
      %v1067 = vunpack.c.l.b16 %v491
      %v1068 = vunpack.c.l.b16 %v492
      %v1069 = vunpack.c.l.b16 %v493
      %v1070 = vunpack.c.l.b16 %v494
      %v1071 = vunpack.c.l.b16 %v495
      %v1072 = vunpack.c.l.b16 %v496
      %v1073 = vunpack.c.l.b16 %v497
      %v1074 = vunpack.c.l.b16 %v498
      %v1075 = vunpack.c.l.b16 %v499
      %v1076 = vunpack.c.l.b16 %v500
      %v1077 = vunpack.c.l.b16 %v501
      %v1078 = vunpack.c.l.b16 %v502
      %v1079 = vunpack.c.l.b16 %v503
      %v1080 = vunpack.c.l.b16 %v504
      %v1081 = vunpack.c.l.b16 %v505
      %v1082 = vpack.c.b16 %v955, %v954
      %v1083 = vpack.c.b16 %v957, %v956
      %v1084 = vpack.c.b16 %v959, %v958
      %v1085 = vpack.c.b16 %v961, %v960
      %v1086 = vpack.c.b16 %v963, %v962
      %v1087 = vpack.c.b16 %v965, %v964
      %v1088 = vpack.c.b16 %v967, %v966
      %v1089 = vpack.c.b16 %v969, %v968
      %v1090 = vpack.c.b16 %v971, %v970
      %v1091 = vpack.c.b16 %v973, %v972
      %v1092 = vpack.c.b16 %v975, %v974
      %v1093 = vpack.c.b16 %v977, %v976
      %v1094 = vpack.c.b16 %v979, %v978
      %v1095 = vpack.c.b16 %v981, %v980
      %v1096 = vpack.c.b16 %v983, %v982
      %v1097 = vpack.c.b16 %v985, %v984
      %v1098 = vpack.c.b16 %v987, %v986
      %v1099 = vpack.c.b16 %v989, %v988
      %v1100 = vpack.c.b16 %v991, %v990
      %v1101 = vpack.c.b16 %v993, %v992
      %v1102 = vpack.c.b16 %v995, %v994
      %v1103 = vpack.c.b16 %v997, %v996
      %v1104 = vpack.c.b16 %v999, %v998
      %v1105 = vpack.c.b16 %v1001, %v1000
      %v1106 = vpack.c.b16 %v1003, %v1002
      %v1107 = vpack.c.b16 %v1005, %v1004
      %v1108 = vpack.c.b16 %v1007, %v1006
      %v1109 = vpack.c.b16 %v1009, %v1008
      %v1110 = vpack.c.b16 %v1011, %v1010
      %v1111 = vpack.c.b16 %v1013, %v1012
      %v1112 = vpack.c.b16 %v1015, %v1014
      %v1113 = vpack.c.b16 %v1017, %v1016
      %v1114 = vpack.c.b16 %v1019, %v1018
      %v1115 = vpack.c.b16 %v1021, %v1020
      %v1116 = vpack.c.b16 %v1023, %v1022
      %v1117 = vpack.c.b16 %v1025, %v1024
      %v1118 = vpack.c.b16 %v1027, %v1026
      %v1119 = vpack.c.b16 %v1029, %v1028
      %v1120 = vpack.c.b16 %v1031, %v1030
      %v1121 = vpack.c.b16 %v1033, %v1032
      %v1122 = vpack.c.b16 %v1035, %v1034
      %v1123 = vpack.c.b16 %v1037, %v1036
      %v1124 = vpack.c.b16 %v1039, %v1038
      %v1125 = vpack.c.b16 %v1041, %v1040
      %v1126 = vpack.c.b16 %v1043, %v1042
      %v1127 = vpack.c.b16 %v1045, %v1044
      %v1128 = vpack.c.b16 %v1047, %v1046
      %v1129 = vpack.c.b16 %v1049, %v1048
      %v1130 = vpack.c.b16 %v1051, %v1050
      %v1131 = vpack.c.b16 %v1053, %v1052
      %v1132 = vpack.c.b16 %v1055, %v1054
      %v1133 = vpack.c.b16 %v1057, %v1056
      %v1134 = vpack.c.b16 %v1059, %v1058
      %v1135 = vpack.c.b16 %v1061, %v1060
      %v1136 = vpack.c.b16 %v1063, %v1062
      %v1137 = vpack.c.b16 %v1065, %v1064
      %v1138 = vpack.c.b16 %v1067, %v1066
      %v1139 = vpack.c.b16 %v1069, %v1068
      %v1140 = vpack.c.b16 %v1071, %v1070
      %v1141 = vpack.c.b16 %v1073, %v1072
      %v1142 = vpack.c.b16 %v1075, %v1074
      %v1143 = vpack.c.b16 %v1077, %v1076
      %v1144 = vpack.c.b16 %v1079, %v1078
      %v1145 = vpack.c.b16 %v1081, %v1080
      %1210 = vmatpush.bf16.msra.mxu0 %v1089
      %1211 = vmatpush.bf16.msra.mxu0 %v1088
      %1212 = vmatpush.bf16.msra.mxu0 %v1087
      %1213 = vmatpush.bf16.msra.mxu0 %v1086
      %1214 = vmatpush.bf16.msra.mxu0 %v1085
      %1215 = vmatpush.bf16.msra.mxu0 %v1084
      %1216 = vmatpush.bf16.msra.mxu0 %v1083
      %1217 = vmatpush.bf16.msra.mxu0 %v1082
      %1218 = vmatmul.bf16.gmra.mxu0 %v698
      %v1219 = vpop.f32.mrf.mxu0
      %v1220 = vadd.f32 0.0, %v1219
      %v1221 = vpop.f32.mrf.mxu0
      %v1222 = vadd.f32 0.0, %v1221
      %1223 = vmatmul.bf16.gmra.mxu0 %v706
      %v1224 = vpop.f32.mrf.mxu0
      %v1225 = vadd.f32 0.0, %v1224
      %v1226 = vpop.f32.mrf.mxu0
      %v1227 = vadd.f32 0.0, %v1226
      %1228 = vmatmul.bf16.gmra.mxu0 %v714
      %v1229 = vpop.f32.mrf.mxu0
      %v1230 = vadd.f32 0.0, %v1229
      %v1231 = vpop.f32.mrf.mxu0
      %v1232 = vadd.f32 0.0, %v1231
      %1233 = vmatmul.bf16.gmra.mxu0 %v722
      %v1234 = vpop.f32.mrf.mxu0
      %v1235 = vadd.f32 0.0, %v1234
      %v1236 = vpop.f32.mrf.mxu0
      %v1237 = vadd.f32 0.0, %v1236
      %1238 = vmatmul.bf16.gmra.mxu0 %v730
      %v1239 = vpop.f32.mrf.mxu0
      %v1240 = vadd.f32 0.0, %v1239
      %v1241 = vpop.f32.mrf.mxu0
      %v1242 = vadd.f32 0.0, %v1241
      %1243 = vmatmul.bf16.gmra.mxu0 %v738
      %v1244 = vpop.f32.mrf.mxu0
      %v1245 = vadd.f32 0.0, %v1244
      %v1246 = vpop.f32.mrf.mxu0
      %v1247 = vadd.f32 0.0, %v1246
      %1248 = vmatmul.bf16.gmra.mxu0 %v746
      %v1249 = vpop.f32.mrf.mxu0
      %v1250 = vadd.f32 0.0, %v1249
      %v1251 = vpop.f32.mrf.mxu0
      %v1252 = vadd.f32 0.0, %v1251
      %1253 = vmatmul.bf16.gmra.mxu0 %v754
      %v1254 = vpop.f32.mrf.mxu0
      %v1255 = vadd.f32 0.0, %v1254
      %v1256 = vpop.f32.mrf.mxu0
      %v1257 = vadd.f32 0.0, %v1256
      %1258 = vdwg.mxu0
      %1259 = vmatpush.bf16.msra.mxu0 %v1097
      %1260 = vmatpush.bf16.msra.mxu0 %v1096
      %1261 = vmatpush.bf16.msra.mxu0 %v1095
      %1262 = vmatpush.bf16.msra.mxu0 %v1094
      %1263 = vmatpush.bf16.msra.mxu0 %v1093
      %1264 = vmatpush.bf16.msra.mxu0 %v1092
      %1265 = vmatpush.bf16.msra.mxu0 %v1091
      %1266 = vmatpush.bf16.msra.mxu0 %v1090
      %1267 = vmatmul.bf16.gmra.mxu0 %v699
      %v1268 = vpop.f32.mrf.mxu0
      %v1269 = vadd.f32 %v1220, %v1268
      %v1270 = vpop.f32.mrf.mxu0
      %v1271 = vadd.f32 %v1222, %v1270
      %1272 = vmatmul.bf16.gmra.mxu0 %v707
      %v1273 = vpop.f32.mrf.mxu0
      %v1274 = vadd.f32 %v1225, %v1273
      %v1275 = vpop.f32.mrf.mxu0
      %v1276 = vadd.f32 %v1227, %v1275
      %1277 = vmatmul.bf16.gmra.mxu0 %v715
      %v1278 = vpop.f32.mrf.mxu0
      %v1279 = vadd.f32 %v1230, %v1278
      %v1280 = vpop.f32.mrf.mxu0
      %v1281 = vadd.f32 %v1232, %v1280
      %1282 = vmatmul.bf16.gmra.mxu0 %v723
      %v1283 = vpop.f32.mrf.mxu0
      %v1284 = vadd.f32 %v1235, %v1283
      %v1285 = vpop.f32.mrf.mxu0
      %v1286 = vadd.f32 %v1237, %v1285
      %1287 = vmatmul.bf16.gmra.mxu0 %v731
      %v1288 = vpop.f32.mrf.mxu0
      %v1289 = vadd.f32 %v1240, %v1288
      %v1290 = vpop.f32.mrf.mxu0
      %v1291 = vadd.f32 %v1242, %v1290
      %1292 = vmatmul.bf16.gmra.mxu0 %v739
      %v1293 = vpop.f32.mrf.mxu0
      %v1294 = vadd.f32 %v1245, %v1293
      %v1295 = vpop.f32.mrf.mxu0
      %v1296 = vadd.f32 %v1247, %v1295
      %1297 = vmatmul.bf16.gmra.mxu0 %v747
      %v1298 = vpop.f32.mrf.mxu0
      %v1299 = vadd.f32 %v1250, %v1298
      %v1300 = vpop.f32.mrf.mxu0
      %v1301 = vadd.f32 %v1252, %v1300
      %1302 = vmatmul.bf16.gmra.mxu0 %v755
      %v1303 = vpop.f32.mrf.mxu0
      %v1304 = vadd.f32 %v1255, %v1303
      %v1305 = vpop.f32.mrf.mxu0
      %v1306 = vadd.f32 %v1257, %v1305
      %1307 = vdwg.mxu0
      %1308 = vmatpush.bf16.msra.mxu0 %v1105
      %1309 = vmatpush.bf16.msra.mxu0 %v1104
      %1310 = vmatpush.bf16.msra.mxu0 %v1103
      %1311 = vmatpush.bf16.msra.mxu0 %v1102
      %1312 = vmatpush.bf16.msra.mxu0 %v1101
      %1313 = vmatpush.bf16.msra.mxu0 %v1100
      %1314 = vmatpush.bf16.msra.mxu0 %v1099
      %1315 = vmatpush.bf16.msra.mxu0 %v1098
      %1316 = vmatmul.bf16.gmra.mxu0 %v700
      %v1317 = vpop.f32.mrf.mxu0
      %v1318 = vadd.f32 %v1269, %v1317
      %v1319 = vpop.f32.mrf.mxu0
      %v1320 = vadd.f32 %v1271, %v1319
      %1321 = vmatmul.bf16.gmra.mxu0 %v708
      %v1322 = vpop.f32.mrf.mxu0
      %v1323 = vadd.f32 %v1274, %v1322
      %v1324 = vpop.f32.mrf.mxu0
      %v1325 = vadd.f32 %v1276, %v1324
      %1326 = vmatmul.bf16.gmra.mxu0 %v716
      %v1327 = vpop.f32.mrf.mxu0
      %v1328 = vadd.f32 %v1279, %v1327
      %v1329 = vpop.f32.mrf.mxu0
      %v1330 = vadd.f32 %v1281, %v1329
      %1331 = vmatmul.bf16.gmra.mxu0 %v724
      %v1332 = vpop.f32.mrf.mxu0
      %v1333 = vadd.f32 %v1284, %v1332
      %v1334 = vpop.f32.mrf.mxu0
      %v1335 = vadd.f32 %v1286, %v1334
      %1336 = vmatmul.bf16.gmra.mxu0 %v732
      %v1337 = vpop.f32.mrf.mxu0
      %v1338 = vadd.f32 %v1289, %v1337
      %v1339 = vpop.f32.mrf.mxu0
      %v1340 = vadd.f32 %v1291, %v1339
      %1341 = vmatmul.bf16.gmra.mxu0 %v740
      %v1342 = vpop.f32.mrf.mxu0
      %v1343 = vadd.f32 %v1294, %v1342
      %v1344 = vpop.f32.mrf.mxu0
      %v1345 = vadd.f32 %v1296, %v1344
      %1346 = vmatmul.bf16.gmra.mxu0 %v748
      %v1347 = vpop.f32.mrf.mxu0
      %v1348 = vadd.f32 %v1299, %v1347
      %v1349 = vpop.f32.mrf.mxu0
      %v1350 = vadd.f32 %v1301, %v1349
      %1351 = vmatmul.bf16.gmra.mxu0 %v756
      %v1352 = vpop.f32.mrf.mxu0
      %v1353 = vadd.f32 %v1304, %v1352
      %v1354 = vpop.f32.mrf.mxu0
      %v1355 = vadd.f32 %v1306, %v1354
      %1356 = vdwg.mxu0
      %1357 = vmatpush.bf16.msra.mxu0 %v1113
      %1358 = vmatpush.bf16.msra.mxu0 %v1112
      %1359 = vmatpush.bf16.msra.mxu0 %v1111
      %1360 = vmatpush.bf16.msra.mxu0 %v1110
      %1361 = vmatpush.bf16.msra.mxu0 %v1109
      %1362 = vmatpush.bf16.msra.mxu0 %v1108
      %1363 = vmatpush.bf16.msra.mxu0 %v1107
      %1364 = vmatpush.bf16.msra.mxu0 %v1106
      %1365 = vmatmul.bf16.gmra.mxu0 %v701
      %v1366 = vpop.f32.mrf.mxu0
      %v1367 = vadd.f32 %v1318, %v1366
      %v1368 = vpop.f32.mrf.mxu0
      %v1369 = vadd.f32 %v1320, %v1368
      %1370 = vmatmul.bf16.gmra.mxu0 %v709
      %v1371 = vpop.f32.mrf.mxu0
      %v1372 = vadd.f32 %v1323, %v1371
      %v1373 = vpop.f32.mrf.mxu0
      %v1374 = vadd.f32 %v1325, %v1373
      %1375 = vmatmul.bf16.gmra.mxu0 %v717
      %v1376 = vpop.f32.mrf.mxu0
      %v1377 = vadd.f32 %v1328, %v1376
      %v1378 = vpop.f32.mrf.mxu0
      %v1379 = vadd.f32 %v1330, %v1378
      %1380 = vmatmul.bf16.gmra.mxu0 %v725
      %v1381 = vpop.f32.mrf.mxu0
      %v1382 = vadd.f32 %v1333, %v1381
      %v1383 = vpop.f32.mrf.mxu0
      %v1384 = vadd.f32 %v1335, %v1383
      %1385 = vmatmul.bf16.gmra.mxu0 %v733
      %v1386 = vpop.f32.mrf.mxu0
      %v1387 = vadd.f32 %v1338, %v1386
      %v1388 = vpop.f32.mrf.mxu0
      %v1389 = vadd.f32 %v1340, %v1388
      %1390 = vmatmul.bf16.gmra.mxu0 %v741
      %v1391 = vpop.f32.mrf.mxu0
      %v1392 = vadd.f32 %v1343, %v1391
      %v1393 = vpop.f32.mrf.mxu0
      %v1394 = vadd.f32 %v1345, %v1393
      %1395 = vmatmul.bf16.gmra.mxu0 %v749
      %v1396 = vpop.f32.mrf.mxu0
      %v1397 = vadd.f32 %v1348, %v1396
      %v1398 = vpop.f32.mrf.mxu0
      %v1399 = vadd.f32 %v1350, %v1398
      %1400 = vmatmul.bf16.gmra.mxu0 %v757
      %v1401 = vpop.f32.mrf.mxu0
      %v1402 = vadd.f32 %v1353, %v1401
      %v1403 = vpop.f32.mrf.mxu0
      %v1404 = vadd.f32 %v1355, %v1403
      %1405 = vdwg.mxu0
      %1406 = vmatpush.bf16.msra.mxu0 %v1121
      %1407 = vmatpush.bf16.msra.mxu0 %v1120
      %1408 = vmatpush.bf16.msra.mxu0 %v1119
      %1409 = vmatpush.bf16.msra.mxu0 %v1118
      %1410 = vmatpush.bf16.msra.mxu0 %v1117
      %1411 = vmatpush.bf16.msra.mxu0 %v1116
      %1412 = vmatpush.bf16.msra.mxu0 %v1115
      %1413 = vmatpush.bf16.msra.mxu0 %v1114
      %1414 = vmatmul.bf16.gmra.mxu0 %v702
      %v1415 = vpop.f32.mrf.mxu0
      %v1416 = vadd.f32 %v1367, %v1415
      %v1417 = vpop.f32.mrf.mxu0
      %v1418 = vadd.f32 %v1369, %v1417
      %1419 = vmatmul.bf16.gmra.mxu0 %v710
      %v1420 = vpop.f32.mrf.mxu0
      %v1421 = vadd.f32 %v1372, %v1420
      %v1422 = vpop.f32.mrf.mxu0
      %v1423 = vadd.f32 %v1374, %v1422
      %1424 = vmatmul.bf16.gmra.mxu0 %v718
      %v1425 = vpop.f32.mrf.mxu0
      %v1426 = vadd.f32 %v1377, %v1425
      %v1427 = vpop.f32.mrf.mxu0
      %v1428 = vadd.f32 %v1379, %v1427
      %1429 = vmatmul.bf16.gmra.mxu0 %v726
      %v1430 = vpop.f32.mrf.mxu0
      %v1431 = vadd.f32 %v1382, %v1430
      %v1432 = vpop.f32.mrf.mxu0
      %v1433 = vadd.f32 %v1384, %v1432
      %1434 = vmatmul.bf16.gmra.mxu0 %v734
      %v1435 = vpop.f32.mrf.mxu0
      %v1436 = vadd.f32 %v1387, %v1435
      %v1437 = vpop.f32.mrf.mxu0
      %v1438 = vadd.f32 %v1389, %v1437
      %1439 = vmatmul.bf16.gmra.mxu0 %v742
      %v1440 = vpop.f32.mrf.mxu0
      %v1441 = vadd.f32 %v1392, %v1440
      %v1442 = vpop.f32.mrf.mxu0
      %v1443 = vadd.f32 %v1394, %v1442
      %1444 = vmatmul.bf16.gmra.mxu0 %v750
      %v1445 = vpop.f32.mrf.mxu0
      %v1446 = vadd.f32 %v1397, %v1445
      %v1447 = vpop.f32.mrf.mxu0
      %v1448 = vadd.f32 %v1399, %v1447
      %1449 = vmatmul.bf16.gmra.mxu0 %v758
      %v1450 = vpop.f32.mrf.mxu0
      %v1451 = vadd.f32 %v1402, %v1450
      %v1452 = vpop.f32.mrf.mxu0
      %v1453 = vadd.f32 %v1404, %v1452
      %1454 = vdwg.mxu0
      %1455 = vmatpush.bf16.msra.mxu0 %v1129
      %1456 = vmatpush.bf16.msra.mxu0 %v1128
      %1457 = vmatpush.bf16.msra.mxu0 %v1127
      %1458 = vmatpush.bf16.msra.mxu0 %v1126
      %1459 = vmatpush.bf16.msra.mxu0 %v1125
      %1460 = vmatpush.bf16.msra.mxu0 %v1124
      %1461 = vmatpush.bf16.msra.mxu0 %v1123
      %1462 = vmatpush.bf16.msra.mxu0 %v1122
      %1463 = vmatmul.bf16.gmra.mxu0 %v703
      %v1464 = vpop.f32.mrf.mxu0
      %v1465 = vadd.f32 %v1416, %v1464
      %v1466 = vpop.f32.mrf.mxu0
      %v1467 = vadd.f32 %v1418, %v1466
      %1468 = vmatmul.bf16.gmra.mxu0 %v711
      %v1469 = vpop.f32.mrf.mxu0
      %v1470 = vadd.f32 %v1421, %v1469
      %v1471 = vpop.f32.mrf.mxu0
      %v1472 = vadd.f32 %v1423, %v1471
      %1473 = vmatmul.bf16.gmra.mxu0 %v719
      %v1474 = vpop.f32.mrf.mxu0
      %v1475 = vadd.f32 %v1426, %v1474
      %v1476 = vpop.f32.mrf.mxu0
      %v1477 = vadd.f32 %v1428, %v1476
      %1478 = vmatmul.bf16.gmra.mxu0 %v727
      %v1479 = vpop.f32.mrf.mxu0
      %v1480 = vadd.f32 %v1431, %v1479
      %v1481 = vpop.f32.mrf.mxu0
      %v1482 = vadd.f32 %v1433, %v1481
      %1483 = vmatmul.bf16.gmra.mxu0 %v735
      %v1484 = vpop.f32.mrf.mxu0
      %v1485 = vadd.f32 %v1436, %v1484
      %v1486 = vpop.f32.mrf.mxu0
      %v1487 = vadd.f32 %v1438, %v1486
      %1488 = vmatmul.bf16.gmra.mxu0 %v743
      %v1489 = vpop.f32.mrf.mxu0
      %v1490 = vadd.f32 %v1441, %v1489
      %v1491 = vpop.f32.mrf.mxu0
      %v1492 = vadd.f32 %v1443, %v1491
      %1493 = vmatmul.bf16.gmra.mxu0 %v751
      %v1494 = vpop.f32.mrf.mxu0
      %v1495 = vadd.f32 %v1446, %v1494
      %v1496 = vpop.f32.mrf.mxu0
      %v1497 = vadd.f32 %v1448, %v1496
      %1498 = vmatmul.bf16.gmra.mxu0 %v759
      %v1499 = vpop.f32.mrf.mxu0
      %v1500 = vadd.f32 %v1451, %v1499
      %v1501 = vpop.f32.mrf.mxu0
      %v1502 = vadd.f32 %v1453, %v1501
      %1503 = vdwg.mxu0
      %1504 = vmatpush.bf16.msra.mxu0 %v1137
      %1505 = vmatpush.bf16.msra.mxu0 %v1136
      %1506 = vmatpush.bf16.msra.mxu0 %v1135
      %1507 = vmatpush.bf16.msra.mxu0 %v1134
      %1508 = vmatpush.bf16.msra.mxu0 %v1133
      %1509 = vmatpush.bf16.msra.mxu0 %v1132
      %1510 = vmatpush.bf16.msra.mxu0 %v1131
      %1511 = vmatpush.bf16.msra.mxu0 %v1130
      %1512 = vmatmul.bf16.gmra.mxu0 %v704
      %v1513 = vpop.f32.mrf.mxu0
      %v1514 = vadd.f32 %v1465, %v1513
      %v1515 = vpop.f32.mrf.mxu0
      %v1516 = vadd.f32 %v1467, %v1515
      %1517 = vmatmul.bf16.gmra.mxu0 %v712
      %v1518 = vpop.f32.mrf.mxu0
      %v1519 = vadd.f32 %v1470, %v1518
      %v1520 = vpop.f32.mrf.mxu0
      %v1521 = vadd.f32 %v1472, %v1520
      %1522 = vmatmul.bf16.gmra.mxu0 %v720
      %v1523 = vpop.f32.mrf.mxu0
      %v1524 = vadd.f32 %v1475, %v1523
      %v1525 = vpop.f32.mrf.mxu0
      %v1526 = vadd.f32 %v1477, %v1525
      %1527 = vmatmul.bf16.gmra.mxu0 %v728
      %v1528 = vpop.f32.mrf.mxu0
      %v1529 = vadd.f32 %v1480, %v1528
      %v1530 = vpop.f32.mrf.mxu0
      %v1531 = vadd.f32 %v1482, %v1530
      %1532 = vmatmul.bf16.gmra.mxu0 %v736
      %v1533 = vpop.f32.mrf.mxu0
      %v1534 = vadd.f32 %v1485, %v1533
      %v1535 = vpop.f32.mrf.mxu0
      %v1536 = vadd.f32 %v1487, %v1535
      %1537 = vmatmul.bf16.gmra.mxu0 %v744
      %v1538 = vpop.f32.mrf.mxu0
      %v1539 = vadd.f32 %v1490, %v1538
      %v1540 = vpop.f32.mrf.mxu0
      %v1541 = vadd.f32 %v1492, %v1540
      %1542 = vmatmul.bf16.gmra.mxu0 %v752
      %v1543 = vpop.f32.mrf.mxu0
      %v1544 = vadd.f32 %v1495, %v1543
      %v1545 = vpop.f32.mrf.mxu0
      %v1546 = vadd.f32 %v1497, %v1545
      %1547 = vmatmul.bf16.gmra.mxu0 %v760
      %v1548 = vpop.f32.mrf.mxu0
      %v1549 = vadd.f32 %v1500, %v1548
      %v1550 = vpop.f32.mrf.mxu0
      %v1551 = vadd.f32 %v1502, %v1550
      %1552 = vdwg.mxu0
      %1553 = vmatpush.bf16.msra.mxu0 %v1145
      %1554 = vmatpush.bf16.msra.mxu0 %v1144
      %1555 = vmatpush.bf16.msra.mxu0 %v1143
      %1556 = vmatpush.bf16.msra.mxu0 %v1142
      %1557 = vmatpush.bf16.msra.mxu0 %v1141
      %1558 = vmatpush.bf16.msra.mxu0 %v1140
      %1559 = vmatpush.bf16.msra.mxu0 %v1139
      %1560 = vmatpush.bf16.msra.mxu0 %v1138
      %1561 = vmatmul.bf16.gmra.mxu0 %v705
      %v1562 = vpop.f32.mrf.mxu0
      %v1563 = vadd.f32 %v1514, %v1562
      %v1564 = vpop.f32.mrf.mxu0
      %v1565 = vadd.f32 %v1516, %v1564
      %1566 = vmatmul.bf16.gmra.mxu0 %v713
      %v1567 = vpop.f32.mrf.mxu0
      %v1568 = vadd.f32 %v1519, %v1567
      %v1569 = vpop.f32.mrf.mxu0
      %v1570 = vadd.f32 %v1521, %v1569
      %1571 = vmatmul.bf16.gmra.mxu0 %v721
      %v1572 = vpop.f32.mrf.mxu0
      %v1573 = vadd.f32 %v1524, %v1572
      %v1574 = vpop.f32.mrf.mxu0
      %v1575 = vadd.f32 %v1526, %v1574
      %1576 = vmatmul.bf16.gmra.mxu0 %v729
      %v1577 = vpop.f32.mrf.mxu0
      %v1578 = vadd.f32 %v1529, %v1577
      %v1579 = vpop.f32.mrf.mxu0
      %v1580 = vadd.f32 %v1531, %v1579
      %1581 = vmatmul.bf16.gmra.mxu0 %v737
      %v1582 = vpop.f32.mrf.mxu0
      %v1583 = vadd.f32 %v1534, %v1582
      %v1584 = vpop.f32.mrf.mxu0
      %v1585 = vadd.f32 %v1536, %v1584
      %1586 = vmatmul.bf16.gmra.mxu0 %v745
      %v1587 = vpop.f32.mrf.mxu0
      %v1588 = vadd.f32 %v1539, %v1587
      %v1589 = vpop.f32.mrf.mxu0
      %v1590 = vadd.f32 %v1541, %v1589
      %1591 = vmatmul.bf16.gmra.mxu0 %v753
      %v1592 = vpop.f32.mrf.mxu0
      %v1593 = vadd.f32 %v1544, %v1592
      %v1594 = vpop.f32.mrf.mxu0
      %v1595 = vadd.f32 %v1546, %v1594
      %1596 = vmatmul.bf16.gmra.mxu0 %v761
      %v1597 = vpop.f32.mrf.mxu0
      %v1598 = vadd.f32 %v1549, %v1597
      %v1599 = vpop.f32.mrf.mxu0
      %v1600 = vadd.f32 %v1551, %v1599
      %1601 = vdwg.mxu0
      %v1602 = vld [vmem:[%s297] sm:$0x1]
      %v1604 = vperm.slane %v1602, 0
      %v1606 = vmul.f32 %v1563, %v1604
      %v1607 = vmul.f32 %v1565, %v1604
      %v1608 = vmul.f32 %v1568, %v1604
      %v1609 = vmul.f32 %v1570, %v1604
      %v1610 = vmul.f32 %v1573, %v1604
      %v1611 = vmul.f32 %v1575, %v1604
      %v1612 = vmul.f32 %v1578, %v1604
      %v1613 = vmul.f32 %v1580, %v1604
      %v1614 = vmul.f32 %v1583, %v1604
      %v1615 = vmul.f32 %v1585, %v1604
      %v1616 = vmul.f32 %v1588, %v1604
      %v1617 = vmul.f32 %v1590, %v1604
      %v1618 = vmul.f32 %v1593, %v1604
      %v1619 = vmul.f32 %v1595, %v1604
      %v1620 = vmul.f32 %v1598, %v1604
      %v1621 = vmul.f32 %v1600, %v1604
      %v1622 = vld [vmem:[%s300] sm:$0x1]
      %v1624 = vperm.slane %v1622, 0
      %v1626 = vadd.f32 %v1606, %v1624
      %v1627 = vadd.f32 %v1607, %v1624
      %v1628 = vadd.f32 %v1608, %v1624
      %v1629 = vadd.f32 %v1609, %v1624
      %v1630 = vadd.f32 %v1610, %v1624
      %v1631 = vadd.f32 %v1611, %v1624
      %v1632 = vadd.f32 %v1612, %v1624
      %v1633 = vadd.f32 %v1613, %v1624
      %v1634 = vadd.f32 %v1614, %v1624
      %v1635 = vadd.f32 %v1615, %v1624
      %v1636 = vadd.f32 %v1616, %v1624
      %v1637 = vadd.f32 %v1617, %v1624
      %v1638 = vadd.f32 %v1618, %v1624
      %v1639 = vadd.f32 %v1619, %v1624
      %v1640 = vadd.f32 %v1620, %v1624
      %v1641 = vadd.f32 %v1621, %v1624
      %v1642 = vmax.f32 %v1626, 0.0
      %v1643 = vmax.f32 %v1627, 0.0
      %v1644 = vmax.f32 %v1628, 0.0
      %v1645 = vmax.f32 %v1629, 0.0
      %v1646 = vmax.f32 %v1630, 0.0
      %v1647 = vmax.f32 %v1631, 0.0
      %v1648 = vmax.f32 %v1632, 0.0
      %v1649 = vmax.f32 %v1633, 0.0
      %v1650 = vmax.f32 %v1634, 0.0
      %v1651 = vmax.f32 %v1635, 0.0
      %v1652 = vmax.f32 %v1636, 0.0
      %v1653 = vmax.f32 %v1637, 0.0
      %v1654 = vmax.f32 %v1638, 0.0
      %v1655 = vmax.f32 %v1639, 0.0
      %v1656 = vmax.f32 %v1640, 0.0
      %v1657 = vmax.f32 %v1641, 0.0
      %v1658 = vpack.c.bf16 %v1642, %v1642
      %v1659 = vpack.c.bf16 %v1643, %v1643
      %v1660 = vpack.c.bf16 %v1644, %v1644
      %v1661 = vpack.c.bf16 %v1645, %v1645
      %v1662 = vpack.c.bf16 %v1646, %v1646
      %v1663 = vpack.c.bf16 %v1647, %v1647
      %v1664 = vpack.c.bf16 %v1648, %v1648
      %v1665 = vpack.c.bf16 %v1649, %v1649
      %v1666 = vpack.c.bf16 %v1650, %v1650
      %v1667 = vpack.c.bf16 %v1651, %v1651
      %v1668 = vpack.c.bf16 %v1652, %v1652
      %v1669 = vpack.c.bf16 %v1653, %v1653
      %v1670 = vpack.c.bf16 %v1654, %v1654
      %v1671 = vpack.c.bf16 %v1655, %v1655
      %v1672 = vpack.c.bf16 %v1656, %v1656
      %v1673 = vpack.c.bf16 %v1657, %v1657
      %1674 = vst [vmem:[%s312] sm:$0xf] %v1658
      %1675 = vst [vmem:[%s312 + $0x4] sm:$0xf] %v1659
      %1676 = vst [vmem:[%s312 + $0x8] sm:$0xf] %v1660
      %1677 = vst [vmem:[%s312 + $0xc] sm:$0xf] %v1661
      %1678 = vst [vmem:[%s312 + $0x10] sm:$0xf] %v1662
      %1679 = vst [vmem:[%s312 + $0x14] sm:$0xf] %v1663
      %1680 = vst [vmem:[%s312 + $0x18] sm:$0xf] %v1664
      %1681 = vst [vmem:[%s312 + $0x1c] sm:$0xf] %v1665
      %1682 = vst [vmem:[%s312 + $0x20] sm:$0xf] %v1666
      %1683 = vst [vmem:[%s312 + $0x24] sm:$0xf] %v1667
      %1684 = vst [vmem:[%s312 + $0x28] sm:$0xf] %v1668
      %1685 = vst [vmem:[%s312 + $0x2c] sm:$0xf] %v1669
      %1686 = vst [vmem:[%s312 + $0x30] sm:$0xf] %v1670
      %1687 = vst [vmem:[%s312 + $0x34] sm:$0xf] %v1671
      %1688 = vst [vmem:[%s312 + $0x38] sm:$0xf] %v1672
      %1689 = vst [vmem:[%s312 + $0x3c] sm:$0xf] %v1673
      %s1690 = smul.u32 16, %s21
      %p1691 = scmp.lt.s32.totalorder %s20, 3
      %s1692 = scalar_select %p1691, %s20, 3
      %p1693 = scmp.lt.s32.totalorder %s1690, 15
      %s1694 = scalar_select %p1693, %s1690, 15
      %p1695 = scmp.lt.s32.totalorder %s22, 0
      %s1696 = scalar_select %p1695, %s22, 0
      %s1697 = sadd.s32 %s1696, %s1694
      %s1698 = smul.addr %s1692, 16
      %s1699 = sadd.s32 %s1697, %s1698
      %s1700 = smul.addr %s1699, 4
      %s1701 = scalar_lea.vmem %s4, %s1700
      // Predicated region
      $region37: #{_lambda_.7} parent=35 // pred_check
        %p1702 = pneg %p164
      $region38: #{_lambda_.7} parent=35 // pred_check_branch
        %1704 = sbr.rel (%p1702) target = $region40
      $region39: #{_lambda_.7} parent=35 // pred_region
        %s1705 = smul.u32 16, %s21
      $region40: #{_lambda_.7} parent=35 // pred_fallthru
        _
    $region36: #{_lambda_.7} parent=5 // pred_fallthru
      _
    %p1706 = scmp.le.s32.totalorder 2, %s10
    // Predicated region
    $region41: #{_lambda_.7} parent=5 // pred_check
      %p1707 = pneg %p1706
    $region42: #{_lambda_.7} parent=5 // pred_check_branch
      %1709 = sbr.rel (%p1707) target = $region44
    $region43: #{_lambda_.7} parent=5 // pred_region
      %s1710 = ssub.s32 %s10, 2
      // Predicated region
      $region45: #{_lambda_.7} parent=43 // pred_check
        %p1711 = pneg %p170
      $region46: #{_lambda_.7} parent=43 // pred_check_branch
        %1713 = sbr.rel (%p1711) target = $region48
      $region47: #{_lambda_.7} parent=43 // pred_region
        %s1714 = smul.u32 16, %s24
        %p1715 = scmp.lt.s32.totalorder %s23, 3
        %s1716 = scalar_select %p1715, %s23, 3
        %p1717 = scmp.lt.s32.totalorder %s1714, 15
        %s1718 = scalar_select %p1717, %s1714, 15
        %p1719 = scmp.lt.s32.totalorder %s25, 0
        %s1720 = scalar_select %p1719, %s25, 0
        %s1721 = sadd.s32 %s1720, %s1718
        %s1722 = smul.addr %s1716, 16
        %s1723 = sadd.s32 %s1721, %s1722
        %s1724 = smul.addr %s1723, 4
        %s1725 = scalar_lea.vmem %s4, %s1724
      $region48: #{_lambda_.7} parent=43 // pred_fallthru
        _
    $region44: #{_lambda_.7} parent=5 // pred_fallthru
      _
  $region6: #{_lambda_.7} parent=0 // loop_footer
    %s14 = sadd.s32 1, %s10
  $region7: #{_lambda_.7} parent=0 // loop_footer_branch
    %9 = sbr.rel target = $region3
  $region8: #{_lambda_.7} parent=0 // loop_exit
    _

// kernel: _lambda_.8
$region0: #{_lambda_.8}
  #allocation0 [shape = 'u32[]', space=smem, size = 0x4, offset = 0x4, fixed_abs, tag = 'smem constant byte address 0x4 - core index']
  #allocation1 [shape = 'u32[72,128]{1,0:T(1,128)}', space=vmem, size = 0x9000, scoped, tag = 'internal scratch']
  %s0 = inlined_call_operand.vmem [shape: bf16[4,512,512], index: 0, kind: input, shape index: {}]
  %s1 = inlined_call_operand.vmem [shape: bf16[4,512,128], index: 1, kind: input, shape index: {}]
  %s2 = inlined_call_operand.vmem [shape: f32[1,128], index: 2, kind: input, shape index: {}]
  %s3 = inlined_call_operand.vmem [shape: f32[1,128], index: 3, kind: input, shape index: {}]
  %s4 = inlined_call_operand.vmem [shape: bf16[4,512,128], index: 4, kind: output, shape index: {}]
  %s5 = sld [smem:[#allocation0]]
  $region49: #{_lambda_.8} parent=0
    _
  %s7 = ssub.s32 1, %s5
  %s8 = scalar_select 0, %s7, %s5
  loop: start=0, step=1, limit=6
  $region2: #{_lambda_.8} parent=0 // loop_pre_header
    _
  $region3: #{_lambda_.8} parent=0 // loop_header
    %s10 = sphi 0, %s14
    %p11 = scmp.ge.s32.totalorder %s10, 6
    %s17 = sphi 0, %s36
    %s18 = sphi 0, %s32
    %s19 = sphi 0, %s28
    %s20 = sphi 0, %s17
    %s21 = sphi 0, %s18
    %s22 = sphi 0, %s19
    %s23 = sphi 0, %s20
    %s24 = sphi 0, %s21
    %s25 = sphi 0, %s22
    %s41 = sphi 0, %s43
    %s44 = sphi 0, %s41
    %s45 = sphi 0, %s44
    %s61 = sphi 0, %s45
    %s69 = sphi 0, %s71
    %s72 = sphi 0, %s69
    %s73 = sphi 0, %s72
    %s89 = sphi 0, %s73
    %s95 = sphi 0, %s97
    %s98 = sphi 0, %s95
    %s99 = sphi 0, %s98
    %s115 = sphi 0, %s99
    %s121 = sphi 0, %s123
    %s124 = sphi 0, %s121
    %s125 = sphi 0, %s124
    %s141 = sphi 0, %s125
    %s151 = sphi 0, %s153
    %s154 = sphi 0, %s151
    %s155 = sphi 0, %s154
    %s171 = sphi 0, %s155
  $region4: #{_lambda_.8} parent=0 // loop_header_branch
    %13 = sbr.rel (%p11) target = $region8
  $region5: #{_lambda_.8} parent=0 // loop_body
    %s15 = ssub.s32 %s10, 1
    %s16 = ssub.s32 %s10, 2
    %s26 = sadd.s32 1, %s19
    %p27 = scmp.ge.s32.totalorder %s26, 1
    %s28 = scalar_select %p27, 0, %s26
    %s29 = sadd.s32 1, %s18
    %s30 = scalar_select %p27, %s29, %s18
    %p31 = scmp.ge.s32.totalorder %s30, 1
    %s32 = scalar_select %p31, 0, %s30
    %s33 = sadd.s32 1, %s17
    %s34 = scalar_select %p31, %s33, %s17
    %p35 = scmp.ge.s32.totalorder %s34, 4
    %s36 = scalar_select %p35, 0, %s34
    %s37 = ssub.s32 %s17, %s36
    %s38 = ssub.s32 %s18, %s32
    %s39 = sor.u32 %s37, %s38
    %p40 = scmp.eq.s32.totalorder %s39, 0
    %s42 = sadd.s32 %s41, 1
    %s43 = scalar_select %p40, %s41, %s42
    %p46 = pneg %p40
    %p47 = scmp.eq.s32.totalorder %s10, 3
    %p48 = por %p46, %p47
    %p49 = scmp.ne.s32.totalorder %s41, %s44
    %p50 = scmp.eq.s32.totalorder %s10, 0
    %p51 = por %p49, %p50
    %p52 = scmp.ne.s32.totalorder %s41, %s44
    %p53 = scmp.eq.s32.totalorder %s15, 3
    %p54 = por %p52, %p53
    %p55 = scmp.ne.s32.totalorder %s44, %s45
    %p56 = scmp.eq.s32.totalorder %s15, 0
    %p57 = por %p55, %p56
    %p58 = scmp.ne.s32.totalorder %s44, %s45
    %p59 = scmp.eq.s32.totalorder %s16, 3
    %p60 = por %p58, %p59
    %p62 = scmp.ne.s32.totalorder %s45, %s61
    %p63 = scmp.eq.s32.totalorder %s16, 0
    %p64 = por %p62, %p63
    %s65 = ssub.s32 %s17, %s36
    %s66 = ssub.s32 %s19, %s28
    %s67 = sor.u32 %s65, %s66
    %p68 = scmp.eq.s32.totalorder %s67, 0
    %s70 = sadd.s32 %s69, 1
    %s71 = scalar_select %p68, %s69, %s70
    %p74 = pneg %p68
    %p75 = scmp.eq.s32.totalorder %s10, 3
    %p76 = por %p74, %p75
    %p77 = scmp.ne.s32.totalorder %s69, %s72
    %p78 = scmp.eq.s32.totalorder %s10, 0
    %p79 = por %p77, %p78
    %p80 = scmp.ne.s32.totalorder %s69, %s72
    %p81 = scmp.eq.s32.totalorder %s15, 3
    %p82 = por %p80, %p81
    %p83 = scmp.ne.s32.totalorder %s72, %s73
    %p84 = scmp.eq.s32.totalorder %s15, 0
    %p85 = por %p83, %p84
    %p86 = scmp.ne.s32.totalorder %s72, %s73
    %p87 = scmp.eq.s32.totalorder %s16, 3
    %p88 = por %p86, %p87
    %p90 = scmp.ne.s32.totalorder %s73, %s89
    %p91 = scmp.eq.s32.totalorder %s16, 0
    %p92 = por %p90, %p91
    %s93 = ssub.s32 %s19, %s28
    %p94 = scmp.eq.s32.totalorder %s93, 0
    %s96 = sadd.s32 %s95, 1
    %s97 = scalar_select %p94, %s95, %s96
    %p100 = pneg %p94
    %p101 = scmp.eq.s32.totalorder %s10, 3
    %p102 = por %p100, %p101
    %p103 = scmp.ne.s32.totalorder %s95, %s98
    %p104 = scmp.eq.s32.totalorder %s10, 0
    %p105 = por %p103, %p104
    %p106 = scmp.ne.s32.totalorder %s95, %s98
    %p107 = scmp.eq.s32.totalorder %s15, 3
    %p108 = por %p106, %p107
    %p109 = scmp.ne.s32.totalorder %s98, %s99
    %p110 = scmp.eq.s32.totalorder %s15, 0
    %p111 = por %p109, %p110
    %p112 = scmp.ne.s32.totalorder %s98, %s99
    %p113 = scmp.eq.s32.totalorder %s16, 3
    %p114 = por %p112, %p113
    %p116 = scmp.ne.s32.totalorder %s99, %s115
    %p117 = scmp.eq.s32.totalorder %s16, 0
    %p118 = por %p116, %p117
    %s119 = ssub.s32 %s19, %s28
    %p120 = scmp.eq.s32.totalorder %s119, 0
    %s122 = sadd.s32 %s121, 1
    %s123 = scalar_select %p120, %s121, %s122
    %p126 = pneg %p120
    %p127 = scmp.eq.s32.totalorder %s10, 3
    %p128 = por %p126, %p127
    %p129 = scmp.ne.s32.totalorder %s121, %s124
    %p130 = scmp.eq.s32.totalorder %s10, 0
    %p131 = por %p129, %p130
    %p132 = scmp.ne.s32.totalorder %s121, %s124
    %p133 = scmp.eq.s32.totalorder %s15, 3
    %p134 = por %p132, %p133
    %p135 = scmp.ne.s32.totalorder %s124, %s125
    %p136 = scmp.eq.s32.totalorder %s15, 0
    %p137 = por %p135, %p136
    %p138 = scmp.ne.s32.totalorder %s124, %s125
    %p139 = scmp.eq.s32.totalorder %s16, 3
    %p140 = por %p138, %p139
    %p142 = scmp.ne.s32.totalorder %s125, %s141
    %p143 = scmp.eq.s32.totalorder %s16, 0
    %p144 = por %p142, %p143
    %s145 = ssub.s32 %s17, %s36
    %s146 = ssub.s32 %s18, %s32
    %s147 = sor.u32 %s145, %s146
    %s148 = ssub.s32 %s19, %s28
    %s149 = sor.u32 %s147, %s148
    %p150 = scmp.eq.s32.totalorder %s149, 0
    %s152 = sadd.s32 %s151, 1
    %s153 = scalar_select %p150, %s151, %s152
    %p156 = pneg %p150
    %p157 = scmp.eq.s32.totalorder %s10, 3
    %p158 = por %p156, %p157
    %p159 = scmp.ne.s32.totalorder %s151, %s154
    %p160 = scmp.eq.s32.totalorder %s10, 0
    %p161 = por %p159, %p160
    %p162 = scmp.ne.s32.totalorder %s151, %s154
    %p163 = scmp.eq.s32.totalorder %s15, 3
    %p164 = por %p162, %p163
    %p165 = scmp.ne.s32.totalorder %s154, %s155
    %p166 = scmp.eq.s32.totalorder %s15, 0
    %p167 = por %p165, %p166
    %p168 = scmp.ne.s32.totalorder %s154, %s155
    %p169 = scmp.eq.s32.totalorder %s16, 3
    %p170 = por %p168, %p169
    %p172 = scmp.ne.s32.totalorder %s155, %s171
    %p173 = scmp.eq.s32.totalorder %s16, 0
    %p174 = por %p172, %p173
    %p175 = scmp.le.s32.totalorder 1, %s10
    %p176 = scmp.lt.s32.totalorder %s10, 5
    %p177 = pnand %p175, %p176
    %p178 = pneg %p177
    // Predicated region
    $region9: #{_lambda_.8} parent=5 // pred_check
      _
    $region10: #{_lambda_.8} parent=5 // pred_check_branch
      %180 = sbr.rel (%p177) target = $region12
    $region11: #{_lambda_.8} parent=5 // pred_region
      %s181 = ssub.s32 %s10, 1
      // Predicated region
      $region13: #{_lambda_.8} parent=11 // pred_check
        %p182 = pneg %p111
      $region14: #{_lambda_.8} parent=11 // pred_check_branch
        %184 = sbr.rel (%p182) target = $region16
      $region15: #{_lambda_.8} parent=11 // pred_region
        %p185 = scmp.lt.s32.totalorder %s22, 0
        %s186 = scalar_select %p185, %s22, 0
        %s187 = scalar_lea.vmem %s2, %s186
      $region16: #{_lambda_.8} parent=11 // pred_fallthru
        _
      // Predicated region
      $region17: #{_lambda_.8} parent=11 // pred_check
        %p188 = pneg %p137
      $region18: #{_lambda_.8} parent=11 // pred_check_branch
        %190 = sbr.rel (%p188) target = $region20
      $region19: #{_lambda_.8} parent=11 // pred_region
        %p191 = scmp.lt.s32.totalorder %s22, 0
        %s192 = scalar_select %p191, %s22, 0
        %s193 = scalar_lea.vmem %s3, %s192
      $region20: #{_lambda_.8} parent=11 // pred_fallthru
        _
    $region12: #{_lambda_.8} parent=5 // pred_fallthru
      _
    %p194 = scmp.lt.s32.totalorder %s10, 4
    // Predicated region
    $region21: #{_lambda_.8} parent=5 // pred_check
      %p195 = pneg %p194
    $region22: #{_lambda_.8} parent=5 // pred_check_branch
      %197 = sbr.rel (%p195) target = $region24
    $region23: #{_lambda_.8} parent=5 // pred_region
      // Predicated region
      $region25: #{_lambda_.8} parent=23 // pred_check
        %p198 = pneg %p51
      $region26: #{_lambda_.8} parent=23 // pred_check_branch
        %200 = sbr.rel (%p198) target = $region28
      $region27: #{_lambda_.8} parent=23 // pred_region
        %s201 = smul.u32 64, %s18
        %p202 = scmp.lt.s32.totalorder %s17, 3
        %s203 = scalar_select %p202, %s17, 3
        %p204 = scmp.lt.s32.totalorder %s201, 63
        %s205 = scalar_select %p204, %s201, 63
        %s206 = smul.addr %s205, 4
        %s207 = smul.addr %s203, 256
        %s208 = sadd.s32 %s206, %s207
        %s209 = smul.addr %s208, 4
        %s210 = scalar_lea.vmem %s0, %s209
        %s211 = smul.u32 64, %s18
      $region28: #{_lambda_.8} parent=23 // pred_fallthru
        _
      // Predicated region
      $region29: #{_lambda_.8} parent=23 // pred_check
        %p212 = pneg %p79
      $region30: #{_lambda_.8} parent=23 // pred_check_branch
        %214 = sbr.rel (%p212) target = $region32
      $region31: #{_lambda_.8} parent=23 // pred_region
        %p215 = scmp.lt.s32.totalorder %s17, 3
        %s216 = scalar_select %p215, %s17, 3
        %p217 = scmp.lt.s32.totalorder %s19, 0
        %s218 = scalar_select %p217, %s19, 0
        %s219 = smul.addr %s216, 64
        %s220 = sadd.s32 %s218, %s219
        %s221 = smul.addr %s220, 4
        %s222 = scalar_lea.vmem %s1, %s221
      $region32: #{_lambda_.8} parent=23 // pred_fallthru
        _
    $region24: #{_lambda_.8} parent=5 // pred_fallthru
      _
    %p223 = scmp.le.s32.totalorder 1, %s10
    %p224 = scmp.lt.s32.totalorder %s10, 5
    %p225 = pnand %p223, %p224
    %p226 = pneg %p225
    // Predicated region
    $region33: #{_lambda_.8} parent=5 // pred_check
      _
    $region34: #{_lambda_.8} parent=5 // pred_check_branch
      %228 = sbr.rel (%p225) target = $region36
    $region35: #{_lambda_.8} parent=5 // pred_region
      %s229 = ssub.s32 %s10, 1
      %s230 = smul.u32 64, %s21
      %p231 = scmp.lt.s32.totalorder %s20, 3
      %s232 = scalar_select %p231, %s20, 3
      %p233 = scmp.lt.s32.totalorder %s230, 63
      %s234 = scalar_select %p233, %s230, 63
      %s235 = smul.addr %s234, 4
      %s236 = smul.addr %s232, 256
      %s237 = sadd.s32 %s235, %s236
      %s238 = smul.addr %s237, 4
      %s239 = scalar_lea.vmem %s0, %s238
      %p240 = pneg %p57
      %p241 = pneg %p54
      %p242 = scmp.lt.s32.totalorder %s20, 3
      %s243 = scalar_select %p242, %s20, 3
      %p244 = scmp.lt.s32.totalorder %s22, 0
      %s245 = scalar_select %p244, %s22, 0
      %s246 = smul.addr %s243, 64
      %s247 = sadd.s32 %s245, %s246
      %s248 = smul.addr %s247, 4
      %s249 = scalar_lea.vmem %s1, %s248
      %p250 = pneg %p85
      %p251 = pneg %p82
      %p252 = scmp.lt.s32.totalorder %s22, 0
      %s253 = scalar_select %p252, %s22, 0
      %s254 = scalar_lea.vmem %s2, %s253
      %p255 = pneg %p111
      %p256 = pneg %p108
      %p257 = scmp.lt.s32.totalorder %s22, 0
      %s258 = scalar_select %p257, %s22, 0
      %s259 = scalar_lea.vmem %s3, %s258
      %p260 = pneg %p137
      %p261 = pneg %p134
      %p262 = pneg %p167
      %p263 = pneg %p164
      %s264 = smul.u32 64, %s21
      %p265 = scmp.lt.s32.totalorder %s20, 3
      %s266 = scalar_select %p265, %s20, 3
      %p267 = scmp.lt.s32.totalorder %s264, 63
      %s268 = scalar_select %p267, %s264, 63
      %p269 = scmp.lt.s32.totalorder %s22, 0
      %s270 = scalar_select %p269, %s22, 0
      %s271 = sadd.s32 %s270, %s268
      %s272 = smul.addr %s266, 64
      %s273 = sadd.s32 %s271, %s272
      %s274 = smul.addr %s273, 4
      %s275 = scalar_lea.vmem %s4, %s274
      %s276 = smul.u32 64, %s21
      %p277 = scmp.lt.s32.totalorder %s20, 3
      %s278 = scalar_select %p277, %s20, 3
      %p279 = scmp.lt.s32.totalorder %s276, 63
      %s280 = scalar_select %p279, %s276, 63
      %s281 = smul.addr %s280, 4
      %s282 = smul.addr %s278, 256
      %s283 = sadd.s32 %s281, %s282
      %s284 = smul.addr %s283, 4
      %s285 = scalar_lea.vmem %s0, %s284
      %s286 = smul.u32 64, %s21
      %p287 = scmp.lt.s32.totalorder %s20, 3
      %s288 = scalar_select %p287, %s20, 3
      %p289 = scmp.lt.s32.totalorder %s22, 0
      %s290 = scalar_select %p289, %s22, 0
      %s291 = smul.addr %s288, 64
      %s292 = sadd.s32 %s290, %s291
      %s293 = smul.addr %s292, 4
      %s294 = scalar_lea.vmem %s1, %s293
      %p295 = scmp.lt.s32.totalorder %s22, 0
      %s296 = scalar_select %p295, %s22, 0
      %s297 = scalar_lea.vmem %s2, %s296
      %p298 = scmp.lt.s32.totalorder %s22, 0
      %s299 = scalar_select %p298, %s22, 0
      %s300 = scalar_lea.vmem %s3, %s299
      %s301 = smul.u32 64, %s21
      %p302 = scmp.lt.s32.totalorder %s20, 3
      %s303 = scalar_select %p302, %s20, 3
      %p304 = scmp.lt.s32.totalorder %s301, 63
      %s305 = scalar_select %p304, %s301, 63
      %p306 = scmp.lt.s32.totalorder %s22, 0
      %s307 = scalar_select %p306, %s22, 0
      %s308 = sadd.s32 %s307, %s305
      %s309 = smul.addr %s303, 64
      %s310 = sadd.s32 %s308, %s309
      %s311 = smul.addr %s310, 4
      %s312 = scalar_lea.vmem %s4, %s311
      %s313 = smul.u32 64, %s21
      %v314 = vld [vmem:[%s285] sm:$0xff]
      %v315 = vld [vmem:[%s285 + $0x8] sm:$0xff]
      %v316 = vld [vmem:[%s285 + $0x10] sm:$0xff]
      %v317 = vld [vmem:[%s285 + $0x18] sm:$0xff]
      %v318 = vld [vmem:[%s285 + $0x20] sm:$0xff]
      %v319 = vld [vmem:[%s285 + $0x28] sm:$0xff]
      %v320 = vld [vmem:[%s285 + $0x30] sm:$0xff]
      %v321 = vld [vmem:[%s285 + $0x38] sm:$0xff]
      %v322 = vld [vmem:[%s285 + $0x40] sm:$0xff]
      %v323 = vld [vmem:[%s285 + $0x48] sm:$0xff]
      %v324 = vld [vmem:[%s285 + $0x50] sm:$0xff]
      %v325 = vld [vmem:[%s285 + $0x58] sm:$0xff]
      %v326 = vld [vmem:[%s285 + $0x60] sm:$0xff]
      %v327 = vld [vmem:[%s285 + $0x68] sm:$0xff]
      %v328 = vld [vmem:[%s285 + $0x70] sm:$0xff]
      %v329 = vld [vmem:[%s285 + $0x78] sm:$0xff]
      %v330 = vld [vmem:[%s285 + $0x80] sm:$0xff]
      %v331 = vld [vmem:[%s285 + $0x88] sm:$0xff]
      %v332 = vld [vmem:[%s285 + $0x90] sm:$0xff]
      %v333 = vld [vmem:[%s285 + $0x98] sm:$0xff]
      %v334 = vld [vmem:[%s285 + $0xa0] sm:$0xff]
      %v335 = vld [vmem:[%s285 + $0xa8] sm:$0xff]
      %v336 = vld [vmem:[%s285 + $0xb0] sm:$0xff]
      %v337 = vld [vmem:[%s285 + $0xb8] sm:$0xff]
      %v338 = vld [vmem:[%s285 + $0xc0] sm:$0xff]
      %v339 = vld [vmem:[%s285 + $0xc8] sm:$0xff]
      %v340 = vld [vmem:[%s285 + $0xd0] sm:$0xff]
      %v341 = vld [vmem:[%s285 + $0xd8] sm:$0xff]
      %v342 = vld [vmem:[%s285 + $0xe0] sm:$0xff]
      %v343 = vld [vmem:[%s285 + $0xe8] sm:$0xff]
      %v344 = vld [vmem:[%s285 + $0xf0] sm:$0xff]
      %v345 = vld [vmem:[%s285 + $0xf8] sm:$0xff]
      %v346 = vld [vmem:[%s285 + $0x100] sm:$0xff]
      %v347 = vld [vmem:[%s285 + $0x108] sm:$0xff]
      %v348 = vld [vmem:[%s285 + $0x110] sm:$0xff]
      %v349 = vld [vmem:[%s285 + $0x118] sm:$0xff]
      %v350 = vld [vmem:[%s285 + $0x120] sm:$0xff]
      %v351 = vld [vmem:[%s285 + $0x128] sm:$0xff]
      %v352 = vld [vmem:[%s285 + $0x130] sm:$0xff]
      %v353 = vld [vmem:[%s285 + $0x138] sm:$0xff]
      %v354 = vld [vmem:[%s285 + $0x140] sm:$0xff]
      %v355 = vld [vmem:[%s285 + $0x148] sm:$0xff]
      %v356 = vld [vmem:[%s285 + $0x150] sm:$0xff]
      %v357 = vld [vmem:[%s285 + $0x158] sm:$0xff]
      %v358 = vld [vmem:[%s285 + $0x160] sm:$0xff]
      %v359 = vld [vmem:[%s285 + $0x168] sm:$0xff]
      %v360 = vld [vmem:[%s285 + $0x170] sm:$0xff]
      %v361 = vld [vmem:[%s285 + $0x178] sm:$0xff]
      %v362 = vld [vmem:[%s285 + $0x180] sm:$0xff]
      %v363 = vld [vmem:[%s285 + $0x188] sm:$0xff]
      %v364 = vld [vmem:[%s285 + $0x190] sm:$0xff]
      %v365 = vld [vmem:[%s285 + $0x198] sm:$0xff]
      %v366 = vld [vmem:[%s285 + $0x1a0] sm:$0xff]
      %v367 = vld [vmem:[%s285 + $0x1a8] sm:$0xff]
      %v368 = vld [vmem:[%s285 + $0x1b0] sm:$0xff]
      %v369 = vld [vmem:[%s285 + $0x1b8] sm:$0xff]
      %v370 = vld [vmem:[%s285 + $0x1c0] sm:$0xff]
      %v371 = vld [vmem:[%s285 + $0x1c8] sm:$0xff]
      %v372 = vld [vmem:[%s285 + $0x1d0] sm:$0xff]
      %v373 = vld [vmem:[%s285 + $0x1d8] sm:$0xff]
      %v374 = vld [vmem:[%s285 + $0x1e0] sm:$0xff]
      %v375 = vld [vmem:[%s285 + $0x1e8] sm:$0xff]
      %v376 = vld [vmem:[%s285 + $0x1f0] sm:$0xff]
      %v377 = vld [vmem:[%s285 + $0x1f8] sm:$0xff]
      %v378 = vld [vmem:[%s285 + $0x200] sm:$0xff]
      %v379 = vld [vmem:[%s285 + $0x208] sm:$0xff]
      %v380 = vld [vmem:[%s285 + $0x210] sm:$0xff]
      %v381 = vld [vmem:[%s285 + $0x218] sm:$0xff]
      %v382 = vld [vmem:[%s285 + $0x220] sm:$0xff]
      %v383 = vld [vmem:[%s285 + $0x228] sm:$0xff]
      %v384 = vld [vmem:[%s285 + $0x230] sm:$0xff]
      %v385 = vld [vmem:[%s285 + $0x238] sm:$0xff]
      %v386 = vld [vmem:[%s285 + $0x240] sm:$0xff]
      %v387 = vld [vmem:[%s285 + $0x248] sm:$0xff]
      %v388 = vld [vmem:[%s285 + $0x250] sm:$0xff]
      %v389 = vld [vmem:[%s285 + $0x258] sm:$0xff]
      %v390 = vld [vmem:[%s285 + $0x260] sm:$0xff]
      %v391 = vld [vmem:[%s285 + $0x268] sm:$0xff]
      %v392 = vld [vmem:[%s285 + $0x270] sm:$0xff]
      %v393 = vld [vmem:[%s285 + $0x278] sm:$0xff]
      %v394 = vld [vmem:[%s285 + $0x280] sm:$0xff]
      %v395 = vld [vmem:[%s285 + $0x288] sm:$0xff]
      %v396 = vld [vmem:[%s285 + $0x290] sm:$0xff]
      %v397 = vld [vmem:[%s285 + $0x298] sm:$0xff]
      %v398 = vld [vmem:[%s285 + $0x2a0] sm:$0xff]
      %v399 = vld [vmem:[%s285 + $0x2a8] sm:$0xff]
      %v400 = vld [vmem:[%s285 + $0x2b0] sm:$0xff]
      %v401 = vld [vmem:[%s285 + $0x2b8] sm:$0xff]
      %v402 = vld [vmem:[%s285 + $0x2c0] sm:$0xff]
      %v403 = vld [vmem:[%s285 + $0x2c8] sm:$0xff]
      %v404 = vld [vmem:[%s285 + $0x2d0] sm:$0xff]
      %v405 = vld [vmem:[%s285 + $0x2d8] sm:$0xff]
      %v406 = vld [vmem:[%s285 + $0x2e0] sm:$0xff]
      %v407 = vld [vmem:[%s285 + $0x2e8] sm:$0xff]
      %v408 = vld [vmem:[%s285 + $0x2f0] sm:$0xff]
      %v409 = vld [vmem:[%s285 + $0x2f8] sm:$0xff]
      %v410 = vld [vmem:[%s285 + $0x300] sm:$0xff]
      %v411 = vld [vmem:[%s285 + $0x308] sm:$0xff]
      %v412 = vld [vmem:[%s285 + $0x310] sm:$0xff]
      %v413 = vld [vmem:[%s285 + $0x318] sm:$0xff]
      %v414 = vld [vmem:[%s285 + $0x320] sm:$0xff]
      %v415 = vld [vmem:[%s285 + $0x328] sm:$0xff]
      %v416 = vld [vmem:[%s285 + $0x330] sm:$0xff]
      %v417 = vld [vmem:[%s285 + $0x338] sm:$0xff]
      %v418 = vld [vmem:[%s285 + $0x340] sm:$0xff]
      %v419 = vld [vmem:[%s285 + $0x348] sm:$0xff]
      %v420 = vld [vmem:[%s285 + $0x350] sm:$0xff]
      %v421 = vld [vmem:[%s285 + $0x358] sm:$0xff]
      %v422 = vld [vmem:[%s285 + $0x360] sm:$0xff]
      %v423 = vld [vmem:[%s285 + $0x368] sm:$0xff]
      %v424 = vld [vmem:[%s285 + $0x370] sm:$0xff]
      %v425 = vld [vmem:[%s285 + $0x378] sm:$0xff]
      %v426 = vld [vmem:[%s285 + $0x380] sm:$0xff]
      %v427 = vld [vmem:[%s285 + $0x388] sm:$0xff]
      %v428 = vld [vmem:[%s285 + $0x390] sm:$0xff]
      %v429 = vld [vmem:[%s285 + $0x398] sm:$0xff]
      %v430 = vld [vmem:[%s285 + $0x3a0] sm:$0xff]
      %v431 = vld [vmem:[%s285 + $0x3a8] sm:$0xff]
      %v432 = vld [vmem:[%s285 + $0x3b0] sm:$0xff]
      %v433 = vld [vmem:[%s285 + $0x3b8] sm:$0xff]
      %v434 = vld [vmem:[%s285 + $0x3c0] sm:$0xff]
      %v435 = vld [vmem:[%s285 + $0x3c8] sm:$0xff]
      %v436 = vld [vmem:[%s285 + $0x3d0] sm:$0xff]
      %v437 = vld [vmem:[%s285 + $0x3d8] sm:$0xff]
      %v438 = vld [vmem:[%s285 + $0x3e0] sm:$0xff]
      %v439 = vld [vmem:[%s285 + $0x3e8] sm:$0xff]
      %v440 = vld [vmem:[%s285 + $0x3f0] sm:$0xff]
      %v441 = vld [vmem:[%s285 + $0x3f8] sm:$0xff]
      %v442 = vld [vmem:[%s294] sm:$0xf]
      %v443 = vld [vmem:[%s294 + $0x4] sm:$0xf]
      %v444 = vld [vmem:[%s294 + $0x8] sm:$0xf]
      %v445 = vld [vmem:[%s294 + $0xc] sm:$0xf]
      %v446 = vld [vmem:[%s294 + $0x10] sm:$0xf]
      %v447 = vld [vmem:[%s294 + $0x14] sm:$0xf]
      %v448 = vld [vmem:[%s294 + $0x18] sm:$0xf]
      %v449 = vld [vmem:[%s294 + $0x1c] sm:$0xf]
      %v450 = vld [vmem:[%s294 + $0x20] sm:$0xf]
      %v451 = vld [vmem:[%s294 + $0x24] sm:$0xf]
      %v452 = vld [vmem:[%s294 + $0x28] sm:$0xf]
      %v453 = vld [vmem:[%s294 + $0x2c] sm:$0xf]
      %v454 = vld [vmem:[%s294 + $0x30] sm:$0xf]
      %v455 = vld [vmem:[%s294 + $0x34] sm:$0xf]
      %v456 = vld [vmem:[%s294 + $0x38] sm:$0xf]
      %v457 = vld [vmem:[%s294 + $0x3c] sm:$0xf]
      %v458 = vld [vmem:[%s294 + $0x40] sm:$0xf]
      %v459 = vld [vmem:[%s294 + $0x44] sm:$0xf]
      %v460 = vld [vmem:[%s294 + $0x48] sm:$0xf]
      %v461 = vld [vmem:[%s294 + $0x4c] sm:$0xf]
      %v462 = vld [vmem:[%s294 + $0x50] sm:$0xf]
      %v463 = vld [vmem:[%s294 + $0x54] sm:$0xf]
      %v464 = vld [vmem:[%s294 + $0x58] sm:$0xf]
      %v465 = vld [vmem:[%s294 + $0x5c] sm:$0xf]
      %v466 = vld [vmem:[%s294 + $0x60] sm:$0xf]
      %v467 = vld [vmem:[%s294 + $0x64] sm:$0xf]
      %v468 = vld [vmem:[%s294 + $0x68] sm:$0xf]
      %v469 = vld [vmem:[%s294 + $0x6c] sm:$0xf]
      %v470 = vld [vmem:[%s294 + $0x70] sm:$0xf]
      %v471 = vld [vmem:[%s294 + $0x74] sm:$0xf]
      %v472 = vld [vmem:[%s294 + $0x78] sm:$0xf]
      %v473 = vld [vmem:[%s294 + $0x7c] sm:$0xf]
      %v474 = vld [vmem:[%s294 + $0x80] sm:$0xf]
      %v475 = vld [vmem:[%s294 + $0x84] sm:$0xf]
      %v476 = vld [vmem:[%s294 + $0x88] sm:$0xf]
      %v477 = vld [vmem:[%s294 + $0x8c] sm:$0xf]
      %v478 = vld [vmem:[%s294 + $0x90] sm:$0xf]
      %v479 = vld [vmem:[%s294 + $0x94] sm:$0xf]
      %v480 = vld [vmem:[%s294 + $0x98] sm:$0xf]
      %v481 = vld [vmem:[%s294 + $0x9c] sm:$0xf]
      %v482 = vld [vmem:[%s294 + $0xa0] sm:$0xf]
      %v483 = vld [vmem:[%s294 + $0xa4] sm:$0xf]
      %v484 = vld [vmem:[%s294 + $0xa8] sm:$0xf]
      %v485 = vld [vmem:[%s294 + $0xac] sm:$0xf]
      %v486 = vld [vmem:[%s294 + $0xb0] sm:$0xf]
      %v487 = vld [vmem:[%s294 + $0xb4] sm:$0xf]
      %v488 = vld [vmem:[%s294 + $0xb8] sm:$0xf]
      %v489 = vld [vmem:[%s294 + $0xbc] sm:$0xf]
      %v490 = vld [vmem:[%s294 + $0xc0] sm:$0xf]
      %v491 = vld [vmem:[%s294 + $0xc4] sm:$0xf]
      %v492 = vld [vmem:[%s294 + $0xc8] sm:$0xf]
      %v493 = vld [vmem:[%s294 + $0xcc] sm:$0xf]
      %v494 = vld [vmem:[%s294 + $0xd0] sm:$0xf]
      %v495 = vld [vmem:[%s294 + $0xd4] sm:$0xf]
      %v496 = vld [vmem:[%s294 + $0xd8] sm:$0xf]
      %v497 = vld [vmem:[%s294 + $0xdc] sm:$0xf]
      %v498 = vld [vmem:[%s294 + $0xe0] sm:$0xf]
      %v499 = vld [vmem:[%s294 + $0xe4] sm:$0xf]
      %v500 = vld [vmem:[%s294 + $0xe8] sm:$0xf]
      %v501 = vld [vmem:[%s294 + $0xec] sm:$0xf]
      %v502 = vld [vmem:[%s294 + $0xf0] sm:$0xf]
      %v503 = vld [vmem:[%s294 + $0xf4] sm:$0xf]
      %v504 = vld [vmem:[%s294 + $0xf8] sm:$0xf]
      %v505 = vld [vmem:[%s294 + $0xfc] sm:$0xf]
      %v634 = vunpack.c.l.b16 %v314
      %v635 = vunpack.c.h.b16 %v314
      %v636 = vunpack.c.l.b16 %v315
      %v637 = vunpack.c.h.b16 %v315
      %v638 = vunpack.c.l.b16 %v316
      %v639 = vunpack.c.h.b16 %v316
      %v640 = vunpack.c.l.b16 %v317
      %v641 = vunpack.c.h.b16 %v317
      %v642 = vunpack.c.l.b16 %v318
      %v643 = vunpack.c.h.b16 %v318
      %v644 = vunpack.c.l.b16 %v319
      %v645 = vunpack.c.h.b16 %v319
      %v646 = vunpack.c.l.b16 %v320
      %v647 = vunpack.c.h.b16 %v320
      %v648 = vunpack.c.l.b16 %v321
      %v649 = vunpack.c.h.b16 %v321
      %v650 = vunpack.c.l.b16 %v322
      %v651 = vunpack.c.h.b16 %v322
      %v652 = vunpack.c.l.b16 %v323
      %v653 = vunpack.c.h.b16 %v323
      %v654 = vunpack.c.l.b16 %v324
      %v655 = vunpack.c.h.b16 %v324
      %v656 = vunpack.c.l.b16 %v325
      %v657 = vunpack.c.h.b16 %v325
      %v658 = vunpack.c.l.b16 %v326
      %v659 = vunpack.c.h.b16 %v326
      %v660 = vunpack.c.l.b16 %v327
      %v661 = vunpack.c.h.b16 %v327
      %v662 = vunpack.c.l.b16 %v328
      %v663 = vunpack.c.h.b16 %v328
      %v664 = vunpack.c.l.b16 %v329
      %v665 = vunpack.c.h.b16 %v329
      %v666 = vunpack.c.l.b16 %v330
      %v667 = vunpack.c.h.b16 %v330
      %v668 = vunpack.c.l.b16 %v331
      %v669 = vunpack.c.h.b16 %v331
      %v670 = vunpack.c.l.b16 %v332
      %v671 = vunpack.c.h.b16 %v332
      %v672 = vunpack.c.l.b16 %v333
      %v673 = vunpack.c.h.b16 %v333
      %v674 = vunpack.c.l.b16 %v334
      %v675 = vunpack.c.h.b16 %v334
      %v676 = vunpack.c.l.b16 %v335
      %v677 = vunpack.c.h.b16 %v335
      %v678 = vunpack.c.l.b16 %v336
      %v679 = vunpack.c.h.b16 %v336
      %v680 = vunpack.c.l.b16 %v337
      %v681 = vunpack.c.h.b16 %v337
      %v682 = vunpack.c.l.b16 %v338
      %v683 = vunpack.c.h.b16 %v338
      %v684 = vunpack.c.l.b16 %v339
      %v685 = vunpack.c.h.b16 %v339
      %v686 = vunpack.c.l.b16 %v340
      %v687 = vunpack.c.h.b16 %v340
      %v688 = vunpack.c.l.b16 %v341
      %v689 = vunpack.c.h.b16 %v341
      %v690 = vunpack.c.l.b16 %v342
      %v691 = vunpack.c.h.b16 %v342
      %v692 = vunpack.c.l.b16 %v343
      %v693 = vunpack.c.h.b16 %v343
      %v694 = vunpack.c.l.b16 %v344
      %v695 = vunpack.c.h.b16 %v344
      %v696 = vunpack.c.l.b16 %v345
      %v697 = vunpack.c.h.b16 %v345
      %v698 = vunpack.c.l.b16 %v346
      %v699 = vunpack.c.h.b16 %v346
      %v700 = vunpack.c.l.b16 %v347
      %v701 = vunpack.c.h.b16 %v347
      %v702 = vunpack.c.l.b16 %v348
      %v703 = vunpack.c.h.b16 %v348
      %v704 = vunpack.c.l.b16 %v349
      %v705 = vunpack.c.h.b16 %v349
      %v706 = vunpack.c.l.b16 %v350
      %v707 = vunpack.c.h.b16 %v350
      %v708 = vunpack.c.l.b16 %v351
      %v709 = vunpack.c.h.b16 %v351
      %v710 = vunpack.c.l.b16 %v352
      %v711 = vunpack.c.h.b16 %v352
      %v712 = vunpack.c.l.b16 %v353
      %v713 = vunpack.c.h.b16 %v353
      %v714 = vunpack.c.l.b16 %v354
      %v715 = vunpack.c.h.b16 %v354
      %v716 = vunpack.c.l.b16 %v355
      %v717 = vunpack.c.h.b16 %v355
      %v718 = vunpack.c.l.b16 %v356
      %v719 = vunpack.c.h.b16 %v356
      %v720 = vunpack.c.l.b16 %v357
      %v721 = vunpack.c.h.b16 %v357
      %v722 = vunpack.c.l.b16 %v358
      %v723 = vunpack.c.h.b16 %v358
      %v724 = vunpack.c.l.b16 %v359
      %v725 = vunpack.c.h.b16 %v359
      %v726 = vunpack.c.l.b16 %v360
      %v727 = vunpack.c.h.b16 %v360
      %v728 = vunpack.c.l.b16 %v361
      %v729 = vunpack.c.h.b16 %v361
      %v730 = vunpack.c.l.b16 %v362
      %v731 = vunpack.c.h.b16 %v362
      %v732 = vunpack.c.l.b16 %v363
      %v733 = vunpack.c.h.b16 %v363
      %v734 = vunpack.c.l.b16 %v364
      %v735 = vunpack.c.h.b16 %v364
      %v736 = vunpack.c.l.b16 %v365
      %v737 = vunpack.c.h.b16 %v365
      %v738 = vunpack.c.l.b16 %v366
      %v739 = vunpack.c.h.b16 %v366
      %v740 = vunpack.c.l.b16 %v367
      %v741 = vunpack.c.h.b16 %v367
      %v742 = vunpack.c.l.b16 %v368
      %v743 = vunpack.c.h.b16 %v368
      %v744 = vunpack.c.l.b16 %v369
      %v745 = vunpack.c.h.b16 %v369
      %v746 = vunpack.c.l.b16 %v370
      %v747 = vunpack.c.h.b16 %v370
      %v748 = vunpack.c.l.b16 %v371
      %v749 = vunpack.c.h.b16 %v371
      %v750 = vunpack.c.l.b16 %v372
      %v751 = vunpack.c.h.b16 %v372
      %v752 = vunpack.c.l.b16 %v373
      %v753 = vunpack.c.h.b16 %v373
      %v754 = vunpack.c.l.b16 %v374
      %v755 = vunpack.c.h.b16 %v374
      %v756 = vunpack.c.l.b16 %v375
      %v757 = vunpack.c.h.b16 %v375
      %v758 = vunpack.c.l.b16 %v376
      %v759 = vunpack.c.h.b16 %v376
      %v760 = vunpack.c.l.b16 %v377
      %v761 = vunpack.c.h.b16 %v377
      %v762 = vunpack.c.l.b16 %v378
      %v763 = vunpack.c.h.b16 %v378
      %v764 = vunpack.c.l.b16 %v379
      %v765 = vunpack.c.h.b16 %v379
      %v766 = vunpack.c.l.b16 %v380
      %v767 = vunpack.c.h.b16 %v380
      %v768 = vunpack.c.l.b16 %v381
      %v769 = vunpack.c.h.b16 %v381
      %v770 = vunpack.c.l.b16 %v382
      %v771 = vunpack.c.h.b16 %v382
      %v772 = vunpack.c.l.b16 %v383
      %v773 = vunpack.c.h.b16 %v383
      %v774 = vunpack.c.l.b16 %v384
      %v775 = vunpack.c.h.b16 %v384
      %v776 = vunpack.c.l.b16 %v385
      %v777 = vunpack.c.h.b16 %v385
      %v778 = vunpack.c.l.b16 %v386
      %v779 = vunpack.c.h.b16 %v386
      %v780 = vunpack.c.l.b16 %v387
      %v781 = vunpack.c.h.b16 %v387
      %v782 = vunpack.c.l.b16 %v388
      %v783 = vunpack.c.h.b16 %v388
      %v784 = vunpack.c.l.b16 %v389
      %v785 = vunpack.c.h.b16 %v389
      %v786 = vunpack.c.l.b16 %v390
      %v787 = vunpack.c.h.b16 %v390
      %v788 = vunpack.c.l.b16 %v391
      %v789 = vunpack.c.h.b16 %v391
      %v790 = vunpack.c.l.b16 %v392
      %v791 = vunpack.c.h.b16 %v392
      %v792 = vunpack.c.l.b16 %v393
      %v793 = vunpack.c.h.b16 %v393
      %v794 = vunpack.c.l.b16 %v394
      %v795 = vunpack.c.h.b16 %v394
      %v796 = vunpack.c.l.b16 %v395
      %v797 = vunpack.c.h.b16 %v395
      %v798 = vunpack.c.l.b16 %v396
      %v799 = vunpack.c.h.b16 %v396
      %v800 = vunpack.c.l.b16 %v397
      %v801 = vunpack.c.h.b16 %v397
      %v802 = vunpack.c.l.b16 %v398
      %v803 = vunpack.c.h.b16 %v398
      %v804 = vunpack.c.l.b16 %v399
      %v805 = vunpack.c.h.b16 %v399
      %v806 = vunpack.c.l.b16 %v400
      %v807 = vunpack.c.h.b16 %v400
      %v808 = vunpack.c.l.b16 %v401
      %v809 = vunpack.c.h.b16 %v401
      %v810 = vunpack.c.l.b16 %v402
      %v811 = vunpack.c.h.b16 %v402
      %v812 = vunpack.c.l.b16 %v403
      %v813 = vunpack.c.h.b16 %v403
      %v814 = vunpack.c.l.b16 %v404
      %v815 = vunpack.c.h.b16 %v404
      %v816 = vunpack.c.l.b16 %v405
      %v817 = vunpack.c.h.b16 %v405
      %v818 = vunpack.c.l.b16 %v406
      %v819 = vunpack.c.h.b16 %v406
      %v820 = vunpack.c.l.b16 %v407
      %v821 = vunpack.c.h.b16 %v407
      %v822 = vunpack.c.l.b16 %v408
      %v823 = vunpack.c.h.b16 %v408
      %v824 = vunpack.c.l.b16 %v409
      %v825 = vunpack.c.h.b16 %v409
      %v826 = vunpack.c.l.b16 %v410
      %v827 = vunpack.c.h.b16 %v410
      %v828 = vunpack.c.l.b16 %v411
      %v829 = vunpack.c.h.b16 %v411
      %v830 = vunpack.c.l.b16 %v412
      %v831 = vunpack.c.h.b16 %v412
      %v832 = vunpack.c.l.b16 %v413
      %v833 = vunpack.c.h.b16 %v413
      %v834 = vunpack.c.l.b16 %v414
      %v835 = vunpack.c.h.b16 %v414
      %v836 = vunpack.c.l.b16 %v415
      %v837 = vunpack.c.h.b16 %v415
      %v838 = vunpack.c.l.b16 %v416
      %v839 = vunpack.c.h.b16 %v416
      %v840 = vunpack.c.l.b16 %v417
      %v841 = vunpack.c.h.b16 %v417
      %v842 = vunpack.c.l.b16 %v418
      %v843 = vunpack.c.h.b16 %v418
      %v844 = vunpack.c.l.b16 %v419
      %v845 = vunpack.c.h.b16 %v419
      %v846 = vunpack.c.l.b16 %v420
      %v847 = vunpack.c.h.b16 %v420
      %v848 = vunpack.c.l.b16 %v421
      %v849 = vunpack.c.h.b16 %v421
      %v850 = vunpack.c.l.b16 %v422
      %v851 = vunpack.c.h.b16 %v422
      %v852 = vunpack.c.l.b16 %v423
      %v853 = vunpack.c.h.b16 %v423
      %v854 = vunpack.c.l.b16 %v424
      %v855 = vunpack.c.h.b16 %v424
      %v856 = vunpack.c.l.b16 %v425
      %v857 = vunpack.c.h.b16 %v425
      %v858 = vunpack.c.l.b16 %v426
      %v859 = vunpack.c.h.b16 %v426
      %v860 = vunpack.c.l.b16 %v427
      %v861 = vunpack.c.h.b16 %v427
      %v862 = vunpack.c.l.b16 %v428
      %v863 = vunpack.c.h.b16 %v428
      %v864 = vunpack.c.l.b16 %v429
      %v865 = vunpack.c.h.b16 %v429
      %v866 = vunpack.c.l.b16 %v430
      %v867 = vunpack.c.h.b16 %v430
      %v868 = vunpack.c.l.b16 %v431
      %v869 = vunpack.c.h.b16 %v431
      %v870 = vunpack.c.l.b16 %v432
      %v871 = vunpack.c.h.b16 %v432
      %v872 = vunpack.c.l.b16 %v433
      %v873 = vunpack.c.h.b16 %v433
      %v874 = vunpack.c.l.b16 %v434
      %v875 = vunpack.c.h.b16 %v434
      %v876 = vunpack.c.l.b16 %v435
      %v877 = vunpack.c.h.b16 %v435
      %v878 = vunpack.c.l.b16 %v436
      %v879 = vunpack.c.h.b16 %v436
      %v880 = vunpack.c.l.b16 %v437
      %v881 = vunpack.c.h.b16 %v437
      %v882 = vunpack.c.l.b16 %v438
      %v883 = vunpack.c.h.b16 %v438
      %v884 = vunpack.c.l.b16 %v439
      %v885 = vunpack.c.h.b16 %v439
      %v886 = vunpack.c.l.b16 %v440
      %v887 = vunpack.c.h.b16 %v440
      %v888 = vunpack.c.l.b16 %v441
      %v889 = vunpack.c.h.b16 %v441
      %v890 = vpack.c.b16 %v638, %v634
      %v891 = vpack.c.b16 %v639, %v635
      %v892 = vpack.c.b16 %v640, %v636
      %v893 = vpack.c.b16 %v641, %v637
      %v894 = vpack.c.b16 %v646, %v642
      %v895 = vpack.c.b16 %v647, %v643
      %v896 = vpack.c.b16 %v648, %v644
      %v897 = vpack.c.b16 %v649, %v645
      %v898 = vpack.c.b16 %v654, %v650
      %v899 = vpack.c.b16 %v655, %v651
      %v900 = vpack.c.b16 %v656, %v652
      %v901 = vpack.c.b16 %v657, %v653
      %v902 = vpack.c.b16 %v662, %v658
      %v903 = vpack.c.b16 %v663, %v659
      %v904 = vpack.c.b16 %v664, %v660
      %v905 = vpack.c.b16 %v665, %v661
      %v906 = vpack.c.b16 %v670, %v666
      %v907 = vpack.c.b16 %v671, %v667
      %v908 = vpack.c.b16 %v672, %v668
      %v909 = vpack.c.b16 %v673, %v669
      %v910 = vpack.c.b16 %v678, %v674
      %v911 = vpack.c.b16 %v679, %v675
      %v912 = vpack.c.b16 %v680, %v676
      %v913 = vpack.c.b16 %v681, %v677
      %v914 = vpack.c.b16 %v686, %v682
      %v915 = vpack.c.b16 %v687, %v683
      %v916 = vpack.c.b16 %v688, %v684
      %v917 = vpack.c.b16 %v689, %v685
      %v918 = vpack.c.b16 %v694, %v690
      %v919 = vpack.c.b16 %v695, %v691
      %v920 = vpack.c.b16 %v696, %v692
      %v921 = vpack.c.b16 %v697, %v693
      %v922 = vpack.c.b16 %v702, %v698
      %v923 = vpack.c.b16 %v703, %v699
      %v924 = vpack.c.b16 %v704, %v700
      %v925 = vpack.c.b16 %v705, %v701
      %v926 = vpack.c.b16 %v710, %v706
      %v927 = vpack.c.b16 %v711, %v707
      %v928 = vpack.c.b16 %v712, %v708
      %v929 = vpack.c.b16 %v713, %v709
      %v930 = vpack.c.b16 %v718, %v714
      %v931 = vpack.c.b16 %v719, %v715
      %v932 = vpack.c.b16 %v720, %v716
      %v933 = vpack.c.b16 %v721, %v717
      %v934 = vpack.c.b16 %v726, %v722
      %v935 = vpack.c.b16 %v727, %v723
      %v936 = vpack.c.b16 %v728, %v724
      %v937 = vpack.c.b16 %v729, %v725
      %v938 = vpack.c.b16 %v734, %v730
      %v939 = vpack.c.b16 %v735, %v731
      %v940 = vpack.c.b16 %v736, %v732
      %v941 = vpack.c.b16 %v737, %v733
      %v942 = vpack.c.b16 %v742, %v738
      %v943 = vpack.c.b16 %v743, %v739
      %v944 = vpack.c.b16 %v744, %v740
      %v945 = vpack.c.b16 %v745, %v741
      %v946 = vpack.c.b16 %v750, %v746
      %v947 = vpack.c.b16 %v751, %v747
      %v948 = vpack.c.b16 %v752, %v748
      %v949 = vpack.c.b16 %v753, %v749
      %v950 = vpack.c.b16 %v758, %v754
      %v951 = vpack.c.b16 %v759, %v755
      %v952 = vpack.c.b16 %v760, %v756
      %v953 = vpack.c.b16 %v761, %v757
      %v954 = vpack.c.b16 %v766, %v762
      %v955 = vpack.c.b16 %v767, %v763
      %v956 = vpack.c.b16 %v768, %v764
      %v957 = vpack.c.b16 %v769, %v765
      %v958 = vpack.c.b16 %v774, %v770
      %v959 = vpack.c.b16 %v775, %v771
      %v960 = vpack.c.b16 %v776, %v772
      %v961 = vpack.c.b16 %v777, %v773
      %v962 = vpack.c.b16 %v782, %v778
      %v963 = vpack.c.b16 %v783, %v779
      %v964 = vpack.c.b16 %v784, %v780
      %v965 = vpack.c.b16 %v785, %v781
      %v966 = vpack.c.b16 %v790, %v786
      %v967 = vpack.c.b16 %v791, %v787
      %v968 = vpack.c.b16 %v792, %v788
      %v969 = vpack.c.b16 %v793, %v789
      %v970 = vpack.c.b16 %v798, %v794
      %v971 = vpack.c.b16 %v799, %v795
      %v972 = vpack.c.b16 %v800, %v796
      %v973 = vpack.c.b16 %v801, %v797
      %v974 = vpack.c.b16 %v806, %v802
      %v975 = vpack.c.b16 %v807, %v803
      %v976 = vpack.c.b16 %v808, %v804
      %v977 = vpack.c.b16 %v809, %v805
      %v978 = vpack.c.b16 %v814, %v810
      %v979 = vpack.c.b16 %v815, %v811
      %v980 = vpack.c.b16 %v816, %v812
      %v981 = vpack.c.b16 %v817, %v813
      %v982 = vpack.c.b16 %v822, %v818
      %v983 = vpack.c.b16 %v823, %v819
      %v984 = vpack.c.b16 %v824, %v820
      %v985 = vpack.c.b16 %v825, %v821
      %v986 = vpack.c.b16 %v830, %v826
      %v987 = vpack.c.b16 %v831, %v827
      %v988 = vpack.c.b16 %v832, %v828
      %v989 = vpack.c.b16 %v833, %v829
      %v990 = vpack.c.b16 %v838, %v834
      %v991 = vpack.c.b16 %v839, %v835
      %v992 = vpack.c.b16 %v840, %v836
      %v993 = vpack.c.b16 %v841, %v837
      %v994 = vpack.c.b16 %v846, %v842
      %v995 = vpack.c.b16 %v847, %v843
      %v996 = vpack.c.b16 %v848, %v844
      %v997 = vpack.c.b16 %v849, %v845
      %v998 = vpack.c.b16 %v854, %v850
      %v999 = vpack.c.b16 %v855, %v851
      %v1000 = vpack.c.b16 %v856, %v852
      %v1001 = vpack.c.b16 %v857, %v853
      %v1002 = vpack.c.b16 %v862, %v858
      %v1003 = vpack.c.b16 %v863, %v859
      %v1004 = vpack.c.b16 %v864, %v860
      %v1005 = vpack.c.b16 %v865, %v861
      %v1006 = vpack.c.b16 %v870, %v866
      %v1007 = vpack.c.b16 %v871, %v867
      %v1008 = vpack.c.b16 %v872, %v868
      %v1009 = vpack.c.b16 %v873, %v869
      %v1010 = vpack.c.b16 %v878, %v874
      %v1011 = vpack.c.b16 %v879, %v875
      %v1012 = vpack.c.b16 %v880, %v876
      %v1013 = vpack.c.b16 %v881, %v877
      %v1014 = vpack.c.b16 %v886, %v882
      %v1015 = vpack.c.b16 %v887, %v883
      %v1016 = vpack.c.b16 %v888, %v884
      %v1017 = vpack.c.b16 %v889, %v885
      %v1210 = vunpack.c.l.b16 %v442
      %v1211 = vunpack.c.l.b16 %v443
      %v1212 = vunpack.c.l.b16 %v444
      %v1213 = vunpack.c.l.b16 %v445
      %v1214 = vunpack.c.l.b16 %v446
      %v1215 = vunpack.c.l.b16 %v447
      %v1216 = vunpack.c.l.b16 %v448
      %v1217 = vunpack.c.l.b16 %v449
      %v1218 = vunpack.c.l.b16 %v450
      %v1219 = vunpack.c.l.b16 %v451
      %v1220 = vunpack.c.l.b16 %v452
      %v1221 = vunpack.c.l.b16 %v453
      %v1222 = vunpack.c.l.b16 %v454
      %v1223 = vunpack.c.l.b16 %v455
      %v1224 = vunpack.c.l.b16 %v456
      %v1225 = vunpack.c.l.b16 %v457
      %v1226 = vunpack.c.l.b16 %v458
      %v1227 = vunpack.c.l.b16 %v459
      %v1228 = vunpack.c.l.b16 %v460
      %v1229 = vunpack.c.l.b16 %v461
      %v1230 = vunpack.c.l.b16 %v462
      %v1231 = vunpack.c.l.b16 %v463
      %v1232 = vunpack.c.l.b16 %v464
      %v1233 = vunpack.c.l.b16 %v465
      %v1234 = vunpack.c.l.b16 %v466
      %v1235 = vunpack.c.l.b16 %v467
      %v1236 = vunpack.c.l.b16 %v468
      %v1237 = vunpack.c.l.b16 %v469
      %v1238 = vunpack.c.l.b16 %v470
      %v1239 = vunpack.c.l.b16 %v471
      %v1240 = vunpack.c.l.b16 %v472
      %v1241 = vunpack.c.l.b16 %v473
      %v1242 = vunpack.c.l.b16 %v474
      %v1243 = vunpack.c.l.b16 %v475
      %v1244 = vunpack.c.l.b16 %v476
      %v1245 = vunpack.c.l.b16 %v477
      %v1246 = vunpack.c.l.b16 %v478
      %v1247 = vunpack.c.l.b16 %v479
      %v1248 = vunpack.c.l.b16 %v480
      %v1249 = vunpack.c.l.b16 %v481
      %v1250 = vunpack.c.l.b16 %v482
      %v1251 = vunpack.c.l.b16 %v483
      %v1252 = vunpack.c.l.b16 %v484
      %v1253 = vunpack.c.l.b16 %v485
      %v1254 = vunpack.c.l.b16 %v486
      %v1255 = vunpack.c.l.b16 %v487
      %v1256 = vunpack.c.l.b16 %v488
      %v1257 = vunpack.c.l.b16 %v489
      %v1258 = vunpack.c.l.b16 %v490
      %v1259 = vunpack.c.l.b16 %v491
      %v1260 = vunpack.c.l.b16 %v492
      %v1261 = vunpack.c.l.b16 %v493
      %v1262 = vunpack.c.l.b16 %v494
      %v1263 = vunpack.c.l.b16 %v495
      %v1264 = vunpack.c.l.b16 %v496
      %v1265 = vunpack.c.l.b16 %v497
      %v1266 = vunpack.c.l.b16 %v498
      %v1267 = vunpack.c.l.b16 %v499
      %v1268 = vunpack.c.l.b16 %v500
      %v1269 = vunpack.c.l.b16 %v501
      %v1270 = vunpack.c.l.b16 %v502
      %v1271 = vunpack.c.l.b16 %v503
      %v1272 = vunpack.c.l.b16 %v504
      %v1273 = vunpack.c.l.b16 %v505
      %v1274 = vpack.c.b16 %v1211, %v1210
      %v1275 = vpack.c.b16 %v1213, %v1212
      %v1276 = vpack.c.b16 %v1215, %v1214
      %v1277 = vpack.c.b16 %v1217, %v1216
      %v1278 = vpack.c.b16 %v1219, %v1218
      %v1279 = vpack.c.b16 %v1221, %v1220
      %v1280 = vpack.c.b16 %v1223, %v1222
      %v1281 = vpack.c.b16 %v1225, %v1224
      %v1282 = vpack.c.b16 %v1227, %v1226
      %v1283 = vpack.c.b16 %v1229, %v1228
      %v1284 = vpack.c.b16 %v1231, %v1230
      %v1285 = vpack.c.b16 %v1233, %v1232
      %v1286 = vpack.c.b16 %v1235, %v1234
      %v1287 = vpack.c.b16 %v1237, %v1236
      %v1288 = vpack.c.b16 %v1239, %v1238
      %v1289 = vpack.c.b16 %v1241, %v1240
      %v1290 = vpack.c.b16 %v1243, %v1242
      %v1291 = vpack.c.b16 %v1245, %v1244
      %v1292 = vpack.c.b16 %v1247, %v1246
      %v1293 = vpack.c.b16 %v1249, %v1248
      %v1294 = vpack.c.b16 %v1251, %v1250
      %v1295 = vpack.c.b16 %v1253, %v1252
      %v1296 = vpack.c.b16 %v1255, %v1254
      %v1297 = vpack.c.b16 %v1257, %v1256
      %v1298 = vpack.c.b16 %v1259, %v1258
      %v1299 = vpack.c.b16 %v1261, %v1260
      %v1300 = vpack.c.b16 %v1263, %v1262
      %v1301 = vpack.c.b16 %v1265, %v1264
      %v1302 = vpack.c.b16 %v1267, %v1266
      %v1303 = vpack.c.b16 %v1269, %v1268
      %v1304 = vpack.c.b16 %v1271, %v1270
      %v1305 = vpack.c.b16 %v1273, %v1272
      %1338 = vmatpush.bf16.msra.mxu0 %v1281
      %1339 = vmatpush.bf16.msra.mxu0 %v1280
      %1340 = vmatpush.bf16.msra.mxu0 %v1279
      %1341 = vmatpush.bf16.msra.mxu0 %v1278
      %1342 = vmatpush.bf16.msra.mxu0 %v1277
      %1343 = vmatpush.bf16.msra.mxu0 %v1276
      %1344 = vmatpush.bf16.msra.mxu0 %v1275
      %1345 = vmatpush.bf16.msra.mxu0 %v1274
      %1346 = vmatmul.bf16.gmra.mxu0 %v890
      %v1347 = vpop.f32.mrf.mxu0
      %v1348 = vadd.f32 0.0, %v1347
      %v1349 = vpop.f32.mrf.mxu0
      %v1350 = vadd.f32 0.0, %v1349
      %1351 = vmatmul.bf16.gmra.mxu0 %v894
      %v1352 = vpop.f32.mrf.mxu0
      %v1353 = vadd.f32 0.0, %v1352
      %v1354 = vpop.f32.mrf.mxu0
      %v1355 = vadd.f32 0.0, %v1354
      %1356 = vmatmul.bf16.gmra.mxu0 %v898
      %v1357 = vpop.f32.mrf.mxu0
      %v1358 = vadd.f32 0.0, %v1357
      %v1359 = vpop.f32.mrf.mxu0
      %v1360 = vadd.f32 0.0, %v1359
      %1361 = vmatmul.bf16.gmra.mxu0 %v902
      %v1362 = vpop.f32.mrf.mxu0
      %v1363 = vadd.f32 0.0, %v1362
      %v1364 = vpop.f32.mrf.mxu0
      %v1365 = vadd.f32 0.0, %v1364
      %1366 = vmatmul.bf16.gmra.mxu0 %v906
      %v1367 = vpop.f32.mrf.mxu0
      %v1368 = vadd.f32 0.0, %v1367
      %v1369 = vpop.f32.mrf.mxu0
      %v1370 = vadd.f32 0.0, %v1369
      %1371 = vmatmul.bf16.gmra.mxu0 %v910
      %v1372 = vpop.f32.mrf.mxu0
      %v1373 = vadd.f32 0.0, %v1372
      %v1374 = vpop.f32.mrf.mxu0
      %v1375 = vadd.f32 0.0, %v1374
      %1376 = vmatmul.bf16.gmra.mxu0 %v914
      %v1377 = vpop.f32.mrf.mxu0
      %v1378 = vadd.f32 0.0, %v1377
      %v1379 = vpop.f32.mrf.mxu0
      %v1380 = vadd.f32 0.0, %v1379
      %1381 = vmatmul.bf16.gmra.mxu0 %v918
      %v1382 = vpop.f32.mrf.mxu0
      %v1383 = vadd.f32 0.0, %v1382
      %v1384 = vpop.f32.mrf.mxu0
      %v1385 = vadd.f32 0.0, %v1384
      %1386 = vmatmul.bf16.gmra.mxu0 %v922
      %v1387 = vpop.f32.mrf.mxu0
      %v1388 = vadd.f32 0.0, %v1387
      %v1389 = vpop.f32.mrf.mxu0
      %v1390 = vadd.f32 0.0, %v1389
      %1391 = vmatmul.bf16.gmra.mxu0 %v926
      %v1392 = vpop.f32.mrf.mxu0
      %v1393 = vadd.f32 0.0, %v1392
      %v1394 = vpop.f32.mrf.mxu0
      %v1395 = vadd.f32 0.0, %v1394
      %1396 = vmatmul.bf16.gmra.mxu0 %v930
      %v1397 = vpop.f32.mrf.mxu0
      %v1398 = vadd.f32 0.0, %v1397
      %v1399 = vpop.f32.mrf.mxu0
      %v1400 = vadd.f32 0.0, %v1399
      %1401 = vmatmul.bf16.gmra.mxu0 %v934
      %v1402 = vpop.f32.mrf.mxu0
      %v1403 = vadd.f32 0.0, %v1402
      %v1404 = vpop.f32.mrf.mxu0
      %v1405 = vadd.f32 0.0, %v1404
      %1406 = vmatmul.bf16.gmra.mxu0 %v938
      %v1407 = vpop.f32.mrf.mxu0
      %v1408 = vadd.f32 0.0, %v1407
      %v1409 = vpop.f32.mrf.mxu0
      %v1410 = vadd.f32 0.0, %v1409
      %1411 = vmatmul.bf16.gmra.mxu0 %v942
      %v1412 = vpop.f32.mrf.mxu0
      %v1413 = vadd.f32 0.0, %v1412
      %v1414 = vpop.f32.mrf.mxu0
      %v1415 = vadd.f32 0.0, %v1414
      %1416 = vmatmul.bf16.gmra.mxu0 %v946
      %v1417 = vpop.f32.mrf.mxu0
      %v1418 = vadd.f32 0.0, %v1417
      %v1419 = vpop.f32.mrf.mxu0
      %v1420 = vadd.f32 0.0, %v1419
      %1421 = vmatmul.bf16.gmra.mxu0 %v950
      %v1422 = vpop.f32.mrf.mxu0
      %v1423 = vadd.f32 0.0, %v1422
      %v1424 = vpop.f32.mrf.mxu0
      %v1425 = vadd.f32 0.0, %v1424
      %1426 = vmatmul.bf16.gmra.mxu0 %v954
      %v1427 = vpop.f32.mrf.mxu0
      %v1428 = vadd.f32 0.0, %v1427
      %v1429 = vpop.f32.mrf.mxu0
      %v1430 = vadd.f32 0.0, %v1429
      %1431 = vmatmul.bf16.gmra.mxu0 %v958
      %v1432 = vpop.f32.mrf.mxu0
      %v1433 = vadd.f32 0.0, %v1432
      %v1434 = vpop.f32.mrf.mxu0
      %v1435 = vadd.f32 0.0, %v1434
      %1436 = vmatmul.bf16.gmra.mxu0 %v962
      %v1437 = vpop.f32.mrf.mxu0
      %v1438 = vadd.f32 0.0, %v1437
      %v1439 = vpop.f32.mrf.mxu0
      %v1440 = vadd.f32 0.0, %v1439
      %1441 = vmatmul.bf16.gmra.mxu0 %v966
      %v1442 = vpop.f32.mrf.mxu0
      %v1443 = vadd.f32 0.0, %v1442
      %v1444 = vpop.f32.mrf.mxu0
      %v1445 = vadd.f32 0.0, %v1444
      %1446 = vmatmul.bf16.gmra.mxu0 %v970
      %v1447 = vpop.f32.mrf.mxu0
      %v1448 = vadd.f32 0.0, %v1447
      %v1449 = vpop.f32.mrf.mxu0
      %v1450 = vadd.f32 0.0, %v1449
      %1451 = vmatmul.bf16.gmra.mxu0 %v974
      %v1452 = vpop.f32.mrf.mxu0
      %v1453 = vadd.f32 0.0, %v1452
      %v1454 = vpop.f32.mrf.mxu0
      %v1455 = vadd.f32 0.0, %v1454
      %1456 = vmatmul.bf16.gmra.mxu0 %v978
      %v1457 = vpop.f32.mrf.mxu0
      %v1458 = vadd.f32 0.0, %v1457
      %v1459 = vpop.f32.mrf.mxu0
      %v1460 = vadd.f32 0.0, %v1459
      %1461 = vmatmul.bf16.gmra.mxu0 %v982
      %v1462 = vpop.f32.mrf.mxu0
      %v1463 = vadd.f32 0.0, %v1462
      %v1464 = vpop.f32.mrf.mxu0
      %v1465 = vadd.f32 0.0, %v1464
      %1466 = vmatmul.bf16.gmra.mxu0 %v986
      %v1467 = vpop.f32.mrf.mxu0
      %v1468 = vadd.f32 0.0, %v1467
      %v1469 = vpop.f32.mrf.mxu0
      %v1470 = vadd.f32 0.0, %v1469
      %1471 = vmatmul.bf16.gmra.mxu0 %v990
      %v1472 = vpop.f32.mrf.mxu0
      %v1473 = vadd.f32 0.0, %v1472
      %v1474 = vpop.f32.mrf.mxu0
      %v1475 = vadd.f32 0.0, %v1474
      %1476 = vmatmul.bf16.gmra.mxu0 %v994
      %v1477 = vpop.f32.mrf.mxu0
      %v1478 = vadd.f32 0.0, %v1477
      %v1479 = vpop.f32.mrf.mxu0
      %v1480 = vadd.f32 0.0, %v1479
      %1481 = vmatmul.bf16.gmra.mxu0 %v998
      %v1482 = vpop.f32.mrf.mxu0
      %v1483 = vadd.f32 0.0, %v1482
      %v1484 = vpop.f32.mrf.mxu0
      %v1485 = vadd.f32 0.0, %v1484
      %1486 = vmatmul.bf16.gmra.mxu0 %v1002
      %v1487 = vpop.f32.mrf.mxu0
      %v1488 = vadd.f32 0.0, %v1487
      %v1489 = vpop.f32.mrf.mxu0
      %v1490 = vadd.f32 0.0, %v1489
      %1491 = vmatmul.bf16.gmra.mxu0 %v1006
      %v1492 = vpop.f32.mrf.mxu0
      %v1493 = vadd.f32 0.0, %v1492
      %v1494 = vpop.f32.mrf.mxu0
      %v1495 = vadd.f32 0.0, %v1494
      %1496 = vmatmul.bf16.gmra.mxu0 %v1010
      %v1497 = vpop.f32.mrf.mxu0
      %v1498 = vadd.f32 0.0, %v1497
      %v1499 = vpop.f32.mrf.mxu0
      %v1500 = vadd.f32 0.0, %v1499
      %1501 = vmatmul.bf16.gmra.mxu0 %v1014
      %v1502 = vpop.f32.mrf.mxu0
      %v1503 = vadd.f32 0.0, %v1502
      %v1504 = vpop.f32.mrf.mxu0
      %v1505 = vadd.f32 0.0, %v1504
      %1506 = vdwg.mxu0
      %1507 = vmatpush.bf16.msra.mxu0 %v1289
      %1508 = vmatpush.bf16.msra.mxu0 %v1288
      %1509 = vmatpush.bf16.msra.mxu0 %v1287
      %1510 = vmatpush.bf16.msra.mxu0 %v1286
      %1511 = vmatpush.bf16.msra.mxu0 %v1285
      %1512 = vmatpush.bf16.msra.mxu0 %v1284
      %1513 = vmatpush.bf16.msra.mxu0 %v1283
      %1514 = vmatpush.bf16.msra.mxu0 %v1282
      %1515 = vmatmul.bf16.gmra.mxu0 %v891
      %v1516 = vpop.f32.mrf.mxu0
      %v1517 = vadd.f32 %v1348, %v1516
      %v1518 = vpop.f32.mrf.mxu0
      %v1519 = vadd.f32 %v1350, %v1518
      %1520 = vmatmul.bf16.gmra.mxu0 %v895
      %v1521 = vpop.f32.mrf.mxu0
      %v1522 = vadd.f32 %v1353, %v1521
      %v1523 = vpop.f32.mrf.mxu0
      %v1524 = vadd.f32 %v1355, %v1523
      %1525 = vmatmul.bf16.gmra.mxu0 %v899
      %v1526 = vpop.f32.mrf.mxu0
      %v1527 = vadd.f32 %v1358, %v1526
      %v1528 = vpop.f32.mrf.mxu0
      %v1529 = vadd.f32 %v1360, %v1528
      %1530 = vmatmul.bf16.gmra.mxu0 %v903
      %v1531 = vpop.f32.mrf.mxu0
      %v1532 = vadd.f32 %v1363, %v1531
      %v1533 = vpop.f32.mrf.mxu0
      %v1534 = vadd.f32 %v1365, %v1533
      %1535 = vmatmul.bf16.gmra.mxu0 %v907
      %v1536 = vpop.f32.mrf.mxu0
      %v1537 = vadd.f32 %v1368, %v1536
      %v1538 = vpop.f32.mrf.mxu0
      %v1539 = vadd.f32 %v1370, %v1538
      %1540 = vmatmul.bf16.gmra.mxu0 %v911
      %v1541 = vpop.f32.mrf.mxu0
      %v1542 = vadd.f32 %v1373, %v1541
      %v1543 = vpop.f32.mrf.mxu0
      %v1544 = vadd.f32 %v1375, %v1543
      %1545 = vmatmul.bf16.gmra.mxu0 %v915
      %v1546 = vpop.f32.mrf.mxu0
      %v1547 = vadd.f32 %v1378, %v1546
      %v1548 = vpop.f32.mrf.mxu0
      %v1549 = vadd.f32 %v1380, %v1548
      %1550 = vmatmul.bf16.gmra.mxu0 %v919
      %v1551 = vpop.f32.mrf.mxu0
      %v1552 = vadd.f32 %v1383, %v1551
      %v1553 = vpop.f32.mrf.mxu0
      %v1554 = vadd.f32 %v1385, %v1553
      %1555 = vmatmul.bf16.gmra.mxu0 %v923
      %v1556 = vpop.f32.mrf.mxu0
      %v1557 = vadd.f32 %v1388, %v1556
      %v1558 = vpop.f32.mrf.mxu0
      %v1559 = vadd.f32 %v1390, %v1558
      %1560 = vmatmul.bf16.gmra.mxu0 %v927
      %v1561 = vpop.f32.mrf.mxu0
      %v1562 = vadd.f32 %v1393, %v1561
      %v1563 = vpop.f32.mrf.mxu0
      %v1564 = vadd.f32 %v1395, %v1563
      %1565 = vmatmul.bf16.gmra.mxu0 %v931
      %v1566 = vpop.f32.mrf.mxu0
      %v1567 = vadd.f32 %v1398, %v1566
      %v1568 = vpop.f32.mrf.mxu0
      %v1569 = vadd.f32 %v1400, %v1568
      %1570 = vmatmul.bf16.gmra.mxu0 %v935
      %v1571 = vpop.f32.mrf.mxu0
      %v1572 = vadd.f32 %v1403, %v1571
      %v1573 = vpop.f32.mrf.mxu0
      %v1574 = vadd.f32 %v1405, %v1573
      %1575 = vmatmul.bf16.gmra.mxu0 %v939
      %v1576 = vpop.f32.mrf.mxu0
      %v1577 = vadd.f32 %v1408, %v1576
      %v1578 = vpop.f32.mrf.mxu0
      %v1579 = vadd.f32 %v1410, %v1578
      %1580 = vmatmul.bf16.gmra.mxu0 %v943
      %v1581 = vpop.f32.mrf.mxu0
      %v1582 = vadd.f32 %v1413, %v1581
      %v1583 = vpop.f32.mrf.mxu0
      %v1584 = vadd.f32 %v1415, %v1583
      %1585 = vmatmul.bf16.gmra.mxu0 %v947
      %v1586 = vpop.f32.mrf.mxu0
      %v1587 = vadd.f32 %v1418, %v1586
      %v1588 = vpop.f32.mrf.mxu0
      %v1589 = vadd.f32 %v1420, %v1588
      %1590 = vmatmul.bf16.gmra.mxu0 %v951
      %v1591 = vpop.f32.mrf.mxu0
      %v1592 = vadd.f32 %v1423, %v1591
      %v1593 = vpop.f32.mrf.mxu0
      %v1594 = vadd.f32 %v1425, %v1593
      %1595 = vmatmul.bf16.gmra.mxu0 %v955
      %v1596 = vpop.f32.mrf.mxu0
      %v1597 = vadd.f32 %v1428, %v1596
      %v1598 = vpop.f32.mrf.mxu0
      %v1599 = vadd.f32 %v1430, %v1598
      %1600 = vmatmul.bf16.gmra.mxu0 %v959
      %v1601 = vpop.f32.mrf.mxu0
      %v1602 = vadd.f32 %v1433, %v1601
      %v1603 = vpop.f32.mrf.mxu0
      %v1604 = vadd.f32 %v1435, %v1603
      %1605 = vmatmul.bf16.gmra.mxu0 %v963
      %v1606 = vpop.f32.mrf.mxu0
      %v1607 = vadd.f32 %v1438, %v1606
      %v1608 = vpop.f32.mrf.mxu0
      %v1609 = vadd.f32 %v1440, %v1608
      %1610 = vmatmul.bf16.gmra.mxu0 %v967
      %v1611 = vpop.f32.mrf.mxu0
      %v1612 = vadd.f32 %v1443, %v1611
      %v1613 = vpop.f32.mrf.mxu0
      %v1614 = vadd.f32 %v1445, %v1613
      %1615 = vmatmul.bf16.gmra.mxu0 %v971
      %v1616 = vpop.f32.mrf.mxu0
      %v1617 = vadd.f32 %v1448, %v1616
      %v1618 = vpop.f32.mrf.mxu0
      %v1619 = vadd.f32 %v1450, %v1618
      %1620 = vmatmul.bf16.gmra.mxu0 %v975
      %v1621 = vpop.f32.mrf.mxu0
      %v1622 = vadd.f32 %v1453, %v1621
      %v1623 = vpop.f32.mrf.mxu0
      %v1624 = vadd.f32 %v1455, %v1623
      %1625 = vmatmul.bf16.gmra.mxu0 %v979
      %v1626 = vpop.f32.mrf.mxu0
      %v1627 = vadd.f32 %v1458, %v1626
      %v1628 = vpop.f32.mrf.mxu0
      %v1629 = vadd.f32 %v1460, %v1628
      %1630 = vmatmul.bf16.gmra.mxu0 %v983
      %v1631 = vpop.f32.mrf.mxu0
      %v1632 = vadd.f32 %v1463, %v1631
      %v1633 = vpop.f32.mrf.mxu0
      %v1634 = vadd.f32 %v1465, %v1633
      %1635 = vmatmul.bf16.gmra.mxu0 %v987
      %v1636 = vpop.f32.mrf.mxu0
      %v1637 = vadd.f32 %v1468, %v1636
      %v1638 = vpop.f32.mrf.mxu0
      %v1639 = vadd.f32 %v1470, %v1638
      %1640 = vmatmul.bf16.gmra.mxu0 %v991
      %v1641 = vpop.f32.mrf.mxu0
      %v1642 = vadd.f32 %v1473, %v1641
      %v1643 = vpop.f32.mrf.mxu0
      %v1644 = vadd.f32 %v1475, %v1643
      %1645 = vmatmul.bf16.gmra.mxu0 %v995
      %v1646 = vpop.f32.mrf.mxu0
      %v1647 = vadd.f32 %v1478, %v1646
      %v1648 = vpop.f32.mrf.mxu0
      %v1649 = vadd.f32 %v1480, %v1648
      %1650 = vmatmul.bf16.gmra.mxu0 %v999
      %v1651 = vpop.f32.mrf.mxu0
      %v1652 = vadd.f32 %v1483, %v1651
      %v1653 = vpop.f32.mrf.mxu0
      %v1654 = vadd.f32 %v1485, %v1653
      %1655 = vmatmul.bf16.gmra.mxu0 %v1003
      %v1656 = vpop.f32.mrf.mxu0
      %v1657 = vadd.f32 %v1488, %v1656
      %v1658 = vpop.f32.mrf.mxu0
      %v1659 = vadd.f32 %v1490, %v1658
      %1660 = vmatmul.bf16.gmra.mxu0 %v1007
      %v1661 = vpop.f32.mrf.mxu0
      %v1662 = vadd.f32 %v1493, %v1661
      %v1663 = vpop.f32.mrf.mxu0
      %v1664 = vadd.f32 %v1495, %v1663
      %1665 = vmatmul.bf16.gmra.mxu0 %v1011
      %v1666 = vpop.f32.mrf.mxu0
      %v1667 = vadd.f32 %v1498, %v1666
      %v1668 = vpop.f32.mrf.mxu0
      %v1669 = vadd.f32 %v1500, %v1668
      %1670 = vmatmul.bf16.gmra.mxu0 %v1015
      %v1671 = vpop.f32.mrf.mxu0
      %v1672 = vadd.f32 %v1503, %v1671
      %v1673 = vpop.f32.mrf.mxu0
      %v1674 = vadd.f32 %v1505, %v1673
      %1675 = vdwg.mxu0
      %1676 = vmatpush.bf16.msra.mxu0 %v1297
      %1677 = vmatpush.bf16.msra.mxu0 %v1296
      %1678 = vmatpush.bf16.msra.mxu0 %v1295
      %1679 = vmatpush.bf16.msra.mxu0 %v1294
      %1680 = vmatpush.bf16.msra.mxu0 %v1293
      %1681 = vmatpush.bf16.msra.mxu0 %v1292
      %1682 = vmatpush.bf16.msra.mxu0 %v1291
      %1683 = vmatpush.bf16.msra.mxu0 %v1290
      %1684 = vmatmul.bf16.gmra.mxu0 %v892
      %v1685 = vpop.f32.mrf.mxu0
      %v1686 = vadd.f32 %v1517, %v1685
      %v1687 = vpop.f32.mrf.mxu0
      %v1688 = vadd.f32 %v1519, %v1687
      %1689 = vmatmul.bf16.gmra.mxu0 %v896
      %v1690 = vpop.f32.mrf.mxu0
      %v1691 = vadd.f32 %v1522, %v1690
      %v1692 = vpop.f32.mrf.mxu0
      %v1693 = vadd.f32 %v1524, %v1692
      %1694 = vmatmul.bf16.gmra.mxu0 %v900
      %v1695 = vpop.f32.mrf.mxu0
      %v1696 = vadd.f32 %v1527, %v1695
      %v1697 = vpop.f32.mrf.mxu0
      %v1698 = vadd.f32 %v1529, %v1697
      %1699 = vmatmul.bf16.gmra.mxu0 %v904
      %v1700 = vpop.f32.mrf.mxu0
      %v1701 = vadd.f32 %v1532, %v1700
      %v1702 = vpop.f32.mrf.mxu0
      %v1703 = vadd.f32 %v1534, %v1702
      %1704 = vmatmul.bf16.gmra.mxu0 %v908
      %v1705 = vpop.f32.mrf.mxu0
      %v1706 = vadd.f32 %v1537, %v1705
      %v1707 = vpop.f32.mrf.mxu0
      %v1708 = vadd.f32 %v1539, %v1707
      %1709 = vmatmul.bf16.gmra.mxu0 %v912
      %v1710 = vpop.f32.mrf.mxu0
      %v1711 = vadd.f32 %v1542, %v1710
      %v1712 = vpop.f32.mrf.mxu0
      %v1713 = vadd.f32 %v1544, %v1712
      %1714 = vmatmul.bf16.gmra.mxu0 %v916
      %v1715 = vpop.f32.mrf.mxu0
      %v1716 = vadd.f32 %v1547, %v1715
      %v1717 = vpop.f32.mrf.mxu0
      %v1718 = vadd.f32 %v1549, %v1717
      %1719 = vmatmul.bf16.gmra.mxu0 %v920
      %v1720 = vpop.f32.mrf.mxu0
      %v1721 = vadd.f32 %v1552, %v1720
      %v1722 = vpop.f32.mrf.mxu0
      %v1723 = vadd.f32 %v1554, %v1722
      %1724 = vmatmul.bf16.gmra.mxu0 %v924
      %v1725 = vpop.f32.mrf.mxu0
      %v1726 = vadd.f32 %v1557, %v1725
      %v1727 = vpop.f32.mrf.mxu0
      %v1728 = vadd.f32 %v1559, %v1727
      %1729 = vmatmul.bf16.gmra.mxu0 %v928
      %v1730 = vpop.f32.mrf.mxu0
      %v1731 = vadd.f32 %v1562, %v1730
      %v1732 = vpop.f32.mrf.mxu0
      %v1733 = vadd.f32 %v1564, %v1732
      %1734 = vmatmul.bf16.gmra.mxu0 %v932
      %v1735 = vpop.f32.mrf.mxu0
      %v1736 = vadd.f32 %v1567, %v1735
      %v1737 = vpop.f32.mrf.mxu0
      %v1738 = vadd.f32 %v1569, %v1737
      %1739 = vmatmul.bf16.gmra.mxu0 %v936
      %v1740 = vpop.f32.mrf.mxu0
      %v1741 = vadd.f32 %v1572, %v1740
      %v1742 = vpop.f32.mrf.mxu0
      %v1743 = vadd.f32 %v1574, %v1742
      %1744 = vmatmul.bf16.gmra.mxu0 %v940
      %v1745 = vpop.f32.mrf.mxu0
      %v1746 = vadd.f32 %v1577, %v1745
      %v1747 = vpop.f32.mrf.mxu0
      %v1748 = vadd.f32 %v1579, %v1747
      %1749 = vmatmul.bf16.gmra.mxu0 %v944
      %v1750 = vpop.f32.mrf.mxu0
      %v1751 = vadd.f32 %v1582, %v1750
      %v1752 = vpop.f32.mrf.mxu0
      %v1753 = vadd.f32 %v1584, %v1752
      %1754 = vmatmul.bf16.gmra.mxu0 %v948
      %v1755 = vpop.f32.mrf.mxu0
      %v1756 = vadd.f32 %v1587, %v1755
      %v1757 = vpop.f32.mrf.mxu0
      %v1758 = vadd.f32 %v1589, %v1757
      %1759 = vmatmul.bf16.gmra.mxu0 %v952
      %v1760 = vpop.f32.mrf.mxu0
      %v1761 = vadd.f32 %v1592, %v1760
      %v1762 = vpop.f32.mrf.mxu0
      %v1763 = vadd.f32 %v1594, %v1762
      %1764 = vmatmul.bf16.gmra.mxu0 %v956
      %v1765 = vpop.f32.mrf.mxu0
      %v1766 = vadd.f32 %v1597, %v1765
      %v1767 = vpop.f32.mrf.mxu0
      %v1768 = vadd.f32 %v1599, %v1767
      %1769 = vmatmul.bf16.gmra.mxu0 %v960
      %v1770 = vpop.f32.mrf.mxu0
      %v1771 = vadd.f32 %v1602, %v1770
      %v1772 = vpop.f32.mrf.mxu0
      %v1773 = vadd.f32 %v1604, %v1772
      %1774 = vmatmul.bf16.gmra.mxu0 %v964
      %v1775 = vpop.f32.mrf.mxu0
      %v1776 = vadd.f32 %v1607, %v1775
      %v1777 = vpop.f32.mrf.mxu0
      %v1778 = vadd.f32 %v1609, %v1777
      %1779 = vmatmul.bf16.gmra.mxu0 %v968
      %v1780 = vpop.f32.mrf.mxu0
      %v1781 = vadd.f32 %v1612, %v1780
      %v1782 = vpop.f32.mrf.mxu0
      %v1783 = vadd.f32 %v1614, %v1782
      %1784 = vmatmul.bf16.gmra.mxu0 %v972
      %v1785 = vpop.f32.mrf.mxu0
      %v1786 = vadd.f32 %v1617, %v1785
      %v1787 = vpop.f32.mrf.mxu0
      %v1788 = vadd.f32 %v1619, %v1787
      %1789 = vmatmul.bf16.gmra.mxu0 %v976
      %v1790 = vpop.f32.mrf.mxu0
      %v1791 = vadd.f32 %v1622, %v1790
      %v1792 = vpop.f32.mrf.mxu0
      %v1793 = vadd.f32 %v1624, %v1792
      %1794 = vmatmul.bf16.gmra.mxu0 %v980
      %v1795 = vpop.f32.mrf.mxu0
      %v1796 = vadd.f32 %v1627, %v1795
      %v1797 = vpop.f32.mrf.mxu0
      %v1798 = vadd.f32 %v1629, %v1797
      %1799 = vmatmul.bf16.gmra.mxu0 %v984
      %v1800 = vpop.f32.mrf.mxu0
      %v1801 = vadd.f32 %v1632, %v1800
      %v1802 = vpop.f32.mrf.mxu0
      %v1803 = vadd.f32 %v1634, %v1802
      %1804 = vmatmul.bf16.gmra.mxu0 %v988
      %v1805 = vpop.f32.mrf.mxu0
      %v1806 = vadd.f32 %v1637, %v1805
      %v1807 = vpop.f32.mrf.mxu0
      %v1808 = vadd.f32 %v1639, %v1807
      %1809 = vmatmul.bf16.gmra.mxu0 %v992
      %v1810 = vpop.f32.mrf.mxu0
      %v1811 = vadd.f32 %v1642, %v1810
      %v1812 = vpop.f32.mrf.mxu0
      %v1813 = vadd.f32 %v1644, %v1812
      %1814 = vmatmul.bf16.gmra.mxu0 %v996
      %v1815 = vpop.f32.mrf.mxu0
      %v1816 = vadd.f32 %v1647, %v1815
      %v1817 = vpop.f32.mrf.mxu0
      %v1818 = vadd.f32 %v1649, %v1817
      %1819 = vmatmul.bf16.gmra.mxu0 %v1000
      %v1820 = vpop.f32.mrf.mxu0
      %v1821 = vadd.f32 %v1652, %v1820
      %v1822 = vpop.f32.mrf.mxu0
      %v1823 = vadd.f32 %v1654, %v1822
      %1824 = vmatmul.bf16.gmra.mxu0 %v1004
      %v1825 = vpop.f32.mrf.mxu0
      %v1826 = vadd.f32 %v1657, %v1825
      %v1827 = vpop.f32.mrf.mxu0
      %v1828 = vadd.f32 %v1659, %v1827
      %1829 = vmatmul.bf16.gmra.mxu0 %v1008
      %v1830 = vpop.f32.mrf.mxu0
      %v1831 = vadd.f32 %v1662, %v1830
      %v1832 = vpop.f32.mrf.mxu0
      %v1833 = vadd.f32 %v1664, %v1832
      %1834 = vmatmul.bf16.gmra.mxu0 %v1012
      %v1835 = vpop.f32.mrf.mxu0
      %v1836 = vadd.f32 %v1667, %v1835
      %v1837 = vpop.f32.mrf.mxu0
      %v1838 = vadd.f32 %v1669, %v1837
      %1839 = vmatmul.bf16.gmra.mxu0 %v1016
      %v1840 = vpop.f32.mrf.mxu0
      %v1841 = vadd.f32 %v1672, %v1840
      %v1842 = vpop.f32.mrf.mxu0
      %v1843 = vadd.f32 %v1674, %v1842
      %1844 = vdwg.mxu0
      %1845 = vmatpush.bf16.msra.mxu0 %v1305
      %1846 = vmatpush.bf16.msra.mxu0 %v1304
      %1847 = vmatpush.bf16.msra.mxu0 %v1303
      %1848 = vmatpush.bf16.msra.mxu0 %v1302
      %1849 = vmatpush.bf16.msra.mxu0 %v1301
      %1850 = vmatpush.bf16.msra.mxu0 %v1300
      %1851 = vmatpush.bf16.msra.mxu0 %v1299
      %1852 = vmatpush.bf16.msra.mxu0 %v1298
      %1853 = vmatmul.bf16.gmra.mxu0 %v893
      %v1854 = vpop.f32.mrf.mxu0
      %v1855 = vadd.f32 %v1686, %v1854
      %v1856 = vpop.f32.mrf.mxu0
      %v1857 = vadd.f32 %v1688, %v1856
      %1858 = vmatmul.bf16.gmra.mxu0 %v897
      %v1859 = vpop.f32.mrf.mxu0
      %v1860 = vadd.f32 %v1691, %v1859
      %v1861 = vpop.f32.mrf.mxu0
      %v1862 = vadd.f32 %v1693, %v1861
      %1863 = vmatmul.bf16.gmra.mxu0 %v901
      %v1864 = vpop.f32.mrf.mxu0
      %v1865 = vadd.f32 %v1696, %v1864
      %v1866 = vpop.f32.mrf.mxu0
      %v1867 = vadd.f32 %v1698, %v1866
      %1868 = vmatmul.bf16.gmra.mxu0 %v905
      %v1869 = vpop.f32.mrf.mxu0
      %v1870 = vadd.f32 %v1701, %v1869
      %v1871 = vpop.f32.mrf.mxu0
      %v1872 = vadd.f32 %v1703, %v1871
      %1873 = vmatmul.bf16.gmra.mxu0 %v909
      %v1874 = vpop.f32.mrf.mxu0
      %v1875 = vadd.f32 %v1706, %v1874
      %v1876 = vpop.f32.mrf.mxu0
      %v1877 = vadd.f32 %v1708, %v1876
      %1878 = vmatmul.bf16.gmra.mxu0 %v913
      %v1879 = vpop.f32.mrf.mxu0
      %v1880 = vadd.f32 %v1711, %v1879
      %v1881 = vpop.f32.mrf.mxu0
      %v1882 = vadd.f32 %v1713, %v1881
      %1883 = vmatmul.bf16.gmra.mxu0 %v917
      %v1884 = vpop.f32.mrf.mxu0
      %v1885 = vadd.f32 %v1716, %v1884
      %v1886 = vpop.f32.mrf.mxu0
      %v1887 = vadd.f32 %v1718, %v1886
      %1888 = vmatmul.bf16.gmra.mxu0 %v921
      %v1889 = vpop.f32.mrf.mxu0
      %v1890 = vadd.f32 %v1721, %v1889
      %v1891 = vpop.f32.mrf.mxu0
      %v1892 = vadd.f32 %v1723, %v1891
      %1893 = vmatmul.bf16.gmra.mxu0 %v925
      %v1894 = vpop.f32.mrf.mxu0
      %v1895 = vadd.f32 %v1726, %v1894
      %v1896 = vpop.f32.mrf.mxu0
      %v1897 = vadd.f32 %v1728, %v1896
      %1898 = vmatmul.bf16.gmra.mxu0 %v929
      %v1899 = vpop.f32.mrf.mxu0
      %v1900 = vadd.f32 %v1731, %v1899
      %v1901 = vpop.f32.mrf.mxu0
      %v1902 = vadd.f32 %v1733, %v1901
      %1903 = vmatmul.bf16.gmra.mxu0 %v933
      %v1904 = vpop.f32.mrf.mxu0
      %v1905 = vadd.f32 %v1736, %v1904
      %v1906 = vpop.f32.mrf.mxu0
      %v1907 = vadd.f32 %v1738, %v1906
      %1908 = vmatmul.bf16.gmra.mxu0 %v937
      %v1909 = vpop.f32.mrf.mxu0
      %v1910 = vadd.f32 %v1741, %v1909
      %v1911 = vpop.f32.mrf.mxu0
      %v1912 = vadd.f32 %v1743, %v1911
      %1913 = vmatmul.bf16.gmra.mxu0 %v941
      %v1914 = vpop.f32.mrf.mxu0
      %v1915 = vadd.f32 %v1746, %v1914
      %v1916 = vpop.f32.mrf.mxu0
      %v1917 = vadd.f32 %v1748, %v1916
      %1918 = vmatmul.bf16.gmra.mxu0 %v945
      %v1919 = vpop.f32.mrf.mxu0
      %v1920 = vadd.f32 %v1751, %v1919
      %v1921 = vpop.f32.mrf.mxu0
      %v1922 = vadd.f32 %v1753, %v1921
      %1923 = vmatmul.bf16.gmra.mxu0 %v949
      %v1924 = vpop.f32.mrf.mxu0
      %v1925 = vadd.f32 %v1756, %v1924
      %v1926 = vpop.f32.mrf.mxu0
      %v1927 = vadd.f32 %v1758, %v1926
      %1928 = vmatmul.bf16.gmra.mxu0 %v953
      %v1929 = vpop.f32.mrf.mxu0
      %v1930 = vadd.f32 %v1761, %v1929
      %v1931 = vpop.f32.mrf.mxu0
      %v1932 = vadd.f32 %v1763, %v1931
      %1933 = vmatmul.bf16.gmra.mxu0 %v957
      %v1934 = vpop.f32.mrf.mxu0
      %v1935 = vadd.f32 %v1766, %v1934
      %v1936 = vpop.f32.mrf.mxu0
      %v1937 = vadd.f32 %v1768, %v1936
      %1938 = vmatmul.bf16.gmra.mxu0 %v961
      %v1939 = vpop.f32.mrf.mxu0
      %v1940 = vadd.f32 %v1771, %v1939
      %v1941 = vpop.f32.mrf.mxu0
      %v1942 = vadd.f32 %v1773, %v1941
      %1943 = vmatmul.bf16.gmra.mxu0 %v965
      %v1944 = vpop.f32.mrf.mxu0
      %v1945 = vadd.f32 %v1776, %v1944
      %v1946 = vpop.f32.mrf.mxu0
      %v1947 = vadd.f32 %v1778, %v1946
      %1948 = vmatmul.bf16.gmra.mxu0 %v969
      %v1949 = vpop.f32.mrf.mxu0
      %v1950 = vadd.f32 %v1781, %v1949
      %v1951 = vpop.f32.mrf.mxu0
      %v1952 = vadd.f32 %v1783, %v1951
      %1953 = vmatmul.bf16.gmra.mxu0 %v973
      %v1954 = vpop.f32.mrf.mxu0
      %v1955 = vadd.f32 %v1786, %v1954
      %v1956 = vpop.f32.mrf.mxu0
      %v1957 = vadd.f32 %v1788, %v1956
      %1958 = vmatmul.bf16.gmra.mxu0 %v977
      %v1959 = vpop.f32.mrf.mxu0
      %v1960 = vadd.f32 %v1791, %v1959
      %v1961 = vpop.f32.mrf.mxu0
      %v1962 = vadd.f32 %v1793, %v1961
      %1963 = vmatmul.bf16.gmra.mxu0 %v981
      %v1964 = vpop.f32.mrf.mxu0
      %v1965 = vadd.f32 %v1796, %v1964
      %v1966 = vpop.f32.mrf.mxu0
      %v1967 = vadd.f32 %v1798, %v1966
      %1968 = vmatmul.bf16.gmra.mxu0 %v985
      %v1969 = vpop.f32.mrf.mxu0
      %v1970 = vadd.f32 %v1801, %v1969
      %v1971 = vpop.f32.mrf.mxu0
      %v1972 = vadd.f32 %v1803, %v1971
      %1973 = vmatmul.bf16.gmra.mxu0 %v989
      %v1974 = vpop.f32.mrf.mxu0
      %v1975 = vadd.f32 %v1806, %v1974
      %v1976 = vpop.f32.mrf.mxu0
      %v1977 = vadd.f32 %v1808, %v1976
      %1978 = vmatmul.bf16.gmra.mxu0 %v993
      %v1979 = vpop.f32.mrf.mxu0
      %v1980 = vadd.f32 %v1811, %v1979
      %v1981 = vpop.f32.mrf.mxu0
      %v1982 = vadd.f32 %v1813, %v1981
      %1983 = vmatmul.bf16.gmra.mxu0 %v997
      %v1984 = vpop.f32.mrf.mxu0
      %v1985 = vadd.f32 %v1816, %v1984
      %v1986 = vpop.f32.mrf.mxu0
      %v1987 = vadd.f32 %v1818, %v1986
      %1988 = vmatmul.bf16.gmra.mxu0 %v1001
      %v1989 = vpop.f32.mrf.mxu0
      %v1990 = vadd.f32 %v1821, %v1989
      %v1991 = vpop.f32.mrf.mxu0
      %v1992 = vadd.f32 %v1823, %v1991
      %1993 = vmatmul.bf16.gmra.mxu0 %v1005
      %v1994 = vpop.f32.mrf.mxu0
      %v1995 = vadd.f32 %v1826, %v1994
      %v1996 = vpop.f32.mrf.mxu0
      %v1997 = vadd.f32 %v1828, %v1996
      %1998 = vmatmul.bf16.gmra.mxu0 %v1009
      %v1999 = vpop.f32.mrf.mxu0
      %v2000 = vadd.f32 %v1831, %v1999
      %v2001 = vpop.f32.mrf.mxu0
      %v2002 = vadd.f32 %v1833, %v2001
      %2003 = vmatmul.bf16.gmra.mxu0 %v1013
      %v2004 = vpop.f32.mrf.mxu0
      %v2005 = vadd.f32 %v1836, %v2004
      %v2006 = vpop.f32.mrf.mxu0
      %v2007 = vadd.f32 %v1838, %v2006
      %2008 = vmatmul.bf16.gmra.mxu0 %v1017
      %v2009 = vpop.f32.mrf.mxu0
      %v2010 = vadd.f32 %v1841, %v2009
      %v2011 = vpop.f32.mrf.mxu0
      %v2012 = vadd.f32 %v1843, %v2011
      %2013 = vdwg.mxu0
      %v2014 = vld [vmem:[%s297] sm:$0x1]
      %v2016 = vperm.slane %v2014, 0
      %v2018 = vmul.f32 %v1855, %v2016
      %v2019 = vmul.f32 %v1857, %v2016
      %v2020 = vmul.f32 %v1860, %v2016
      %v2021 = vmul.f32 %v1862, %v2016
      %v2022 = vmul.f32 %v1865, %v2016
      %v2023 = vmul.f32 %v1867, %v2016
      %v2024 = vmul.f32 %v1870, %v2016
      %v2025 = vmul.f32 %v1872, %v2016
      %v2026 = vmul.f32 %v1875, %v2016
      %v2027 = vmul.f32 %v1877, %v2016
      %v2028 = vmul.f32 %v1880, %v2016
      %v2029 = vmul.f32 %v1882, %v2016
      %v2030 = vmul.f32 %v1885, %v2016
      %v2031 = vmul.f32 %v1887, %v2016
      %v2032 = vmul.f32 %v1890, %v2016
      %v2033 = vmul.f32 %v1892, %v2016
      %v2034 = vmul.f32 %v1895, %v2016
      %v2035 = vmul.f32 %v1897, %v2016
      %v2036 = vmul.f32 %v1900, %v2016
      %v2037 = vmul.f32 %v1902, %v2016
      %v2038 = vmul.f32 %v1905, %v2016
      %v2039 = vmul.f32 %v1907, %v2016
      %v2040 = vmul.f32 %v1910, %v2016
      %v2041 = vmul.f32 %v1912, %v2016
      %v2042 = vmul.f32 %v1915, %v2016
      %v2043 = vmul.f32 %v1917, %v2016
      %v2044 = vmul.f32 %v1920, %v2016
      %v2045 = vmul.f32 %v1922, %v2016
      %v2046 = vmul.f32 %v1925, %v2016
      %v2047 = vmul.f32 %v1927, %v2016
      %v2048 = vmul.f32 %v1930, %v2016
      %v2049 = vmul.f32 %v1932, %v2016
      %v2050 = vmul.f32 %v1935, %v2016
      %v2051 = vmul.f32 %v1937, %v2016
      %v2052 = vmul.f32 %v1940, %v2016
      %v2053 = vmul.f32 %v1942, %v2016
      %v2054 = vmul.f32 %v1945, %v2016
      %v2055 = vmul.f32 %v1947, %v2016
      %v2056 = vmul.f32 %v1950, %v2016
      %v2057 = vmul.f32 %v1952, %v2016
      %v2058 = vmul.f32 %v1955, %v2016
      %v2059 = vmul.f32 %v1957, %v2016
      %v2060 = vmul.f32 %v1960, %v2016
      %v2061 = vmul.f32 %v1962, %v2016
      %v2062 = vmul.f32 %v1965, %v2016
      %v2063 = vmul.f32 %v1967, %v2016
      %v2064 = vmul.f32 %v1970, %v2016
      %v2065 = vmul.f32 %v1972, %v2016
      %v2066 = vmul.f32 %v1975, %v2016
      %v2067 = vmul.f32 %v1977, %v2016
      %v2068 = vmul.f32 %v1980, %v2016
      %v2069 = vmul.f32 %v1982, %v2016
      %v2070 = vmul.f32 %v1985, %v2016
      %v2071 = vmul.f32 %v1987, %v2016
      %v2072 = vmul.f32 %v1990, %v2016
      %v2073 = vmul.f32 %v1992, %v2016
      %v2074 = vmul.f32 %v1995, %v2016
      %v2075 = vmul.f32 %v1997, %v2016
      %v2076 = vmul.f32 %v2000, %v2016
      %v2077 = vmul.f32 %v2002, %v2016
      %v2078 = vmul.f32 %v2005, %v2016
      %v2079 = vmul.f32 %v2007, %v2016
      %v2080 = vmul.f32 %v2010, %v2016
      %v2081 = vmul.f32 %v2012, %v2016
      %v2082 = vld [vmem:[%s300] sm:$0x1]
      %v2084 = vperm.slane %v2082, 0
      %v2086 = vadd.f32 %v2018, %v2084
      %v2087 = vadd.f32 %v2019, %v2084
      %v2088 = vadd.f32 %v2020, %v2084
      %v2089 = vadd.f32 %v2021, %v2084
      %v2090 = vadd.f32 %v2022, %v2084
      %v2091 = vadd.f32 %v2023, %v2084
      %v2092 = vadd.f32 %v2024, %v2084
      %v2093 = vadd.f32 %v2025, %v2084
      %v2094 = vadd.f32 %v2026, %v2084
      %v2095 = vadd.f32 %v2027, %v2084
      %v2096 = vadd.f32 %v2028, %v2084
      %v2097 = vadd.f32 %v2029, %v2084
      %v2098 = vadd.f32 %v2030, %v2084
      %v2099 = vadd.f32 %v2031, %v2084
      %v2100 = vadd.f32 %v2032, %v2084
      %v2101 = vadd.f32 %v2033, %v2084
      %v2102 = vadd.f32 %v2034, %v2084
      %v2103 = vadd.f32 %v2035, %v2084
      %v2104 = vadd.f32 %v2036, %v2084
      %v2105 = vadd.f32 %v2037, %v2084
      %v2106 = vadd.f32 %v2038, %v2084
      %v2107 = vadd.f32 %v2039, %v2084
      %v2108 = vadd.f32 %v2040, %v2084
      %v2109 = vadd.f32 %v2041, %v2084
      %v2110 = vadd.f32 %v2042, %v2084
      %v2111 = vadd.f32 %v2043, %v2084
      %v2112 = vadd.f32 %v2044, %v2084
      %v2113 = vadd.f32 %v2045, %v2084
      %v2114 = vadd.f32 %v2046, %v2084
      %v2115 = vadd.f32 %v2047, %v2084
      %v2116 = vadd.f32 %v2048, %v2084
      %v2117 = vadd.f32 %v2049, %v2084
      %v2118 = vadd.f32 %v2050, %v2084
      %v2119 = vadd.f32 %v2051, %v2084
      %v2120 = vadd.f32 %v2052, %v2084
      %v2121 = vadd.f32 %v2053, %v2084
      %v2122 = vadd.f32 %v2054, %v2084
      %v2123 = vadd.f32 %v2055, %v2084
      %v2124 = vadd.f32 %v2056, %v2084
      %v2125 = vadd.f32 %v2057, %v2084
      %v2126 = vadd.f32 %v2058, %v2084
      %v2127 = vadd.f32 %v2059, %v2084
      %v2128 = vadd.f32 %v2060, %v2084
      %v2129 = vadd.f32 %v2061, %v2084
      %v2130 = vadd.f32 %v2062, %v2084
      %v2131 = vadd.f32 %v2063, %v2084
      %v2132 = vadd.f32 %v2064, %v2084
      %v2133 = vadd.f32 %v2065, %v2084
      %v2134 = vadd.f32 %v2066, %v2084
      %v2135 = vadd.f32 %v2067, %v2084
      %v2136 = vadd.f32 %v2068, %v2084
      %v2137 = vadd.f32 %v2069, %v2084
      %v2138 = vadd.f32 %v2070, %v2084
      %v2139 = vadd.f32 %v2071, %v2084
      %v2140 = vadd.f32 %v2072, %v2084
      %v2141 = vadd.f32 %v2073, %v2084
      %v2142 = vadd.f32 %v2074, %v2084
      %v2143 = vadd.f32 %v2075, %v2084
      %v2144 = vadd.f32 %v2076, %v2084
      %v2145 = vadd.f32 %v2077, %v2084
      %v2146 = vadd.f32 %v2078, %v2084
      %v2147 = vadd.f32 %v2079, %v2084
      %v2148 = vadd.f32 %v2080, %v2084
      %v2149 = vadd.f32 %v2081, %v2084
      %v2150 = vmax.f32 %v2086, 0.0
      %v2151 = vmax.f32 %v2087, 0.0
      %v2152 = vmax.f32 %v2088, 0.0
      %v2153 = vmax.f32 %v2089, 0.0
      %v2154 = vmax.f32 %v2090, 0.0
      %v2155 = vmax.f32 %v2091, 0.0
      %v2156 = vmax.f32 %v2092, 0.0
      %v2157 = vmax.f32 %v2093, 0.0
      %v2158 = vmax.f32 %v2094, 0.0
      %v2159 = vmax.f32 %v2095, 0.0
      %v2160 = vmax.f32 %v2096, 0.0
      %v2161 = vmax.f32 %v2097, 0.0
      %v2162 = vmax.f32 %v2098, 0.0
      %v2163 = vmax.f32 %v2099, 0.0
      %v2164 = vmax.f32 %v2100, 0.0
      %v2165 = vmax.f32 %v2101, 0.0
      %v2166 = vmax.f32 %v2102, 0.0
      %v2167 = vmax.f32 %v2103, 0.0
      %v2168 = vmax.f32 %v2104, 0.0
      %v2169 = vmax.f32 %v2105, 0.0
      %v2170 = vmax.f32 %v2106, 0.0
      %v2171 = vmax.f32 %v2107, 0.0
      %v2172 = vmax.f32 %v2108, 0.0
      %v2173 = vmax.f32 %v2109, 0.0
      %v2174 = vmax.f32 %v2110, 0.0
      %v2175 = vmax.f32 %v2111, 0.0
      %v2176 = vmax.f32 %v2112, 0.0
      %v2177 = vmax.f32 %v2113, 0.0
      %v2178 = vmax.f32 %v2114, 0.0
      %v2179 = vmax.f32 %v2115, 0.0
      %v2180 = vmax.f32 %v2116, 0.0
      %v2181 = vmax.f32 %v2117, 0.0
      %v2182 = vmax.f32 %v2118, 0.0
      %v2183 = vmax.f32 %v2119, 0.0
      %v2184 = vmax.f32 %v2120, 0.0
      %v2185 = vmax.f32 %v2121, 0.0
      %v2186 = vmax.f32 %v2122, 0.0
      %v2187 = vmax.f32 %v2123, 0.0
      %v2188 = vmax.f32 %v2124, 0.0
      %v2189 = vmax.f32 %v2125, 0.0
      %v2190 = vmax.f32 %v2126, 0.0
      %v2191 = vmax.f32 %v2127, 0.0
      %v2192 = vmax.f32 %v2128, 0.0
      %v2193 = vmax.f32 %v2129, 0.0
      %v2194 = vmax.f32 %v2130, 0.0
      %v2195 = vmax.f32 %v2131, 0.0
      %v2196 = vmax.f32 %v2132, 0.0
      %v2197 = vmax.f32 %v2133, 0.0
      %v2198 = vmax.f32 %v2134, 0.0
      %v2199 = vmax.f32 %v2135, 0.0
      %v2200 = vmax.f32 %v2136, 0.0
      %v2201 = vmax.f32 %v2137, 0.0
      %v2202 = vmax.f32 %v2138, 0.0
      %v2203 = vmax.f32 %v2139, 0.0
      %v2204 = vmax.f32 %v2140, 0.0
      %v2205 = vmax.f32 %v2141, 0.0
      %v2206 = vmax.f32 %v2142, 0.0
      %v2207 = vmax.f32 %v2143, 0.0
      %v2208 = vmax.f32 %v2144, 0.0
      %v2209 = vmax.f32 %v2145, 0.0
      %v2210 = vmax.f32 %v2146, 0.0
      %v2211 = vmax.f32 %v2147, 0.0
      %v2212 = vmax.f32 %v2148, 0.0
      %v2213 = vmax.f32 %v2149, 0.0
      %v2214 = vpack.c.bf16 %v2150, %v2150
      %v2215 = vpack.c.bf16 %v2151, %v2151
      %v2216 = vpack.c.bf16 %v2152, %v2152
      %v2217 = vpack.c.bf16 %v2153, %v2153
      %v2218 = vpack.c.bf16 %v2154, %v2154
      %v2219 = vpack.c.bf16 %v2155, %v2155
      %v2220 = vpack.c.bf16 %v2156, %v2156
      %v2221 = vpack.c.bf16 %v2157, %v2157
      %v2222 = vpack.c.bf16 %v2158, %v2158
      %v2223 = vpack.c.bf16 %v2159, %v2159
      %v2224 = vpack.c.bf16 %v2160, %v2160
      %v2225 = vpack.c.bf16 %v2161, %v2161
      %v2226 = vpack.c.bf16 %v2162, %v2162
      %v2227 = vpack.c.bf16 %v2163, %v2163
      %v2228 = vpack.c.bf16 %v2164, %v2164
      %v2229 = vpack.c.bf16 %v2165, %v2165
      %v2230 = vpack.c.bf16 %v2166, %v2166
      %v2231 = vpack.c.bf16 %v2167, %v2167
      %v2232 = vpack.c.bf16 %v2168, %v2168
      %v2233 = vpack.c.bf16 %v2169, %v2169
      %v2234 = vpack.c.bf16 %v2170, %v2170
      %v2235 = vpack.c.bf16 %v2171, %v2171
      %v2236 = vpack.c.bf16 %v2172, %v2172
      %v2237 = vpack.c.bf16 %v2173, %v2173
      %v2238 = vpack.c.bf16 %v2174, %v2174
      %v2239 = vpack.c.bf16 %v2175, %v2175
      %v2240 = vpack.c.bf16 %v2176, %v2176
      %v2241 = vpack.c.bf16 %v2177, %v2177
      %v2242 = vpack.c.bf16 %v2178, %v2178
      %v2243 = vpack.c.bf16 %v2179, %v2179
      %v2244 = vpack.c.bf16 %v2180, %v2180
      %v2245 = vpack.c.bf16 %v2181, %v2181
      %v2246 = vpack.c.bf16 %v2182, %v2182
      %v2247 = vpack.c.bf16 %v2183, %v2183
      %v2248 = vpack.c.bf16 %v2184, %v2184
      %v2249 = vpack.c.bf16 %v2185, %v2185
      %v2250 = vpack.c.bf16 %v2186, %v2186
      %v2251 = vpack.c.bf16 %v2187, %v2187
      %v2252 = vpack.c.bf16 %v2188, %v2188
      %v2253 = vpack.c.bf16 %v2189, %v2189
      %v2254 = vpack.c.bf16 %v2190, %v2190
      %v2255 = vpack.c.bf16 %v2191, %v2191
      %v2256 = vpack.c.bf16 %v2192, %v2192
      %v2257 = vpack.c.bf16 %v2193, %v2193
      %v2258 = vpack.c.bf16 %v2194, %v2194
      %v2259 = vpack.c.bf16 %v2195, %v2195
      %v2260 = vpack.c.bf16 %v2196, %v2196
      %v2261 = vpack.c.bf16 %v2197, %v2197
      %v2262 = vpack.c.bf16 %v2198, %v2198
      %v2263 = vpack.c.bf16 %v2199, %v2199
      %v2264 = vpack.c.bf16 %v2200, %v2200
      %v2265 = vpack.c.bf16 %v2201, %v2201
      %v2266 = vpack.c.bf16 %v2202, %v2202
      %v2267 = vpack.c.bf16 %v2203, %v2203
      %v2268 = vpack.c.bf16 %v2204, %v2204
      %v2269 = vpack.c.bf16 %v2205, %v2205
      %v2270 = vpack.c.bf16 %v2206, %v2206
      %v2271 = vpack.c.bf16 %v2207, %v2207
      %v2272 = vpack.c.bf16 %v2208, %v2208
      %v2273 = vpack.c.bf16 %v2209, %v2209
      %v2274 = vpack.c.bf16 %v2210, %v2210
      %v2275 = vpack.c.bf16 %v2211, %v2211
      %v2276 = vpack.c.bf16 %v2212, %v2212
      %v2277 = vpack.c.bf16 %v2213, %v2213
      %2278 = vst [vmem:[%s312] sm:$0xf] %v2214
      %2279 = vst [vmem:[%s312 + $0x4] sm:$0xf] %v2215
      %2280 = vst [vmem:[%s312 + $0x8] sm:$0xf] %v2216
      %2281 = vst [vmem:[%s312 + $0xc] sm:$0xf] %v2217
      %2282 = vst [vmem:[%s312 + $0x10] sm:$0xf] %v2218
      %2283 = vst [vmem:[%s312 + $0x14] sm:$0xf] %v2219
      %2284 = vst [vmem:[%s312 + $0x18] sm:$0xf] %v2220
      %2285 = vst [vmem:[%s312 + $0x1c] sm:$0xf] %v2221
      %2286 = vst [vmem:[%s312 + $0x20] sm:$0xf] %v2222
      %2287 = vst [vmem:[%s312 + $0x24] sm:$0xf] %v2223
      %2288 = vst [vmem:[%s312 + $0x28] sm:$0xf] %v2224
      %2289 = vst [vmem:[%s312 + $0x2c] sm:$0xf] %v2225
      %2290 = vst [vmem:[%s312 + $0x30] sm:$0xf] %v2226
      %2291 = vst [vmem:[%s312 + $0x34] sm:$0xf] %v2227
      %2292 = vst [vmem:[%s312 + $0x38] sm:$0xf] %v2228
      %2293 = vst [vmem:[%s312 + $0x3c] sm:$0xf] %v2229
      %2294 = vst [vmem:[%s312 + $0x40] sm:$0xf] %v2230
      %2295 = vst [vmem:[%s312 + $0x44] sm:$0xf] %v2231
      %2296 = vst [vmem:[%s312 + $0x48] sm:$0xf] %v2232
      %2297 = vst [vmem:[%s312 + $0x4c] sm:$0xf] %v2233
      %2298 = vst [vmem:[%s312 + $0x50] sm:$0xf] %v2234
      %2299 = vst [vmem:[%s312 + $0x54] sm:$0xf] %v2235
      %2300 = vst [vmem:[%s312 + $0x58] sm:$0xf] %v2236
      %2301 = vst [vmem:[%s312 + $0x5c] sm:$0xf] %v2237
      %2302 = vst [vmem:[%s312 + $0x60] sm:$0xf] %v2238
      %2303 = vst [vmem:[%s312 + $0x64] sm:$0xf] %v2239
      %2304 = vst [vmem:[%s312 + $0x68] sm:$0xf] %v2240
      %2305 = vst [vmem:[%s312 + $0x6c] sm:$0xf] %v2241
      %2306 = vst [vmem:[%s312 + $0x70] sm:$0xf] %v2242
      %2307 = vst [vmem:[%s312 + $0x74] sm:$0xf] %v2243
      %2308 = vst [vmem:[%s312 + $0x78] sm:$0xf] %v2244
      %2309 = vst [vmem:[%s312 + $0x7c] sm:$0xf] %v2245
      %2310 = vst [vmem:[%s312 + $0x80] sm:$0xf] %v2246
      %2311 = vst [vmem:[%s312 + $0x84] sm:$0xf] %v2247
      %2312 = vst [vmem:[%s312 + $0x88] sm:$0xf] %v2248
      %2313 = vst [vmem:[%s312 + $0x8c] sm:$0xf] %v2249
      %2314 = vst [vmem:[%s312 + $0x90] sm:$0xf] %v2250
      %2315 = vst [vmem:[%s312 + $0x94] sm:$0xf] %v2251
      %2316 = vst [vmem:[%s312 + $0x98] sm:$0xf] %v2252
      %2317 = vst [vmem:[%s312 + $0x9c] sm:$0xf] %v2253
      %2318 = vst [vmem:[%s312 + $0xa0] sm:$0xf] %v2254
      %2319 = vst [vmem:[%s312 + $0xa4] sm:$0xf] %v2255
      %2320 = vst [vmem:[%s312 + $0xa8] sm:$0xf] %v2256
      %2321 = vst [vmem:[%s312 + $0xac] sm:$0xf] %v2257
      %2322 = vst [vmem:[%s312 + $0xb0] sm:$0xf] %v2258
      %2323 = vst [vmem:[%s312 + $0xb4] sm:$0xf] %v2259
      %2324 = vst [vmem:[%s312 + $0xb8] sm:$0xf] %v2260
      %2325 = vst [vmem:[%s312 + $0xbc] sm:$0xf] %v2261
      %2326 = vst [vmem:[%s312 + $0xc0] sm:$0xf] %v2262
      %2327 = vst [vmem:[%s312 + $0xc4] sm:$0xf] %v2263
      %2328 = vst [vmem:[%s312 + $0xc8] sm:$0xf] %v2264
      %2329 = vst [vmem:[%s312 + $0xcc] sm:$0xf] %v2265
      %2330 = vst [vmem:[%s312 + $0xd0] sm:$0xf] %v2266
      %2331 = vst [vmem:[%s312 + $0xd4] sm:$0xf] %v2267
      %2332 = vst [vmem:[%s312 + $0xd8] sm:$0xf] %v2268
      %2333 = vst [vmem:[%s312 + $0xdc] sm:$0xf] %v2269
      %2334 = vst [vmem:[%s312 + $0xe0] sm:$0xf] %v2270
      %2335 = vst [vmem:[%s312 + $0xe4] sm:$0xf] %v2271
      %2336 = vst [vmem:[%s312 + $0xe8] sm:$0xf] %v2272
      %2337 = vst [vmem:[%s312 + $0xec] sm:$0xf] %v2273
      %2338 = vst [vmem:[%s312 + $0xf0] sm:$0xf] %v2274
      %2339 = vst [vmem:[%s312 + $0xf4] sm:$0xf] %v2275
      %2340 = vst [vmem:[%s312 + $0xf8] sm:$0xf] %v2276
      %2341 = vst [vmem:[%s312 + $0xfc] sm:$0xf] %v2277
      %s2342 = smul.u32 64, %s21
      %p2343 = scmp.lt.s32.totalorder %s20, 3
      %s2344 = scalar_select %p2343, %s20, 3
      %p2345 = scmp.lt.s32.totalorder %s2342, 63
      %s2346 = scalar_select %p2345, %s2342, 63
      %p2347 = scmp.lt.s32.totalorder %s22, 0
      %s2348 = scalar_select %p2347, %s22, 0
      %s2349 = sadd.s32 %s2348, %s2346
      %s2350 = smul.addr %s2344, 64
      %s2351 = sadd.s32 %s2349, %s2350
      %s2352 = smul.addr %s2351, 4
      %s2353 = scalar_lea.vmem %s4, %s2352
      // Predicated region
      $region37: #{_lambda_.8} parent=35 // pred_check
        %p2354 = pneg %p164
      $region38: #{_lambda_.8} parent=35 // pred_check_branch
        %2356 = sbr.rel (%p2354) target = $region40
      $region39: #{_lambda_.8} parent=35 // pred_region
        %s2357 = smul.u32 64, %s21
      $region40: #{_lambda_.8} parent=35 // pred_fallthru
        _
    $region36: #{_lambda_.8} parent=5 // pred_fallthru
      _
    %p2358 = scmp.le.s32.totalorder 2, %s10
    // Predicated region
    $region41: #{_lambda_.8} parent=5 // pred_check
      %p2359 = pneg %p2358
    $region42: #{_lambda_.8} parent=5 // pred_check_branch
      %2361 = sbr.rel (%p2359) target = $region44
    $region43: #{_lambda_.8} parent=5 // pred_region
      %s2362 = ssub.s32 %s10, 2
      // Predicated region
      $region45: #{_lambda_.8} parent=43 // pred_check
        %p2363 = pneg %p170
      $region46: #{_lambda_.8} parent=43 // pred_check_branch
        %2365 = sbr.rel (%p2363) target = $region48
      $region47: #{_lambda_.8} parent=43 // pred_region
        %s2366 = smul.u32 64, %s24
        %p2367 = scmp.lt.s32.totalorder %s23, 3
        %s2368 = scalar_select %p2367, %s23, 3
        %p2369 = scmp.lt.s32.totalorder %s2366, 63
        %s2370 = scalar_select %p2369, %s2366, 63
        %p2371 = scmp.lt.s32.totalorder %s25, 0
        %s2372 = scalar_select %p2371, %s25, 0
        %s2373 = sadd.s32 %s2372, %s2370
        %s2374 = smul.addr %s2368, 64
        %s2375 = sadd.s32 %s2373, %s2374
        %s2376 = smul.addr %s2375, 4
        %s2377 = scalar_lea.vmem %s4, %s2376
      $region48: #{_lambda_.8} parent=43 // pred_fallthru
        _
    $region44: #{_lambda_.8} parent=5 // pred_fallthru
      _
  $region6: #{_lambda_.8} parent=0 // loop_footer
    %s14 = sadd.s32 1, %s10
  $region7: #{_lambda_.8} parent=0 // loop_footer_branch
    %9 = sbr.rel target = $region3
  $region8: #{_lambda_.8} parent=0 // loop_exit
    _

// kernel: _lambda_.9
$region0: #{_lambda_.9}
  #allocation0 [shape = 'u32[]', space=smem, size = 0x4, offset = 0x4, fixed_abs, tag = 'smem constant byte address 0x4 - core index']
  #allocation1 [shape = 'u32[72,128]{1,0:T(1,128)}', space=vmem, size = 0x9000, scoped, tag = 'internal scratch']
  %s0 = inlined_call_operand.vmem [shape: bf16[4,2048,256], index: 0, kind: input, shape index: {}]
  %s1 = inlined_call_operand.vmem [shape: bf16[4,256,128], index: 1, kind: input, shape index: {}]
  %s2 = inlined_call_operand.vmem [shape: f32[1,128], index: 2, kind: input, shape index: {}]
  %s3 = inlined_call_operand.vmem [shape: f32[1,128], index: 3, kind: input, shape index: {}]
  %s4 = inlined_call_operand.vmem [shape: f32[4,2048,128], index: 4, kind: output, shape index: {}]
  %s5 = sld [smem:[#allocation0]]
  $region49: #{_lambda_.9} parent=0
    _
  %s7 = ssub.s32 1, %s5
  %s8 = scalar_select 0, %s7, %s5
  loop: start=0, step=1, limit=10
  $region2: #{_lambda_.9} parent=0 // loop_pre_header
    _
  $region3: #{_lambda_.9} parent=0 // loop_header
    %s10 = sphi 0, %s14
    %p11 = scmp.ge.s32.totalorder %s10, 10
    %s17 = sphi 0, %s36
    %s18 = sphi 0, %s32
    %s19 = sphi 0, %s28
    %s20 = sphi 0, %s17
    %s21 = sphi 0, %s18
    %s22 = sphi 0, %s19
    %s23 = sphi 0, %s20
    %s24 = sphi 0, %s21
    %s25 = sphi 0, %s22
    %s41 = sphi 0, %s43
    %s44 = sphi 0, %s41
    %s45 = sphi 0, %s44
    %s61 = sphi 0, %s45
    %s69 = sphi 0, %s71
    %s72 = sphi 0, %s69
    %s73 = sphi 0, %s72
    %s89 = sphi 0, %s73
    %s95 = sphi 0, %s97
    %s98 = sphi 0, %s95
    %s99 = sphi 0, %s98
    %s115 = sphi 0, %s99
    %s121 = sphi 0, %s123
    %s124 = sphi 0, %s121
    %s125 = sphi 0, %s124
    %s141 = sphi 0, %s125
    %s151 = sphi 0, %s153
    %s154 = sphi 0, %s151
    %s155 = sphi 0, %s154
    %s171 = sphi 0, %s155
  $region4: #{_lambda_.9} parent=0 // loop_header_branch
    %13 = sbr.rel (%p11) target = $region8
  $region5: #{_lambda_.9} parent=0 // loop_body
    %s15 = ssub.s32 %s10, 1
    %s16 = ssub.s32 %s10, 2
    %s26 = sadd.s32 1, %s19
    %p27 = scmp.ge.s32.totalorder %s26, 1
    %s28 = scalar_select %p27, 0, %s26
    %s29 = sadd.s32 1, %s18
    %s30 = scalar_select %p27, %s29, %s18
    %p31 = scmp.ge.s32.totalorder %s30, 2
    %s32 = scalar_select %p31, 0, %s30
    %s33 = sadd.s32 1, %s17
    %s34 = scalar_select %p31, %s33, %s17
    %p35 = scmp.ge.s32.totalorder %s34, 4
    %s36 = scalar_select %p35, 0, %s34
    %s37 = ssub.s32 %s17, %s36
    %s38 = ssub.s32 %s18, %s32
    %s39 = sor.u32 %s37, %s38
    %p40 = scmp.eq.s32.totalorder %s39, 0
    %s42 = sadd.s32 %s41, 1
    %s43 = scalar_select %p40, %s41, %s42
    %p46 = pneg %p40
    %p47 = scmp.eq.s32.totalorder %s10, 7
    %p48 = por %p46, %p47
    %p49 = scmp.ne.s32.totalorder %s41, %s44
    %p50 = scmp.eq.s32.totalorder %s10, 0
    %p51 = por %p49, %p50
    %p52 = scmp.ne.s32.totalorder %s41, %s44
    %p53 = scmp.eq.s32.totalorder %s15, 7
    %p54 = por %p52, %p53
    %p55 = scmp.ne.s32.totalorder %s44, %s45
    %p56 = scmp.eq.s32.totalorder %s15, 0
    %p57 = por %p55, %p56
    %p58 = scmp.ne.s32.totalorder %s44, %s45
    %p59 = scmp.eq.s32.totalorder %s16, 7
    %p60 = por %p58, %p59
    %p62 = scmp.ne.s32.totalorder %s45, %s61
    %p63 = scmp.eq.s32.totalorder %s16, 0
    %p64 = por %p62, %p63
    %s65 = ssub.s32 %s17, %s36
    %s66 = ssub.s32 %s19, %s28
    %s67 = sor.u32 %s65, %s66
    %p68 = scmp.eq.s32.totalorder %s67, 0
    %s70 = sadd.s32 %s69, 1
    %s71 = scalar_select %p68, %s69, %s70
    %p74 = pneg %p68
    %p75 = scmp.eq.s32.totalorder %s10, 7
    %p76 = por %p74, %p75
    %p77 = scmp.ne.s32.totalorder %s69, %s72
    %p78 = scmp.eq.s32.totalorder %s10, 0
    %p79 = por %p77, %p78
    %p80 = scmp.ne.s32.totalorder %s69, %s72
    %p81 = scmp.eq.s32.totalorder %s15, 7
    %p82 = por %p80, %p81
    %p83 = scmp.ne.s32.totalorder %s72, %s73
    %p84 = scmp.eq.s32.totalorder %s15, 0
    %p85 = por %p83, %p84
    %p86 = scmp.ne.s32.totalorder %s72, %s73
    %p87 = scmp.eq.s32.totalorder %s16, 7
    %p88 = por %p86, %p87
    %p90 = scmp.ne.s32.totalorder %s73, %s89
    %p91 = scmp.eq.s32.totalorder %s16, 0
    %p92 = por %p90, %p91
    %s93 = ssub.s32 %s19, %s28
    %p94 = scmp.eq.s32.totalorder %s93, 0
    %s96 = sadd.s32 %s95, 1
    %s97 = scalar_select %p94, %s95, %s96
    %p100 = pneg %p94
    %p101 = scmp.eq.s32.totalorder %s10, 7
    %p102 = por %p100, %p101
    %p103 = scmp.ne.s32.totalorder %s95, %s98
    %p104 = scmp.eq.s32.totalorder %s10, 0
    %p105 = por %p103, %p104
    %p106 = scmp.ne.s32.totalorder %s95, %s98
    %p107 = scmp.eq.s32.totalorder %s15, 7
    %p108 = por %p106, %p107
    %p109 = scmp.ne.s32.totalorder %s98, %s99
    %p110 = scmp.eq.s32.totalorder %s15, 0
    %p111 = por %p109, %p110
    %p112 = scmp.ne.s32.totalorder %s98, %s99
    %p113 = scmp.eq.s32.totalorder %s16, 7
    %p114 = por %p112, %p113
    %p116 = scmp.ne.s32.totalorder %s99, %s115
    %p117 = scmp.eq.s32.totalorder %s16, 0
    %p118 = por %p116, %p117
    %s119 = ssub.s32 %s19, %s28
    %p120 = scmp.eq.s32.totalorder %s119, 0
    %s122 = sadd.s32 %s121, 1
    %s123 = scalar_select %p120, %s121, %s122
    %p126 = pneg %p120
    %p127 = scmp.eq.s32.totalorder %s10, 7
    %p128 = por %p126, %p127
    %p129 = scmp.ne.s32.totalorder %s121, %s124
    %p130 = scmp.eq.s32.totalorder %s10, 0
    %p131 = por %p129, %p130
    %p132 = scmp.ne.s32.totalorder %s121, %s124
    %p133 = scmp.eq.s32.totalorder %s15, 7
    %p134 = por %p132, %p133
    %p135 = scmp.ne.s32.totalorder %s124, %s125
    %p136 = scmp.eq.s32.totalorder %s15, 0
    %p137 = por %p135, %p136
    %p138 = scmp.ne.s32.totalorder %s124, %s125
    %p139 = scmp.eq.s32.totalorder %s16, 7
    %p140 = por %p138, %p139
    %p142 = scmp.ne.s32.totalorder %s125, %s141
    %p143 = scmp.eq.s32.totalorder %s16, 0
    %p144 = por %p142, %p143
    %s145 = ssub.s32 %s17, %s36
    %s146 = ssub.s32 %s18, %s32
    %s147 = sor.u32 %s145, %s146
    %s148 = ssub.s32 %s19, %s28
    %s149 = sor.u32 %s147, %s148
    %p150 = scmp.eq.s32.totalorder %s149, 0
    %s152 = sadd.s32 %s151, 1
    %s153 = scalar_select %p150, %s151, %s152
    %p156 = pneg %p150
    %p157 = scmp.eq.s32.totalorder %s10, 7
    %p158 = por %p156, %p157
    %p159 = scmp.ne.s32.totalorder %s151, %s154
    %p160 = scmp.eq.s32.totalorder %s10, 0
    %p161 = por %p159, %p160
    %p162 = scmp.ne.s32.totalorder %s151, %s154
    %p163 = scmp.eq.s32.totalorder %s15, 7
    %p164 = por %p162, %p163
    %p165 = scmp.ne.s32.totalorder %s154, %s155
    %p166 = scmp.eq.s32.totalorder %s15, 0
    %p167 = por %p165, %p166
    %p168 = scmp.ne.s32.totalorder %s154, %s155
    %p169 = scmp.eq.s32.totalorder %s16, 7
    %p170 = por %p168, %p169
    %p172 = scmp.ne.s32.totalorder %s155, %s171
    %p173 = scmp.eq.s32.totalorder %s16, 0
    %p174 = por %p172, %p173
    %p175 = scmp.le.s32.totalorder 1, %s10
    %p176 = scmp.lt.s32.totalorder %s10, 9
    %p177 = pnand %p175, %p176
    %p178 = pneg %p177
    // Predicated region
    $region9: #{_lambda_.9} parent=5 // pred_check
      _
    $region10: #{_lambda_.9} parent=5 // pred_check_branch
      %180 = sbr.rel (%p177) target = $region12
    $region11: #{_lambda_.9} parent=5 // pred_region
      %s181 = ssub.s32 %s10, 1
      // Predicated region
      $region13: #{_lambda_.9} parent=11 // pred_check
        %p182 = pneg %p111
      $region14: #{_lambda_.9} parent=11 // pred_check_branch
        %184 = sbr.rel (%p182) target = $region16
      $region15: #{_lambda_.9} parent=11 // pred_region
        %p185 = scmp.lt.s32.totalorder %s22, 0
        %s186 = scalar_select %p185, %s22, 0
        %s187 = scalar_lea.vmem %s2, %s186
      $region16: #{_lambda_.9} parent=11 // pred_fallthru
        _
      // Predicated region
      $region17: #{_lambda_.9} parent=11 // pred_check
        %p188 = pneg %p137
      $region18: #{_lambda_.9} parent=11 // pred_check_branch
        %190 = sbr.rel (%p188) target = $region20
      $region19: #{_lambda_.9} parent=11 // pred_region
        %p191 = scmp.lt.s32.totalorder %s22, 0
        %s192 = scalar_select %p191, %s22, 0
        %s193 = scalar_lea.vmem %s3, %s192
      $region20: #{_lambda_.9} parent=11 // pred_fallthru
        _
    $region12: #{_lambda_.9} parent=5 // pred_fallthru
      _
    %p194 = scmp.lt.s32.totalorder %s10, 8
    // Predicated region
    $region21: #{_lambda_.9} parent=5 // pred_check
      %p195 = pneg %p194
    $region22: #{_lambda_.9} parent=5 // pred_check_branch
      %197 = sbr.rel (%p195) target = $region24
    $region23: #{_lambda_.9} parent=5 // pred_region
      // Predicated region
      $region25: #{_lambda_.9} parent=23 // pred_check
        %p198 = pneg %p51
      $region26: #{_lambda_.9} parent=23 // pred_check_branch
        %200 = sbr.rel (%p198) target = $region28
      $region27: #{_lambda_.9} parent=23 // pred_region
        %s201 = smul.u32 128, %s18
        %p202 = scmp.lt.s32.totalorder %s17, 3
        %s203 = scalar_select %p202, %s17, 3
        %p204 = scmp.lt.s32.totalorder %s201, 255
        %s205 = scalar_select %p204, %s201, 255
        %s206 = smul.addr %s205, 2
        %s207 = smul.addr %s203, 512
        %s208 = sadd.s32 %s206, %s207
        %s209 = smul.addr %s208, 4
        %s210 = scalar_lea.vmem %s0, %s209
        %s211 = smul.u32 128, %s18
      $region28: #{_lambda_.9} parent=23 // pred_fallthru
        _
      // Predicated region
      $region29: #{_lambda_.9} parent=23 // pred_check
        %p212 = pneg %p79
      $region30: #{_lambda_.9} parent=23 // pred_check_branch
        %214 = sbr.rel (%p212) target = $region32
      $region31: #{_lambda_.9} parent=23 // pred_region
        %p215 = scmp.lt.s32.totalorder %s17, 3
        %s216 = scalar_select %p215, %s17, 3
        %p217 = scmp.lt.s32.totalorder %s19, 0
        %s218 = scalar_select %p217, %s19, 0
        %s219 = smul.addr %s216, 32
        %s220 = sadd.s32 %s218, %s219
        %s221 = smul.addr %s220, 4
        %s222 = scalar_lea.vmem %s1, %s221
      $region32: #{_lambda_.9} parent=23 // pred_fallthru
        _
    $region24: #{_lambda_.9} parent=5 // pred_fallthru
      _
    %p223 = scmp.le.s32.totalorder 1, %s10
    %p224 = scmp.lt.s32.totalorder %s10, 9
    %p225 = pnand %p223, %p224
    %p226 = pneg %p225
    // Predicated region
    $region33: #{_lambda_.9} parent=5 // pred_check
      _
    $region34: #{_lambda_.9} parent=5 // pred_check_branch
      %228 = sbr.rel (%p225) target = $region36
    $region35: #{_lambda_.9} parent=5 // pred_region
      %s229 = ssub.s32 %s10, 1
      %s230 = smul.u32 128, %s21
      %p231 = scmp.lt.s32.totalorder %s20, 3
      %s232 = scalar_select %p231, %s20, 3
      %p233 = scmp.lt.s32.totalorder %s230, 255
      %s234 = scalar_select %p233, %s230, 255
      %s235 = smul.addr %s234, 2
      %s236 = smul.addr %s232, 512
      %s237 = sadd.s32 %s235, %s236
      %s238 = smul.addr %s237, 4
      %s239 = scalar_lea.vmem %s0, %s238
      %p240 = pneg %p57
      %p241 = pneg %p54
      %p242 = scmp.lt.s32.totalorder %s20, 3
      %s243 = scalar_select %p242, %s20, 3
      %p244 = scmp.lt.s32.totalorder %s22, 0
      %s245 = scalar_select %p244, %s22, 0
      %s246 = smul.addr %s243, 32
      %s247 = sadd.s32 %s245, %s246
      %s248 = smul.addr %s247, 4
      %s249 = scalar_lea.vmem %s1, %s248
      %p250 = pneg %p85
      %p251 = pneg %p82
      %p252 = scmp.lt.s32.totalorder %s22, 0
      %s253 = scalar_select %p252, %s22, 0
      %s254 = scalar_lea.vmem %s2, %s253
      %p255 = pneg %p111
      %p256 = pneg %p108
      %p257 = scmp.lt.s32.totalorder %s22, 0
      %s258 = scalar_select %p257, %s22, 0
      %s259 = scalar_lea.vmem %s3, %s258
      %p260 = pneg %p137
      %p261 = pneg %p134
      %p262 = pneg %p167
      %p263 = pneg %p164
      %s264 = smul.u32 128, %s21
      %p265 = scmp.lt.s32.totalorder %s20, 3
      %s266 = scalar_select %p265, %s20, 3
      %p267 = scmp.lt.s32.totalorder %s264, 255
      %s268 = scalar_select %p267, %s264, 255
      %p269 = scmp.lt.s32.totalorder %s22, 0
      %s270 = scalar_select %p269, %s22, 0
      %s271 = sadd.s32 %s270, %s268
      %s272 = smul.addr %s266, 256
      %s273 = sadd.s32 %s271, %s272
      %s274 = smul.addr %s273, 8
      %s275 = scalar_lea.vmem %s4, %s274
      %s276 = smul.u32 128, %s21
      %p277 = scmp.lt.s32.totalorder %s20, 3
      %s278 = scalar_select %p277, %s20, 3
      %p279 = scmp.lt.s32.totalorder %s276, 255
      %s280 = scalar_select %p279, %s276, 255
      %s281 = smul.addr %s280, 2
      %s282 = smul.addr %s278, 512
      %s283 = sadd.s32 %s281, %s282
      %s284 = smul.addr %s283, 4
      %s285 = scalar_lea.vmem %s0, %s284
      %s286 = smul.u32 128, %s21
      %p287 = scmp.lt.s32.totalorder %s20, 3
      %s288 = scalar_select %p287, %s20, 3
      %p289 = scmp.lt.s32.totalorder %s22, 0
      %s290 = scalar_select %p289, %s22, 0
      %s291 = smul.addr %s288, 32
      %s292 = sadd.s32 %s290, %s291
      %s293 = smul.addr %s292, 4
      %s294 = scalar_lea.vmem %s1, %s293
      %p295 = scmp.lt.s32.totalorder %s22, 0
      %s296 = scalar_select %p295, %s22, 0
      %s297 = scalar_lea.vmem %s2, %s296
      %p298 = scmp.lt.s32.totalorder %s22, 0
      %s299 = scalar_select %p298, %s22, 0
      %s300 = scalar_lea.vmem %s3, %s299
      %s301 = smul.u32 128, %s21
      %p302 = scmp.lt.s32.totalorder %s20, 3
      %s303 = scalar_select %p302, %s20, 3
      %p304 = scmp.lt.s32.totalorder %s301, 255
      %s305 = scalar_select %p304, %s301, 255
      %p306 = scmp.lt.s32.totalorder %s22, 0
      %s307 = scalar_select %p306, %s22, 0
      %s308 = sadd.s32 %s307, %s305
      %s309 = smul.addr %s303, 256
      %s310 = sadd.s32 %s308, %s309
      %s311 = smul.addr %s310, 8
      %s312 = scalar_lea.vmem %s4, %s311
      %s313 = smul.u32 128, %s21
      %v314 = vld [vmem:[%s285] sm:$0xff]
      %v315 = vld [vmem:[%s285 + $0x8] sm:$0xff]
      %v316 = vld [vmem:[%s285 + $0x10] sm:$0xff]
      %v317 = vld [vmem:[%s285 + $0x18] sm:$0xff]
      %v318 = vld [vmem:[%s285 + $0x20] sm:$0xff]
      %v319 = vld [vmem:[%s285 + $0x28] sm:$0xff]
      %v320 = vld [vmem:[%s285 + $0x30] sm:$0xff]
      %v321 = vld [vmem:[%s285 + $0x38] sm:$0xff]
      %v322 = vld [vmem:[%s285 + $0x40] sm:$0xff]
      %v323 = vld [vmem:[%s285 + $0x48] sm:$0xff]
      %v324 = vld [vmem:[%s285 + $0x50] sm:$0xff]
      %v325 = vld [vmem:[%s285 + $0x58] sm:$0xff]
      %v326 = vld [vmem:[%s285 + $0x60] sm:$0xff]
      %v327 = vld [vmem:[%s285 + $0x68] sm:$0xff]
      %v328 = vld [vmem:[%s285 + $0x70] sm:$0xff]
      %v329 = vld [vmem:[%s285 + $0x78] sm:$0xff]
      %v330 = vld [vmem:[%s285 + $0x80] sm:$0xff]
      %v331 = vld [vmem:[%s285 + $0x88] sm:$0xff]
      %v332 = vld [vmem:[%s285 + $0x90] sm:$0xff]
      %v333 = vld [vmem:[%s285 + $0x98] sm:$0xff]
      %v334 = vld [vmem:[%s285 + $0xa0] sm:$0xff]
      %v335 = vld [vmem:[%s285 + $0xa8] sm:$0xff]
      %v336 = vld [vmem:[%s285 + $0xb0] sm:$0xff]
      %v337 = vld [vmem:[%s285 + $0xb8] sm:$0xff]
      %v338 = vld [vmem:[%s285 + $0xc0] sm:$0xff]
      %v339 = vld [vmem:[%s285 + $0xc8] sm:$0xff]
      %v340 = vld [vmem:[%s285 + $0xd0] sm:$0xff]
      %v341 = vld [vmem:[%s285 + $0xd8] sm:$0xff]
      %v342 = vld [vmem:[%s285 + $0xe0] sm:$0xff]
      %v343 = vld [vmem:[%s285 + $0xe8] sm:$0xff]
      %v344 = vld [vmem:[%s285 + $0xf0] sm:$0xff]
      %v345 = vld [vmem:[%s285 + $0xf8] sm:$0xff]
      %v346 = vld [vmem:[%s285 + $0x100] sm:$0xff]
      %v347 = vld [vmem:[%s285 + $0x108] sm:$0xff]
      %v348 = vld [vmem:[%s285 + $0x110] sm:$0xff]
      %v349 = vld [vmem:[%s285 + $0x118] sm:$0xff]
      %v350 = vld [vmem:[%s285 + $0x120] sm:$0xff]
      %v351 = vld [vmem:[%s285 + $0x128] sm:$0xff]
      %v352 = vld [vmem:[%s285 + $0x130] sm:$0xff]
      %v353 = vld [vmem:[%s285 + $0x138] sm:$0xff]
      %v354 = vld [vmem:[%s285 + $0x140] sm:$0xff]
      %v355 = vld [vmem:[%s285 + $0x148] sm:$0xff]
      %v356 = vld [vmem:[%s285 + $0x150] sm:$0xff]
      %v357 = vld [vmem:[%s285 + $0x158] sm:$0xff]
      %v358 = vld [vmem:[%s285 + $0x160] sm:$0xff]
      %v359 = vld [vmem:[%s285 + $0x168] sm:$0xff]
      %v360 = vld [vmem:[%s285 + $0x170] sm:$0xff]
      %v361 = vld [vmem:[%s285 + $0x178] sm:$0xff]
      %v362 = vld [vmem:[%s285 + $0x180] sm:$0xff]
      %v363 = vld [vmem:[%s285 + $0x188] sm:$0xff]
      %v364 = vld [vmem:[%s285 + $0x190] sm:$0xff]
      %v365 = vld [vmem:[%s285 + $0x198] sm:$0xff]
      %v366 = vld [vmem:[%s285 + $0x1a0] sm:$0xff]
      %v367 = vld [vmem:[%s285 + $0x1a8] sm:$0xff]
      %v368 = vld [vmem:[%s285 + $0x1b0] sm:$0xff]
      %v369 = vld [vmem:[%s285 + $0x1b8] sm:$0xff]
      %v370 = vld [vmem:[%s285 + $0x1c0] sm:$0xff]
      %v371 = vld [vmem:[%s285 + $0x1c8] sm:$0xff]
      %v372 = vld [vmem:[%s285 + $0x1d0] sm:$0xff]
      %v373 = vld [vmem:[%s285 + $0x1d8] sm:$0xff]
      %v374 = vld [vmem:[%s285 + $0x1e0] sm:$0xff]
      %v375 = vld [vmem:[%s285 + $0x1e8] sm:$0xff]
      %v376 = vld [vmem:[%s285 + $0x1f0] sm:$0xff]
      %v377 = vld [vmem:[%s285 + $0x1f8] sm:$0xff]
      %v378 = vld [vmem:[%s285 + $0x200] sm:$0xff]
      %v379 = vld [vmem:[%s285 + $0x208] sm:$0xff]
      %v380 = vld [vmem:[%s285 + $0x210] sm:$0xff]
      %v381 = vld [vmem:[%s285 + $0x218] sm:$0xff]
      %v382 = vld [vmem:[%s285 + $0x220] sm:$0xff]
      %v383 = vld [vmem:[%s285 + $0x228] sm:$0xff]
      %v384 = vld [vmem:[%s285 + $0x230] sm:$0xff]
      %v385 = vld [vmem:[%s285 + $0x238] sm:$0xff]
      %v386 = vld [vmem:[%s285 + $0x240] sm:$0xff]
      %v387 = vld [vmem:[%s285 + $0x248] sm:$0xff]
      %v388 = vld [vmem:[%s285 + $0x250] sm:$0xff]
      %v389 = vld [vmem:[%s285 + $0x258] sm:$0xff]
      %v390 = vld [vmem:[%s285 + $0x260] sm:$0xff]
      %v391 = vld [vmem:[%s285 + $0x268] sm:$0xff]
      %v392 = vld [vmem:[%s285 + $0x270] sm:$0xff]
      %v393 = vld [vmem:[%s285 + $0x278] sm:$0xff]
      %v394 = vld [vmem:[%s285 + $0x280] sm:$0xff]
      %v395 = vld [vmem:[%s285 + $0x288] sm:$0xff]
      %v396 = vld [vmem:[%s285 + $0x290] sm:$0xff]
      %v397 = vld [vmem:[%s285 + $0x298] sm:$0xff]
      %v398 = vld [vmem:[%s285 + $0x2a0] sm:$0xff]
      %v399 = vld [vmem:[%s285 + $0x2a8] sm:$0xff]
      %v400 = vld [vmem:[%s285 + $0x2b0] sm:$0xff]
      %v401 = vld [vmem:[%s285 + $0x2b8] sm:$0xff]
      %v402 = vld [vmem:[%s285 + $0x2c0] sm:$0xff]
      %v403 = vld [vmem:[%s285 + $0x2c8] sm:$0xff]
      %v404 = vld [vmem:[%s285 + $0x2d0] sm:$0xff]
      %v405 = vld [vmem:[%s285 + $0x2d8] sm:$0xff]
      %v406 = vld [vmem:[%s285 + $0x2e0] sm:$0xff]
      %v407 = vld [vmem:[%s285 + $0x2e8] sm:$0xff]
      %v408 = vld [vmem:[%s285 + $0x2f0] sm:$0xff]
      %v409 = vld [vmem:[%s285 + $0x2f8] sm:$0xff]
      %v410 = vld [vmem:[%s285 + $0x300] sm:$0xff]
      %v411 = vld [vmem:[%s285 + $0x308] sm:$0xff]
      %v412 = vld [vmem:[%s285 + $0x310] sm:$0xff]
      %v413 = vld [vmem:[%s285 + $0x318] sm:$0xff]
      %v414 = vld [vmem:[%s285 + $0x320] sm:$0xff]
      %v415 = vld [vmem:[%s285 + $0x328] sm:$0xff]
      %v416 = vld [vmem:[%s285 + $0x330] sm:$0xff]
      %v417 = vld [vmem:[%s285 + $0x338] sm:$0xff]
      %v418 = vld [vmem:[%s285 + $0x340] sm:$0xff]
      %v419 = vld [vmem:[%s285 + $0x348] sm:$0xff]
      %v420 = vld [vmem:[%s285 + $0x350] sm:$0xff]
      %v421 = vld [vmem:[%s285 + $0x358] sm:$0xff]
      %v422 = vld [vmem:[%s285 + $0x360] sm:$0xff]
      %v423 = vld [vmem:[%s285 + $0x368] sm:$0xff]
      %v424 = vld [vmem:[%s285 + $0x370] sm:$0xff]
      %v425 = vld [vmem:[%s285 + $0x378] sm:$0xff]
      %v426 = vld [vmem:[%s285 + $0x380] sm:$0xff]
      %v427 = vld [vmem:[%s285 + $0x388] sm:$0xff]
      %v428 = vld [vmem:[%s285 + $0x390] sm:$0xff]
      %v429 = vld [vmem:[%s285 + $0x398] sm:$0xff]
      %v430 = vld [vmem:[%s285 + $0x3a0] sm:$0xff]
      %v431 = vld [vmem:[%s285 + $0x3a8] sm:$0xff]
      %v432 = vld [vmem:[%s285 + $0x3b0] sm:$0xff]
      %v433 = vld [vmem:[%s285 + $0x3b8] sm:$0xff]
      %v434 = vld [vmem:[%s285 + $0x3c0] sm:$0xff]
      %v435 = vld [vmem:[%s285 + $0x3c8] sm:$0xff]
      %v436 = vld [vmem:[%s285 + $0x3d0] sm:$0xff]
      %v437 = vld [vmem:[%s285 + $0x3d8] sm:$0xff]
      %v438 = vld [vmem:[%s285 + $0x3e0] sm:$0xff]
      %v439 = vld [vmem:[%s285 + $0x3e8] sm:$0xff]
      %v440 = vld [vmem:[%s285 + $0x3f0] sm:$0xff]
      %v441 = vld [vmem:[%s285 + $0x3f8] sm:$0xff]
      %v442 = vld [vmem:[%s294] sm:$0xf]
      %v443 = vld [vmem:[%s294 + $0x4] sm:$0xf]
      %v444 = vld [vmem:[%s294 + $0x8] sm:$0xf]
      %v445 = vld [vmem:[%s294 + $0xc] sm:$0xf]
      %v446 = vld [vmem:[%s294 + $0x10] sm:$0xf]
      %v447 = vld [vmem:[%s294 + $0x14] sm:$0xf]
      %v448 = vld [vmem:[%s294 + $0x18] sm:$0xf]
      %v449 = vld [vmem:[%s294 + $0x1c] sm:$0xf]
      %v450 = vld [vmem:[%s294 + $0x20] sm:$0xf]
      %v451 = vld [vmem:[%s294 + $0x24] sm:$0xf]
      %v452 = vld [vmem:[%s294 + $0x28] sm:$0xf]
      %v453 = vld [vmem:[%s294 + $0x2c] sm:$0xf]
      %v454 = vld [vmem:[%s294 + $0x30] sm:$0xf]
      %v455 = vld [vmem:[%s294 + $0x34] sm:$0xf]
      %v456 = vld [vmem:[%s294 + $0x38] sm:$0xf]
      %v457 = vld [vmem:[%s294 + $0x3c] sm:$0xf]
      %v458 = vld [vmem:[%s294 + $0x40] sm:$0xf]
      %v459 = vld [vmem:[%s294 + $0x44] sm:$0xf]
      %v460 = vld [vmem:[%s294 + $0x48] sm:$0xf]
      %v461 = vld [vmem:[%s294 + $0x4c] sm:$0xf]
      %v462 = vld [vmem:[%s294 + $0x50] sm:$0xf]
      %v463 = vld [vmem:[%s294 + $0x54] sm:$0xf]
      %v464 = vld [vmem:[%s294 + $0x58] sm:$0xf]
      %v465 = vld [vmem:[%s294 + $0x5c] sm:$0xf]
      %v466 = vld [vmem:[%s294 + $0x60] sm:$0xf]
      %v467 = vld [vmem:[%s294 + $0x64] sm:$0xf]
      %v468 = vld [vmem:[%s294 + $0x68] sm:$0xf]
      %v469 = vld [vmem:[%s294 + $0x6c] sm:$0xf]
      %v470 = vld [vmem:[%s294 + $0x70] sm:$0xf]
      %v471 = vld [vmem:[%s294 + $0x74] sm:$0xf]
      %v472 = vld [vmem:[%s294 + $0x78] sm:$0xf]
      %v473 = vld [vmem:[%s294 + $0x7c] sm:$0xf]
      %v602 = vunpack.c.l.b16 %v314
      %v603 = vunpack.c.h.b16 %v314
      %v604 = vunpack.c.l.b16 %v315
      %v605 = vunpack.c.h.b16 %v315
      %v606 = vunpack.c.l.b16 %v316
      %v607 = vunpack.c.h.b16 %v316
      %v608 = vunpack.c.l.b16 %v317
      %v609 = vunpack.c.h.b16 %v317
      %v610 = vunpack.c.l.b16 %v318
      %v611 = vunpack.c.h.b16 %v318
      %v612 = vunpack.c.l.b16 %v319
      %v613 = vunpack.c.h.b16 %v319
      %v614 = vunpack.c.l.b16 %v320
      %v615 = vunpack.c.h.b16 %v320
      %v616 = vunpack.c.l.b16 %v321
      %v617 = vunpack.c.h.b16 %v321
      %v618 = vunpack.c.l.b16 %v322
      %v619 = vunpack.c.h.b16 %v322
      %v620 = vunpack.c.l.b16 %v323
      %v621 = vunpack.c.h.b16 %v323
      %v622 = vunpack.c.l.b16 %v324
      %v623 = vunpack.c.h.b16 %v324
      %v624 = vunpack.c.l.b16 %v325
      %v625 = vunpack.c.h.b16 %v325
      %v626 = vunpack.c.l.b16 %v326
      %v627 = vunpack.c.h.b16 %v326
      %v628 = vunpack.c.l.b16 %v327
      %v629 = vunpack.c.h.b16 %v327
      %v630 = vunpack.c.l.b16 %v328
      %v631 = vunpack.c.h.b16 %v328
      %v632 = vunpack.c.l.b16 %v329
      %v633 = vunpack.c.h.b16 %v329
      %v634 = vunpack.c.l.b16 %v330
      %v635 = vunpack.c.h.b16 %v330
      %v636 = vunpack.c.l.b16 %v331
      %v637 = vunpack.c.h.b16 %v331
      %v638 = vunpack.c.l.b16 %v332
      %v639 = vunpack.c.h.b16 %v332
      %v640 = vunpack.c.l.b16 %v333
      %v641 = vunpack.c.h.b16 %v333
      %v642 = vunpack.c.l.b16 %v334
      %v643 = vunpack.c.h.b16 %v334
      %v644 = vunpack.c.l.b16 %v335
      %v645 = vunpack.c.h.b16 %v335
      %v646 = vunpack.c.l.b16 %v336
      %v647 = vunpack.c.h.b16 %v336
      %v648 = vunpack.c.l.b16 %v337
      %v649 = vunpack.c.h.b16 %v337
      %v650 = vunpack.c.l.b16 %v338
      %v651 = vunpack.c.h.b16 %v338
      %v652 = vunpack.c.l.b16 %v339
      %v653 = vunpack.c.h.b16 %v339
      %v654 = vunpack.c.l.b16 %v340
      %v655 = vunpack.c.h.b16 %v340
      %v656 = vunpack.c.l.b16 %v341
      %v657 = vunpack.c.h.b16 %v341
      %v658 = vunpack.c.l.b16 %v342
      %v659 = vunpack.c.h.b16 %v342
      %v660 = vunpack.c.l.b16 %v343
      %v661 = vunpack.c.h.b16 %v343
      %v662 = vunpack.c.l.b16 %v344
      %v663 = vunpack.c.h.b16 %v344
      %v664 = vunpack.c.l.b16 %v345
      %v665 = vunpack.c.h.b16 %v345
      %v666 = vunpack.c.l.b16 %v346
      %v667 = vunpack.c.h.b16 %v346
      %v668 = vunpack.c.l.b16 %v347
      %v669 = vunpack.c.h.b16 %v347
      %v670 = vunpack.c.l.b16 %v348
      %v671 = vunpack.c.h.b16 %v348
      %v672 = vunpack.c.l.b16 %v349
      %v673 = vunpack.c.h.b16 %v349
      %v674 = vunpack.c.l.b16 %v350
      %v675 = vunpack.c.h.b16 %v350
      %v676 = vunpack.c.l.b16 %v351
      %v677 = vunpack.c.h.b16 %v351
      %v678 = vunpack.c.l.b16 %v352
      %v679 = vunpack.c.h.b16 %v352
      %v680 = vunpack.c.l.b16 %v353
      %v681 = vunpack.c.h.b16 %v353
      %v682 = vunpack.c.l.b16 %v354
      %v683 = vunpack.c.h.b16 %v354
      %v684 = vunpack.c.l.b16 %v355
      %v685 = vunpack.c.h.b16 %v355
      %v686 = vunpack.c.l.b16 %v356
      %v687 = vunpack.c.h.b16 %v356
      %v688 = vunpack.c.l.b16 %v357
      %v689 = vunpack.c.h.b16 %v357
      %v690 = vunpack.c.l.b16 %v358
      %v691 = vunpack.c.h.b16 %v358
      %v692 = vunpack.c.l.b16 %v359
      %v693 = vunpack.c.h.b16 %v359
      %v694 = vunpack.c.l.b16 %v360
      %v695 = vunpack.c.h.b16 %v360
      %v696 = vunpack.c.l.b16 %v361
      %v697 = vunpack.c.h.b16 %v361
      %v698 = vunpack.c.l.b16 %v362
      %v699 = vunpack.c.h.b16 %v362
      %v700 = vunpack.c.l.b16 %v363
      %v701 = vunpack.c.h.b16 %v363
      %v702 = vunpack.c.l.b16 %v364
      %v703 = vunpack.c.h.b16 %v364
      %v704 = vunpack.c.l.b16 %v365
      %v705 = vunpack.c.h.b16 %v365
      %v706 = vunpack.c.l.b16 %v366
      %v707 = vunpack.c.h.b16 %v366
      %v708 = vunpack.c.l.b16 %v367
      %v709 = vunpack.c.h.b16 %v367
      %v710 = vunpack.c.l.b16 %v368
      %v711 = vunpack.c.h.b16 %v368
      %v712 = vunpack.c.l.b16 %v369
      %v713 = vunpack.c.h.b16 %v369
      %v714 = vunpack.c.l.b16 %v370
      %v715 = vunpack.c.h.b16 %v370
      %v716 = vunpack.c.l.b16 %v371
      %v717 = vunpack.c.h.b16 %v371
      %v718 = vunpack.c.l.b16 %v372
      %v719 = vunpack.c.h.b16 %v372
      %v720 = vunpack.c.l.b16 %v373
      %v721 = vunpack.c.h.b16 %v373
      %v722 = vunpack.c.l.b16 %v374
      %v723 = vunpack.c.h.b16 %v374
      %v724 = vunpack.c.l.b16 %v375
      %v725 = vunpack.c.h.b16 %v375
      %v726 = vunpack.c.l.b16 %v376
      %v727 = vunpack.c.h.b16 %v376
      %v728 = vunpack.c.l.b16 %v377
      %v729 = vunpack.c.h.b16 %v377
      %v730 = vunpack.c.l.b16 %v378
      %v731 = vunpack.c.h.b16 %v378
      %v732 = vunpack.c.l.b16 %v379
      %v733 = vunpack.c.h.b16 %v379
      %v734 = vunpack.c.l.b16 %v380
      %v735 = vunpack.c.h.b16 %v380
      %v736 = vunpack.c.l.b16 %v381
      %v737 = vunpack.c.h.b16 %v381
      %v738 = vunpack.c.l.b16 %v382
      %v739 = vunpack.c.h.b16 %v382
      %v740 = vunpack.c.l.b16 %v383
      %v741 = vunpack.c.h.b16 %v383
      %v742 = vunpack.c.l.b16 %v384
      %v743 = vunpack.c.h.b16 %v384
      %v744 = vunpack.c.l.b16 %v385
      %v745 = vunpack.c.h.b16 %v385
      %v746 = vunpack.c.l.b16 %v386
      %v747 = vunpack.c.h.b16 %v386
      %v748 = vunpack.c.l.b16 %v387
      %v749 = vunpack.c.h.b16 %v387
      %v750 = vunpack.c.l.b16 %v388
      %v751 = vunpack.c.h.b16 %v388
      %v752 = vunpack.c.l.b16 %v389
      %v753 = vunpack.c.h.b16 %v389
      %v754 = vunpack.c.l.b16 %v390
      %v755 = vunpack.c.h.b16 %v390
      %v756 = vunpack.c.l.b16 %v391
      %v757 = vunpack.c.h.b16 %v391
      %v758 = vunpack.c.l.b16 %v392
      %v759 = vunpack.c.h.b16 %v392
      %v760 = vunpack.c.l.b16 %v393
      %v761 = vunpack.c.h.b16 %v393
      %v762 = vunpack.c.l.b16 %v394
      %v763 = vunpack.c.h.b16 %v394
      %v764 = vunpack.c.l.b16 %v395
      %v765 = vunpack.c.h.b16 %v395
      %v766 = vunpack.c.l.b16 %v396
      %v767 = vunpack.c.h.b16 %v396
      %v768 = vunpack.c.l.b16 %v397
      %v769 = vunpack.c.h.b16 %v397
      %v770 = vunpack.c.l.b16 %v398
      %v771 = vunpack.c.h.b16 %v398
      %v772 = vunpack.c.l.b16 %v399
      %v773 = vunpack.c.h.b16 %v399
      %v774 = vunpack.c.l.b16 %v400
      %v775 = vunpack.c.h.b16 %v400
      %v776 = vunpack.c.l.b16 %v401
      %v777 = vunpack.c.h.b16 %v401
      %v778 = vunpack.c.l.b16 %v402
      %v779 = vunpack.c.h.b16 %v402
      %v780 = vunpack.c.l.b16 %v403
      %v781 = vunpack.c.h.b16 %v403
      %v782 = vunpack.c.l.b16 %v404
      %v783 = vunpack.c.h.b16 %v404
      %v784 = vunpack.c.l.b16 %v405
      %v785 = vunpack.c.h.b16 %v405
      %v786 = vunpack.c.l.b16 %v406
      %v787 = vunpack.c.h.b16 %v406
      %v788 = vunpack.c.l.b16 %v407
      %v789 = vunpack.c.h.b16 %v407
      %v790 = vunpack.c.l.b16 %v408
      %v791 = vunpack.c.h.b16 %v408
      %v792 = vunpack.c.l.b16 %v409
      %v793 = vunpack.c.h.b16 %v409
      %v794 = vunpack.c.l.b16 %v410
      %v795 = vunpack.c.h.b16 %v410
      %v796 = vunpack.c.l.b16 %v411
      %v797 = vunpack.c.h.b16 %v411
      %v798 = vunpack.c.l.b16 %v412
      %v799 = vunpack.c.h.b16 %v412
      %v800 = vunpack.c.l.b16 %v413
      %v801 = vunpack.c.h.b16 %v413
      %v802 = vunpack.c.l.b16 %v414
      %v803 = vunpack.c.h.b16 %v414
      %v804 = vunpack.c.l.b16 %v415
      %v805 = vunpack.c.h.b16 %v415
      %v806 = vunpack.c.l.b16 %v416
      %v807 = vunpack.c.h.b16 %v416
      %v808 = vunpack.c.l.b16 %v417
      %v809 = vunpack.c.h.b16 %v417
      %v810 = vunpack.c.l.b16 %v418
      %v811 = vunpack.c.h.b16 %v418
      %v812 = vunpack.c.l.b16 %v419
      %v813 = vunpack.c.h.b16 %v419
      %v814 = vunpack.c.l.b16 %v420
      %v815 = vunpack.c.h.b16 %v420
      %v816 = vunpack.c.l.b16 %v421
      %v817 = vunpack.c.h.b16 %v421
      %v818 = vunpack.c.l.b16 %v422
      %v819 = vunpack.c.h.b16 %v422
      %v820 = vunpack.c.l.b16 %v423
      %v821 = vunpack.c.h.b16 %v423
      %v822 = vunpack.c.l.b16 %v424
      %v823 = vunpack.c.h.b16 %v424
      %v824 = vunpack.c.l.b16 %v425
      %v825 = vunpack.c.h.b16 %v425
      %v826 = vunpack.c.l.b16 %v426
      %v827 = vunpack.c.h.b16 %v426
      %v828 = vunpack.c.l.b16 %v427
      %v829 = vunpack.c.h.b16 %v427
      %v830 = vunpack.c.l.b16 %v428
      %v831 = vunpack.c.h.b16 %v428
      %v832 = vunpack.c.l.b16 %v429
      %v833 = vunpack.c.h.b16 %v429
      %v834 = vunpack.c.l.b16 %v430
      %v835 = vunpack.c.h.b16 %v430
      %v836 = vunpack.c.l.b16 %v431
      %v837 = vunpack.c.h.b16 %v431
      %v838 = vunpack.c.l.b16 %v432
      %v839 = vunpack.c.h.b16 %v432
      %v840 = vunpack.c.l.b16 %v433
      %v841 = vunpack.c.h.b16 %v433
      %v842 = vunpack.c.l.b16 %v434
      %v843 = vunpack.c.h.b16 %v434
      %v844 = vunpack.c.l.b16 %v435
      %v845 = vunpack.c.h.b16 %v435
      %v846 = vunpack.c.l.b16 %v436
      %v847 = vunpack.c.h.b16 %v436
      %v848 = vunpack.c.l.b16 %v437
      %v849 = vunpack.c.h.b16 %v437
      %v850 = vunpack.c.l.b16 %v438
      %v851 = vunpack.c.h.b16 %v438
      %v852 = vunpack.c.l.b16 %v439
      %v853 = vunpack.c.h.b16 %v439
      %v854 = vunpack.c.l.b16 %v440
      %v855 = vunpack.c.h.b16 %v440
      %v856 = vunpack.c.l.b16 %v441
      %v857 = vunpack.c.h.b16 %v441
      %v858 = vpack.c.b16 %v604, %v602
      %v859 = vpack.c.b16 %v605, %v603
      %v860 = vpack.c.b16 %v608, %v606
      %v861 = vpack.c.b16 %v609, %v607
      %v862 = vpack.c.b16 %v612, %v610
      %v863 = vpack.c.b16 %v613, %v611
      %v864 = vpack.c.b16 %v616, %v614
      %v865 = vpack.c.b16 %v617, %v615
      %v866 = vpack.c.b16 %v620, %v618
      %v867 = vpack.c.b16 %v621, %v619
      %v868 = vpack.c.b16 %v624, %v622
      %v869 = vpack.c.b16 %v625, %v623
      %v870 = vpack.c.b16 %v628, %v626
      %v871 = vpack.c.b16 %v629, %v627
      %v872 = vpack.c.b16 %v632, %v630
      %v873 = vpack.c.b16 %v633, %v631
      %v874 = vpack.c.b16 %v636, %v634
      %v875 = vpack.c.b16 %v637, %v635
      %v876 = vpack.c.b16 %v640, %v638
      %v877 = vpack.c.b16 %v641, %v639
      %v878 = vpack.c.b16 %v644, %v642
      %v879 = vpack.c.b16 %v645, %v643
      %v880 = vpack.c.b16 %v648, %v646
      %v881 = vpack.c.b16 %v649, %v647
      %v882 = vpack.c.b16 %v652, %v650
      %v883 = vpack.c.b16 %v653, %v651
      %v884 = vpack.c.b16 %v656, %v654
      %v885 = vpack.c.b16 %v657, %v655
      %v886 = vpack.c.b16 %v660, %v658
      %v887 = vpack.c.b16 %v661, %v659
      %v888 = vpack.c.b16 %v664, %v662
      %v889 = vpack.c.b16 %v665, %v663
      %v890 = vpack.c.b16 %v668, %v666
      %v891 = vpack.c.b16 %v669, %v667
      %v892 = vpack.c.b16 %v672, %v670
      %v893 = vpack.c.b16 %v673, %v671
      %v894 = vpack.c.b16 %v676, %v674
      %v895 = vpack.c.b16 %v677, %v675
      %v896 = vpack.c.b16 %v680, %v678
      %v897 = vpack.c.b16 %v681, %v679
      %v898 = vpack.c.b16 %v684, %v682
      %v899 = vpack.c.b16 %v685, %v683
      %v900 = vpack.c.b16 %v688, %v686
      %v901 = vpack.c.b16 %v689, %v687
      %v902 = vpack.c.b16 %v692, %v690
      %v903 = vpack.c.b16 %v693, %v691
      %v904 = vpack.c.b16 %v696, %v694
      %v905 = vpack.c.b16 %v697, %v695
      %v906 = vpack.c.b16 %v700, %v698
      %v907 = vpack.c.b16 %v701, %v699
      %v908 = vpack.c.b16 %v704, %v702
      %v909 = vpack.c.b16 %v705, %v703
      %v910 = vpack.c.b16 %v708, %v706
      %v911 = vpack.c.b16 %v709, %v707
      %v912 = vpack.c.b16 %v712, %v710
      %v913 = vpack.c.b16 %v713, %v711
      %v914 = vpack.c.b16 %v716, %v714
      %v915 = vpack.c.b16 %v717, %v715
      %v916 = vpack.c.b16 %v720, %v718
      %v917 = vpack.c.b16 %v721, %v719
      %v918 = vpack.c.b16 %v724, %v722
      %v919 = vpack.c.b16 %v725, %v723
      %v920 = vpack.c.b16 %v728, %v726
      %v921 = vpack.c.b16 %v729, %v727
      %v922 = vpack.c.b16 %v732, %v730
      %v923 = vpack.c.b16 %v733, %v731
      %v924 = vpack.c.b16 %v736, %v734
      %v925 = vpack.c.b16 %v737, %v735
      %v926 = vpack.c.b16 %v740, %v738
      %v927 = vpack.c.b16 %v741, %v739
      %v928 = vpack.c.b16 %v744, %v742
      %v929 = vpack.c.b16 %v745, %v743
      %v930 = vpack.c.b16 %v748, %v746
      %v931 = vpack.c.b16 %v749, %v747
      %v932 = vpack.c.b16 %v752, %v750
      %v933 = vpack.c.b16 %v753, %v751
      %v934 = vpack.c.b16 %v756, %v754
      %v935 = vpack.c.b16 %v757, %v755
      %v936 = vpack.c.b16 %v760, %v758
      %v937 = vpack.c.b16 %v761, %v759
      %v938 = vpack.c.b16 %v764, %v762
      %v939 = vpack.c.b16 %v765, %v763
      %v940 = vpack.c.b16 %v768, %v766
      %v941 = vpack.c.b16 %v769, %v767
      %v942 = vpack.c.b16 %v772, %v770
      %v943 = vpack.c.b16 %v773, %v771
      %v944 = vpack.c.b16 %v776, %v774
      %v945 = vpack.c.b16 %v777, %v775
      %v946 = vpack.c.b16 %v780, %v778
      %v947 = vpack.c.b16 %v781, %v779
      %v948 = vpack.c.b16 %v784, %v782
      %v949 = vpack.c.b16 %v785, %v783
      %v950 = vpack.c.b16 %v788, %v786
      %v951 = vpack.c.b16 %v789, %v787
      %v952 = vpack.c.b16 %v792, %v790
      %v953 = vpack.c.b16 %v793, %v791
      %v954 = vpack.c.b16 %v796, %v794
      %v955 = vpack.c.b16 %v797, %v795
      %v956 = vpack.c.b16 %v800, %v798
      %v957 = vpack.c.b16 %v801, %v799
      %v958 = vpack.c.b16 %v804, %v802
      %v959 = vpack.c.b16 %v805, %v803
      %v960 = vpack.c.b16 %v808, %v806
      %v961 = vpack.c.b16 %v809, %v807
      %v962 = vpack.c.b16 %v812, %v810
      %v963 = vpack.c.b16 %v813, %v811
      %v964 = vpack.c.b16 %v816, %v814
      %v965 = vpack.c.b16 %v817, %v815
      %v966 = vpack.c.b16 %v820, %v818
      %v967 = vpack.c.b16 %v821, %v819
      %v968 = vpack.c.b16 %v824, %v822
      %v969 = vpack.c.b16 %v825, %v823
      %v970 = vpack.c.b16 %v828, %v826
      %v971 = vpack.c.b16 %v829, %v827
      %v972 = vpack.c.b16 %v832, %v830
      %v973 = vpack.c.b16 %v833, %v831
      %v974 = vpack.c.b16 %v836, %v834
      %v975 = vpack.c.b16 %v837, %v835
      %v976 = vpack.c.b16 %v840, %v838
      %v977 = vpack.c.b16 %v841, %v839
      %v978 = vpack.c.b16 %v844, %v842
      %v979 = vpack.c.b16 %v845, %v843
      %v980 = vpack.c.b16 %v848, %v846
      %v981 = vpack.c.b16 %v849, %v847
      %v982 = vpack.c.b16 %v852, %v850
      %v983 = vpack.c.b16 %v853, %v851
      %v984 = vpack.c.b16 %v856, %v854
      %v985 = vpack.c.b16 %v857, %v855
      %v1146 = vunpack.c.l.b16 %v442
      %v1147 = vunpack.c.l.b16 %v443
      %v1148 = vunpack.c.l.b16 %v444
      %v1149 = vunpack.c.l.b16 %v445
      %v1150 = vunpack.c.l.b16 %v446
      %v1151 = vunpack.c.l.b16 %v447
      %v1152 = vunpack.c.l.b16 %v448
      %v1153 = vunpack.c.l.b16 %v449
      %v1154 = vunpack.c.l.b16 %v450
      %v1155 = vunpack.c.l.b16 %v451
      %v1156 = vunpack.c.l.b16 %v452
      %v1157 = vunpack.c.l.b16 %v453
      %v1158 = vunpack.c.l.b16 %v454
      %v1159 = vunpack.c.l.b16 %v455
      %v1160 = vunpack.c.l.b16 %v456
      %v1161 = vunpack.c.l.b16 %v457
      %v1162 = vunpack.c.l.b16 %v458
      %v1163 = vunpack.c.l.b16 %v459
      %v1164 = vunpack.c.l.b16 %v460
      %v1165 = vunpack.c.l.b16 %v461
      %v1166 = vunpack.c.l.b16 %v462
      %v1167 = vunpack.c.l.b16 %v463
      %v1168 = vunpack.c.l.b16 %v464
      %v1169 = vunpack.c.l.b16 %v465
      %v1170 = vunpack.c.l.b16 %v466
      %v1171 = vunpack.c.l.b16 %v467
      %v1172 = vunpack.c.l.b16 %v468
      %v1173 = vunpack.c.l.b16 %v469
      %v1174 = vunpack.c.l.b16 %v470
      %v1175 = vunpack.c.l.b16 %v471
      %v1176 = vunpack.c.l.b16 %v472
      %v1177 = vunpack.c.l.b16 %v473
      %v1178 = vpack.c.b16 %v1147, %v1146
      %v1179 = vpack.c.b16 %v1149, %v1148
      %v1180 = vpack.c.b16 %v1151, %v1150
      %v1181 = vpack.c.b16 %v1153, %v1152
      %v1182 = vpack.c.b16 %v1155, %v1154
      %v1183 = vpack.c.b16 %v1157, %v1156
      %v1184 = vpack.c.b16 %v1159, %v1158
      %v1185 = vpack.c.b16 %v1161, %v1160
      %v1186 = vpack.c.b16 %v1163, %v1162
      %v1187 = vpack.c.b16 %v1165, %v1164
      %v1188 = vpack.c.b16 %v1167, %v1166
      %v1189 = vpack.c.b16 %v1169, %v1168
      %v1190 = vpack.c.b16 %v1171, %v1170
      %v1191 = vpack.c.b16 %v1173, %v1172
      %v1192 = vpack.c.b16 %v1175, %v1174
      %v1193 = vpack.c.b16 %v1177, %v1176
      %1210 = vmatpush.bf16.msra.mxu0 %v1185
      %1211 = vmatpush.bf16.msra.mxu0 %v1184
      %1212 = vmatpush.bf16.msra.mxu0 %v1183
      %1213 = vmatpush.bf16.msra.mxu0 %v1182
      %1214 = vmatpush.bf16.msra.mxu0 %v1181
      %1215 = vmatpush.bf16.msra.mxu0 %v1180
      %1216 = vmatpush.bf16.msra.mxu0 %v1179
      %1217 = vmatpush.bf16.msra.mxu0 %v1178
      %1218 = vmatmul.bf16.gmra.mxu0 %v858
      %v1219 = vpop.f32.mrf.mxu0
      %v1220 = vadd.f32 0.0, %v1219
      %v1221 = vpop.f32.mrf.mxu0
      %v1222 = vadd.f32 0.0, %v1221
      %1223 = vmatmul.bf16.gmra.mxu0 %v860
      %v1224 = vpop.f32.mrf.mxu0
      %v1225 = vadd.f32 0.0, %v1224
      %v1226 = vpop.f32.mrf.mxu0
      %v1227 = vadd.f32 0.0, %v1226
      %1228 = vmatmul.bf16.gmra.mxu0 %v862
      %v1229 = vpop.f32.mrf.mxu0
      %v1230 = vadd.f32 0.0, %v1229
      %v1231 = vpop.f32.mrf.mxu0
      %v1232 = vadd.f32 0.0, %v1231
      %1233 = vmatmul.bf16.gmra.mxu0 %v864
      %v1234 = vpop.f32.mrf.mxu0
      %v1235 = vadd.f32 0.0, %v1234
      %v1236 = vpop.f32.mrf.mxu0
      %v1237 = vadd.f32 0.0, %v1236
      %1238 = vmatmul.bf16.gmra.mxu0 %v866
      %v1239 = vpop.f32.mrf.mxu0
      %v1240 = vadd.f32 0.0, %v1239
      %v1241 = vpop.f32.mrf.mxu0
      %v1242 = vadd.f32 0.0, %v1241
      %1243 = vmatmul.bf16.gmra.mxu0 %v868
      %v1244 = vpop.f32.mrf.mxu0
      %v1245 = vadd.f32 0.0, %v1244
      %v1246 = vpop.f32.mrf.mxu0
      %v1247 = vadd.f32 0.0, %v1246
      %1248 = vmatmul.bf16.gmra.mxu0 %v870
      %v1249 = vpop.f32.mrf.mxu0
      %v1250 = vadd.f32 0.0, %v1249
      %v1251 = vpop.f32.mrf.mxu0
      %v1252 = vadd.f32 0.0, %v1251
      %1253 = vmatmul.bf16.gmra.mxu0 %v872
      %v1254 = vpop.f32.mrf.mxu0
      %v1255 = vadd.f32 0.0, %v1254
      %v1256 = vpop.f32.mrf.mxu0
      %v1257 = vadd.f32 0.0, %v1256
      %1258 = vmatmul.bf16.gmra.mxu0 %v874
      %v1259 = vpop.f32.mrf.mxu0
      %v1260 = vadd.f32 0.0, %v1259
      %v1261 = vpop.f32.mrf.mxu0
      %v1262 = vadd.f32 0.0, %v1261
      %1263 = vmatmul.bf16.gmra.mxu0 %v876
      %v1264 = vpop.f32.mrf.mxu0
      %v1265 = vadd.f32 0.0, %v1264
      %v1266 = vpop.f32.mrf.mxu0
      %v1267 = vadd.f32 0.0, %v1266
      %1268 = vmatmul.bf16.gmra.mxu0 %v878
      %v1269 = vpop.f32.mrf.mxu0
      %v1270 = vadd.f32 0.0, %v1269
      %v1271 = vpop.f32.mrf.mxu0
      %v1272 = vadd.f32 0.0, %v1271
      %1273 = vmatmul.bf16.gmra.mxu0 %v880
      %v1274 = vpop.f32.mrf.mxu0
      %v1275 = vadd.f32 0.0, %v1274
      %v1276 = vpop.f32.mrf.mxu0
      %v1277 = vadd.f32 0.0, %v1276
      %1278 = vmatmul.bf16.gmra.mxu0 %v882
      %v1279 = vpop.f32.mrf.mxu0
      %v1280 = vadd.f32 0.0, %v1279
      %v1281 = vpop.f32.mrf.mxu0
      %v1282 = vadd.f32 0.0, %v1281
      %1283 = vmatmul.bf16.gmra.mxu0 %v884
      %v1284 = vpop.f32.mrf.mxu0
      %v1285 = vadd.f32 0.0, %v1284
      %v1286 = vpop.f32.mrf.mxu0
      %v1287 = vadd.f32 0.0, %v1286
      %1288 = vmatmul.bf16.gmra.mxu0 %v886
      %v1289 = vpop.f32.mrf.mxu0
      %v1290 = vadd.f32 0.0, %v1289
      %v1291 = vpop.f32.mrf.mxu0
      %v1292 = vadd.f32 0.0, %v1291
      %1293 = vmatmul.bf16.gmra.mxu0 %v888
      %v1294 = vpop.f32.mrf.mxu0
      %v1295 = vadd.f32 0.0, %v1294
      %v1296 = vpop.f32.mrf.mxu0
      %v1297 = vadd.f32 0.0, %v1296
      %1298 = vmatmul.bf16.gmra.mxu0 %v890
      %v1299 = vpop.f32.mrf.mxu0
      %v1300 = vadd.f32 0.0, %v1299
      %v1301 = vpop.f32.mrf.mxu0
      %v1302 = vadd.f32 0.0, %v1301
      %1303 = vmatmul.bf16.gmra.mxu0 %v892
      %v1304 = vpop.f32.mrf.mxu0
      %v1305 = vadd.f32 0.0, %v1304
      %v1306 = vpop.f32.mrf.mxu0
      %v1307 = vadd.f32 0.0, %v1306
      %1308 = vmatmul.bf16.gmra.mxu0 %v894
      %v1309 = vpop.f32.mrf.mxu0
      %v1310 = vadd.f32 0.0, %v1309
      %v1311 = vpop.f32.mrf.mxu0
      %v1312 = vadd.f32 0.0, %v1311
      %1313 = vmatmul.bf16.gmra.mxu0 %v896
      %v1314 = vpop.f32.mrf.mxu0
      %v1315 = vadd.f32 0.0, %v1314
      %v1316 = vpop.f32.mrf.mxu0
      %v1317 = vadd.f32 0.0, %v1316
      %1318 = vmatmul.bf16.gmra.mxu0 %v898
      %v1319 = vpop.f32.mrf.mxu0
      %v1320 = vadd.f32 0.0, %v1319
      %v1321 = vpop.f32.mrf.mxu0
      %v1322 = vadd.f32 0.0, %v1321
      %1323 = vmatmul.bf16.gmra.mxu0 %v900
      %v1324 = vpop.f32.mrf.mxu0
      %v1325 = vadd.f32 0.0, %v1324
      %v1326 = vpop.f32.mrf.mxu0
      %v1327 = vadd.f32 0.0, %v1326
      %1328 = vmatmul.bf16.gmra.mxu0 %v902
      %v1329 = vpop.f32.mrf.mxu0
      %v1330 = vadd.f32 0.0, %v1329
      %v1331 = vpop.f32.mrf.mxu0
      %v1332 = vadd.f32 0.0, %v1331
      %1333 = vmatmul.bf16.gmra.mxu0 %v904
      %v1334 = vpop.f32.mrf.mxu0
      %v1335 = vadd.f32 0.0, %v1334
      %v1336 = vpop.f32.mrf.mxu0
      %v1337 = vadd.f32 0.0, %v1336
      %1338 = vmatmul.bf16.gmra.mxu0 %v906
      %v1339 = vpop.f32.mrf.mxu0
      %v1340 = vadd.f32 0.0, %v1339
      %v1341 = vpop.f32.mrf.mxu0
      %v1342 = vadd.f32 0.0, %v1341
      %1343 = vmatmul.bf16.gmra.mxu0 %v908
      %v1344 = vpop.f32.mrf.mxu0
      %v1345 = vadd.f32 0.0, %v1344
      %v1346 = vpop.f32.mrf.mxu0
      %v1347 = vadd.f32 0.0, %v1346
      %1348 = vmatmul.bf16.gmra.mxu0 %v910
      %v1349 = vpop.f32.mrf.mxu0
      %v1350 = vadd.f32 0.0, %v1349
      %v1351 = vpop.f32.mrf.mxu0
      %v1352 = vadd.f32 0.0, %v1351
      %1353 = vmatmul.bf16.gmra.mxu0 %v912
      %v1354 = vpop.f32.mrf.mxu0
      %v1355 = vadd.f32 0.0, %v1354
      %v1356 = vpop.f32.mrf.mxu0
      %v1357 = vadd.f32 0.0, %v1356
      %1358 = vmatmul.bf16.gmra.mxu0 %v914
      %v1359 = vpop.f32.mrf.mxu0
      %v1360 = vadd.f32 0.0, %v1359
      %v1361 = vpop.f32.mrf.mxu0
      %v1362 = vadd.f32 0.0, %v1361
      %1363 = vmatmul.bf16.gmra.mxu0 %v916
      %v1364 = vpop.f32.mrf.mxu0
      %v1365 = vadd.f32 0.0, %v1364
      %v1366 = vpop.f32.mrf.mxu0
      %v1367 = vadd.f32 0.0, %v1366
      %1368 = vmatmul.bf16.gmra.mxu0 %v918
      %v1369 = vpop.f32.mrf.mxu0
      %v1370 = vadd.f32 0.0, %v1369
      %v1371 = vpop.f32.mrf.mxu0
      %v1372 = vadd.f32 0.0, %v1371
      %1373 = vmatmul.bf16.gmra.mxu0 %v920
      %v1374 = vpop.f32.mrf.mxu0
      %v1375 = vadd.f32 0.0, %v1374
      %v1376 = vpop.f32.mrf.mxu0
      %v1377 = vadd.f32 0.0, %v1376
      %1378 = vmatmul.bf16.gmra.mxu0 %v922
      %v1379 = vpop.f32.mrf.mxu0
      %v1380 = vadd.f32 0.0, %v1379
      %v1381 = vpop.f32.mrf.mxu0
      %v1382 = vadd.f32 0.0, %v1381
      %1383 = vmatmul.bf16.gmra.mxu0 %v924
      %v1384 = vpop.f32.mrf.mxu0
      %v1385 = vadd.f32 0.0, %v1384
      %v1386 = vpop.f32.mrf.mxu0
      %v1387 = vadd.f32 0.0, %v1386
      %1388 = vmatmul.bf16.gmra.mxu0 %v926
      %v1389 = vpop.f32.mrf.mxu0
      %v1390 = vadd.f32 0.0, %v1389
      %v1391 = vpop.f32.mrf.mxu0
      %v1392 = vadd.f32 0.0, %v1391
      %1393 = vmatmul.bf16.gmra.mxu0 %v928
      %v1394 = vpop.f32.mrf.mxu0
      %v1395 = vadd.f32 0.0, %v1394
      %v1396 = vpop.f32.mrf.mxu0
      %v1397 = vadd.f32 0.0, %v1396
      %1398 = vmatmul.bf16.gmra.mxu0 %v930
      %v1399 = vpop.f32.mrf.mxu0
      %v1400 = vadd.f32 0.0, %v1399
      %v1401 = vpop.f32.mrf.mxu0
      %v1402 = vadd.f32 0.0, %v1401
      %1403 = vmatmul.bf16.gmra.mxu0 %v932
      %v1404 = vpop.f32.mrf.mxu0
      %v1405 = vadd.f32 0.0, %v1404
      %v1406 = vpop.f32.mrf.mxu0
      %v1407 = vadd.f32 0.0, %v1406
      %1408 = vmatmul.bf16.gmra.mxu0 %v934
      %v1409 = vpop.f32.mrf.mxu0
      %v1410 = vadd.f32 0.0, %v1409
      %v1411 = vpop.f32.mrf.mxu0
      %v1412 = vadd.f32 0.0, %v1411
      %1413 = vmatmul.bf16.gmra.mxu0 %v936
      %v1414 = vpop.f32.mrf.mxu0
      %v1415 = vadd.f32 0.0, %v1414
      %v1416 = vpop.f32.mrf.mxu0
      %v1417 = vadd.f32 0.0, %v1416
      %1418 = vmatmul.bf16.gmra.mxu0 %v938
      %v1419 = vpop.f32.mrf.mxu0
      %v1420 = vadd.f32 0.0, %v1419
      %v1421 = vpop.f32.mrf.mxu0
      %v1422 = vadd.f32 0.0, %v1421
      %1423 = vmatmul.bf16.gmra.mxu0 %v940
      %v1424 = vpop.f32.mrf.mxu0
      %v1425 = vadd.f32 0.0, %v1424
      %v1426 = vpop.f32.mrf.mxu0
      %v1427 = vadd.f32 0.0, %v1426
      %1428 = vmatmul.bf16.gmra.mxu0 %v942
      %v1429 = vpop.f32.mrf.mxu0
      %v1430 = vadd.f32 0.0, %v1429
      %v1431 = vpop.f32.mrf.mxu0
      %v1432 = vadd.f32 0.0, %v1431
      %1433 = vmatmul.bf16.gmra.mxu0 %v944
      %v1434 = vpop.f32.mrf.mxu0
      %v1435 = vadd.f32 0.0, %v1434
      %v1436 = vpop.f32.mrf.mxu0
      %v1437 = vadd.f32 0.0, %v1436
      %1438 = vmatmul.bf16.gmra.mxu0 %v946
      %v1439 = vpop.f32.mrf.mxu0
      %v1440 = vadd.f32 0.0, %v1439
      %v1441 = vpop.f32.mrf.mxu0
      %v1442 = vadd.f32 0.0, %v1441
      %1443 = vmatmul.bf16.gmra.mxu0 %v948
      %v1444 = vpop.f32.mrf.mxu0
      %v1445 = vadd.f32 0.0, %v1444
      %v1446 = vpop.f32.mrf.mxu0
      %v1447 = vadd.f32 0.0, %v1446
      %1448 = vmatmul.bf16.gmra.mxu0 %v950
      %v1449 = vpop.f32.mrf.mxu0
      %v1450 = vadd.f32 0.0, %v1449
      %v1451 = vpop.f32.mrf.mxu0
      %v1452 = vadd.f32 0.0, %v1451
      %1453 = vmatmul.bf16.gmra.mxu0 %v952
      %v1454 = vpop.f32.mrf.mxu0
      %v1455 = vadd.f32 0.0, %v1454
      %v1456 = vpop.f32.mrf.mxu0
      %v1457 = vadd.f32 0.0, %v1456
      %1458 = vmatmul.bf16.gmra.mxu0 %v954
      %v1459 = vpop.f32.mrf.mxu0
      %v1460 = vadd.f32 0.0, %v1459
      %v1461 = vpop.f32.mrf.mxu0
      %v1462 = vadd.f32 0.0, %v1461
      %1463 = vmatmul.bf16.gmra.mxu0 %v956
      %v1464 = vpop.f32.mrf.mxu0
      %v1465 = vadd.f32 0.0, %v1464
      %v1466 = vpop.f32.mrf.mxu0
      %v1467 = vadd.f32 0.0, %v1466
      %1468 = vmatmul.bf16.gmra.mxu0 %v958
      %v1469 = vpop.f32.mrf.mxu0
      %v1470 = vadd.f32 0.0, %v1469
      %v1471 = vpop.f32.mrf.mxu0
      %v1472 = vadd.f32 0.0, %v1471
      %1473 = vmatmul.bf16.gmra.mxu0 %v960
      %v1474 = vpop.f32.mrf.mxu0
      %v1475 = vadd.f32 0.0, %v1474
      %v1476 = vpop.f32.mrf.mxu0
      %v1477 = vadd.f32 0.0, %v1476
      %1478 = vmatmul.bf16.gmra.mxu0 %v962
      %v1479 = vpop.f32.mrf.mxu0
      %v1480 = vadd.f32 0.0, %v1479
      %v1481 = vpop.f32.mrf.mxu0
      %v1482 = vadd.f32 0.0, %v1481
      %1483 = vmatmul.bf16.gmra.mxu0 %v964
      %v1484 = vpop.f32.mrf.mxu0
      %v1485 = vadd.f32 0.0, %v1484
      %v1486 = vpop.f32.mrf.mxu0
      %v1487 = vadd.f32 0.0, %v1486
      %1488 = vmatmul.bf16.gmra.mxu0 %v966
      %v1489 = vpop.f32.mrf.mxu0
      %v1490 = vadd.f32 0.0, %v1489
      %v1491 = vpop.f32.mrf.mxu0
      %v1492 = vadd.f32 0.0, %v1491
      %1493 = vmatmul.bf16.gmra.mxu0 %v968
      %v1494 = vpop.f32.mrf.mxu0
      %v1495 = vadd.f32 0.0, %v1494
      %v1496 = vpop.f32.mrf.mxu0
      %v1497 = vadd.f32 0.0, %v1496
      %1498 = vmatmul.bf16.gmra.mxu0 %v970
      %v1499 = vpop.f32.mrf.mxu0
      %v1500 = vadd.f32 0.0, %v1499
      %v1501 = vpop.f32.mrf.mxu0
      %v1502 = vadd.f32 0.0, %v1501
      %1503 = vmatmul.bf16.gmra.mxu0 %v972
      %v1504 = vpop.f32.mrf.mxu0
      %v1505 = vadd.f32 0.0, %v1504
      %v1506 = vpop.f32.mrf.mxu0
      %v1507 = vadd.f32 0.0, %v1506
      %1508 = vmatmul.bf16.gmra.mxu0 %v974
      %v1509 = vpop.f32.mrf.mxu0
      %v1510 = vadd.f32 0.0, %v1509
      %v1511 = vpop.f32.mrf.mxu0
      %v1512 = vadd.f32 0.0, %v1511
      %1513 = vmatmul.bf16.gmra.mxu0 %v976
      %v1514 = vpop.f32.mrf.mxu0
      %v1515 = vadd.f32 0.0, %v1514
      %v1516 = vpop.f32.mrf.mxu0
      %v1517 = vadd.f32 0.0, %v1516
      %1518 = vmatmul.bf16.gmra.mxu0 %v978
      %v1519 = vpop.f32.mrf.mxu0
      %v1520 = vadd.f32 0.0, %v1519
      %v1521 = vpop.f32.mrf.mxu0
      %v1522 = vadd.f32 0.0, %v1521
      %1523 = vmatmul.bf16.gmra.mxu0 %v980
      %v1524 = vpop.f32.mrf.mxu0
      %v1525 = vadd.f32 0.0, %v1524
      %v1526 = vpop.f32.mrf.mxu0
      %v1527 = vadd.f32 0.0, %v1526
      %1528 = vmatmul.bf16.gmra.mxu0 %v982
      %v1529 = vpop.f32.mrf.mxu0
      %v1530 = vadd.f32 0.0, %v1529
      %v1531 = vpop.f32.mrf.mxu0
      %v1532 = vadd.f32 0.0, %v1531
      %1533 = vmatmul.bf16.gmra.mxu0 %v984
      %v1534 = vpop.f32.mrf.mxu0
      %v1535 = vadd.f32 0.0, %v1534
      %v1536 = vpop.f32.mrf.mxu0
      %v1537 = vadd.f32 0.0, %v1536
      %1538 = vdwg.mxu0
      %1539 = vmatpush.bf16.msra.mxu0 %v1193
      %1540 = vmatpush.bf16.msra.mxu0 %v1192
      %1541 = vmatpush.bf16.msra.mxu0 %v1191
      %1542 = vmatpush.bf16.msra.mxu0 %v1190
      %1543 = vmatpush.bf16.msra.mxu0 %v1189
      %1544 = vmatpush.bf16.msra.mxu0 %v1188
      %1545 = vmatpush.bf16.msra.mxu0 %v1187
      %1546 = vmatpush.bf16.msra.mxu0 %v1186
      %1547 = vmatmul.bf16.gmra.mxu0 %v859
      %v1548 = vpop.f32.mrf.mxu0
      %v1549 = vadd.f32 %v1220, %v1548
      %v1550 = vpop.f32.mrf.mxu0
      %v1551 = vadd.f32 %v1222, %v1550
      %1552 = vmatmul.bf16.gmra.mxu0 %v861
      %v1553 = vpop.f32.mrf.mxu0
      %v1554 = vadd.f32 %v1225, %v1553
      %v1555 = vpop.f32.mrf.mxu0
      %v1556 = vadd.f32 %v1227, %v1555
      %1557 = vmatmul.bf16.gmra.mxu0 %v863
      %v1558 = vpop.f32.mrf.mxu0
      %v1559 = vadd.f32 %v1230, %v1558
      %v1560 = vpop.f32.mrf.mxu0
      %v1561 = vadd.f32 %v1232, %v1560
      %1562 = vmatmul.bf16.gmra.mxu0 %v865
      %v1563 = vpop.f32.mrf.mxu0
      %v1564 = vadd.f32 %v1235, %v1563
      %v1565 = vpop.f32.mrf.mxu0
      %v1566 = vadd.f32 %v1237, %v1565
      %1567 = vmatmul.bf16.gmra.mxu0 %v867
      %v1568 = vpop.f32.mrf.mxu0
      %v1569 = vadd.f32 %v1240, %v1568
      %v1570 = vpop.f32.mrf.mxu0
      %v1571 = vadd.f32 %v1242, %v1570
      %1572 = vmatmul.bf16.gmra.mxu0 %v869
      %v1573 = vpop.f32.mrf.mxu0
      %v1574 = vadd.f32 %v1245, %v1573
      %v1575 = vpop.f32.mrf.mxu0
      %v1576 = vadd.f32 %v1247, %v1575
      %1577 = vmatmul.bf16.gmra.mxu0 %v871
      %v1578 = vpop.f32.mrf.mxu0
      %v1579 = vadd.f32 %v1250, %v1578
      %v1580 = vpop.f32.mrf.mxu0
      %v1581 = vadd.f32 %v1252, %v1580
      %1582 = vmatmul.bf16.gmra.mxu0 %v873
      %v1583 = vpop.f32.mrf.mxu0
      %v1584 = vadd.f32 %v1255, %v1583
      %v1585 = vpop.f32.mrf.mxu0
      %v1586 = vadd.f32 %v1257, %v1585
      %1587 = vmatmul.bf16.gmra.mxu0 %v875
      %v1588 = vpop.f32.mrf.mxu0
      %v1589 = vadd.f32 %v1260, %v1588
      %v1590 = vpop.f32.mrf.mxu0
      %v1591 = vadd.f32 %v1262, %v1590
      %1592 = vmatmul.bf16.gmra.mxu0 %v877
      %v1593 = vpop.f32.mrf.mxu0
      %v1594 = vadd.f32 %v1265, %v1593
      %v1595 = vpop.f32.mrf.mxu0
      %v1596 = vadd.f32 %v1267, %v1595
      %1597 = vmatmul.bf16.gmra.mxu0 %v879
      %v1598 = vpop.f32.mrf.mxu0
      %v1599 = vadd.f32 %v1270, %v1598
      %v1600 = vpop.f32.mrf.mxu0
      %v1601 = vadd.f32 %v1272, %v1600
      %1602 = vmatmul.bf16.gmra.mxu0 %v881
      %v1603 = vpop.f32.mrf.mxu0
      %v1604 = vadd.f32 %v1275, %v1603
      %v1605 = vpop.f32.mrf.mxu0
      %v1606 = vadd.f32 %v1277, %v1605
      %1607 = vmatmul.bf16.gmra.mxu0 %v883
      %v1608 = vpop.f32.mrf.mxu0
      %v1609 = vadd.f32 %v1280, %v1608
      %v1610 = vpop.f32.mrf.mxu0
      %v1611 = vadd.f32 %v1282, %v1610
      %1612 = vmatmul.bf16.gmra.mxu0 %v885
      %v1613 = vpop.f32.mrf.mxu0
      %v1614 = vadd.f32 %v1285, %v1613
      %v1615 = vpop.f32.mrf.mxu0
      %v1616 = vadd.f32 %v1287, %v1615
      %1617 = vmatmul.bf16.gmra.mxu0 %v887
      %v1618 = vpop.f32.mrf.mxu0
      %v1619 = vadd.f32 %v1290, %v1618
      %v1620 = vpop.f32.mrf.mxu0
      %v1621 = vadd.f32 %v1292, %v1620
      %1622 = vmatmul.bf16.gmra.mxu0 %v889
      %v1623 = vpop.f32.mrf.mxu0
      %v1624 = vadd.f32 %v1295, %v1623
      %v1625 = vpop.f32.mrf.mxu0
      %v1626 = vadd.f32 %v1297, %v1625
      %1627 = vmatmul.bf16.gmra.mxu0 %v891
      %v1628 = vpop.f32.mrf.mxu0
      %v1629 = vadd.f32 %v1300, %v1628
      %v1630 = vpop.f32.mrf.mxu0
      %v1631 = vadd.f32 %v1302, %v1630
      %1632 = vmatmul.bf16.gmra.mxu0 %v893
      %v1633 = vpop.f32.mrf.mxu0
      %v1634 = vadd.f32 %v1305, %v1633
      %v1635 = vpop.f32.mrf.mxu0
      %v1636 = vadd.f32 %v1307, %v1635
      %1637 = vmatmul.bf16.gmra.mxu0 %v895
      %v1638 = vpop.f32.mrf.mxu0
      %v1639 = vadd.f32 %v1310, %v1638
      %v1640 = vpop.f32.mrf.mxu0
      %v1641 = vadd.f32 %v1312, %v1640
      %1642 = vmatmul.bf16.gmra.mxu0 %v897
      %v1643 = vpop.f32.mrf.mxu0
      %v1644 = vadd.f32 %v1315, %v1643
      %v1645 = vpop.f32.mrf.mxu0
      %v1646 = vadd.f32 %v1317, %v1645
      %1647 = vmatmul.bf16.gmra.mxu0 %v899
      %v1648 = vpop.f32.mrf.mxu0
      %v1649 = vadd.f32 %v1320, %v1648
      %v1650 = vpop.f32.mrf.mxu0
      %v1651 = vadd.f32 %v1322, %v1650
      %1652 = vmatmul.bf16.gmra.mxu0 %v901
      %v1653 = vpop.f32.mrf.mxu0
      %v1654 = vadd.f32 %v1325, %v1653
      %v1655 = vpop.f32.mrf.mxu0
      %v1656 = vadd.f32 %v1327, %v1655
      %1657 = vmatmul.bf16.gmra.mxu0 %v903
      %v1658 = vpop.f32.mrf.mxu0
      %v1659 = vadd.f32 %v1330, %v1658
      %v1660 = vpop.f32.mrf.mxu0
      %v1661 = vadd.f32 %v1332, %v1660
      %1662 = vmatmul.bf16.gmra.mxu0 %v905
      %v1663 = vpop.f32.mrf.mxu0
      %v1664 = vadd.f32 %v1335, %v1663
      %v1665 = vpop.f32.mrf.mxu0
      %v1666 = vadd.f32 %v1337, %v1665
      %1667 = vmatmul.bf16.gmra.mxu0 %v907
      %v1668 = vpop.f32.mrf.mxu0
      %v1669 = vadd.f32 %v1340, %v1668
      %v1670 = vpop.f32.mrf.mxu0
      %v1671 = vadd.f32 %v1342, %v1670
      %1672 = vmatmul.bf16.gmra.mxu0 %v909
      %v1673 = vpop.f32.mrf.mxu0
      %v1674 = vadd.f32 %v1345, %v1673
      %v1675 = vpop.f32.mrf.mxu0
      %v1676 = vadd.f32 %v1347, %v1675
      %1677 = vmatmul.bf16.gmra.mxu0 %v911
      %v1678 = vpop.f32.mrf.mxu0
      %v1679 = vadd.f32 %v1350, %v1678
      %v1680 = vpop.f32.mrf.mxu0
      %v1681 = vadd.f32 %v1352, %v1680
      %1682 = vmatmul.bf16.gmra.mxu0 %v913
      %v1683 = vpop.f32.mrf.mxu0
      %v1684 = vadd.f32 %v1355, %v1683
      %v1685 = vpop.f32.mrf.mxu0
      %v1686 = vadd.f32 %v1357, %v1685
      %1687 = vmatmul.bf16.gmra.mxu0 %v915
      %v1688 = vpop.f32.mrf.mxu0
      %v1689 = vadd.f32 %v1360, %v1688
      %v1690 = vpop.f32.mrf.mxu0
      %v1691 = vadd.f32 %v1362, %v1690
      %1692 = vmatmul.bf16.gmra.mxu0 %v917
      %v1693 = vpop.f32.mrf.mxu0
      %v1694 = vadd.f32 %v1365, %v1693
      %v1695 = vpop.f32.mrf.mxu0
      %v1696 = vadd.f32 %v1367, %v1695
      %1697 = vmatmul.bf16.gmra.mxu0 %v919
      %v1698 = vpop.f32.mrf.mxu0
      %v1699 = vadd.f32 %v1370, %v1698
      %v1700 = vpop.f32.mrf.mxu0
      %v1701 = vadd.f32 %v1372, %v1700
      %1702 = vmatmul.bf16.gmra.mxu0 %v921
      %v1703 = vpop.f32.mrf.mxu0
      %v1704 = vadd.f32 %v1375, %v1703
      %v1705 = vpop.f32.mrf.mxu0
      %v1706 = vadd.f32 %v1377, %v1705
      %1707 = vmatmul.bf16.gmra.mxu0 %v923
      %v1708 = vpop.f32.mrf.mxu0
      %v1709 = vadd.f32 %v1380, %v1708
      %v1710 = vpop.f32.mrf.mxu0
      %v1711 = vadd.f32 %v1382, %v1710
      %1712 = vmatmul.bf16.gmra.mxu0 %v925
      %v1713 = vpop.f32.mrf.mxu0
      %v1714 = vadd.f32 %v1385, %v1713
      %v1715 = vpop.f32.mrf.mxu0
      %v1716 = vadd.f32 %v1387, %v1715
      %1717 = vmatmul.bf16.gmra.mxu0 %v927
      %v1718 = vpop.f32.mrf.mxu0
      %v1719 = vadd.f32 %v1390, %v1718
      %v1720 = vpop.f32.mrf.mxu0
      %v1721 = vadd.f32 %v1392, %v1720
      %1722 = vmatmul.bf16.gmra.mxu0 %v929
      %v1723 = vpop.f32.mrf.mxu0
      %v1724 = vadd.f32 %v1395, %v1723
      %v1725 = vpop.f32.mrf.mxu0
      %v1726 = vadd.f32 %v1397, %v1725
      %1727 = vmatmul.bf16.gmra.mxu0 %v931
      %v1728 = vpop.f32.mrf.mxu0
      %v1729 = vadd.f32 %v1400, %v1728
      %v1730 = vpop.f32.mrf.mxu0
      %v1731 = vadd.f32 %v1402, %v1730
      %1732 = vmatmul.bf16.gmra.mxu0 %v933
      %v1733 = vpop.f32.mrf.mxu0
      %v1734 = vadd.f32 %v1405, %v1733
      %v1735 = vpop.f32.mrf.mxu0
      %v1736 = vadd.f32 %v1407, %v1735
      %1737 = vmatmul.bf16.gmra.mxu0 %v935
      %v1738 = vpop.f32.mrf.mxu0
      %v1739 = vadd.f32 %v1410, %v1738
      %v1740 = vpop.f32.mrf.mxu0
      %v1741 = vadd.f32 %v1412, %v1740
      %1742 = vmatmul.bf16.gmra.mxu0 %v937
      %v1743 = vpop.f32.mrf.mxu0
      %v1744 = vadd.f32 %v1415, %v1743
      %v1745 = vpop.f32.mrf.mxu0
      %v1746 = vadd.f32 %v1417, %v1745
      %1747 = vmatmul.bf16.gmra.mxu0 %v939
      %v1748 = vpop.f32.mrf.mxu0
      %v1749 = vadd.f32 %v1420, %v1748
      %v1750 = vpop.f32.mrf.mxu0
      %v1751 = vadd.f32 %v1422, %v1750
      %1752 = vmatmul.bf16.gmra.mxu0 %v941
      %v1753 = vpop.f32.mrf.mxu0
      %v1754 = vadd.f32 %v1425, %v1753
      %v1755 = vpop.f32.mrf.mxu0
      %v1756 = vadd.f32 %v1427, %v1755
      %1757 = vmatmul.bf16.gmra.mxu0 %v943
      %v1758 = vpop.f32.mrf.mxu0
      %v1759 = vadd.f32 %v1430, %v1758
      %v1760 = vpop.f32.mrf.mxu0
      %v1761 = vadd.f32 %v1432, %v1760
      %1762 = vmatmul.bf16.gmra.mxu0 %v945
      %v1763 = vpop.f32.mrf.mxu0
      %v1764 = vadd.f32 %v1435, %v1763
      %v1765 = vpop.f32.mrf.mxu0
      %v1766 = vadd.f32 %v1437, %v1765
      %1767 = vmatmul.bf16.gmra.mxu0 %v947
      %v1768 = vpop.f32.mrf.mxu0
      %v1769 = vadd.f32 %v1440, %v1768
      %v1770 = vpop.f32.mrf.mxu0
      %v1771 = vadd.f32 %v1442, %v1770
      %1772 = vmatmul.bf16.gmra.mxu0 %v949
      %v1773 = vpop.f32.mrf.mxu0
      %v1774 = vadd.f32 %v1445, %v1773
      %v1775 = vpop.f32.mrf.mxu0
      %v1776 = vadd.f32 %v1447, %v1775
      %1777 = vmatmul.bf16.gmra.mxu0 %v951
      %v1778 = vpop.f32.mrf.mxu0
      %v1779 = vadd.f32 %v1450, %v1778
      %v1780 = vpop.f32.mrf.mxu0
      %v1781 = vadd.f32 %v1452, %v1780
      %1782 = vmatmul.bf16.gmra.mxu0 %v953
      %v1783 = vpop.f32.mrf.mxu0
      %v1784 = vadd.f32 %v1455, %v1783
      %v1785 = vpop.f32.mrf.mxu0
      %v1786 = vadd.f32 %v1457, %v1785
      %1787 = vmatmul.bf16.gmra.mxu0 %v955
      %v1788 = vpop.f32.mrf.mxu0
      %v1789 = vadd.f32 %v1460, %v1788
      %v1790 = vpop.f32.mrf.mxu0
      %v1791 = vadd.f32 %v1462, %v1790
      %1792 = vmatmul.bf16.gmra.mxu0 %v957
      %v1793 = vpop.f32.mrf.mxu0
      %v1794 = vadd.f32 %v1465, %v1793
      %v1795 = vpop.f32.mrf.mxu0
      %v1796 = vadd.f32 %v1467, %v1795
      %1797 = vmatmul.bf16.gmra.mxu0 %v959
      %v1798 = vpop.f32.mrf.mxu0
      %v1799 = vadd.f32 %v1470, %v1798
      %v1800 = vpop.f32.mrf.mxu0
      %v1801 = vadd.f32 %v1472, %v1800
      %1802 = vmatmul.bf16.gmra.mxu0 %v961
      %v1803 = vpop.f32.mrf.mxu0
      %v1804 = vadd.f32 %v1475, %v1803
      %v1805 = vpop.f32.mrf.mxu0
      %v1806 = vadd.f32 %v1477, %v1805
      %1807 = vmatmul.bf16.gmra.mxu0 %v963
      %v1808 = vpop.f32.mrf.mxu0
      %v1809 = vadd.f32 %v1480, %v1808
      %v1810 = vpop.f32.mrf.mxu0
      %v1811 = vadd.f32 %v1482, %v1810
      %1812 = vmatmul.bf16.gmra.mxu0 %v965
      %v1813 = vpop.f32.mrf.mxu0
      %v1814 = vadd.f32 %v1485, %v1813
      %v1815 = vpop.f32.mrf.mxu0
      %v1816 = vadd.f32 %v1487, %v1815
      %1817 = vmatmul.bf16.gmra.mxu0 %v967
      %v1818 = vpop.f32.mrf.mxu0
      %v1819 = vadd.f32 %v1490, %v1818
      %v1820 = vpop.f32.mrf.mxu0
      %v1821 = vadd.f32 %v1492, %v1820
      %1822 = vmatmul.bf16.gmra.mxu0 %v969
      %v1823 = vpop.f32.mrf.mxu0
      %v1824 = vadd.f32 %v1495, %v1823
      %v1825 = vpop.f32.mrf.mxu0
      %v1826 = vadd.f32 %v1497, %v1825
      %1827 = vmatmul.bf16.gmra.mxu0 %v971
      %v1828 = vpop.f32.mrf.mxu0
      %v1829 = vadd.f32 %v1500, %v1828
      %v1830 = vpop.f32.mrf.mxu0
      %v1831 = vadd.f32 %v1502, %v1830
      %1832 = vmatmul.bf16.gmra.mxu0 %v973
      %v1833 = vpop.f32.mrf.mxu0
      %v1834 = vadd.f32 %v1505, %v1833
      %v1835 = vpop.f32.mrf.mxu0
      %v1836 = vadd.f32 %v1507, %v1835
      %1837 = vmatmul.bf16.gmra.mxu0 %v975
      %v1838 = vpop.f32.mrf.mxu0
      %v1839 = vadd.f32 %v1510, %v1838
      %v1840 = vpop.f32.mrf.mxu0
      %v1841 = vadd.f32 %v1512, %v1840
      %1842 = vmatmul.bf16.gmra.mxu0 %v977
      %v1843 = vpop.f32.mrf.mxu0
      %v1844 = vadd.f32 %v1515, %v1843
      %v1845 = vpop.f32.mrf.mxu0
      %v1846 = vadd.f32 %v1517, %v1845
      %1847 = vmatmul.bf16.gmra.mxu0 %v979
      %v1848 = vpop.f32.mrf.mxu0
      %v1849 = vadd.f32 %v1520, %v1848
      %v1850 = vpop.f32.mrf.mxu0
      %v1851 = vadd.f32 %v1522, %v1850
      %1852 = vmatmul.bf16.gmra.mxu0 %v981
      %v1853 = vpop.f32.mrf.mxu0
      %v1854 = vadd.f32 %v1525, %v1853
      %v1855 = vpop.f32.mrf.mxu0
      %v1856 = vadd.f32 %v1527, %v1855
      %1857 = vmatmul.bf16.gmra.mxu0 %v983
      %v1858 = vpop.f32.mrf.mxu0
      %v1859 = vadd.f32 %v1530, %v1858
      %v1860 = vpop.f32.mrf.mxu0
      %v1861 = vadd.f32 %v1532, %v1860
      %1862 = vmatmul.bf16.gmra.mxu0 %v985
      %v1863 = vpop.f32.mrf.mxu0
      %v1864 = vadd.f32 %v1535, %v1863
      %v1865 = vpop.f32.mrf.mxu0
      %v1866 = vadd.f32 %v1537, %v1865
      %1867 = vdwg.mxu0
      %v1868 = vld [vmem:[%s297] sm:$0x1]
      %v1870 = vperm.slane %v1868, 0
      %v1872 = vmul.f32 %v1549, %v1870
      %v1873 = vmul.f32 %v1551, %v1870
      %v1874 = vmul.f32 %v1554, %v1870
      %v1875 = vmul.f32 %v1556, %v1870
      %v1876 = vmul.f32 %v1559, %v1870
      %v1877 = vmul.f32 %v1561, %v1870
      %v1878 = vmul.f32 %v1564, %v1870
      %v1879 = vmul.f32 %v1566, %v1870
      %v1880 = vmul.f32 %v1569, %v1870
      %v1881 = vmul.f32 %v1571, %v1870
      %v1882 = vmul.f32 %v1574, %v1870
      %v1883 = vmul.f32 %v1576, %v1870
      %v1884 = vmul.f32 %v1579, %v1870
      %v1885 = vmul.f32 %v1581, %v1870
      %v1886 = vmul.f32 %v1584, %v1870
      %v1887 = vmul.f32 %v1586, %v1870
      %v1888 = vmul.f32 %v1589, %v1870
      %v1889 = vmul.f32 %v1591, %v1870
      %v1890 = vmul.f32 %v1594, %v1870
      %v1891 = vmul.f32 %v1596, %v1870
      %v1892 = vmul.f32 %v1599, %v1870
      %v1893 = vmul.f32 %v1601, %v1870
      %v1894 = vmul.f32 %v1604, %v1870
      %v1895 = vmul.f32 %v1606, %v1870
      %v1896 = vmul.f32 %v1609, %v1870
      %v1897 = vmul.f32 %v1611, %v1870
      %v1898 = vmul.f32 %v1614, %v1870
      %v1899 = vmul.f32 %v1616, %v1870
      %v1900 = vmul.f32 %v1619, %v1870
      %v1901 = vmul.f32 %v1621, %v1870
      %v1902 = vmul.f32 %v1624, %v1870
      %v1903 = vmul.f32 %v1626, %v1870
      %v1904 = vmul.f32 %v1629, %v1870
      %v1905 = vmul.f32 %v1631, %v1870
      %v1906 = vmul.f32 %v1634, %v1870
      %v1907 = vmul.f32 %v1636, %v1870
      %v1908 = vmul.f32 %v1639, %v1870
      %v1909 = vmul.f32 %v1641, %v1870
      %v1910 = vmul.f32 %v1644, %v1870
      %v1911 = vmul.f32 %v1646, %v1870
      %v1912 = vmul.f32 %v1649, %v1870
      %v1913 = vmul.f32 %v1651, %v1870
      %v1914 = vmul.f32 %v1654, %v1870
      %v1915 = vmul.f32 %v1656, %v1870
      %v1916 = vmul.f32 %v1659, %v1870
      %v1917 = vmul.f32 %v1661, %v1870
      %v1918 = vmul.f32 %v1664, %v1870
      %v1919 = vmul.f32 %v1666, %v1870
      %v1920 = vmul.f32 %v1669, %v1870
      %v1921 = vmul.f32 %v1671, %v1870
      %v1922 = vmul.f32 %v1674, %v1870
      %v1923 = vmul.f32 %v1676, %v1870
      %v1924 = vmul.f32 %v1679, %v1870
      %v1925 = vmul.f32 %v1681, %v1870
      %v1926 = vmul.f32 %v1684, %v1870
      %v1927 = vmul.f32 %v1686, %v1870
      %v1928 = vmul.f32 %v1689, %v1870
      %v1929 = vmul.f32 %v1691, %v1870
      %v1930 = vmul.f32 %v1694, %v1870
      %v1931 = vmul.f32 %v1696, %v1870
      %v1932 = vmul.f32 %v1699, %v1870
      %v1933 = vmul.f32 %v1701, %v1870
      %v1934 = vmul.f32 %v1704, %v1870
      %v1935 = vmul.f32 %v1706, %v1870
      %v1936 = vmul.f32 %v1709, %v1870
      %v1937 = vmul.f32 %v1711, %v1870
      %v1938 = vmul.f32 %v1714, %v1870
      %v1939 = vmul.f32 %v1716, %v1870
      %v1940 = vmul.f32 %v1719, %v1870
      %v1941 = vmul.f32 %v1721, %v1870
      %v1942 = vmul.f32 %v1724, %v1870
      %v1943 = vmul.f32 %v1726, %v1870
      %v1944 = vmul.f32 %v1729, %v1870
      %v1945 = vmul.f32 %v1731, %v1870
      %v1946 = vmul.f32 %v1734, %v1870
      %v1947 = vmul.f32 %v1736, %v1870
      %v1948 = vmul.f32 %v1739, %v1870
      %v1949 = vmul.f32 %v1741, %v1870
      %v1950 = vmul.f32 %v1744, %v1870
      %v1951 = vmul.f32 %v1746, %v1870
      %v1952 = vmul.f32 %v1749, %v1870
      %v1953 = vmul.f32 %v1751, %v1870
      %v1954 = vmul.f32 %v1754, %v1870
      %v1955 = vmul.f32 %v1756, %v1870
      %v1956 = vmul.f32 %v1759, %v1870
      %v1957 = vmul.f32 %v1761, %v1870
      %v1958 = vmul.f32 %v1764, %v1870
      %v1959 = vmul.f32 %v1766, %v1870
      %v1960 = vmul.f32 %v1769, %v1870
      %v1961 = vmul.f32 %v1771, %v1870
      %v1962 = vmul.f32 %v1774, %v1870
      %v1963 = vmul.f32 %v1776, %v1870
      %v1964 = vmul.f32 %v1779, %v1870
      %v1965 = vmul.f32 %v1781, %v1870
      %v1966 = vmul.f32 %v1784, %v1870
      %v1967 = vmul.f32 %v1786, %v1870
      %v1968 = vmul.f32 %v1789, %v1870
      %v1969 = vmul.f32 %v1791, %v1870
      %v1970 = vmul.f32 %v1794, %v1870
      %v1971 = vmul.f32 %v1796, %v1870
      %v1972 = vmul.f32 %v1799, %v1870
      %v1973 = vmul.f32 %v1801, %v1870
      %v1974 = vmul.f32 %v1804, %v1870
      %v1975 = vmul.f32 %v1806, %v1870
      %v1976 = vmul.f32 %v1809, %v1870
      %v1977 = vmul.f32 %v1811, %v1870
      %v1978 = vmul.f32 %v1814, %v1870
      %v1979 = vmul.f32 %v1816, %v1870
      %v1980 = vmul.f32 %v1819, %v1870
      %v1981 = vmul.f32 %v1821, %v1870
      %v1982 = vmul.f32 %v1824, %v1870
      %v1983 = vmul.f32 %v1826, %v1870
      %v1984 = vmul.f32 %v1829, %v1870
      %v1985 = vmul.f32 %v1831, %v1870
      %v1986 = vmul.f32 %v1834, %v1870
      %v1987 = vmul.f32 %v1836, %v1870
      %v1988 = vmul.f32 %v1839, %v1870
      %v1989 = vmul.f32 %v1841, %v1870
      %v1990 = vmul.f32 %v1844, %v1870
      %v1991 = vmul.f32 %v1846, %v1870
      %v1992 = vmul.f32 %v1849, %v1870
      %v1993 = vmul.f32 %v1851, %v1870
      %v1994 = vmul.f32 %v1854, %v1870
      %v1995 = vmul.f32 %v1856, %v1870
      %v1996 = vmul.f32 %v1859, %v1870
      %v1997 = vmul.f32 %v1861, %v1870
      %v1998 = vmul.f32 %v1864, %v1870
      %v1999 = vmul.f32 %v1866, %v1870
      %v2000 = vld [vmem:[%s300] sm:$0x1]
      %v2002 = vperm.slane %v2000, 0
      %v2004 = vadd.f32 %v1872, %v2002
      %v2005 = vadd.f32 %v1873, %v2002
      %v2006 = vadd.f32 %v1874, %v2002
      %v2007 = vadd.f32 %v1875, %v2002
      %v2008 = vadd.f32 %v1876, %v2002
      %v2009 = vadd.f32 %v1877, %v2002
      %v2010 = vadd.f32 %v1878, %v2002
      %v2011 = vadd.f32 %v1879, %v2002
      %v2012 = vadd.f32 %v1880, %v2002
      %v2013 = vadd.f32 %v1881, %v2002
      %v2014 = vadd.f32 %v1882, %v2002
      %v2015 = vadd.f32 %v1883, %v2002
      %v2016 = vadd.f32 %v1884, %v2002
      %v2017 = vadd.f32 %v1885, %v2002
      %v2018 = vadd.f32 %v1886, %v2002
      %v2019 = vadd.f32 %v1887, %v2002
      %v2020 = vadd.f32 %v1888, %v2002
      %v2021 = vadd.f32 %v1889, %v2002
      %v2022 = vadd.f32 %v1890, %v2002
      %v2023 = vadd.f32 %v1891, %v2002
      %v2024 = vadd.f32 %v1892, %v2002
      %v2025 = vadd.f32 %v1893, %v2002
      %v2026 = vadd.f32 %v1894, %v2002
      %v2027 = vadd.f32 %v1895, %v2002
      %v2028 = vadd.f32 %v1896, %v2002
      %v2029 = vadd.f32 %v1897, %v2002
      %v2030 = vadd.f32 %v1898, %v2002
      %v2031 = vadd.f32 %v1899, %v2002
      %v2032 = vadd.f32 %v1900, %v2002
      %v2033 = vadd.f32 %v1901, %v2002
      %v2034 = vadd.f32 %v1902, %v2002
      %v2035 = vadd.f32 %v1903, %v2002
      %v2036 = vadd.f32 %v1904, %v2002
      %v2037 = vadd.f32 %v1905, %v2002
      %v2038 = vadd.f32 %v1906, %v2002
      %v2039 = vadd.f32 %v1907, %v2002
      %v2040 = vadd.f32 %v1908, %v2002
      %v2041 = vadd.f32 %v1909, %v2002
      %v2042 = vadd.f32 %v1910, %v2002
      %v2043 = vadd.f32 %v1911, %v2002
      %v2044 = vadd.f32 %v1912, %v2002
      %v2045 = vadd.f32 %v1913, %v2002
      %v2046 = vadd.f32 %v1914, %v2002
      %v2047 = vadd.f32 %v1915, %v2002
      %v2048 = vadd.f32 %v1916, %v2002
      %v2049 = vadd.f32 %v1917, %v2002
      %v2050 = vadd.f32 %v1918, %v2002
      %v2051 = vadd.f32 %v1919, %v2002
      %v2052 = vadd.f32 %v1920, %v2002
      %v2053 = vadd.f32 %v1921, %v2002
      %v2054 = vadd.f32 %v1922, %v2002
      %v2055 = vadd.f32 %v1923, %v2002
      %v2056 = vadd.f32 %v1924, %v2002
      %v2057 = vadd.f32 %v1925, %v2002
      %v2058 = vadd.f32 %v1926, %v2002
      %v2059 = vadd.f32 %v1927, %v2002
      %v2060 = vadd.f32 %v1928, %v2002
      %v2061 = vadd.f32 %v1929, %v2002
      %v2062 = vadd.f32 %v1930, %v2002
      %v2063 = vadd.f32 %v1931, %v2002
      %v2064 = vadd.f32 %v1932, %v2002
      %v2065 = vadd.f32 %v1933, %v2002
      %v2066 = vadd.f32 %v1934, %v2002
      %v2067 = vadd.f32 %v1935, %v2002
      %v2068 = vadd.f32 %v1936, %v2002
      %v2069 = vadd.f32 %v1937, %v2002
      %v2070 = vadd.f32 %v1938, %v2002
      %v2071 = vadd.f32 %v1939, %v2002
      %v2072 = vadd.f32 %v1940, %v2002
      %v2073 = vadd.f32 %v1941, %v2002
      %v2074 = vadd.f32 %v1942, %v2002
      %v2075 = vadd.f32 %v1943, %v2002
      %v2076 = vadd.f32 %v1944, %v2002
      %v2077 = vadd.f32 %v1945, %v2002
      %v2078 = vadd.f32 %v1946, %v2002
      %v2079 = vadd.f32 %v1947, %v2002
      %v2080 = vadd.f32 %v1948, %v2002
      %v2081 = vadd.f32 %v1949, %v2002
      %v2082 = vadd.f32 %v1950, %v2002
      %v2083 = vadd.f32 %v1951, %v2002
      %v2084 = vadd.f32 %v1952, %v2002
      %v2085 = vadd.f32 %v1953, %v2002
      %v2086 = vadd.f32 %v1954, %v2002
      %v2087 = vadd.f32 %v1955, %v2002
      %v2088 = vadd.f32 %v1956, %v2002
      %v2089 = vadd.f32 %v1957, %v2002
      %v2090 = vadd.f32 %v1958, %v2002
      %v2091 = vadd.f32 %v1959, %v2002
      %v2092 = vadd.f32 %v1960, %v2002
      %v2093 = vadd.f32 %v1961, %v2002
      %v2094 = vadd.f32 %v1962, %v2002
      %v2095 = vadd.f32 %v1963, %v2002
      %v2096 = vadd.f32 %v1964, %v2002
      %v2097 = vadd.f32 %v1965, %v2002
      %v2098 = vadd.f32 %v1966, %v2002
      %v2099 = vadd.f32 %v1967, %v2002
      %v2100 = vadd.f32 %v1968, %v2002
      %v2101 = vadd.f32 %v1969, %v2002
      %v2102 = vadd.f32 %v1970, %v2002
      %v2103 = vadd.f32 %v1971, %v2002
      %v2104 = vadd.f32 %v1972, %v2002
      %v2105 = vadd.f32 %v1973, %v2002
      %v2106 = vadd.f32 %v1974, %v2002
      %v2107 = vadd.f32 %v1975, %v2002
      %v2108 = vadd.f32 %v1976, %v2002
      %v2109 = vadd.f32 %v1977, %v2002
      %v2110 = vadd.f32 %v1978, %v2002
      %v2111 = vadd.f32 %v1979, %v2002
      %v2112 = vadd.f32 %v1980, %v2002
      %v2113 = vadd.f32 %v1981, %v2002
      %v2114 = vadd.f32 %v1982, %v2002
      %v2115 = vadd.f32 %v1983, %v2002
      %v2116 = vadd.f32 %v1984, %v2002
      %v2117 = vadd.f32 %v1985, %v2002
      %v2118 = vadd.f32 %v1986, %v2002
      %v2119 = vadd.f32 %v1987, %v2002
      %v2120 = vadd.f32 %v1988, %v2002
      %v2121 = vadd.f32 %v1989, %v2002
      %v2122 = vadd.f32 %v1990, %v2002
      %v2123 = vadd.f32 %v1991, %v2002
      %v2124 = vadd.f32 %v1992, %v2002
      %v2125 = vadd.f32 %v1993, %v2002
      %v2126 = vadd.f32 %v1994, %v2002
      %v2127 = vadd.f32 %v1995, %v2002
      %v2128 = vadd.f32 %v1996, %v2002
      %v2129 = vadd.f32 %v1997, %v2002
      %v2130 = vadd.f32 %v1998, %v2002
      %v2131 = vadd.f32 %v1999, %v2002
      %v2132 = vtanh.pop %v2004
      %v2133 = vtanh.pop %v2005
      %v2134 = vtanh.pop %v2006
      %v2135 = vtanh.pop %v2007
      %v2136 = vtanh.pop %v2008
      %v2137 = vtanh.pop %v2009
      %v2138 = vtanh.pop %v2010
      %v2139 = vtanh.pop %v2011
      %v2140 = vtanh.pop %v2012
      %v2141 = vtanh.pop %v2013
      %v2142 = vtanh.pop %v2014
      %v2143 = vtanh.pop %v2015
      %v2144 = vtanh.pop %v2016
      %v2145 = vtanh.pop %v2017
      %v2146 = vtanh.pop %v2018
      %v2147 = vtanh.pop %v2019
      %v2148 = vtanh.pop %v2020
      %v2149 = vtanh.pop %v2021
      %v2150 = vtanh.pop %v2022
      %v2151 = vtanh.pop %v2023
      %v2152 = vtanh.pop %v2024
      %v2153 = vtanh.pop %v2025
      %v2154 = vtanh.pop %v2026
      %v2155 = vtanh.pop %v2027
      %v2156 = vtanh.pop %v2028
      %v2157 = vtanh.pop %v2029
      %v2158 = vtanh.pop %v2030
      %v2159 = vtanh.pop %v2031
      %v2160 = vtanh.pop %v2032
      %v2161 = vtanh.pop %v2033
      %v2162 = vtanh.pop %v2034
      %v2163 = vtanh.pop %v2035
      %v2164 = vtanh.pop %v2036
      %v2165 = vtanh.pop %v2037
      %v2166 = vtanh.pop %v2038
      %v2167 = vtanh.pop %v2039
      %v2168 = vtanh.pop %v2040
      %v2169 = vtanh.pop %v2041
      %v2170 = vtanh.pop %v2042
      %v2171 = vtanh.pop %v2043
      %v2172 = vtanh.pop %v2044
      %v2173 = vtanh.pop %v2045
      %v2174 = vtanh.pop %v2046
      %v2175 = vtanh.pop %v2047
      %v2176 = vtanh.pop %v2048
      %v2177 = vtanh.pop %v2049
      %v2178 = vtanh.pop %v2050
      %v2179 = vtanh.pop %v2051
      %v2180 = vtanh.pop %v2052
      %v2181 = vtanh.pop %v2053
      %v2182 = vtanh.pop %v2054
      %v2183 = vtanh.pop %v2055
      %v2184 = vtanh.pop %v2056
      %v2185 = vtanh.pop %v2057
      %v2186 = vtanh.pop %v2058
      %v2187 = vtanh.pop %v2059
      %v2188 = vtanh.pop %v2060
      %v2189 = vtanh.pop %v2061
      %v2190 = vtanh.pop %v2062
      %v2191 = vtanh.pop %v2063
      %v2192 = vtanh.pop %v2064
      %v2193 = vtanh.pop %v2065
      %v2194 = vtanh.pop %v2066
      %v2195 = vtanh.pop %v2067
      %v2196 = vtanh.pop %v2068
      %v2197 = vtanh.pop %v2069
      %v2198 = vtanh.pop %v2070
      %v2199 = vtanh.pop %v2071
      %v2200 = vtanh.pop %v2072
      %v2201 = vtanh.pop %v2073
      %v2202 = vtanh.pop %v2074
      %v2203 = vtanh.pop %v2075
      %v2204 = vtanh.pop %v2076
      %v2205 = vtanh.pop %v2077
      %v2206 = vtanh.pop %v2078
      %v2207 = vtanh.pop %v2079
      %v2208 = vtanh.pop %v2080
      %v2209 = vtanh.pop %v2081
      %v2210 = vtanh.pop %v2082
      %v2211 = vtanh.pop %v2083
      %v2212 = vtanh.pop %v2084
      %v2213 = vtanh.pop %v2085
      %v2214 = vtanh.pop %v2086
      %v2215 = vtanh.pop %v2087
      %v2216 = vtanh.pop %v2088
      %v2217 = vtanh.pop %v2089
      %v2218 = vtanh.pop %v2090
      %v2219 = vtanh.pop %v2091
      %v2220 = vtanh.pop %v2092
      %v2221 = vtanh.pop %v2093
      %v2222 = vtanh.pop %v2094
      %v2223 = vtanh.pop %v2095
      %v2224 = vtanh.pop %v2096
      %v2225 = vtanh.pop %v2097
      %v2226 = vtanh.pop %v2098
      %v2227 = vtanh.pop %v2099
      %v2228 = vtanh.pop %v2100
      %v2229 = vtanh.pop %v2101
      %v2230 = vtanh.pop %v2102
      %v2231 = vtanh.pop %v2103
      %v2232 = vtanh.pop %v2104
      %v2233 = vtanh.pop %v2105
      %v2234 = vtanh.pop %v2106
      %v2235 = vtanh.pop %v2107
      %v2236 = vtanh.pop %v2108
      %v2237 = vtanh.pop %v2109
      %v2238 = vtanh.pop %v2110
      %v2239 = vtanh.pop %v2111
      %v2240 = vtanh.pop %v2112
      %v2241 = vtanh.pop %v2113
      %v2242 = vtanh.pop %v2114
      %v2243 = vtanh.pop %v2115
      %v2244 = vtanh.pop %v2116
      %v2245 = vtanh.pop %v2117
      %v2246 = vtanh.pop %v2118
      %v2247 = vtanh.pop %v2119
      %v2248 = vtanh.pop %v2120
      %v2249 = vtanh.pop %v2121
      %v2250 = vtanh.pop %v2122
      %v2251 = vtanh.pop %v2123
      %v2252 = vtanh.pop %v2124
      %v2253 = vtanh.pop %v2125
      %v2254 = vtanh.pop %v2126
      %v2255 = vtanh.pop %v2127
      %v2256 = vtanh.pop %v2128
      %v2257 = vtanh.pop %v2129
      %v2258 = vtanh.pop %v2130
      %v2259 = vtanh.pop %v2131
      %2260 = vst [vmem:[%s312] sm:$0xff] %v2132
      %2261 = vst [vmem:[%s312 + $0x8] sm:$0xff] %v2133
      %2262 = vst [vmem:[%s312 + $0x10] sm:$0xff] %v2134
      %2263 = vst [vmem:[%s312 + $0x18] sm:$0xff] %v2135
      %2264 = vst [vmem:[%s312 + $0x20] sm:$0xff] %v2136
      %2265 = vst [vmem:[%s312 + $0x28] sm:$0xff] %v2137
      %2266 = vst [vmem:[%s312 + $0x30] sm:$0xff] %v2138
      %2267 = vst [vmem:[%s312 + $0x38] sm:$0xff] %v2139
      %2268 = vst [vmem:[%s312 + $0x40] sm:$0xff] %v2140
      %2269 = vst [vmem:[%s312 + $0x48] sm:$0xff] %v2141
      %2270 = vst [vmem:[%s312 + $0x50] sm:$0xff] %v2142
      %2271 = vst [vmem:[%s312 + $0x58] sm:$0xff] %v2143
      %2272 = vst [vmem:[%s312 + $0x60] sm:$0xff] %v2144
      %2273 = vst [vmem:[%s312 + $0x68] sm:$0xff] %v2145
      %2274 = vst [vmem:[%s312 + $0x70] sm:$0xff] %v2146
      %2275 = vst [vmem:[%s312 + $0x78] sm:$0xff] %v2147
      %2276 = vst [vmem:[%s312 + $0x80] sm:$0xff] %v2148
      %2277 = vst [vmem:[%s312 + $0x88] sm:$0xff] %v2149
      %2278 = vst [vmem:[%s312 + $0x90] sm:$0xff] %v2150
      %2279 = vst [vmem:[%s312 + $0x98] sm:$0xff] %v2151
      %2280 = vst [vmem:[%s312 + $0xa0] sm:$0xff] %v2152
      %2281 = vst [vmem:[%s312 + $0xa8] sm:$0xff] %v2153
      %2282 = vst [vmem:[%s312 + $0xb0] sm:$0xff] %v2154
      %2283 = vst [vmem:[%s312 + $0xb8] sm:$0xff] %v2155
      %2284 = vst [vmem:[%s312 + $0xc0] sm:$0xff] %v2156
      %2285 = vst [vmem:[%s312 + $0xc8] sm:$0xff] %v2157
      %2286 = vst [vmem:[%s312 + $0xd0] sm:$0xff] %v2158
      %2287 = vst [vmem:[%s312 + $0xd8] sm:$0xff] %v2159
      %2288 = vst [vmem:[%s312 + $0xe0] sm:$0xff] %v2160
      %2289 = vst [vmem:[%s312 + $0xe8] sm:$0xff] %v2161
      %2290 = vst [vmem:[%s312 + $0xf0] sm:$0xff] %v2162
      %2291 = vst [vmem:[%s312 + $0xf8] sm:$0xff] %v2163
      %2292 = vst [vmem:[%s312 + $0x100] sm:$0xff] %v2164
      %2293 = vst [vmem:[%s312 + $0x108] sm:$0xff] %v2165
      %2294 = vst [vmem:[%s312 + $0x110] sm:$0xff] %v2166
      %2295 = vst [vmem:[%s312 + $0x118] sm:$0xff] %v2167
      %2296 = vst [vmem:[%s312 + $0x120] sm:$0xff] %v2168
      %2297 = vst [vmem:[%s312 + $0x128] sm:$0xff] %v2169
      %2298 = vst [vmem:[%s312 + $0x130] sm:$0xff] %v2170
      %2299 = vst [vmem:[%s312 + $0x138] sm:$0xff] %v2171
      %2300 = vst [vmem:[%s312 + $0x140] sm:$0xff] %v2172
      %2301 = vst [vmem:[%s312 + $0x148] sm:$0xff] %v2173
      %2302 = vst [vmem:[%s312 + $0x150] sm:$0xff] %v2174
      %2303 = vst [vmem:[%s312 + $0x158] sm:$0xff] %v2175
      %2304 = vst [vmem:[%s312 + $0x160] sm:$0xff] %v2176
      %2305 = vst [vmem:[%s312 + $0x168] sm:$0xff] %v2177
      %2306 = vst [vmem:[%s312 + $0x170] sm:$0xff] %v2178
      %2307 = vst [vmem:[%s312 + $0x178] sm:$0xff] %v2179
      %2308 = vst [vmem:[%s312 + $0x180] sm:$0xff] %v2180
      %2309 = vst [vmem:[%s312 + $0x188] sm:$0xff] %v2181
      %2310 = vst [vmem:[%s312 + $0x190] sm:$0xff] %v2182
      %2311 = vst [vmem:[%s312 + $0x198] sm:$0xff] %v2183
      %2312 = vst [vmem:[%s312 + $0x1a0] sm:$0xff] %v2184
      %2313 = vst [vmem:[%s312 + $0x1a8] sm:$0xff] %v2185
      %2314 = vst [vmem:[%s312 + $0x1b0] sm:$0xff] %v2186
      %2315 = vst [vmem:[%s312 + $0x1b8] sm:$0xff] %v2187
      %2316 = vst [vmem:[%s312 + $0x1c0] sm:$0xff] %v2188
      %2317 = vst [vmem:[%s312 + $0x1c8] sm:$0xff] %v2189
      %2318 = vst [vmem:[%s312 + $0x1d0] sm:$0xff] %v2190
      %2319 = vst [vmem:[%s312 + $0x1d8] sm:$0xff] %v2191
      %2320 = vst [vmem:[%s312 + $0x1e0] sm:$0xff] %v2192
      %2321 = vst [vmem:[%s312 + $0x1e8] sm:$0xff] %v2193
      %2322 = vst [vmem:[%s312 + $0x1f0] sm:$0xff] %v2194
      %2323 = vst [vmem:[%s312 + $0x1f8] sm:$0xff] %v2195
      %2324 = vst [vmem:[%s312 + $0x200] sm:$0xff] %v2196
      %2325 = vst [vmem:[%s312 + $0x208] sm:$0xff] %v2197
      %2326 = vst [vmem:[%s312 + $0x210] sm:$0xff] %v2198
      %2327 = vst [vmem:[%s312 + $0x218] sm:$0xff] %v2199
      %2328 = vst [vmem:[%s312 + $0x220] sm:$0xff] %v2200
      %2329 = vst [vmem:[%s312 + $0x228] sm:$0xff] %v2201
      %2330 = vst [vmem:[%s312 + $0x230] sm:$0xff] %v2202
      %2331 = vst [vmem:[%s312 + $0x238] sm:$0xff] %v2203
      %2332 = vst [vmem:[%s312 + $0x240] sm:$0xff] %v2204
      %2333 = vst [vmem:[%s312 + $0x248] sm:$0xff] %v2205
      %2334 = vst [vmem:[%s312 + $0x250] sm:$0xff] %v2206
      %2335 = vst [vmem:[%s312 + $0x258] sm:$0xff] %v2207
      %2336 = vst [vmem:[%s312 + $0x260] sm:$0xff] %v2208
      %2337 = vst [vmem:[%s312 + $0x268] sm:$0xff] %v2209
      %2338 = vst [vmem:[%s312 + $0x270] sm:$0xff] %v2210
      %2339 = vst [vmem:[%s312 + $0x278] sm:$0xff] %v2211
      %2340 = vst [vmem:[%s312 + $0x280] sm:$0xff] %v2212
      %2341 = vst [vmem:[%s312 + $0x288] sm:$0xff] %v2213
      %2342 = vst [vmem:[%s312 + $0x290] sm:$0xff] %v2214
      %2343 = vst [vmem:[%s312 + $0x298] sm:$0xff] %v2215
      %2344 = vst [vmem:[%s312 + $0x2a0] sm:$0xff] %v2216
      %2345 = vst [vmem:[%s312 + $0x2a8] sm:$0xff] %v2217
      %2346 = vst [vmem:[%s312 + $0x2b0] sm:$0xff] %v2218
      %2347 = vst [vmem:[%s312 + $0x2b8] sm:$0xff] %v2219
      %2348 = vst [vmem:[%s312 + $0x2c0] sm:$0xff] %v2220
      %2349 = vst [vmem:[%s312 + $0x2c8] sm:$0xff] %v2221
      %2350 = vst [vmem:[%s312 + $0x2d0] sm:$0xff] %v2222
      %2351 = vst [vmem:[%s312 + $0x2d8] sm:$0xff] %v2223
      %2352 = vst [vmem:[%s312 + $0x2e0] sm:$0xff] %v2224
      %2353 = vst [vmem:[%s312 + $0x2e8] sm:$0xff] %v2225
      %2354 = vst [vmem:[%s312 + $0x2f0] sm:$0xff] %v2226
      %2355 = vst [vmem:[%s312 + $0x2f8] sm:$0xff] %v2227
      %2356 = vst [vmem:[%s312 + $0x300] sm:$0xff] %v2228
      %2357 = vst [vmem:[%s312 + $0x308] sm:$0xff] %v2229
      %2358 = vst [vmem:[%s312 + $0x310] sm:$0xff] %v2230
      %2359 = vst [vmem:[%s312 + $0x318] sm:$0xff] %v2231
      %2360 = vst [vmem:[%s312 + $0x320] sm:$0xff] %v2232
      %2361 = vst [vmem:[%s312 + $0x328] sm:$0xff] %v2233
      %2362 = vst [vmem:[%s312 + $0x330] sm:$0xff] %v2234
      %2363 = vst [vmem:[%s312 + $0x338] sm:$0xff] %v2235
      %2364 = vst [vmem:[%s312 + $0x340] sm:$0xff] %v2236
      %2365 = vst [vmem:[%s312 + $0x348] sm:$0xff] %v2237
      %2366 = vst [vmem:[%s312 + $0x350] sm:$0xff] %v2238
      %2367 = vst [vmem:[%s312 + $0x358] sm:$0xff] %v2239
      %2368 = vst [vmem:[%s312 + $0x360] sm:$0xff] %v2240
      %2369 = vst [vmem:[%s312 + $0x368] sm:$0xff] %v2241
      %2370 = vst [vmem:[%s312 + $0x370] sm:$0xff] %v2242
      %2371 = vst [vmem:[%s312 + $0x378] sm:$0xff] %v2243
      %2372 = vst [vmem:[%s312 + $0x380] sm:$0xff] %v2244
      %2373 = vst [vmem:[%s312 + $0x388] sm:$0xff] %v2245
      %2374 = vst [vmem:[%s312 + $0x390] sm:$0xff] %v2246
      %2375 = vst [vmem:[%s312 + $0x398] sm:$0xff] %v2247
      %2376 = vst [vmem:[%s312 + $0x3a0] sm:$0xff] %v2248
      %2377 = vst [vmem:[%s312 + $0x3a8] sm:$0xff] %v2249
      %2378 = vst [vmem:[%s312 + $0x3b0] sm:$0xff] %v2250
      %2379 = vst [vmem:[%s312 + $0x3b8] sm:$0xff] %v2251
      %2380 = vst [vmem:[%s312 + $0x3c0] sm:$0xff] %v2252
      %2381 = vst [vmem:[%s312 + $0x3c8] sm:$0xff] %v2253
      %2382 = vst [vmem:[%s312 + $0x3d0] sm:$0xff] %v2254
      %2383 = vst [vmem:[%s312 + $0x3d8] sm:$0xff] %v2255
      %2384 = vst [vmem:[%s312 + $0x3e0] sm:$0xff] %v2256
      %2385 = vst [vmem:[%s312 + $0x3e8] sm:$0xff] %v2257
      %2386 = vst [vmem:[%s312 + $0x3f0] sm:$0xff] %v2258
      %2387 = vst [vmem:[%s312 + $0x3f8] sm:$0xff] %v2259
      %s2388 = smul.u32 128, %s21
      %p2389 = scmp.lt.s32.totalorder %s20, 3
      %s2390 = scalar_select %p2389, %s20, 3
      %p2391 = scmp.lt.s32.totalorder %s2388, 255
      %s2392 = scalar_select %p2391, %s2388, 255
      %p2393 = scmp.lt.s32.totalorder %s22, 0
      %s2394 = scalar_select %p2393, %s22, 0
      %s2395 = sadd.s32 %s2394, %s2392
      %s2396 = smul.addr %s2390, 256
      %s2397 = sadd.s32 %s2395, %s2396
      %s2398 = smul.addr %s2397, 8
      %s2399 = scalar_lea.vmem %s4, %s2398
      // Predicated region
      $region37: #{_lambda_.9} parent=35 // pred_check
        %p2400 = pneg %p164
      $region38: #{_lambda_.9} parent=35 // pred_check_branch
        %2402 = sbr.rel (%p2400) target = $region40
      $region39: #{_lambda_.9} parent=35 // pred_region
        %s2403 = smul.u32 128, %s21
      $region40: #{_lambda_.9} parent=35 // pred_fallthru
        _
    $region36: #{_lambda_.9} parent=5 // pred_fallthru
      _
    %p2404 = scmp.le.s32.totalorder 2, %s10
    // Predicated region
    $region41: #{_lambda_.9} parent=5 // pred_check
      %p2405 = pneg %p2404
    $region42: #{_lambda_.9} parent=5 // pred_check_branch
      %2407 = sbr.rel (%p2405) target = $region44
    $region43: #{_lambda_.9} parent=5 // pred_region
      %s2408 = ssub.s32 %s10, 2
      // Predicated region
      $region45: #{_lambda_.9} parent=43 // pred_check
        %p2409 = pneg %p170
      $region46: #{_lambda_.9} parent=43 // pred_check_branch
        %2411 = sbr.rel (%p2409) target = $region48
      $region47: #{_lambda_.9} parent=43 // pred_region
        %s2412 = smul.u32 128, %s24
        %p2413 = scmp.lt.s32.totalorder %s23, 3
        %s2414 = scalar_select %p2413, %s23, 3
        %p2415 = scmp.lt.s32.totalorder %s2412, 255
        %s2416 = scalar_select %p2415, %s2412, 255
        %p2417 = scmp.lt.s32.totalorder %s25, 0
        %s2418 = scalar_select %p2417, %s25, 0
        %s2419 = sadd.s32 %s2418, %s2416
        %s2420 = smul.addr %s2414, 256
        %s2421 = sadd.s32 %s2419, %s2420
        %s2422 = smul.addr %s2421, 8
        %s2423 = scalar_lea.vmem %s4, %s2422
      $region48: #{_lambda_.9} parent=43 // pred_fallthru
        _
    $region44: #{_lambda_.9} parent=5 // pred_fallthru
      _
  $region6: #{_lambda_.9} parent=0 // loop_footer
    %s14 = sadd.s32 1, %s10
  $region7: #{_lambda_.9} parent=0 // loop_footer_branch
    %9 = sbr.rel target = $region3
  $region8: #{_lambda_.9} parent=0 // loop_exit
    _

</llo_original>
